<compile_context>
chip_gen: v7x
topology: tpu7x:2x2x1
jax: 0.10.0
libtpu: 0.0.40
codegen_flags: <defaults>
</compile_context>

<pallas_src>
import functools

import jax
import jax.numpy as jnp
from jax.experimental import pallas as pl
from jax.experimental.pallas import tpu as pltpu

EMB_DIM = 768          # hardcoded in the module (reshape(-1, 768))
HIDDEN = 300           # student_hidden_size default
HIDDEN_PAD = 384       # 3 * 128, lane-aligned padded hidden width
PRED_HIDDEN = 64       # width of the synthetic prediction head
PRED_PAD = 128         # lane-aligned padded head width
REWARD_SCALE = 1000.0


def _critic_kernel(acts_ref, h0_ref, c0_ref, wih_ref, bias_ref,
                   whh_hbm, kc_hbm, wph_hbm, wpq_hbm,
                   b1_ref, w2_ref, b2_ref,
                   out_ref,
                   whh_buf, kc_buf, wph_buf, wpq_buf, sem,
                   *, n_resp, batch, seq_len):
    B = batch
    T = seq_len
    R = n_resp                       # responses handled by this grid point (1|2)
    Hp = whh_buf.shape[0]
    G = 4 * Hp
    RB = R * B

    # --- start the weight DMAs that are NOT needed by the input projection ---
    # They overlap the input projection (whh) and the LSTM rollout (head wts).
    cps = [
        pltpu.make_async_copy(whh_hbm, whh_buf, sem.at[0]),
        pltpu.make_async_copy(kc_hbm, kc_buf, sem.at[1]),
        pltpu.make_async_copy(wph_hbm, wph_buf, sem.at[2]),
        pltpu.make_async_copy(wpq_hbm, wpq_buf, sem.at[3]),
    ]
    for cp in cps:
        cp.start()

    # --- input projection, hoisted off the recurrence ------------------------
    # acts_ref holds [actions (T*B rows) ; correctness table (2 rows)], so the
    # correctness projection rides the same wide MXU op.
    proj = jnp.dot(acts_ref[...], wih_ref[...],
                   preferred_element_type=jnp.float32)         # (T*B + 2, G)
    act_proj = proj[:T * B, :].reshape(T, B, G)                # time-major
    corr_proj = proj[T * B:, :]                                # (2, G)
    bias = bias_ref[...]                                       # (1, G)

    if R == 2:
        # fused: rows [0,B) -> response 0, [B,2B) -> response 1
        crows = jnp.concatenate(
            [jnp.broadcast_to(corr_proj[0:1, :] + bias, (B, G)),
             jnp.broadcast_to(corr_proj[1:2, :] + bias, (B, G))], axis=0)
    else:
        # split (one response per grid point / TensorCore): arithmetic blend on
        # program_id keeps the row select a cheap scalar*vector op.
        rf = pl.program_id(0).astype(jnp.float32)
        row = corr_proj[0:1, :] * (1.0 - rf) + corr_proj[1:2, :] * rf + bias
        crows = jnp.broadcast_to(row, (B, G))                  # (B, G)

    h = h0_ref[...].reshape(RB, Hp)                            # f32, pads zero
    c = c0_ref[...].reshape(RB, Hp)

    # --- LSTM rollout; stacked-gate matmul; whh DMA overlapped above ---------
    cps[0].wait()
    whh = whh_buf[...]
    # TODO(synk): switch to lax.fori_loop(..., unroll=True) carrying (h, c) if
    # T grows beyond ~8 to bound live ranges.
    for t in range(T):
        a_t = act_proj[t]                                      # (B, G)
        if R == 2:
            pre_t = jnp.concatenate([a_t, a_t], axis=0) + crows
        else:
            pre_t = a_t + crows
        gates = pre_t + jnp.dot(h.astype(jnp.bfloat16), whh,
                                preferred_element_type=jnp.float32)  # (RB, G)
        i_g = jax.nn.sigmoid(gates[:, 0 * Hp:1 * Hp])
        f_g = jax.nn.sigmoid(gates[:, 1 * Hp:2 * Hp])
        g_g = jnp.tanh(gates[:, 2 * Hp:3 * Hp])
        o_g = jax.nn.sigmoid(gates[:, 3 * Hp:4 * Hp])
        c = f_g * c + i_g * g_g
        h = o_g * jnp.tanh(c)          # lstm_out[:, -1, :] == final h

    # --- prediction head (head weight DMAs overlapped with the LSTM) ---------
    # TODO(synk): the pretrained prediction_layer architecture is not given; a
    # deterministic 2-layer MLP pred(h,q)=sigmoid(relu(hWh+qWq+b1)@w2+b2) is
    # used as a synthetic stand-in (matches the pure-JAX reference below).
    cps[1].wait()
    cps[2].wait()
    cps[3].wait()
    kc = kc_buf[...]                   # (C, D) bf16
    C = kc.shape[0]
    h_proj = jnp.dot(h.astype(jnp.bfloat16), wph_buf[...],
                     preferred_element_type=jnp.float32)       # (RB, Pp)
    q_proj = jnp.dot(kc, wpq_buf[...],
                     preferred_element_type=jnp.float32)       # (C, Pp)
    hidden = jax.nn.relu(h_proj[:, None, :] + q_proj[None, :, :]
                         + b1_ref[...][None, :, :])            # (RB, C, Pp)
    logits = (jnp.dot(hidden.reshape(RB * C, wph_buf.shape[1]), w2_ref[...],
                      preferred_element_type=jnp.float32)
              + b2_ref[...])                                   # (RB*C, 1)
    preds = jax.nn.sigmoid(logits).reshape(RB, C)
    # cluster mean: single-vreg lane reduce (XLU) instead of an Nx1 MXU op
    vals = jnp.mean(preds, axis=-1, keepdims=True)             # (RB, 1)
    out_ref[...] = vals.reshape(R, B, 1)


def _prep_params(params):
    """Stack / pad / cast weights once, outside the kernel."""
    Hp = HIDDEN_PAD
    dH = Hp - HIDDEN
    dP = PRED_PAD - PRED_HIDDEN

    def pad_last(w):                   # (..., H) -> (..., Hp), zero padded
        return jnp.pad(w, [(0, 0)] * (w.ndim - 1) + [(0, dH)])

    # w_ih: (4, D, H) -> (D, 4*Hp), gate blocks [i|f|g|o] along columns
    wih = pad_last(params["w_ih"])                                   # (4, D, Hp)
    wih = jnp.transpose(wih, (1, 0, 2)).reshape(EMB_DIM, 4 * Hp)
    # w_hh: (4, H, H) -> (Hp, 4*Hp); pad both rows and columns with zeros
    whh = pad_last(params["w_hh"])                                   # (4, H, Hp)
    whh = jnp.pad(whh, ((0, 0), (0, dH), (0, 0)))                    # (4, Hp, Hp)
    whh = jnp.transpose(whh, (1, 0, 2)).reshape(Hp, 4 * Hp)
    # combined gate biases: (4, 1, H) -> (1, 4*Hp)
    bias = pad_last(params["b_gates"]).transpose(1, 0, 2).reshape(1, 4 * Hp)
    # prediction head, padded to lane-dense widths (zero pads are inert)
    wph = jnp.pad(params["w_pred_h"], ((0, dH), (0, dP)))            # (Hp, Pp)
    wpq = jnp.pad(params["w_pred_q"], ((0, 0), (0, dP)))             # (D, Pp)
    b1 = jnp.pad(params["b_pred1"], ((0, 0), (0, dP)))               # (1, Pp)
    w2 = jnp.pad(params["w_pred2"], ((0, 0), (0, dP))).reshape(PRED_PAD, 1)
    return dict(
        wih=wih.astype(jnp.bfloat16), whh=whh.astype(jnp.bfloat16),
        bias=bias.astype(jnp.float32),
        corr=params["corr_emb"].astype(jnp.bfloat16),
        wph=wph.astype(jnp.bfloat16), wpq=wpq.astype(jnp.bfloat16),
        b1=b1.astype(jnp.float32), w2=w2.astype(jnp.float32),
        b2=params["b_pred2"].astype(jnp.float32))


def all_kc_critic_dkt(obs, actions, y_kc_before, y_que, cell_state,
                      cluster_embs, params, split_responses=None):
    """Pallas-backed forward of AllKCCriticDKT.  Returns (B,) float32 values."""
    B, T, D = actions.shape
    assert D == EMB_DIM
    C = cluster_embs.shape[0]
    Hp, Pp, G = HIDDEN_PAD, PRED_PAD, 4 * HIDDEN_PAD

    if split_responses is None:
        # v7x has 2 TensorCores/chip: run the two (independent, serial,
        # latency-bound) response rollouts on separate cores.  On 1-TC chips
        # (v5e/v6e) the fused 2B-row batch is strictly better.
        try:
            kind = jax.devices()[0].device_kind.lower()
        except Exception:  # pragma: no cover - conservative fallback
            kind = ""
        split_responses = ("v7" in kind) or ("7x" in kind)
    n_blocks = 2 if split_responses else 1
    r_blk = 2 // n_blocks            # responses per grid point

    p = _prep_params(params)

    dH = HIDDEN_PAD - HIDDEN
    h0 = jnp.pad(obs.astype(jnp.float32), ((0, 0), (0, dH)))         # (B, Hp)
    c0 = jnp.pad(cell_state.astype(jnp.float32), ((0, 0), (0, dH)))
    h0_2 = jnp.stack([h0, h0], axis=0)                               # (2, B, Hp)
    c0_2 = jnp.stack([c0, c0], axis=0)

    # time-major actions with the 2 correctness-table rows folded in, so the
    # correctness projection shares the big input-projection matmul.
    acts_tm = jnp.transpose(actions.astype(jnp.bfloat16),
                            (1, 0, 2)).reshape(T * B, EMB_DIM)
    acts_plus = jnp.concatenate([acts_tm, p["corr"]], axis=0)        # (T*B+2, D)
    TB2 = T * B + 2

    # TODO(synk): if this critic is called repeatedly with fixed weights (RL
    # loop), hoist wih/whh/head weights into a cross-call VMEM future (P10) so
    # the ~3.4 MiB constant DMA is paid once, not per call.
    # TODO(synk): if B*T grows, stream `actions` with a tiled BlockSpec over a
    # "parallel" batch/time axis instead of one resident slab, and emit a
    # lane-dense (1, B_pad) output.
    in_specs = [
        pl.BlockSpec((TB2, D), lambda r: (0, 0)),                    # acts+corr
        pl.BlockSpec((r_blk, B, Hp), lambda r: (r, 0, 0)),           # h0
        pl.BlockSpec((r_blk, B, Hp), lambda r: (r, 0, 0)),           # c0
        pl.BlockSpec((D, G), lambda r: (0, 0)),                      # wih
        pl.BlockSpec((1, G), lambda r: (0, 0)),                      # bias
        pl.BlockSpec(memory_space=pl.ANY),                           # whh  (HBM)
        pl.BlockSpec(memory_space=pl.ANY),                           # kc   (HBM)
        pl.BlockSpec(memory_space=pl.ANY),                           # wph  (HBM)
        pl.BlockSpec(memory_space=pl.ANY),                           # wpq  (HBM)
        pl.BlockSpec((1, Pp), lambda r: (0, 0)),                     # b1
        pl.BlockSpec((Pp, 1), lambda r: (0, 0)),                     # w2
        pl.BlockSpec((1, 1), lambda r: (0, 0)),                      # b2
    ]
    grid_spec = pltpu.PrefetchScalarGridSpec(
        num_scalar_prefetch=0,
        grid=(n_blocks,),
        in_specs=in_specs,
        out_specs=pl.BlockSpec((r_blk, B, 1), lambda r: (r, 0, 0)),
        scratch_shapes=[
            pltpu.VMEM((Hp, G), jnp.bfloat16),     # whh
            pltpu.VMEM((C, D), jnp.bfloat16),      # cluster_embs
            pltpu.VMEM((Hp, Pp), jnp.bfloat16),    # wph
            pltpu.VMEM((D, Pp), jnp.bfloat16),     # wpq
            pltpu.SemaphoreType.DMA((4,)),
        ])

    kernel = functools.partial(_critic_kernel, n_resp=r_blk, batch=B, seq_len=T)
    out = pl.pallas_call(
        kernel,
        out_shape=jax.ShapeDtypeStruct((2, B, 1), jnp.float32),
        grid_spec=grid_spec,
        compiler_params=pltpu.CompilerParams(
            dimension_semantics=("parallel",),
            # ~6.5 MiB actual footprint incl. double-buffer headroom; 16 MiB
            # (halved from 32) keeps slack on v7x's 64 MiB physical VMEM.
            vmem_limit_bytes=16 * 1024 * 1024),
    )(acts_plus, h0_2, c0_2, p["wih"], p["bias"],
      p["whh"], cluster_embs.astype(jnp.bfloat16), p["wph"], p["wpq"],
      p["b1"], p["w2"], p["b2"])

    v0 = out[0, :, 0]
    v1 = out[1, :, 0]
    return (y_que * v1 + (1.0 - y_que) * v0 - y_kc_before) * REWARD_SCALE


def _reference(obs, actions, y_kc_before, y_que, cell_state, cluster_embs, p):
    """Pure-JAX f32 reference mirroring the PyTorch forward semantics."""
    def value_for_response(resp):
        x = actions + p["corr_emb"][resp][None, None, :]
        h, c = obs, cell_state
        for t in range(x.shape[1]):
            x_t = x[:, t, :]
            gates = [x_t @ p["w_ih"][g] + h @ p["w_hh"][g] + p["b_gates"][g]
                     for g in range(4)]
            i_g = jax.nn.sigmoid(gates[0])
            f_g = jax.nn.sigmoid(gates[1])
            g_g = jnp.tanh(gates[2])
            o_g = jax.nn.sigmoid(gates[3])
            c = f_g * c + i_g * g_g
            h = o_g * jnp.tanh(c)
        h_proj = h @ p["w_pred_h"]
        q_proj = cluster_embs @ p["w_pred_q"]
        hidden = jax.nn.relu(h_proj[:, None, :] + q_proj[None, :, :]
                             + p["b_pred1"][None, :, :])
        logits = jnp.sum(hidden * p["w_pred2"][None, :, :], axis=-1) + p["b_pred2"]
        return jnp.mean(jax.nn.sigmoid(logits), axis=1)
    v0 = value_for_response(0)
    v1 = value_for_response(1)
    return (y_que * v1 + (1.0 - y_que) * v0 - y_kc_before) * REWARD_SCALE


def init_params(key):
    ks = jax.random.split(key, 8)
    s = 0.05
    return dict(
        corr_emb=s * jax.random.normal(ks[0], (2, EMB_DIM), jnp.float32),
        w_ih=s * jax.random.normal(ks[1], (4, EMB_DIM, HIDDEN), jnp.float32),
        w_hh=s * jax.random.normal(ks[2], (4, HIDDEN, HIDDEN), jnp.float32),
        b_gates=s * jax.random.normal(ks[3], (4, 1, HIDDEN), jnp.float32),
        w_pred_h=s * jax.random.normal(ks[4], (HIDDEN, PRED_HIDDEN), jnp.float32),
        w_pred_q=s * jax.random.normal(ks[5], (EMB_DIM, PRED_HIDDEN), jnp.float32),
        b_pred1=s * jax.random.normal(ks[6], (1, PRED_HIDDEN), jnp.float32),
        w_pred2=s * jax.random.normal(ks[7], (1, PRED_HIDDEN), jnp.float32),
        b_pred2=jnp.zeros((1, 1), jnp.float32),
    )


if __name__ == "__main__":
    B, T, C = 4, 4, 16          # students, action-sequence length, KC clusters

    key = jax.random.PRNGKey(0)
    kp, k_obs, k_cell, k_act, k_kc, k_yq, k_ykc = jax.random.split(key, 7)
    params = init_params(kp)

    obs = 0.1 * jax.random.normal(k_obs, (B, HIDDEN), jnp.float32)
    cell_state = 0.1 * jax.random.normal(k_cell, (B, HIDDEN), jnp.float32)
    actions = 0.1 * jax.random.normal(k_act, (B, T, EMB_DIM), jnp.float32)
    cluster_embs = 0.1 * jax.random.normal(k_kc, (C, EMB_DIM), jnp.float32)
    y_que = jax.random.uniform(k_yq, (B,), jnp.float32)
    y_kc_before = jax.random.uniform(k_ykc, (B,), jnp.float32)

    value = all_kc_critic_dkt(obs, actions, y_kc_before, y_que, cell_state,
                              cluster_embs, params)
    value = jax.block_until_ready(value)

    ref = _reference(obs, actions, y_kc_before, y_que, cell_state,
                     cluster_embs, params)
    ref = jax.block_until_ready(ref)

    assert value.shape == (B,)
    assert bool(jnp.all(jnp.isfinite(value)))
    # bf16 matmul operands + the x1000 reward scale -> slightly relaxed tolerance
    assert bool(jnp.allclose(value, ref, rtol=2e-2, atol=2.0)), (value, ref)

    print("KERNEL_OK")
</pallas_src>

<mosaic_0001>
module attributes {stable_mosaic.version = 11 : i64} {
  func.func @_critic_kernel(%arg0: i32, %arg1: memref<18x768xbf16, #tpu.memory_space<vmem>>, %arg2: memref<2x4x384xf32, #tpu.memory_space<vmem>>, %arg3: memref<2x4x384xf32, #tpu.memory_space<vmem>>, %arg4: memref<768x1536xbf16, #tpu.memory_space<vmem>>, %arg5: memref<1x1536xf32, #tpu.memory_space<vmem>>, %arg6: memref<384x1536xbf16, #tpu.memory_space<any>>, %arg7: memref<16x768xbf16, #tpu.memory_space<any>>, %arg8: memref<384x128xbf16, #tpu.memory_space<any>>, %arg9: memref<768x128xbf16, #tpu.memory_space<any>>, %arg10: memref<1x128xf32, #tpu.memory_space<vmem>>, %arg11: memref<128x1xf32, #tpu.memory_space<vmem>>, %arg12: memref<1x1xf32, #tpu.memory_space<vmem>>, %arg13: memref<2x4x1xf32, #tpu.memory_space<vmem>>, %arg14: memref<384x1536xbf16, #tpu.memory_space<vmem>>, %arg15: memref<16x768xbf16, #tpu.memory_space<vmem>>, %arg16: memref<384x128xbf16, #tpu.memory_space<vmem>>, %arg17: memref<768x128xbf16, #tpu.memory_space<vmem>>, %arg18: memref<4x!tpu.dma_semaphore, #tpu.memory_space<semaphore_mem>>) attributes {dimension_semantics = [#tpu.dimension_semantics<parallel>], iteration_bounds = array<i64: 1>, scalar_prefetch = 0 : i64, scratch_operands = 5 : i64, tpu.core_type = #tpu.core_type<tc>, window_params = [{pipeline_mode = #tpu.pipeline_mode<synchronous>, transform_indices = @transform_0, window_bounds = array<i64: 18, 768>}, {transform_indices = @transform_1, window_bounds = array<i64: 2, 4, 384>}, {transform_indices = @transform_2, window_bounds = array<i64: 2, 4, 384>}, {pipeline_mode = #tpu.pipeline_mode<synchronous>, transform_indices = @transform_3, window_bounds = array<i64: 768, 1536>}, {pipeline_mode = #tpu.pipeline_mode<synchronous>, transform_indices = @transform_4, window_bounds = array<i64: 1, 1536>}, {}, {}, {}, {}, {pipeline_mode = #tpu.pipeline_mode<synchronous>, transform_indices = @transform_9, window_bounds = array<i64: 1, 128>}, {pipeline_mode = #tpu.pipeline_mode<synchronous>, transform_indices = @transform_10, window_bounds = array<i64: 128, 1>}, {pipeline_mode = #tpu.pipeline_mode<synchronous>, transform_indices = @transform_11, window_bounds = array<i64: 1, 1>}, {transform_indices = @transform_12, window_bounds = array<i64: 2, 4, 1>}]} {
    %c0_i32 = arith.constant 0 : i32
    %0 = tpu.memref_slice %arg18[%c0_i32] : memref<4x!tpu.dma_semaphore, #tpu.memory_space<semaphore_mem>> -> memref<1x!tpu.dma_semaphore, #tpu.memory_space<semaphore_mem>>
    %1 = tpu.memref_squeeze %0 : memref<1x!tpu.dma_semaphore, #tpu.memory_space<semaphore_mem>> -> memref<!tpu.dma_semaphore, #tpu.memory_space<semaphore_mem>>
    tpu.enqueue_dma source(%arg6 : memref<384x1536xbf16, #tpu.memory_space<any>>) target(%arg14 : memref<384x1536xbf16, #tpu.memory_space<vmem>>) target_semaphore(%1 : memref<!tpu.dma_semaphore, #tpu.memory_space<semaphore_mem>>)
    %c1_i32 = arith.constant 1 : i32
    %2 = tpu.memref_slice %arg18[%c1_i32] : memref<4x!tpu.dma_semaphore, #tpu.memory_space<semaphore_mem>> -> memref<1x!tpu.dma_semaphore, #tpu.memory_space<semaphore_mem>>
    %3 = tpu.memref_squeeze %2 : memref<1x!tpu.dma_semaphore, #tpu.memory_space<semaphore_mem>> -> memref<!tpu.dma_semaphore, #tpu.memory_space<semaphore_mem>>
    tpu.enqueue_dma source(%arg7 : memref<16x768xbf16, #tpu.memory_space<any>>) target(%arg15 : memref<16x768xbf16, #tpu.memory_space<vmem>>) target_semaphore(%3 : memref<!tpu.dma_semaphore, #tpu.memory_space<semaphore_mem>>)
    %c2_i32 = arith.constant 2 : i32
    %4 = tpu.memref_slice %arg18[%c2_i32] : memref<4x!tpu.dma_semaphore, #tpu.memory_space<semaphore_mem>> -> memref<1x!tpu.dma_semaphore, #tpu.memory_space<semaphore_mem>>
    %5 = tpu.memref_squeeze %4 : memref<1x!tpu.dma_semaphore, #tpu.memory_space<semaphore_mem>> -> memref<!tpu.dma_semaphore, #tpu.memory_space<semaphore_mem>>
    tpu.enqueue_dma source(%arg8 : memref<384x128xbf16, #tpu.memory_space<any>>) target(%arg16 : memref<384x128xbf16, #tpu.memory_space<vmem>>) target_semaphore(%5 : memref<!tpu.dma_semaphore, #tpu.memory_space<semaphore_mem>>)
    %c3_i32 = arith.constant 3 : i32
    %6 = tpu.memref_slice %arg18[%c3_i32] : memref<4x!tpu.dma_semaphore, #tpu.memory_space<semaphore_mem>> -> memref<1x!tpu.dma_semaphore, #tpu.memory_space<semaphore_mem>>
    %7 = tpu.memref_squeeze %6 : memref<1x!tpu.dma_semaphore, #tpu.memory_space<semaphore_mem>> -> memref<!tpu.dma_semaphore, #tpu.memory_space<semaphore_mem>>
    tpu.enqueue_dma source(%arg9 : memref<768x128xbf16, #tpu.memory_space<any>>) target(%arg17 : memref<768x128xbf16, #tpu.memory_space<vmem>>) target_semaphore(%7 : memref<!tpu.dma_semaphore, #tpu.memory_space<semaphore_mem>>)
    %c0 = arith.constant 0 : index
    %c0_0 = arith.constant 0 : index
    %8 = vector.load %arg1[%c0, %c0_0] : memref<18x768xbf16, #tpu.memory_space<vmem>>, vector<18x768xbf16>
    %c0_1 = arith.constant 0 : index
    %c0_2 = arith.constant 0 : index
    %9 = vector.load %arg4[%c0_1, %c0_2] : memref<768x1536xbf16, #tpu.memory_space<vmem>>, vector<768x1536xbf16>
    %cst = arith.constant dense<0.000000e+00> : vector<18x1536xf32>
    %10 = tpu.matmul %8, %9, %cst {dimension_numbers = #tpu.dot_dimension_numbers<[1], [0], [0], [1], [0, 0, 1, 1], [], []>} : vector<18x768xbf16>, vector<768x1536xbf16>, vector<18x1536xf32> -> vector<18x1536xf32>
    %11 = vector.extract_strided_slice %10 {offsets = [0, 0], sizes = [16, 1536], strides = [1, 1]} : vector<18x1536xf32> to vector<16x1536xf32>
    %12 = vector.shape_cast %11 : vector<16x1536xf32> to vector<4x4x1536xf32>
    %13 = vector.extract_strided_slice %10 {offsets = [16, 0], sizes = [2, 1536], strides = [1, 1]} : vector<18x1536xf32> to vector<2x1536xf32>
    %c0_3 = arith.constant 0 : index
    %c0_4 = arith.constant 0 : index
    %14 = vector.load %arg5[%c0_3, %c0_4] : memref<1x1536xf32, #tpu.memory_space<vmem>>, vector<1x1536xf32>
    %15 = vector.extract_strided_slice %13 {offsets = [0, 0], sizes = [1, 1536], strides = [1, 1]} : vector<2x1536xf32> to vector<1x1536xf32>
    %16 = arith.addf %15, %14 : vector<1x1536xf32>
    %17 = vector.shape_cast %16 : vector<1x1536xf32> to vector<1x1536xf32>
    %18 = vector.broadcast %17 : vector<1x1536xf32> to vector<4x1536xf32>
    %19 = vector.extract_strided_slice %13 {offsets = [1, 0], sizes = [1, 1536], strides = [1, 1]} : vector<2x1536xf32> to vector<1x1536xf32>
    %20 = arith.addf %19, %14 : vector<1x1536xf32>
    %21 = vector.shape_cast %20 : vector<1x1536xf32> to vector<1x1536xf32>
    %22 = vector.broadcast %21 : vector<1x1536xf32> to vector<4x1536xf32>
    %23 = tpu.concatenate %18, %22 in 0 : vector<4x1536xf32>, vector<4x1536xf32> -> vector<8x1536xf32>
    %c0_5 = arith.constant 0 : index
    %c0_6 = arith.constant 0 : index
    %c0_7 = arith.constant 0 : index
    %24 = vector.load %arg2[%c0_5, %c0_6, %c0_7] : memref<2x4x384xf32, #tpu.memory_space<vmem>>, vector<2x4x384xf32>
    %25 = vector.shape_cast %24 : vector<2x4x384xf32> to vector<8x384xf32>
    %c0_8 = arith.constant 0 : index
    %c0_9 = arith.constant 0 : index
    %c0_10 = arith.constant 0 : index
    %26 = vector.load %arg3[%c0_8, %c0_9, %c0_10] : memref<2x4x384xf32, #tpu.memory_space<vmem>>, vector<2x4x384xf32>
    %27 = vector.shape_cast %26 : vector<2x4x384xf32> to vector<8x384xf32>
    %c0_i32_11 = arith.constant 0 : i32
    %28 = tpu.memref_slice %arg18[%c0_i32_11] : memref<4x!tpu.dma_semaphore, #tpu.memory_space<semaphore_mem>> -> memref<1x!tpu.dma_semaphore, #tpu.memory_space<semaphore_mem>>
    %29 = tpu.memref_squeeze %28 : memref<1x!tpu.dma_semaphore, #tpu.memory_space<semaphore_mem>> -> memref<!tpu.dma_semaphore, #tpu.memory_space<semaphore_mem>>
    tpu.wait_dma2 semaphore(%29 : memref<!tpu.dma_semaphore, #tpu.memory_space<semaphore_mem>>) src(%arg6 : memref<384x1536xbf16, #tpu.memory_space<any>>) dst(%arg14 : memref<384x1536xbf16, #tpu.memory_space<vmem>>)
    %c0_12 = arith.constant 0 : index
    %c0_13 = arith.constant 0 : index
    %30 = vector.load %arg14[%c0_12, %c0_13] : memref<384x1536xbf16, #tpu.memory_space<vmem>>, vector<384x1536xbf16>
    %31 = vector.extract_strided_slice %12 {offsets = [0, 0, 0], sizes = [1, 4, 1536], strides = [1, 1, 1]} : vector<4x4x1536xf32> to vector<1x4x1536xf32>
    %32 = vector.shape_cast %31 : vector<1x4x1536xf32> to vector<4x1536xf32>
    %33 = tpu.concatenate %32, %32 in 0 : vector<4x1536xf32>, vector<4x1536xf32> -> vector<8x1536xf32>
    %34 = arith.addf %33, %23 : vector<8x1536xf32>
    %35 = arith.truncf %25 : vector<8x384xf32> to vector<8x384xbf16>
    %cst_14 = arith.constant dense<0.000000e+00> : vector<8x1536xf32>
    %36 = tpu.matmul %35, %30, %cst_14 {dimension_numbers = #tpu.dot_dimension_numbers<[1], [0], [0], [1], [0, 0, 1, 1], [], []>} : vector<8x384xbf16>, vector<384x1536xbf16>, vector<8x1536xf32> -> vector<8x1536xf32>
    %37 = arith.addf %34, %36 : vector<8x1536xf32>
    %38 = vector.extract_strided_slice %37 {offsets = [0, 0], sizes = [8, 384], strides = [1, 1]} : vector<8x1536xf32> to vector<8x384xf32>
    %39 = arith.negf %38 : vector<8x384xf32>
    %40 = math.exp %39 : vector<8x384xf32>
    %cst_15 = arith.constant 1.000000e+00 : f32
    %41 = vector.broadcast %cst_15 : f32 to vector<8x384xf32>
    %42 = arith.addf %41, %40 : vector<8x384xf32>
    %43 = arith.divf %41, %42 : vector<8x384xf32>
    %44 = vector.extract_strided_slice %37 {offsets = [0, 384], sizes = [8, 384], strides = [1, 1]} : vector<8x1536xf32> to vector<8x384xf32>
    %45 = arith.negf %44 : vector<8x384xf32>
    %46 = math.exp %45 : vector<8x384xf32>
    %cst_16 = arith.constant 1.000000e+00 : f32
    %47 = vector.broadcast %cst_16 : f32 to vector<8x384xf32>
    %48 = arith.addf %47, %46 : vector<8x384xf32>
    %49 = arith.divf %47, %48 : vector<8x384xf32>
    %50 = vector.extract_strided_slice %37 {offsets = [0, 768], sizes = [8, 384], strides = [1, 1]} : vector<8x1536xf32> to vector<8x384xf32>
    %51 = math.tanh %50 : vector<8x384xf32>
    %52 = vector.extract_strided_slice %37 {offsets = [0, 1152], sizes = [8, 384], strides = [1, 1]} : vector<8x1536xf32> to vector<8x384xf32>
    %53 = arith.negf %52 : vector<8x384xf32>
    %54 = math.exp %53 : vector<8x384xf32>
    %cst_17 = arith.constant 1.000000e+00 : f32
    %55 = vector.broadcast %cst_17 : f32 to vector<8x384xf32>
    %56 = arith.addf %55, %54 : vector<8x384xf32>
    %57 = arith.divf %55, %56 : vector<8x384xf32>
    %58 = arith.mulf %49, %27 : vector<8x384xf32>
    %59 = arith.mulf %43, %51 : vector<8x384xf32>
    %60 = arith.addf %58, %59 : vector<8x384xf32>
    %61 = math.tanh %60 : vector<8x384xf32>
    %62 = arith.mulf %57, %61 : vector<8x384xf32>
    %63 = vector.extract_strided_slice %12 {offsets = [1, 0, 0], sizes = [1, 4, 1536], strides = [1, 1, 1]} : vector<4x4x1536xf32> to vector<1x4x1536xf32>
    %64 = vector.shape_cast %63 : vector<1x4x1536xf32> to vector<4x1536xf32>
    %65 = tpu.concatenate %64, %64 in 0 : vector<4x1536xf32>, vector<4x1536xf32> -> vector<8x1536xf32>
    %66 = arith.addf %65, %23 : vector<8x1536xf32>
    %67 = arith.truncf %62 : vector<8x384xf32> to vector<8x384xbf16>
    %cst_18 = arith.constant dense<0.000000e+00> : vector<8x1536xf32>
    %68 = tpu.matmul %67, %30, %cst_18 {dimension_numbers = #tpu.dot_dimension_numbers<[1], [0], [0], [1], [0, 0, 1, 1], [], []>} : vector<8x384xbf16>, vector<384x1536xbf16>, vector<8x1536xf32> -> vector<8x1536xf32>
    %69 = arith.addf %66, %68 : vector<8x1536xf32>
    %70 = vector.extract_strided_slice %69 {offsets = [0, 0], sizes = [8, 384], strides = [1, 1]} : vector<8x1536xf32> to vector<8x384xf32>
    %71 = arith.negf %70 : vector<8x384xf32>
    %72 = math.exp %71 : vector<8x384xf32>
    %cst_19 = arith.constant 1.000000e+00 : f32
    %73 = vector.broadcast %cst_19 : f32 to vector<8x384xf32>
    %74 = arith.addf %73, %72 : vector<8x384xf32>
    %75 = arith.divf %73, %74 : vector<8x384xf32>
    %76 = vector.extract_strided_slice %69 {offsets = [0, 384], sizes = [8, 384], strides = [1, 1]} : vector<8x1536xf32> to vector<8x384xf32>
    %77 = arith.negf %76 : vector<8x384xf32>
    %78 = math.exp %77 : vector<8x384xf32>
    %cst_20 = arith.constant 1.000000e+00 : f32
    %79 = vector.broadcast %cst_20 : f32 to vector<8x384xf32>
    %80 = arith.addf %79, %78 : vector<8x384xf32>
    %81 = arith.divf %79, %80 : vector<8x384xf32>
    %82 = vector.extract_strided_slice %69 {offsets = [0, 768], sizes = [8, 384], strides = [1, 1]} : vector<8x1536xf32> to vector<8x384xf32>
    %83 = math.tanh %82 : vector<8x384xf32>
    %84 = vector.extract_strided_slice %69 {offsets = [0, 1152], sizes = [8, 384], strides = [1, 1]} : vector<8x1536xf32> to vector<8x384xf32>
    %85 = arith.negf %84 : vector<8x384xf32>
    %86 = math.exp %85 : vector<8x384xf32>
    %cst_21 = arith.constant 1.000000e+00 : f32
    %87 = vector.broadcast %cst_21 : f32 to vector<8x384xf32>
    %88 = arith.addf %87, %86 : vector<8x384xf32>
    %89 = arith.divf %87, %88 : vector<8x384xf32>
    %90 = arith.mulf %81, %60 : vector<8x384xf32>
    %91 = arith.mulf %75, %83 : vector<8x384xf32>
    %92 = arith.addf %90, %91 : vector<8x384xf32>
    %93 = math.tanh %92 : vector<8x384xf32>
    %94 = arith.mulf %89, %93 : vector<8x384xf32>
    %95 = vector.extract_strided_slice %12 {offsets = [2, 0, 0], sizes = [1, 4, 1536], strides = [1, 1, 1]} : vector<4x4x1536xf32> to vector<1x4x1536xf32>
    %96 = vector.shape_cast %95 : vector<1x4x1536xf32> to vector<4x1536xf32>
    %97 = tpu.concatenate %96, %96 in 0 : vector<4x1536xf32>, vector<4x1536xf32> -> vector<8x1536xf32>
    %98 = arith.addf %97, %23 : vector<8x1536xf32>
    %99 = arith.truncf %94 : vector<8x384xf32> to vector<8x384xbf16>
    %cst_22 = arith.constant dense<0.000000e+00> : vector<8x1536xf32>
    %100 = tpu.matmul %99, %30, %cst_22 {dimension_numbers = #tpu.dot_dimension_numbers<[1], [0], [0], [1], [0, 0, 1, 1], [], []>} : vector<8x384xbf16>, vector<384x1536xbf16>, vector<8x1536xf32> -> vector<8x1536xf32>
    %101 = arith.addf %98, %100 : vector<8x1536xf32>
    %102 = vector.extract_strided_slice %101 {offsets = [0, 0], sizes = [8, 384], strides = [1, 1]} : vector<8x1536xf32> to vector<8x384xf32>
    %103 = arith.negf %102 : vector<8x384xf32>
    %104 = math.exp %103 : vector<8x384xf32>
    %cst_23 = arith.constant 1.000000e+00 : f32
    %105 = vector.broadcast %cst_23 : f32 to vector<8x384xf32>
    %106 = arith.addf %105, %104 : vector<8x384xf32>
    %107 = arith.divf %105, %106 : vector<8x384xf32>
    %108 = vector.extract_strided_slice %101 {offsets = [0, 384], sizes = [8, 384], strides = [1, 1]} : vector<8x1536xf32> to vector<8x384xf32>
    %109 = arith.negf %108 : vector<8x384xf32>
    %110 = math.exp %109 : vector<8x384xf32>
    %cst_24 = arith.constant 1.000000e+00 : f32
    %111 = vector.broadcast %cst_24 : f32 to vector<8x384xf32>
    %112 = arith.addf %111, %110 : vector<8x384xf32>
    %113 = arith.divf %111, %112 : vector<8x384xf32>
    %114 = vector.extract_strided_slice %101 {offsets = [0, 768], sizes = [8, 384], strides = [1, 1]} : vector<8x1536xf32> to vector<8x384xf32>
    %115 = math.tanh %114 : vector<8x384xf32>
    %116 = vector.extract_strided_slice %101 {offsets = [0, 1152], sizes = [8, 384], strides = [1, 1]} : vector<8x1536xf32> to vector<8x384xf32>
    %117 = arith.negf %116 : vector<8x384xf32>
    %118 = math.exp %117 : vector<8x384xf32>
    %cst_25 = arith.constant 1.000000e+00 : f32
    %119 = vector.broadcast %cst_25 : f32 to vector<8x384xf32>
    %120 = arith.addf %119, %118 : vector<8x384xf32>
    %121 = arith.divf %119, %120 : vector<8x384xf32>
    %122 = arith.mulf %113, %92 : vector<8x384xf32>
    %123 = arith.mulf %107, %115 : vector<8x384xf32>
    %124 = arith.addf %122, %123 : vector<8x384xf32>
    %125 = math.tanh %124 : vector<8x384xf32>
    %126 = arith.mulf %121, %125 : vector<8x384xf32>
    %127 = vector.extract_strided_slice %12 {offsets = [3, 0, 0], sizes = [1, 4, 1536], strides = [1, 1, 1]} : vector<4x4x1536xf32> to vector<1x4x1536xf32>
    %128 = vector.shape_cast %127 : vector<1x4x1536xf32> to vector<4x1536xf32>
    %129 = tpu.concatenate %128, %128 in 0 : vector<4x1536xf32>, vector<4x1536xf32> -> vector<8x1536xf32>
    %130 = arith.addf %129, %23 : vector<8x1536xf32>
    %131 = arith.truncf %126 : vector<8x384xf32> to vector<8x384xbf16>
    %cst_26 = arith.constant dense<0.000000e+00> : vector<8x1536xf32>
    %132 = tpu.matmul %131, %30, %cst_26 {dimension_numbers = #tpu.dot_dimension_numbers<[1], [0], [0], [1], [0, 0, 1, 1], [], []>} : vector<8x384xbf16>, vector<384x1536xbf16>, vector<8x1536xf32> -> vector<8x1536xf32>
    %133 = arith.addf %130, %132 : vector<8x1536xf32>
    %134 = vector.extract_strided_slice %133 {offsets = [0, 0], sizes = [8, 384], strides = [1, 1]} : vector<8x1536xf32> to vector<8x384xf32>
    %135 = arith.negf %134 : vector<8x384xf32>
    %136 = math.exp %135 : vector<8x384xf32>
    %cst_27 = arith.constant 1.000000e+00 : f32
    %137 = vector.broadcast %cst_27 : f32 to vector<8x384xf32>
    %138 = arith.addf %137, %136 : vector<8x384xf32>
    %139 = arith.divf %137, %138 : vector<8x384xf32>
    %140 = vector.extract_strided_slice %133 {offsets = [0, 384], sizes = [8, 384], strides = [1, 1]} : vector<8x1536xf32> to vector<8x384xf32>
    %141 = arith.negf %140 : vector<8x384xf32>
    %142 = math.exp %141 : vector<8x384xf32>
    %cst_28 = arith.constant 1.000000e+00 : f32
    %143 = vector.broadcast %cst_28 : f32 to vector<8x384xf32>
    %144 = arith.addf %143, %142 : vector<8x384xf32>
    %145 = arith.divf %143, %144 : vector<8x384xf32>
    %146 = vector.extract_strided_slice %133 {offsets = [0, 768], sizes = [8, 384], strides = [1, 1]} : vector<8x1536xf32> to vector<8x384xf32>
    %147 = math.tanh %146 : vector<8x384xf32>
    %148 = vector.extract_strided_slice %133 {offsets = [0, 1152], sizes = [8, 384], strides = [1, 1]} : vector<8x1536xf32> to vector<8x384xf32>
    %149 = arith.negf %148 : vector<8x384xf32>
    %150 = math.exp %149 : vector<8x384xf32>
    %cst_29 = arith.constant 1.000000e+00 : f32
    %151 = vector.broadcast %cst_29 : f32 to vector<8x384xf32>
    %152 = arith.addf %151, %150 : vector<8x384xf32>
    %153 = arith.divf %151, %152 : vector<8x384xf32>
    %154 = arith.mulf %145, %124 : vector<8x384xf32>
    %155 = arith.mulf %139, %147 : vector<8x384xf32>
    %156 = arith.addf %154, %155 : vector<8x384xf32>
    %157 = math.tanh %156 : vector<8x384xf32>
    %158 = arith.mulf %153, %157 : vector<8x384xf32>
    %c1_i32_30 = arith.constant 1 : i32
    %159 = tpu.memref_slice %arg18[%c1_i32_30] : memref<4x!tpu.dma_semaphore, #tpu.memory_space<semaphore_mem>> -> memref<1x!tpu.dma_semaphore, #tpu.memory_space<semaphore_mem>>
    %160 = tpu.memref_squeeze %159 : memref<1x!tpu.dma_semaphore, #tpu.memory_space<semaphore_mem>> -> memref<!tpu.dma_semaphore, #tpu.memory_space<semaphore_mem>>
    tpu.wait_dma2 semaphore(%160 : memref<!tpu.dma_semaphore, #tpu.memory_space<semaphore_mem>>) src(%arg7 : memref<16x768xbf16, #tpu.memory_space<any>>) dst(%arg15 : memref<16x768xbf16, #tpu.memory_space<vmem>>)
    %c2_i32_31 = arith.constant 2 : i32
    %161 = tpu.memref_slice %arg18[%c2_i32_31] : memref<4x!tpu.dma_semaphore, #tpu.memory_space<semaphore_mem>> -> memref<1x!tpu.dma_semaphore, #tpu.memory_space<semaphore_mem>>
    %162 = tpu.memref_squeeze %161 : memref<1x!tpu.dma_semaphore, #tpu.memory_space<semaphore_mem>> -> memref<!tpu.dma_semaphore, #tpu.memory_space<semaphore_mem>>
    tpu.wait_dma2 semaphore(%162 : memref<!tpu.dma_semaphore, #tpu.memory_space<semaphore_mem>>) src(%arg8 : memref<384x128xbf16, #tpu.memory_space<any>>) dst(%arg16 : memref<384x128xbf16, #tpu.memory_space<vmem>>)
    %c3_i32_32 = arith.constant 3 : i32
    %163 = tpu.memref_slice %arg18[%c3_i32_32] : memref<4x!tpu.dma_semaphore, #tpu.memory_space<semaphore_mem>> -> memref<1x!tpu.dma_semaphore, #tpu.memory_space<semaphore_mem>>
    %164 = tpu.memref_squeeze %163 : memref<1x!tpu.dma_semaphore, #tpu.memory_space<semaphore_mem>> -> memref<!tpu.dma_semaphore, #tpu.memory_space<semaphore_mem>>
    tpu.wait_dma2 semaphore(%164 : memref<!tpu.dma_semaphore, #tpu.memory_space<semaphore_mem>>) src(%arg9 : memref<768x128xbf16, #tpu.memory_space<any>>) dst(%arg17 : memref<768x128xbf16, #tpu.memory_space<vmem>>)
    %c0_33 = arith.constant 0 : index
    %c0_34 = arith.constant 0 : index
    %165 = vector.load %arg15[%c0_33, %c0_34] : memref<16x768xbf16, #tpu.memory_space<vmem>>, vector<16x768xbf16>
    %166 = arith.truncf %158 : vector<8x384xf32> to vector<8x384xbf16>
    %c0_35 = arith.constant 0 : index
    %c0_36 = arith.constant 0 : index
    %167 = vector.load %arg16[%c0_35, %c0_36] : memref<384x128xbf16, #tpu.memory_space<vmem>>, vector<384x128xbf16>
    %cst_37 = arith.constant dense<0.000000e+00> : vector<8x128xf32>
    %168 = tpu.matmul %166, %167, %cst_37 {dimension_numbers = #tpu.dot_dimension_numbers<[1], [0], [0], [1], [0, 0, 1, 1], [], []>} : vector<8x384xbf16>, vector<384x128xbf16>, vector<8x128xf32> -> vector<8x128xf32>
    %c0_38 = arith.constant 0 : index
    %c0_39 = arith.constant 0 : index
    %169 = vector.load %arg17[%c0_38, %c0_39] : memref<768x128xbf16, #tpu.memory_space<vmem>>, vector<768x128xbf16>
    %cst_40 = arith.constant dense<0.000000e+00> : vector<16x128xf32>
    %170 = tpu.matmul %165, %169, %cst_40 {dimension_numbers = #tpu.dot_dimension_numbers<[1], [0], [0], [1], [0, 0, 1, 1], [], []>} : vector<16x768xbf16>, vector<768x128xbf16>, vector<16x128xf32> -> vector<16x128xf32>
    %171 = vector.shape_cast %168 : vector<8x128xf32> to vector<8x1x128xf32>
    %172 = vector.shape_cast %170 : vector<16x128xf32> to vector<1x16x128xf32>
    %173 = vector.broadcast %171 : vector<8x1x128xf32> to vector<8x16x128xf32>
    %174 = vector.broadcast %172 : vector<1x16x128xf32> to vector<8x16x128xf32>
    %175 = arith.addf %173, %174 : vector<8x16x128xf32>
    %c0_41 = arith.constant 0 : index
    %c0_42 = arith.constant 0 : index
    %176 = vector.load %arg10[%c0_41, %c0_42] : memref<1x128xf32, #tpu.memory_space<vmem>>, vector<1x128xf32>
    %177 = vector.shape_cast %176 : vector<1x128xf32> to vector<1x1x128xf32>
    %178 = vector.broadcast %177 : vector<1x1x128xf32> to vector<8x16x128xf32>
    %179 = arith.addf %175, %178 : vector<8x16x128xf32>
    %cst_43 = arith.constant 0.000000e+00 : f32
    %180 = vector.broadcast %cst_43 : f32 to vector<8x16x128xf32>
    %181 = arith.maximumf %179, %180 : vector<8x16x128xf32>
    %182 = vector.shape_cast %181 : vector<8x16x128xf32> to vector<128x128xf32>
    %c0_44 = arith.constant 0 : index
    %c0_45 = arith.constant 0 : index
    %183 = vector.load %arg11[%c0_44, %c0_45] : memref<128x1xf32, #tpu.memory_space<vmem>>, vector<128x1xf32>
    %cst_46 = arith.constant dense<0.000000e+00> : vector<128x1xf32>
    %184 = tpu.matmul %182, %183, %cst_46 {dimension_numbers = #tpu.dot_dimension_numbers<[1], [0], [0], [1], [0, 0, 1, 1], [], []>} : vector<128x128xf32>, vector<128x1xf32>, vector<128x1xf32> -> vector<128x1xf32>
    %c0_47 = arith.constant 0 : index
    %c0_48 = arith.constant 0 : index
    %185 = vector.load %arg12[%c0_47, %c0_48] : memref<1x1xf32, #tpu.memory_space<vmem>>, vector<1x1xf32>
    %186 = vector.broadcast %185 : vector<1x1xf32> to vector<128x1xf32>
    %187 = arith.addf %184, %186 : vector<128x1xf32>
    %188 = arith.negf %187 : vector<128x1xf32>
    %189 = math.exp %188 : vector<128x1xf32>
    %cst_49 = arith.constant 1.000000e+00 : f32
    %190 = vector.broadcast %cst_49 : f32 to vector<128x1xf32>
    %191 = arith.addf %190, %189 : vector<128x1xf32>
    %192 = arith.divf %190, %191 : vector<128x1xf32>
    %193 = vector.shape_cast %192 : vector<128x1xf32> to vector<8x16xf32>
    %cst_50 = arith.constant dense<0.000000e+00> : vector<8xf32>
    %194 = vector.multi_reduction <add>, %193, %cst_50 [1] : vector<8x16xf32> to vector<8xf32>
    %195 = vector.shape_cast %194 : vector<8xf32> to vector<8x1xf32>
    %cst_51 = arith.constant 1.600000e+01 : f32
    %196 = vector.broadcast %cst_51 : f32 to vector<8x1xf32>
    %197 = arith.divf %195, %196 : vector<8x1xf32>
    %198 = vector.shape_cast %197 : vector<8x1xf32> to vector<2x4x1xf32>
    %c0_52 = arith.constant 0 : index
    %c0_53 = arith.constant 0 : index
    %c0_54 = arith.constant 0 : index
    %199 = vector.load %arg13[%c0_52, %c0_53, %c0_54] : memref<2x4x1xf32, #tpu.memory_space<vmem>>, vector<2x4x1xf32>
    tpu.vector_store %arg13[%c0_52, %c0_53, %c0_54], %198 {strides = array<i32>} : memref<2x4x1xf32, #tpu.memory_space<vmem>>, vector<2x4x1xf32>,
    return
  }
  func.func @transform_0(%arg0: i32) -> (i32, i32) {
    %c0_i32 = arith.constant 0 : i32
    %c0_i32_0 = arith.constant 0 : i32
    %c0_i32_1 = arith.constant 0 : i32
    return %c0_i32, %c0_i32_0 : i32, i32
  }
  func.func @transform_1(%arg0: i32) -> (i32, i32, i32) {
    %c0_i32 = arith.constant 0 : i32
    %c0_i32_0 = arith.constant 0 : i32
    %c0_i32_1 = arith.constant 0 : i32
    return %arg0, %c0_i32, %c0_i32_0 : i32, i32, i32
  }
  func.func @transform_2(%arg0: i32) -> (i32, i32, i32) {
    %c0_i32 = arith.constant 0 : i32
    %c0_i32_0 = arith.constant 0 : i32
    %c0_i32_1 = arith.constant 0 : i32
    return %arg0, %c0_i32, %c0_i32_0 : i32, i32, i32
  }
  func.func @transform_3(%arg0: i32) -> (i32, i32) {
    %c0_i32 = arith.constant 0 : i32
    %c0_i32_0 = arith.constant 0 : i32
    %c0_i32_1 = arith.constant 0 : i32
    return %c0_i32, %c0_i32_0 : i32, i32
  }
  func.func @transform_4(%arg0: i32) -> (i32, i32) {
    %c0_i32 = arith.constant 0 : i32
    %c0_i32_0 = arith.constant 0 : i32
    %c0_i32_1 = arith.constant 0 : i32
    return %c0_i32, %c0_i32_0 : i32, i32
  }
  func.func @transform_9(%arg0: i32) -> (i32, i32) {
    %c0_i32 = arith.constant 0 : i32
    %c0_i32_0 = arith.constant 0 : i32
    %c0_i32_1 = arith.constant 0 : i32
    return %c0_i32, %c0_i32_0 : i32, i32
  }
  func.func @transform_10(%arg0: i32) -> (i32, i32) {
    %c0_i32 = arith.constant 0 : i32
    %c0_i32_0 = arith.constant 0 : i32
    %c0_i32_1 = arith.constant 0 : i32
    return %c0_i32, %c0_i32_0 : i32, i32
  }
  func.func @transform_11(%arg0: i32) -> (i32, i32) {
    %c0_i32 = arith.constant 0 : i32
    %c0_i32_0 = arith.constant 0 : i32
    %c0_i32_1 = arith.constant 0 : i32
    return %c0_i32, %c0_i32_0 : i32, i32
  }
  func.func @transform_12(%arg0: i32) -> (i32, i32, i32) {
    %c0_i32 = arith.constant 0 : i32
    %c0_i32_0 = arith.constant 0 : i32
    %c0_i32_1 = arith.constant 0 : i32
    return %arg0, %c0_i32, %c0_i32_0 : i32, i32, i32
  }
}

</mosaic_0001>

<llo_original>
// kernel: tpu_custom_call.1
$region0: #{tpu_custom_call.1}
  #allocation0 [shape = 'u32[]', space=smem, size = 0x4, offset = 0x4, fixed_abs, tag = 'smem constant byte address 0x4 - core index']
  #allocation1 [shape = 'u32[144,128]{1,0:T(1,128)}', space=vmem, size = 0x12000, scoped, tag = 'internal scratch']
  #allocation2 [shape = 'bf16[384,1536]{1,0:T(16,128)(2,1)}', space=vmem, size = 0x120000, scoped, tag = 'scratch operand']
  #allocation3 [shape = 'bf16[16,768]{1,0:T(16,128)(2,1)}', space=vmem, size = 0x6000, scoped, tag = 'scratch operand']
  #allocation4 [shape = 'bf16[384,128]{1,0:T(16,128)(2,1)}', space=vmem, size = 0x18000, scoped, tag = 'scratch operand']
  #allocation5 [shape = 'bf16[768,128]{1,0:T(16,128)(2,1)}', space=vmem, size = 0x30000, scoped, tag = 'scratch operand']
  #allocation6 [shape = 's32[4]{0}', space=sflag, size = 0x10, scoped, tag = 'scratch operand']
  #allocation7 [shape = 'f32[1,1]{1,0:T(1,128)S(1)}', space=vmem, size = 0x200, scoped, tag = 'scoped memory for tpu_custom_call.1']
  #allocation18 [shape = 's32[]', space=sflag, size = 0x4, offset = 0, fixed_abs, tag = 'sflag constant byte address 0x0 - dummy sync flag']
  #allocation20 [shape = 's32[]', space=sflag, size = 0x4, offset = 0, fixed_abs, tag = 'sflag constant byte address 0x0 - dummy sync flag']
  #allocation22 [shape = 's32[]', space=sflag, size = 0x4, offset = 0, fixed_abs, tag = 'sflag constant byte address 0x0 - dummy sync flag']
  #allocation23 [shape = 's32[]', space=sflag, size = 0x4, offset = 0, fixed_abs, tag = 'sflag constant byte address 0x0 - dummy sync flag']
  #allocation24 [shape = 'u32[]', space=smem, size = 0x4, offset = 0x44, fixed_abs, tag = 'smem constant byte address 0x44 - assertion arg 0']
  #allocation25 [shape = 'u32[]', space=smem, size = 0x4, offset = 0x48, fixed_abs, tag = 'smem constant byte address 0x48 - assertion arg 1']
  #allocation26 [shape = 's32[]', space=sflag, size = 0x4, offset = 0, fixed_abs, tag = 'sflag constant byte address 0x0 - dummy sync flag']
  #allocation27 [shape = 's32[]', space=sflag, size = 0x4, offset = 0, fixed_abs, tag = 'sflag constant byte address 0x0 - dummy sync flag']
  %s0 = inlined_call_operand.hbm [shape: bf16[18,768], index: 0, kind: input, shape index: {}]
  %s1 = inlined_call_operand.hbm [shape: f32[2,4,384], index: 1, kind: input, shape index: {}]
  %s2 = inlined_call_operand.hbm [shape: f32[2,4,384], index: 2, kind: input, shape index: {}]
  %s3 = inlined_call_operand.hbm [shape: bf16[768,1536], index: 3, kind: input, shape index: {}]
  %s4 = inlined_call_operand.hbm [shape: f32[1,1536], index: 4, kind: input, shape index: {}]
  %s5 = inlined_call_operand.hbm [shape: bf16[384,1536], index: 5, kind: input, shape index: {}]
  %s6 = inlined_call_operand.hbm [shape: bf16[16,768], index: 6, kind: input, shape index: {}]
  %s7 = inlined_call_operand.hbm [shape: bf16[384,128], index: 7, kind: input, shape index: {}]
  %s8 = inlined_call_operand.hbm [shape: bf16[768,128], index: 8, kind: input, shape index: {}]
  %s9 = inlined_call_operand.hbm [shape: f32[1,128], index: 9, kind: input, shape index: {}]
  %s10 = inlined_call_operand.vmem [shape: f32[128,1], index: 10, kind: input, shape index: {}]
  %s11 = inlined_call_operand.<no memory space> [shape: f32[1,1], index: 11, kind: input, shape index: {}]
  %s12 = inlined_call_operand.vmem [shape: f32[2,4,1], index: 12, kind: output, shape index: {}]
  %s13 = sld [smem:[#allocation0]]
  $region74: #{tpu_custom_call.1} parent=0
    _
  %s15 = ssub.s32 1, %s13
  %s16 = scalar_select 0, %s15, %s13
  %v17 = vstv %s11
  %18 = vst [vmem:[#allocation7] sm:$0x1] %v17
  $region1: #{tpu_custom_call.1} parent=0
    #allocation8 [shape = 'u8[36864]{0}', space=vmem, size = 0x9000, scoped, tag = 'input window, operand 0, single buffered']
    #allocation9 [shape = 's32[1]{0}', space=sflag, size = 0x4, scoped, tag = 'scoped memory for tpu_custom_call.1']
    #allocation10 [shape = 'u8[12288]{0}', space=vmem, size = 0x3000, scoped, tag = 'input window, operand 1, single buffered']
    #allocation11 [shape = 's32[1]{0}', space=sflag, size = 0x4, scoped, tag = 'scoped memory for tpu_custom_call.1']
    #allocation12 [shape = 'u8[12288]{0}', space=vmem, size = 0x3000, scoped, tag = 'input window, operand 2, single buffered']
    #allocation13 [shape = 'u8[2359296]{0}', space=vmem, size = 0x240000, scoped, tag = 'input window, operand 3, single buffered']
    #allocation14 [shape = 's32[1]{0}', space=sflag, size = 0x4, scoped, tag = 'scoped memory for tpu_custom_call.1']
    #allocation15 [shape = 'u8[6144]{0}', space=vmem, size = 0x1800, scoped, tag = 'input window, operand 4, single buffered']
    #allocation16 [shape = 'u8[512]{0}', space=vmem, size = 0x400, scoped, tag = 'input window, operand 9, single buffered']
    #allocation17 [shape = 's32[1]{0}', space=sflag, size = 0x4, scoped, tag = 'scoped memory for tpu_custom_call.1']
    #allocation19 [shape = 'u32[9]{0}', space=smem, size = 0x24, scoped, tag = 'DMA stride descriptor']
    #allocation21 [shape = 'u32[6]{0}', space=smem, size = 0x18, scoped, tag = 'DMA stride descriptor']
    %19 = vsyncpa [#allocation9], 0
    %20 = vsyncpa [#allocation11], 0
    %21 = vsyncpa [#allocation14], 0
    %22 = vsyncpa [#allocation17], 0
    // Predicated region
    $region2: #{tpu_custom_call.1} parent=1 // pred_check
      _
    $region3: #{tpu_custom_call.1} parent=1 // pred_check_branch
      %24 = sbr.rel (0) target = $region5
    $region4: #{tpu_custom_call.1} parent=1 // pred_region
      %s26 = ssub.s32 1152, 1152
      %27 = vsyncadd [#allocation9], %s26
      %s28 = sshll.u32 [#allocation8], 4
      %s29 = int_to_ptr.vmem [resolvable:$true] %s28
      %34 = dma.hbm_to_vmem [thread:$0]  %s0, 1152, %s29, [#allocation9], 384, 384, 24
    $region5: #{tpu_custom_call.1} parent=1 // pred_fallthru
      _
    // Predicated region
    $region6: #{tpu_custom_call.1} parent=1 // pred_check
      _
    $region7: #{tpu_custom_call.1} parent=1 // pred_check_branch
      %36 = sbr.rel (0) target = $region9
    $region8: #{tpu_custom_call.1} parent=1 // pred_region
      %s38 = ssub.s32 384, 384
      %39 = vsyncadd [#allocation11], %s38
      %s40 = sshll.u32 [#allocation10], 4
      %s41 = int_to_ptr.vmem [resolvable:$true] %s40
      %46 = dma.hbm_to_vmem [thread:$0]  %s1, 384, %s41, [#allocation11], 192, 192, 12
    $region9: #{tpu_custom_call.1} parent=1 // pred_fallthru
      _
    // Predicated region
    $region10: #{tpu_custom_call.1} parent=1 // pred_check
      _
    $region11: #{tpu_custom_call.1} parent=1 // pred_check_branch
      %48 = sbr.rel (0) target = $region13
    $region12: #{tpu_custom_call.1} parent=1 // pred_region
      %s50 = ssub.s32 384, 384
      %51 = vsyncadd [#allocation11], %s50
      %s52 = sshll.u32 [#allocation12], 4
      %s53 = int_to_ptr.vmem [resolvable:$true] %s52
      %58 = dma.hbm_to_vmem [thread:$0]  %s2, 384, %s53, [#allocation11], 192, 192, 12
    $region13: #{tpu_custom_call.1} parent=1 // pred_fallthru
      _
    // Predicated region
    $region14: #{tpu_custom_call.1} parent=1 // pred_check
      _
    $region15: #{tpu_custom_call.1} parent=1 // pred_check_branch
      %60 = sbr.rel (0) target = $region17
    $region16: #{tpu_custom_call.1} parent=1 // pred_region
      %s62 = ssub.s32 73728, 73728
      %63 = vsyncadd [#allocation14], %s62
      %s64 = sshll.u32 [#allocation13], 4
      %s65 = int_to_ptr.vmem [resolvable:$true] %s64
      %70 = dma.hbm_to_vmem [thread:$0]  %s3, 73728, %s65, [#allocation14], 768, 768, 48
    $region17: #{tpu_custom_call.1} parent=1 // pred_fallthru
      _
    // Predicated region
    $region18: #{tpu_custom_call.1} parent=1 // pred_check
      _
    $region19: #{tpu_custom_call.1} parent=1 // pred_check_branch
      %72 = sbr.rel (0) target = $region21
    $region20: #{tpu_custom_call.1} parent=1 // pred_region
      %s74 = ssub.s32 192, 192
      %75 = vsyncadd [#allocation14], %s74
      %s77 = sshll.u32 [#allocation15], 4
      %s78 = int_to_ptr.vmem [resolvable:$true] %s77
      %80 = dma.hbm_to_vmem [thread:$0]  %s4, 192, %s78, [#allocation14]
    $region21: #{tpu_custom_call.1} parent=1 // pred_fallthru
      _
    // Predicated region
    $region22: #{tpu_custom_call.1} parent=1 // pred_check
      _
    $region23: #{tpu_custom_call.1} parent=1 // pred_check_branch
      %82 = sbr.rel (0) target = $region25
    $region24: #{tpu_custom_call.1} parent=1 // pred_region
      %s84 = ssub.s32 16, 16
      %85 = vsyncadd [#allocation17], %s84
      %s87 = sshll.u32 [#allocation16], 4
      %s88 = int_to_ptr.vmem [resolvable:$true] %s87
      %90 = dma.hbm_to_vmem [thread:$0]  %s9, 16, %s88, [#allocation17]
    $region25: #{tpu_custom_call.1} parent=1 // pred_fallthru
      _
    // Predicated region
    $region26: #{tpu_custom_call.1} parent=1 // pred_check
      _
    $region27: #{tpu_custom_call.1} parent=1 // pred_check_branch
      %92 = sbr.rel (0) target = $region29
    $region28: #{tpu_custom_call.1} parent=1 // pred_region
      _
    $region29: #{tpu_custom_call.1} parent=1 // pred_fallthru
      _
    // Predicated region
    $region30: #{tpu_custom_call.1} parent=1 // pred_check
      _
    $region31: #{tpu_custom_call.1} parent=1 // pred_check_branch
      %94 = sbr.rel (0) target = $region33
    $region32: #{tpu_custom_call.1} parent=1 // pred_region
      _
    $region33: #{tpu_custom_call.1} parent=1 // pred_fallthru
      _
    // Predicated region
    $region34: #{tpu_custom_call.1} parent=1 // pred_check
      _
    $region35: #{tpu_custom_call.1} parent=1 // pred_check_branch
      %96 = sbr.rel (0) target = $region37
    $region36: #{tpu_custom_call.1} parent=1 // pred_region
      %97 = dma.done [#allocation9], 1152
    $region37: #{tpu_custom_call.1} parent=1 // pred_fallthru
      _
    // Predicated region
    $region38: #{tpu_custom_call.1} parent=1 // pred_check
      _
    $region39: #{tpu_custom_call.1} parent=1 // pred_check_branch
      %99 = sbr.rel (0) target = $region41
    $region40: #{tpu_custom_call.1} parent=1 // pred_region
      %100 = dma.done [#allocation11], 384
    $region41: #{tpu_custom_call.1} parent=1 // pred_fallthru
      _
    // Predicated region
    $region42: #{tpu_custom_call.1} parent=1 // pred_check
      _
    $region43: #{tpu_custom_call.1} parent=1 // pred_check_branch
      %102 = sbr.rel (0) target = $region45
    $region44: #{tpu_custom_call.1} parent=1 // pred_region
      %103 = dma.done [#allocation11], 384
    $region45: #{tpu_custom_call.1} parent=1 // pred_fallthru
      _
    // Predicated region
    $region46: #{tpu_custom_call.1} parent=1 // pred_check
      _
    $region47: #{tpu_custom_call.1} parent=1 // pred_check_branch
      %105 = sbr.rel (0) target = $region49
    $region48: #{tpu_custom_call.1} parent=1 // pred_region
      %106 = dma.done [#allocation14], 73728
    $region49: #{tpu_custom_call.1} parent=1 // pred_fallthru
      _
    // Predicated region
    $region50: #{tpu_custom_call.1} parent=1 // pred_check
      _
    $region51: #{tpu_custom_call.1} parent=1 // pred_check_branch
      %108 = sbr.rel (0) target = $region53
    $region52: #{tpu_custom_call.1} parent=1 // pred_region
      %109 = dma.done [#allocation14], 192
    $region53: #{tpu_custom_call.1} parent=1 // pred_fallthru
      _
    // Predicated region
    $region54: #{tpu_custom_call.1} parent=1 // pred_check
      _
    $region55: #{tpu_custom_call.1} parent=1 // pred_check_branch
      %111 = sbr.rel (0) target = $region57
    $region56: #{tpu_custom_call.1} parent=1 // pred_region
      %112 = dma.done [#allocation17], 16
    $region57: #{tpu_custom_call.1} parent=1 // pred_fallthru
      _
    %s115 = sshll.u32 1, 14
    %s116 = sxor.u32 4294967295, %s115
    %s118 = sld [smem:[#allocation0]]
    %s119 = sadd.s32 2, %s118
    %s121 = sshll.u32 7, 26
    %s122 = sxor.u32 4294967295, %s121
    %s123 = sand.u32 0, %s122
    %s124 = sshll.u32 %s119, 26
    %s125 = sor.u32 %s123, %s124
    %s126 = sshll.u32 [#allocation2], 4
    %s127 = int_to_ptr.vmem [resolvable:$true] %s126
    %130 = sst [smem:[#allocation19]] 1536
    %s131 = scalar_lea.smem [#allocation19], 1
    %132 = sst [smem:[%s131]] 1536
    %s133 = scalar_lea.smem [#allocation19], 2
    %134 = sst [smem:[%s133]] 12
    %s135 = scalar_lea.smem [#allocation19], 3
    %136 = sst [smem:[%s135]] 64
    %s137 = scalar_lea.smem [#allocation19], 4
    %138 = sst [smem:[%s137]] 128
    %s139 = scalar_lea.smem [#allocation19], 5
    %140 = sst [smem:[%s139]] 2
    %s141 = scalar_lea.smem [#allocation19], 6
    %142 = sst [smem:[%s141]] 768
    %s143 = scalar_lea.smem [#allocation19], 7
    %144 = sst [smem:[%s143]] 64
    %s145 = scalar_lea.smem [#allocation19], 8
    %146 = sst [smem:[%s145]] 4
    %148 = dma.general %s5, 36864, %s127, [#allocation6], [#allocation18], [#allocation19], %s125, 0
    %s149 = scalar_lea.sflag [#allocation6], 1
    %s151 = sshll.u32 1, 14
    %s152 = sxor.u32 4294967295, %s151
    %s154 = sadd.s32 2, %s118
    %s156 = sshll.u32 7, 26
    %s157 = sxor.u32 4294967295, %s156
    %s158 = sand.u32 0, %s157
    %s159 = sshll.u32 %s154, 26
    %s160 = sor.u32 %s158, %s159
    %s161 = sshll.u32 [#allocation3], 4
    %s162 = int_to_ptr.vmem [resolvable:$true] %s161
    %165 = sst [smem:[#allocation21]] 64
    %s166 = scalar_lea.smem [#allocation21], 1
    %167 = sst [smem:[%s166]] 128
    %s168 = scalar_lea.smem [#allocation21], 2
    %169 = sst [smem:[%s168]] 2
    %s170 = scalar_lea.smem [#allocation21], 3
    %171 = sst [smem:[%s170]] 384
    %s172 = scalar_lea.smem [#allocation21], 4
    %173 = sst [smem:[%s172]] 64
    %s174 = scalar_lea.smem [#allocation21], 5
    %175 = sst [smem:[%s174]] 4
    %177 = dma.general %s6, 768, %s162, %s149, [#allocation20], [#allocation21], %s160, 0
    %s178 = scalar_lea.sflag [#allocation6], 2
    // Predicated region
    $region58: #{tpu_custom_call.1} parent=1 // pred_check
      _
    $region59: #{tpu_custom_call.1} parent=1 // pred_check_branch
      %180 = sbr.rel target = $region61
    $region60: #{tpu_custom_call.1} parent=1 // pred_region
      %181 = sst [smem:[#allocation24]] [#allocation23]
      %182 = sst [smem:[#allocation25]] [#allocation22]
    $region61: #{tpu_custom_call.1} parent=1 // pred_fallthru
      _
    %184 = shalt.err (0)
    %s186 = sshll.u32 [#allocation4], 4
    %s187 = int_to_ptr.vmem [resolvable:$true] %s186
    %189 = dma.hbm_to_vmem [thread:$0]  %s7, 3072, %s187, %s178
    %s190 = scalar_lea.sflag [#allocation6], 3
    // Predicated region
    $region62: #{tpu_custom_call.1} parent=1 // pred_check
      _
    $region63: #{tpu_custom_call.1} parent=1 // pred_check_branch
      %192 = sbr.rel target = $region65
    $region64: #{tpu_custom_call.1} parent=1 // pred_region
      %193 = sst [smem:[#allocation24]] [#allocation27]
      %194 = sst [smem:[#allocation25]] [#allocation26]
    $region65: #{tpu_custom_call.1} parent=1 // pred_fallthru
      _
    %196 = shalt.err (0)
    %s198 = sshll.u32 [#allocation5], 4
    %s199 = int_to_ptr.vmem [resolvable:$true] %s198
    %201 = dma.hbm_to_vmem [thread:$0]  %s8, 6144, %s199, %s190
    %v202 = vld [vmem:[#allocation8] sm:$0xff]
    %v203 = vld [vmem:[#allocation8 + $0x8] sm:$0xff]
    %v204 = vld [vmem:[#allocation8 + $0x10] sm:$0xff]
    %v205 = vld [vmem:[#allocation8 + $0x18] sm:$0xff]
    %v206 = vld [vmem:[#allocation8 + $0x20] sm:$0xff]
    %v207 = vld [vmem:[#allocation8 + $0x28] sm:$0xff]
    %v208 = vld [vmem:[#allocation8 + $0x30] sm:$0x11]
    %v209 = vld [vmem:[#allocation8 + $0x38] sm:$0x11]
    %v210 = vld [vmem:[#allocation8 + $0x40] sm:$0x11]
    %v211 = vld [vmem:[#allocation13] sm:$0xff]
    %v212 = vld [vmem:[#allocation13 + $0x8] sm:$0xff]
    %v213 = vld [vmem:[#allocation13 + $0x10] sm:$0xff]
    %v214 = vld [vmem:[#allocation13 + $0x18] sm:$0xff]
    %v215 = vld [vmem:[#allocation13 + $0x20] sm:$0xff]
    %v216 = vld [vmem:[#allocation13 + $0x28] sm:$0xff]
    %v217 = vld [vmem:[#allocation13 + $0x30] sm:$0xff]
    %v218 = vld [vmem:[#allocation13 + $0x38] sm:$0xff]
    %v219 = vld [vmem:[#allocation13 + $0x40] sm:$0xff]
    %v220 = vld [vmem:[#allocation13 + $0x48] sm:$0xff]
    %v221 = vld [vmem:[#allocation13 + $0x50] sm:$0xff]
    %v222 = vld [vmem:[#allocation13 + $0x58] sm:$0xff]
    %v223 = vld [vmem:[#allocation13 + $0x60] sm:$0xff]
    %v224 = vld [vmem:[#allocation13 + $0x68] sm:$0xff]
    %v225 = vld [vmem:[#allocation13 + $0x70] sm:$0xff]
    %v226 = vld [vmem:[#allocation13 + $0x78] sm:$0xff]
    %v227 = vld [vmem:[#allocation13 + $0x80] sm:$0xff]
    %v228 = vld [vmem:[#allocation13 + $0x88] sm:$0xff]
    %v229 = vld [vmem:[#allocation13 + $0x90] sm:$0xff]
    %v230 = vld [vmem:[#allocation13 + $0x98] sm:$0xff]
    %v231 = vld [vmem:[#allocation13 + $0xa0] sm:$0xff]
    %v232 = vld [vmem:[#allocation13 + $0xa8] sm:$0xff]
    %v233 = vld [vmem:[#allocation13 + $0xb0] sm:$0xff]
    %v234 = vld [vmem:[#allocation13 + $0xb8] sm:$0xff]
    %v235 = vld [vmem:[#allocation13 + $0xc0] sm:$0xff]
    %v236 = vld [vmem:[#allocation13 + $0xc8] sm:$0xff]
    %v237 = vld [vmem:[#allocation13 + $0xd0] sm:$0xff]
    %v238 = vld [vmem:[#allocation13 + $0xd8] sm:$0xff]
    %v239 = vld [vmem:[#allocation13 + $0xe0] sm:$0xff]
    %v240 = vld [vmem:[#allocation13 + $0xe8] sm:$0xff]
    %v241 = vld [vmem:[#allocation13 + $0xf0] sm:$0xff]
    %v242 = vld [vmem:[#allocation13 + $0xf8] sm:$0xff]
    %v243 = vld [vmem:[#allocation13 + $0x100] sm:$0xff]
    %v244 = vld [vmem:[#allocation13 + $0x108] sm:$0xff]
    %v245 = vld [vmem:[#allocation13 + $0x110] sm:$0xff]
    %v246 = vld [vmem:[#allocation13 + $0x118] sm:$0xff]
    %v247 = vld [vmem:[#allocation13 + $0x120] sm:$0xff]
    %v248 = vld [vmem:[#allocation13 + $0x128] sm:$0xff]
    %v249 = vld [vmem:[#allocation13 + $0x130] sm:$0xff]
    %v250 = vld [vmem:[#allocation13 + $0x138] sm:$0xff]
    %v251 = vld [vmem:[#allocation13 + $0x140] sm:$0xff]
    %v252 = vld [vmem:[#allocation13 + $0x148] sm:$0xff]
    %v253 = vld [vmem:[#allocation13 + $0x150] sm:$0xff]
    %v254 = vld [vmem:[#allocation13 + $0x158] sm:$0xff]
    %v255 = vld [vmem:[#allocation13 + $0x160] sm:$0xff]
    %v256 = vld [vmem:[#allocation13 + $0x168] sm:$0xff]
    %v257 = vld [vmem:[#allocation13 + $0x170] sm:$0xff]
    %v258 = vld [vmem:[#allocation13 + $0x178] sm:$0xff]
    %v259 = vld [vmem:[#allocation13 + $0x180] sm:$0xff]
    %v260 = vld [vmem:[#allocation13 + $0x188] sm:$0xff]
    %v261 = vld [vmem:[#allocation13 + $0x190] sm:$0xff]
    %v262 = vld [vmem:[#allocation13 + $0x198] sm:$0xff]
    %v263 = vld [vmem:[#allocation13 + $0x1a0] sm:$0xff]
    %v264 = vld [vmem:[#allocation13 + $0x1a8] sm:$0xff]
    %v265 = vld [vmem:[#allocation13 + $0x1b0] sm:$0xff]
    %v266 = vld [vmem:[#allocation13 + $0x1b8] sm:$0xff]
    %v267 = vld [vmem:[#allocation13 + $0x1c0] sm:$0xff]
    %v268 = vld [vmem:[#allocation13 + $0x1c8] sm:$0xff]
    %v269 = vld [vmem:[#allocation13 + $0x1d0] sm:$0xff]
    %v270 = vld [vmem:[#allocation13 + $0x1d8] sm:$0xff]
    %v271 = vld [vmem:[#allocation13 + $0x1e0] sm:$0xff]
    %v272 = vld [vmem:[#allocation13 + $0x1e8] sm:$0xff]
    %v273 = vld [vmem:[#allocation13 + $0x1f0] sm:$0xff]
    %v274 = vld [vmem:[#allocation13 + $0x1f8] sm:$0xff]
    %v275 = vld [vmem:[#allocation13 + $0x200] sm:$0xff]
    %v276 = vld [vmem:[#allocation13 + $0x208] sm:$0xff]
    %v277 = vld [vmem:[#allocation13 + $0x210] sm:$0xff]
    %v278 = vld [vmem:[#allocation13 + $0x218] sm:$0xff]
    %v279 = vld [vmem:[#allocation13 + $0x220] sm:$0xff]
    %v280 = vld [vmem:[#allocation13 + $0x228] sm:$0xff]
    %v281 = vld [vmem:[#allocation13 + $0x230] sm:$0xff]
    %v282 = vld [vmem:[#allocation13 + $0x238] sm:$0xff]
    %v283 = vld [vmem:[#allocation13 + $0x240] sm:$0xff]
    %v284 = vld [vmem:[#allocation13 + $0x248] sm:$0xff]
    %v285 = vld [vmem:[#allocation13 + $0x250] sm:$0xff]
    %v286 = vld [vmem:[#allocation13 + $0x258] sm:$0xff]
    %v287 = vld [vmem:[#allocation13 + $0x260] sm:$0xff]
    %v288 = vld [vmem:[#allocation13 + $0x268] sm:$0xff]
    %v289 = vld [vmem:[#allocation13 + $0x270] sm:$0xff]
    %v290 = vld [vmem:[#allocation13 + $0x278] sm:$0xff]
    %v291 = vld [vmem:[#allocation13 + $0x280] sm:$0xff]
    %v292 = vld [vmem:[#allocation13 + $0x288] sm:$0xff]
    %v293 = vld [vmem:[#allocation13 + $0x290] sm:$0xff]
    %v294 = vld [vmem:[#allocation13 + $0x298] sm:$0xff]
    %v295 = vld [vmem:[#allocation13 + $0x2a0] sm:$0xff]
    %v296 = vld [vmem:[#allocation13 + $0x2a8] sm:$0xff]
    %v297 = vld [vmem:[#allocation13 + $0x2b0] sm:$0xff]
    %v298 = vld [vmem:[#allocation13 + $0x2b8] sm:$0xff]
    %v299 = vld [vmem:[#allocation13 + $0x2c0] sm:$0xff]
    %v300 = vld [vmem:[#allocation13 + $0x2c8] sm:$0xff]
    %v301 = vld [vmem:[#allocation13 + $0x2d0] sm:$0xff]
    %v302 = vld [vmem:[#allocation13 + $0x2d8] sm:$0xff]
    %v303 = vld [vmem:[#allocation13 + $0x2e0] sm:$0xff]
    %v304 = vld [vmem:[#allocation13 + $0x2e8] sm:$0xff]
    %v305 = vld [vmem:[#allocation13 + $0x2f0] sm:$0xff]
    %v306 = vld [vmem:[#allocation13 + $0x2f8] sm:$0xff]
    %v307 = vld [vmem:[#allocation13 + $0x300] sm:$0xff]
    %v308 = vld [vmem:[#allocation13 + $0x308] sm:$0xff]
    %v309 = vld [vmem:[#allocation13 + $0x310] sm:$0xff]
    %v310 = vld [vmem:[#allocation13 + $0x318] sm:$0xff]
    %v311 = vld [vmem:[#allocation13 + $0x320] sm:$0xff]
    %v312 = vld [vmem:[#allocation13 + $0x328] sm:$0xff]
    %v313 = vld [vmem:[#allocation13 + $0x330] sm:$0xff]
    %v314 = vld [vmem:[#allocation13 + $0x338] sm:$0xff]
    %v315 = vld [vmem:[#allocation13 + $0x340] sm:$0xff]
    %v316 = vld [vmem:[#allocation13 + $0x348] sm:$0xff]
    %v317 = vld [vmem:[#allocation13 + $0x350] sm:$0xff]
    %v318 = vld [vmem:[#allocation13 + $0x358] sm:$0xff]
    %v319 = vld [vmem:[#allocation13 + $0x360] sm:$0xff]
    %v320 = vld [vmem:[#allocation13 + $0x368] sm:$0xff]
    %v321 = vld [vmem:[#allocation13 + $0x370] sm:$0xff]
    %v322 = vld [vmem:[#allocation13 + $0x378] sm:$0xff]
    %v323 = vld [vmem:[#allocation13 + $0x380] sm:$0xff]
    %v324 = vld [vmem:[#allocation13 + $0x388] sm:$0xff]
    %v325 = vld [vmem:[#allocation13 + $0x390] sm:$0xff]
    %v326 = vld [vmem:[#allocation13 + $0x398] sm:$0xff]
    %v327 = vld [vmem:[#allocation13 + $0x3a0] sm:$0xff]
    %v328 = vld [vmem:[#allocation13 + $0x3a8] sm:$0xff]
    %v329 = vld [vmem:[#allocation13 + $0x3b0] sm:$0xff]
    %v330 = vld [vmem:[#allocation13 + $0x3b8] sm:$0xff]
    %v331 = vld [vmem:[#allocation13 + $0x3c0] sm:$0xff]
    %v332 = vld [vmem:[#allocation13 + $0x3c8] sm:$0xff]
    %v333 = vld [vmem:[#allocation13 + $0x3d0] sm:$0xff]
    %v334 = vld [vmem:[#allocation13 + $0x3d8] sm:$0xff]
    %v335 = vld [vmem:[#allocation13 + $0x3e0] sm:$0xff]
    %v336 = vld [vmem:[#allocation13 + $0x3e8] sm:$0xff]
    %v337 = vld [vmem:[#allocation13 + $0x3f0] sm:$0xff]
    %v338 = vld [vmem:[#allocation13 + $0x3f8] sm:$0xff]
    %v339 = vld [vmem:[#allocation13 + $0x400] sm:$0xff]
    %v340 = vld [vmem:[#allocation13 + $0x408] sm:$0xff]
    %v341 = vld [vmem:[#allocation13 + $0x410] sm:$0xff]
    %v342 = vld [vmem:[#allocation13 + $0x418] sm:$0xff]
    %v343 = vld [vmem:[#allocation13 + $0x420] sm:$0xff]
    %v344 = vld [vmem:[#allocation13 + $0x428] sm:$0xff]
    %v345 = vld [vmem:[#allocation13 + $0x430] sm:$0xff]
    %v346 = vld [vmem:[#allocation13 + $0x438] sm:$0xff]
    %v347 = vld [vmem:[#allocation13 + $0x440] sm:$0xff]
    %v348 = vld [vmem:[#allocation13 + $0x448] sm:$0xff]
    %v349 = vld [vmem:[#allocation13 + $0x450] sm:$0xff]
    %v350 = vld [vmem:[#allocation13 + $0x458] sm:$0xff]
    %v351 = vld [vmem:[#allocation13 + $0x460] sm:$0xff]
    %v352 = vld [vmem:[#allocation13 + $0x468] sm:$0xff]
    %v353 = vld [vmem:[#allocation13 + $0x470] sm:$0xff]
    %v354 = vld [vmem:[#allocation13 + $0x478] sm:$0xff]
    %v355 = vld [vmem:[#allocation13 + $0x480] sm:$0xff]
    %v356 = vld [vmem:[#allocation13 + $0x488] sm:$0xff]
    %v357 = vld [vmem:[#allocation13 + $0x490] sm:$0xff]
    %v358 = vld [vmem:[#allocation13 + $0x498] sm:$0xff]
    %v359 = vld [vmem:[#allocation13 + $0x4a0] sm:$0xff]
    %v360 = vld [vmem:[#allocation13 + $0x4a8] sm:$0xff]
    %v361 = vld [vmem:[#allocation13 + $0x4b0] sm:$0xff]
    %v362 = vld [vmem:[#allocation13 + $0x4b8] sm:$0xff]
    %v363 = vld [vmem:[#allocation13 + $0x4c0] sm:$0xff]
    %v364 = vld [vmem:[#allocation13 + $0x4c8] sm:$0xff]
    %v365 = vld [vmem:[#allocation13 + $0x4d0] sm:$0xff]
    %v366 = vld [vmem:[#allocation13 + $0x4d8] sm:$0xff]
    %v367 = vld [vmem:[#allocation13 + $0x4e0] sm:$0xff]
    %v368 = vld [vmem:[#allocation13 + $0x4e8] sm:$0xff]
    %v369 = vld [vmem:[#allocation13 + $0x4f0] sm:$0xff]
    %v370 = vld [vmem:[#allocation13 + $0x4f8] sm:$0xff]
    %v371 = vld [vmem:[#allocation13 + $0x500] sm:$0xff]
    %v372 = vld [vmem:[#allocation13 + $0x508] sm:$0xff]
    %v373 = vld [vmem:[#allocation13 + $0x510] sm:$0xff]
    %v374 = vld [vmem:[#allocation13 + $0x518] sm:$0xff]
    %v375 = vld [vmem:[#allocation13 + $0x520] sm:$0xff]
    %v376 = vld [vmem:[#allocation13 + $0x528] sm:$0xff]
    %v377 = vld [vmem:[#allocation13 + $0x530] sm:$0xff]
    %v378 = vld [vmem:[#allocation13 + $0x538] sm:$0xff]
    %v379 = vld [vmem:[#allocation13 + $0x540] sm:$0xff]
    %v380 = vld [vmem:[#allocation13 + $0x548] sm:$0xff]
    %v381 = vld [vmem:[#allocation13 + $0x550] sm:$0xff]
    %v382 = vld [vmem:[#allocation13 + $0x558] sm:$0xff]
    %v383 = vld [vmem:[#allocation13 + $0x560] sm:$0xff]
    %v384 = vld [vmem:[#allocation13 + $0x568] sm:$0xff]
    %v385 = vld [vmem:[#allocation13 + $0x570] sm:$0xff]
    %v386 = vld [vmem:[#allocation13 + $0x578] sm:$0xff]
    %v387 = vld [vmem:[#allocation13 + $0x580] sm:$0xff]
    %v388 = vld [vmem:[#allocation13 + $0x588] sm:$0xff]
    %v389 = vld [vmem:[#allocation13 + $0x590] sm:$0xff]
    %v390 = vld [vmem:[#allocation13 + $0x598] sm:$0xff]
    %v391 = vld [vmem:[#allocation13 + $0x5a0] sm:$0xff]
    %v392 = vld [vmem:[#allocation13 + $0x5a8] sm:$0xff]
    %v393 = vld [vmem:[#allocation13 + $0x5b0] sm:$0xff]
    %v394 = vld [vmem:[#allocation13 + $0x5b8] sm:$0xff]
    %v395 = vld [vmem:[#allocation13 + $0x5c0] sm:$0xff]
    %v396 = vld [vmem:[#allocation13 + $0x5c8] sm:$0xff]
    %v397 = vld [vmem:[#allocation13 + $0x5d0] sm:$0xff]
    %v398 = vld [vmem:[#allocation13 + $0x5d8] sm:$0xff]
    %v399 = vld [vmem:[#allocation13 + $0x5e0] sm:$0xff]
    %v400 = vld [vmem:[#allocation13 + $0x5e8] sm:$0xff]
    %v401 = vld [vmem:[#allocation13 + $0x5f0] sm:$0xff]
    %v402 = vld [vmem:[#allocation13 + $0x5f8] sm:$0xff]
    %v403 = vld [vmem:[#allocation13 + $0x600] sm:$0xff]
    %v404 = vld [vmem:[#allocation13 + $0x608] sm:$0xff]
    %v405 = vld [vmem:[#allocation13 + $0x610] sm:$0xff]
    %v406 = vld [vmem:[#allocation13 + $0x618] sm:$0xff]
    %v407 = vld [vmem:[#allocation13 + $0x620] sm:$0xff]
    %v408 = vld [vmem:[#allocation13 + $0x628] sm:$0xff]
    %v409 = vld [vmem:[#allocation13 + $0x630] sm:$0xff]
    %v410 = vld [vmem:[#allocation13 + $0x638] sm:$0xff]
    %v411 = vld [vmem:[#allocation13 + $0x640] sm:$0xff]
    %v412 = vld [vmem:[#allocation13 + $0x648] sm:$0xff]
    %v413 = vld [vmem:[#allocation13 + $0x650] sm:$0xff]
    %v414 = vld [vmem:[#allocation13 + $0x658] sm:$0xff]
    %v415 = vld [vmem:[#allocation13 + $0x660] sm:$0xff]
    %v416 = vld [vmem:[#allocation13 + $0x668] sm:$0xff]
    %v417 = vld [vmem:[#allocation13 + $0x670] sm:$0xff]
    %v418 = vld [vmem:[#allocation13 + $0x678] sm:$0xff]
    %v419 = vld [vmem:[#allocation13 + $0x680] sm:$0xff]
    %v420 = vld [vmem:[#allocation13 + $0x688] sm:$0xff]
    %v421 = vld [vmem:[#allocation13 + $0x690] sm:$0xff]
    %v422 = vld [vmem:[#allocation13 + $0x698] sm:$0xff]
    %v423 = vld [vmem:[#allocation13 + $0x6a0] sm:$0xff]
    %v424 = vld [vmem:[#allocation13 + $0x6a8] sm:$0xff]
    %v425 = vld [vmem:[#allocation13 + $0x6b0] sm:$0xff]
    %v426 = vld [vmem:[#allocation13 + $0x6b8] sm:$0xff]
    %v427 = vld [vmem:[#allocation13 + $0x6c0] sm:$0xff]
    %v428 = vld [vmem:[#allocation13 + $0x6c8] sm:$0xff]
    %v429 = vld [vmem:[#allocation13 + $0x6d0] sm:$0xff]
    %v430 = vld [vmem:[#allocation13 + $0x6d8] sm:$0xff]
    %v431 = vld [vmem:[#allocation13 + $0x6e0] sm:$0xff]
    %v432 = vld [vmem:[#allocation13 + $0x6e8] sm:$0xff]
    %v433 = vld [vmem:[#allocation13 + $0x6f0] sm:$0xff]
    %v434 = vld [vmem:[#allocation13 + $0x6f8] sm:$0xff]
    %v435 = vld [vmem:[#allocation13 + $0x700] sm:$0xff]
    %v436 = vld [vmem:[#allocation13 + $0x708] sm:$0xff]
    %v437 = vld [vmem:[#allocation13 + $0x710] sm:$0xff]
    %v438 = vld [vmem:[#allocation13 + $0x718] sm:$0xff]
    %v439 = vld [vmem:[#allocation13 + $0x720] sm:$0xff]
    %v440 = vld [vmem:[#allocation13 + $0x728] sm:$0xff]
    %v441 = vld [vmem:[#allocation13 + $0x730] sm:$0xff]
    %v442 = vld [vmem:[#allocation13 + $0x738] sm:$0xff]
    %v443 = vld [vmem:[#allocation13 + $0x740] sm:$0xff]
    %v444 = vld [vmem:[#allocation13 + $0x748] sm:$0xff]
    %v445 = vld [vmem:[#allocation13 + $0x750] sm:$0xff]
    %v446 = vld [vmem:[#allocation13 + $0x758] sm:$0xff]
    %v447 = vld [vmem:[#allocation13 + $0x760] sm:$0xff]
    %v448 = vld [vmem:[#allocation13 + $0x768] sm:$0xff]
    %v449 = vld [vmem:[#allocation13 + $0x770] sm:$0xff]
    %v450 = vld [vmem:[#allocation13 + $0x778] sm:$0xff]
    %v451 = vld [vmem:[#allocation13 + $0x780] sm:$0xff]
    %v452 = vld [vmem:[#allocation13 + $0x788] sm:$0xff]
    %v453 = vld [vmem:[#allocation13 + $0x790] sm:$0xff]
    %v454 = vld [vmem:[#allocation13 + $0x798] sm:$0xff]
    %v455 = vld [vmem:[#allocation13 + $0x7a0] sm:$0xff]
    %v456 = vld [vmem:[#allocation13 + $0x7a8] sm:$0xff]
    %v457 = vld [vmem:[#allocation13 + $0x7b0] sm:$0xff]
    %v458 = vld [vmem:[#allocation13 + $0x7b8] sm:$0xff]
    %v459 = vld [vmem:[#allocation13 + $0x7c0] sm:$0xff]
    %v460 = vld [vmem:[#allocation13 + $0x7c8] sm:$0xff]
    %v461 = vld [vmem:[#allocation13 + $0x7d0] sm:$0xff]
    %v462 = vld [vmem:[#allocation13 + $0x7d8] sm:$0xff]
    %v463 = vld [vmem:[#allocation13 + $0x7e0] sm:$0xff]
    %v464 = vld [vmem:[#allocation13 + $0x7e8] sm:$0xff]
    %v465 = vld [vmem:[#allocation13 + $0x7f0] sm:$0xff]
    %v466 = vld [vmem:[#allocation13 + $0x7f8] sm:$0xff]
    %v467 = vld [vmem:[#allocation13 + $0x800] sm:$0xff]
    %v468 = vld [vmem:[#allocation13 + $0x808] sm:$0xff]
    %v469 = vld [vmem:[#allocation13 + $0x810] sm:$0xff]
    %v470 = vld [vmem:[#allocation13 + $0x818] sm:$0xff]
    %v471 = vld [vmem:[#allocation13 + $0x820] sm:$0xff]
    %v472 = vld [vmem:[#allocation13 + $0x828] sm:$0xff]
    %v473 = vld [vmem:[#allocation13 + $0x830] sm:$0xff]
    %v474 = vld [vmem:[#allocation13 + $0x838] sm:$0xff]
    %v475 = vld [vmem:[#allocation13 + $0x840] sm:$0xff]
    %v476 = vld [vmem:[#allocation13 + $0x848] sm:$0xff]
    %v477 = vld [vmem:[#allocation13 + $0x850] sm:$0xff]
    %v478 = vld [vmem:[#allocation13 + $0x858] sm:$0xff]
    %v479 = vld [vmem:[#allocation13 + $0x860] sm:$0xff]
    %v480 = vld [vmem:[#allocation13 + $0x868] sm:$0xff]
    %v481 = vld [vmem:[#allocation13 + $0x870] sm:$0xff]
    %v482 = vld [vmem:[#allocation13 + $0x878] sm:$0xff]
    %v483 = vld [vmem:[#allocation13 + $0x880] sm:$0xff]
    %v484 = vld [vmem:[#allocation13 + $0x888] sm:$0xff]
    %v485 = vld [vmem:[#allocation13 + $0x890] sm:$0xff]
    %v486 = vld [vmem:[#allocation13 + $0x898] sm:$0xff]
    %v487 = vld [vmem:[#allocation13 + $0x8a0] sm:$0xff]
    %v488 = vld [vmem:[#allocation13 + $0x8a8] sm:$0xff]
    %v489 = vld [vmem:[#allocation13 + $0x8b0] sm:$0xff]
    %v490 = vld [vmem:[#allocation13 + $0x8b8] sm:$0xff]
    %v491 = vld [vmem:[#allocation13 + $0x8c0] sm:$0xff]
    %v492 = vld [vmem:[#allocation13 + $0x8c8] sm:$0xff]
    %v493 = vld [vmem:[#allocation13 + $0x8d0] sm:$0xff]
    %v494 = vld [vmem:[#allocation13 + $0x8d8] sm:$0xff]
    %v495 = vld [vmem:[#allocation13 + $0x8e0] sm:$0xff]
    %v496 = vld [vmem:[#allocation13 + $0x8e8] sm:$0xff]
    %v497 = vld [vmem:[#allocation13 + $0x8f0] sm:$0xff]
    %v498 = vld [vmem:[#allocation13 + $0x8f8] sm:$0xff]
    %v499 = vld [vmem:[#allocation13 + $0x900] sm:$0xff]
    %v500 = vld [vmem:[#allocation13 + $0x908] sm:$0xff]
    %v501 = vld [vmem:[#allocation13 + $0x910] sm:$0xff]
    %v502 = vld [vmem:[#allocation13 + $0x918] sm:$0xff]
    %v503 = vld [vmem:[#allocation13 + $0x920] sm:$0xff]
    %v504 = vld [vmem:[#allocation13 + $0x928] sm:$0xff]
    %v505 = vld [vmem:[#allocation13 + $0x930] sm:$0xff]
    %v506 = vld [vmem:[#allocation13 + $0x938] sm:$0xff]
    %v507 = vld [vmem:[#allocation13 + $0x940] sm:$0xff]
    %v508 = vld [vmem:[#allocation13 + $0x948] sm:$0xff]
    %v509 = vld [vmem:[#allocation13 + $0x950] sm:$0xff]
    %v510 = vld [vmem:[#allocation13 + $0x958] sm:$0xff]
    %v511 = vld [vmem:[#allocation13 + $0x960] sm:$0xff]
    %v512 = vld [vmem:[#allocation13 + $0x968] sm:$0xff]
    %v513 = vld [vmem:[#allocation13 + $0x970] sm:$0xff]
    %v514 = vld [vmem:[#allocation13 + $0x978] sm:$0xff]
    %v515 = vld [vmem:[#allocation13 + $0x980] sm:$0xff]
    %v516 = vld [vmem:[#allocation13 + $0x988] sm:$0xff]
    %v517 = vld [vmem:[#allocation13 + $0x990] sm:$0xff]
    %v518 = vld [vmem:[#allocation13 + $0x998] sm:$0xff]
    %v519 = vld [vmem:[#allocation13 + $0x9a0] sm:$0xff]
    %v520 = vld [vmem:[#allocation13 + $0x9a8] sm:$0xff]
    %v521 = vld [vmem:[#allocation13 + $0x9b0] sm:$0xff]
    %v522 = vld [vmem:[#allocation13 + $0x9b8] sm:$0xff]
    %v523 = vld [vmem:[#allocation13 + $0x9c0] sm:$0xff]
    %v524 = vld [vmem:[#allocation13 + $0x9c8] sm:$0xff]
    %v525 = vld [vmem:[#allocation13 + $0x9d0] sm:$0xff]
    %v526 = vld [vmem:[#allocation13 + $0x9d8] sm:$0xff]
    %v527 = vld [vmem:[#allocation13 + $0x9e0] sm:$0xff]
    %v528 = vld [vmem:[#allocation13 + $0x9e8] sm:$0xff]
    %v529 = vld [vmem:[#allocation13 + $0x9f0] sm:$0xff]
    %v530 = vld [vmem:[#allocation13 + $0x9f8] sm:$0xff]
    %v531 = vld [vmem:[#allocation13 + $0xa00] sm:$0xff]
    %v532 = vld [vmem:[#allocation13 + $0xa08] sm:$0xff]
    %v533 = vld [vmem:[#allocation13 + $0xa10] sm:$0xff]
    %v534 = vld [vmem:[#allocation13 + $0xa18] sm:$0xff]
    %v535 = vld [vmem:[#allocation13 + $0xa20] sm:$0xff]
    %v536 = vld [vmem:[#allocation13 + $0xa28] sm:$0xff]
    %v537 = vld [vmem:[#allocation13 + $0xa30] sm:$0xff]
    %v538 = vld [vmem:[#allocation13 + $0xa38] sm:$0xff]
    %v539 = vld [vmem:[#allocation13 + $0xa40] sm:$0xff]
    %v540 = vld [vmem:[#allocation13 + $0xa48] sm:$0xff]
    %v541 = vld [vmem:[#allocation13 + $0xa50] sm:$0xff]
    %v542 = vld [vmem:[#allocation13 + $0xa58] sm:$0xff]
    %v543 = vld [vmem:[#allocation13 + $0xa60] sm:$0xff]
    %v544 = vld [vmem:[#allocation13 + $0xa68] sm:$0xff]
    %v545 = vld [vmem:[#allocation13 + $0xa70] sm:$0xff]
    %v546 = vld [vmem:[#allocation13 + $0xa78] sm:$0xff]
    %v547 = vld [vmem:[#allocation13 + $0xa80] sm:$0xff]
    %v548 = vld [vmem:[#allocation13 + $0xa88] sm:$0xff]
    %v549 = vld [vmem:[#allocation13 + $0xa90] sm:$0xff]
    %v550 = vld [vmem:[#allocation13 + $0xa98] sm:$0xff]
    %v551 = vld [vmem:[#allocation13 + $0xaa0] sm:$0xff]
    %v552 = vld [vmem:[#allocation13 + $0xaa8] sm:$0xff]
    %v553 = vld [vmem:[#allocation13 + $0xab0] sm:$0xff]
    %v554 = vld [vmem:[#allocation13 + $0xab8] sm:$0xff]
    %v555 = vld [vmem:[#allocation13 + $0xac0] sm:$0xff]
    %v556 = vld [vmem:[#allocation13 + $0xac8] sm:$0xff]
    %v557 = vld [vmem:[#allocation13 + $0xad0] sm:$0xff]
    %v558 = vld [vmem:[#allocation13 + $0xad8] sm:$0xff]
    %v559 = vld [vmem:[#allocation13 + $0xae0] sm:$0xff]
    %v560 = vld [vmem:[#allocation13 + $0xae8] sm:$0xff]
    %v561 = vld [vmem:[#allocation13 + $0xaf0] sm:$0xff]
    %v562 = vld [vmem:[#allocation13 + $0xaf8] sm:$0xff]
    %v563 = vld [vmem:[#allocation13 + $0xb00] sm:$0xff]
    %v564 = vld [vmem:[#allocation13 + $0xb08] sm:$0xff]
    %v565 = vld [vmem:[#allocation13 + $0xb10] sm:$0xff]
    %v566 = vld [vmem:[#allocation13 + $0xb18] sm:$0xff]
    %v567 = vld [vmem:[#allocation13 + $0xb20] sm:$0xff]
    %v568 = vld [vmem:[#allocation13 + $0xb28] sm:$0xff]
    %v569 = vld [vmem:[#allocation13 + $0xb30] sm:$0xff]
    %v570 = vld [vmem:[#allocation13 + $0xb38] sm:$0xff]
    %v571 = vld [vmem:[#allocation13 + $0xb40] sm:$0xff]
    %v572 = vld [vmem:[#allocation13 + $0xb48] sm:$0xff]
    %v573 = vld [vmem:[#allocation13 + $0xb50] sm:$0xff]
    %v574 = vld [vmem:[#allocation13 + $0xb58] sm:$0xff]
    %v575 = vld [vmem:[#allocation13 + $0xb60] sm:$0xff]
    %v576 = vld [vmem:[#allocation13 + $0xb68] sm:$0xff]
    %v577 = vld [vmem:[#allocation13 + $0xb70] sm:$0xff]
    %v578 = vld [vmem:[#allocation13 + $0xb78] sm:$0xff]
    %v579 = vld [vmem:[#allocation13 + $0xb80] sm:$0xff]
    %v580 = vld [vmem:[#allocation13 + $0xb88] sm:$0xff]
    %v581 = vld [vmem:[#allocation13 + $0xb90] sm:$0xff]
    %v582 = vld [vmem:[#allocation13 + $0xb98] sm:$0xff]
    %v583 = vld [vmem:[#allocation13 + $0xba0] sm:$0xff]
    %v584 = vld [vmem:[#allocation13 + $0xba8] sm:$0xff]
    %v585 = vld [vmem:[#allocation13 + $0xbb0] sm:$0xff]
    %v586 = vld [vmem:[#allocation13 + $0xbb8] sm:$0xff]
    %v587 = vld [vmem:[#allocation13 + $0xbc0] sm:$0xff]
    %v588 = vld [vmem:[#allocation13 + $0xbc8] sm:$0xff]
    %v589 = vld [vmem:[#allocation13 + $0xbd0] sm:$0xff]
    %v590 = vld [vmem:[#allocation13 + $0xbd8] sm:$0xff]
    %v591 = vld [vmem:[#allocation13 + $0xbe0] sm:$0xff]
    %v592 = vld [vmem:[#allocation13 + $0xbe8] sm:$0xff]
    %v593 = vld [vmem:[#allocation13 + $0xbf0] sm:$0xff]
    %v594 = vld [vmem:[#allocation13 + $0xbf8] sm:$0xff]
    %v595 = vld [vmem:[#allocation13 + $0xc00] sm:$0xff]
    %v596 = vld [vmem:[#allocation13 + $0xc08] sm:$0xff]
    %v597 = vld [vmem:[#allocation13 + $0xc10] sm:$0xff]
    %v598 = vld [vmem:[#allocation13 + $0xc18] sm:$0xff]
    %v599 = vld [vmem:[#allocation13 + $0xc20] sm:$0xff]
    %v600 = vld [vmem:[#allocation13 + $0xc28] sm:$0xff]
    %v601 = vld [vmem:[#allocation13 + $0xc30] sm:$0xff]
    %v602 = vld [vmem:[#allocation13 + $0xc38] sm:$0xff]
    %v603 = vld [vmem:[#allocation13 + $0xc40] sm:$0xff]
    %v604 = vld [vmem:[#allocation13 + $0xc48] sm:$0xff]
    %v605 = vld [vmem:[#allocation13 + $0xc50] sm:$0xff]
    %v606 = vld [vmem:[#allocation13 + $0xc58] sm:$0xff]
    %v607 = vld [vmem:[#allocation13 + $0xc60] sm:$0xff]
    %v608 = vld [vmem:[#allocation13 + $0xc68] sm:$0xff]
    %v609 = vld [vmem:[#allocation13 + $0xc70] sm:$0xff]
    %v610 = vld [vmem:[#allocation13 + $0xc78] sm:$0xff]
    %v611 = vld [vmem:[#allocation13 + $0xc80] sm:$0xff]
    %v612 = vld [vmem:[#allocation13 + $0xc88] sm:$0xff]
    %v613 = vld [vmem:[#allocation13 + $0xc90] sm:$0xff]
    %v614 = vld [vmem:[#allocation13 + $0xc98] sm:$0xff]
    %v615 = vld [vmem:[#allocation13 + $0xca0] sm:$0xff]
    %v616 = vld [vmem:[#allocation13 + $0xca8] sm:$0xff]
    %v617 = vld [vmem:[#allocation13 + $0xcb0] sm:$0xff]
    %v618 = vld [vmem:[#allocation13 + $0xcb8] sm:$0xff]
    %v619 = vld [vmem:[#allocation13 + $0xcc0] sm:$0xff]
    %v620 = vld [vmem:[#allocation13 + $0xcc8] sm:$0xff]
    %v621 = vld [vmem:[#allocation13 + $0xcd0] sm:$0xff]
    %v622 = vld [vmem:[#allocation13 + $0xcd8] sm:$0xff]
    %v623 = vld [vmem:[#allocation13 + $0xce0] sm:$0xff]
    %v624 = vld [vmem:[#allocation13 + $0xce8] sm:$0xff]
    %v625 = vld [vmem:[#allocation13 + $0xcf0] sm:$0xff]
    %v626 = vld [vmem:[#allocation13 + $0xcf8] sm:$0xff]
    %v627 = vld [vmem:[#allocation13 + $0xd00] sm:$0xff]
    %v628 = vld [vmem:[#allocation13 + $0xd08] sm:$0xff]
    %v629 = vld [vmem:[#allocation13 + $0xd10] sm:$0xff]
    %v630 = vld [vmem:[#allocation13 + $0xd18] sm:$0xff]
    %v631 = vld [vmem:[#allocation13 + $0xd20] sm:$0xff]
    %v632 = vld [vmem:[#allocation13 + $0xd28] sm:$0xff]
    %v633 = vld [vmem:[#allocation13 + $0xd30] sm:$0xff]
    %v634 = vld [vmem:[#allocation13 + $0xd38] sm:$0xff]
    %v635 = vld [vmem:[#allocation13 + $0xd40] sm:$0xff]
    %v636 = vld [vmem:[#allocation13 + $0xd48] sm:$0xff]
    %v637 = vld [vmem:[#allocation13 + $0xd50] sm:$0xff]
    %v638 = vld [vmem:[#allocation13 + $0xd58] sm:$0xff]
    %v639 = vld [vmem:[#allocation13 + $0xd60] sm:$0xff]
    %v640 = vld [vmem:[#allocation13 + $0xd68] sm:$0xff]
    %v641 = vld [vmem:[#allocation13 + $0xd70] sm:$0xff]
    %v642 = vld [vmem:[#allocation13 + $0xd78] sm:$0xff]
    %v643 = vld [vmem:[#allocation13 + $0xd80] sm:$0xff]
    %v644 = vld [vmem:[#allocation13 + $0xd88] sm:$0xff]
    %v645 = vld [vmem:[#allocation13 + $0xd90] sm:$0xff]
    %v646 = vld [vmem:[#allocation13 + $0xd98] sm:$0xff]
    %v647 = vld [vmem:[#allocation13 + $0xda0] sm:$0xff]
    %v648 = vld [vmem:[#allocation13 + $0xda8] sm:$0xff]
    %v649 = vld [vmem:[#allocation13 + $0xdb0] sm:$0xff]
    %v650 = vld [vmem:[#allocation13 + $0xdb8] sm:$0xff]
    %v651 = vld [vmem:[#allocation13 + $0xdc0] sm:$0xff]
    %v652 = vld [vmem:[#allocation13 + $0xdc8] sm:$0xff]
    %v653 = vld [vmem:[#allocation13 + $0xdd0] sm:$0xff]
    %v654 = vld [vmem:[#allocation13 + $0xdd8] sm:$0xff]
    %v655 = vld [vmem:[#allocation13 + $0xde0] sm:$0xff]
    %v656 = vld [vmem:[#allocation13 + $0xde8] sm:$0xff]
    %v657 = vld [vmem:[#allocation13 + $0xdf0] sm:$0xff]
    %v658 = vld [vmem:[#allocation13 + $0xdf8] sm:$0xff]
    %v659 = vld [vmem:[#allocation13 + $0xe00] sm:$0xff]
    %v660 = vld [vmem:[#allocation13 + $0xe08] sm:$0xff]
    %v661 = vld [vmem:[#allocation13 + $0xe10] sm:$0xff]
    %v662 = vld [vmem:[#allocation13 + $0xe18] sm:$0xff]
    %v663 = vld [vmem:[#allocation13 + $0xe20] sm:$0xff]
    %v664 = vld [vmem:[#allocation13 + $0xe28] sm:$0xff]
    %v665 = vld [vmem:[#allocation13 + $0xe30] sm:$0xff]
    %v666 = vld [vmem:[#allocation13 + $0xe38] sm:$0xff]
    %v667 = vld [vmem:[#allocation13 + $0xe40] sm:$0xff]
    %v668 = vld [vmem:[#allocation13 + $0xe48] sm:$0xff]
    %v669 = vld [vmem:[#allocation13 + $0xe50] sm:$0xff]
    %v670 = vld [vmem:[#allocation13 + $0xe58] sm:$0xff]
    %v671 = vld [vmem:[#allocation13 + $0xe60] sm:$0xff]
    %v672 = vld [vmem:[#allocation13 + $0xe68] sm:$0xff]
    %v673 = vld [vmem:[#allocation13 + $0xe70] sm:$0xff]
    %v674 = vld [vmem:[#allocation13 + $0xe78] sm:$0xff]
    %v675 = vld [vmem:[#allocation13 + $0xe80] sm:$0xff]
    %v676 = vld [vmem:[#allocation13 + $0xe88] sm:$0xff]
    %v677 = vld [vmem:[#allocation13 + $0xe90] sm:$0xff]
    %v678 = vld [vmem:[#allocation13 + $0xe98] sm:$0xff]
    %v679 = vld [vmem:[#allocation13 + $0xea0] sm:$0xff]
    %v680 = vld [vmem:[#allocation13 + $0xea8] sm:$0xff]
    %v681 = vld [vmem:[#allocation13 + $0xeb0] sm:$0xff]
    %v682 = vld [vmem:[#allocation13 + $0xeb8] sm:$0xff]
    %v683 = vld [vmem:[#allocation13 + $0xec0] sm:$0xff]
    %v684 = vld [vmem:[#allocation13 + $0xec8] sm:$0xff]
    %v685 = vld [vmem:[#allocation13 + $0xed0] sm:$0xff]
    %v686 = vld [vmem:[#allocation13 + $0xed8] sm:$0xff]
    %v687 = vld [vmem:[#allocation13 + $0xee0] sm:$0xff]
    %v688 = vld [vmem:[#allocation13 + $0xee8] sm:$0xff]
    %v689 = vld [vmem:[#allocation13 + $0xef0] sm:$0xff]
    %v690 = vld [vmem:[#allocation13 + $0xef8] sm:$0xff]
    %v691 = vld [vmem:[#allocation13 + $0xf00] sm:$0xff]
    %v692 = vld [vmem:[#allocation13 + $0xf08] sm:$0xff]
    %v693 = vld [vmem:[#allocation13 + $0xf10] sm:$0xff]
    %v694 = vld [vmem:[#allocation13 + $0xf18] sm:$0xff]
    %v695 = vld [vmem:[#allocation13 + $0xf20] sm:$0xff]
    %v696 = vld [vmem:[#allocation13 + $0xf28] sm:$0xff]
    %v697 = vld [vmem:[#allocation13 + $0xf30] sm:$0xff]
    %v698 = vld [vmem:[#allocation13 + $0xf38] sm:$0xff]
    %v699 = vld [vmem:[#allocation13 + $0xf40] sm:$0xff]
    %v700 = vld [vmem:[#allocation13 + $0xf48] sm:$0xff]
    %v701 = vld [vmem:[#allocation13 + $0xf50] sm:$0xff]
    %v702 = vld [vmem:[#allocation13 + $0xf58] sm:$0xff]
    %v703 = vld [vmem:[#allocation13 + $0xf60] sm:$0xff]
    %v704 = vld [vmem:[#allocation13 + $0xf68] sm:$0xff]
    %v705 = vld [vmem:[#allocation13 + $0xf70] sm:$0xff]
    %v706 = vld [vmem:[#allocation13 + $0xf78] sm:$0xff]
    %v707 = vld [vmem:[#allocation13 + $0xf80] sm:$0xff]
    %v708 = vld [vmem:[#allocation13 + $0xf88] sm:$0xff]
    %v709 = vld [vmem:[#allocation13 + $0xf90] sm:$0xff]
    %v710 = vld [vmem:[#allocation13 + $0xf98] sm:$0xff]
    %v711 = vld [vmem:[#allocation13 + $0xfa0] sm:$0xff]
    %v712 = vld [vmem:[#allocation13 + $0xfa8] sm:$0xff]
    %v713 = vld [vmem:[#allocation13 + $0xfb0] sm:$0xff]
    %v714 = vld [vmem:[#allocation13 + $0xfb8] sm:$0xff]
    %v715 = vld [vmem:[#allocation13 + $0xfc0] sm:$0xff]
    %v716 = vld [vmem:[#allocation13 + $0xfc8] sm:$0xff]
    %v717 = vld [vmem:[#allocation13 + $0xfd0] sm:$0xff]
    %v718 = vld [vmem:[#allocation13 + $0xfd8] sm:$0xff]
    %v719 = vld [vmem:[#allocation13 + $0xfe0] sm:$0xff]
    %v720 = vld [vmem:[#allocation13 + $0xfe8] sm:$0xff]
    %v721 = vld [vmem:[#allocation13 + $0xff0] sm:$0xff]
    %v722 = vld [vmem:[#allocation13 + $0xff8] sm:$0xff]
    %v723 = vld [vmem:[#allocation13 + $0x1000] sm:$0xff]
    %v724 = vld [vmem:[#allocation13 + $0x1008] sm:$0xff]
    %v725 = vld [vmem:[#allocation13 + $0x1010] sm:$0xff]
    %v726 = vld [vmem:[#allocation13 + $0x1018] sm:$0xff]
    %v727 = vld [vmem:[#allocation13 + $0x1020] sm:$0xff]
    %v728 = vld [vmem:[#allocation13 + $0x1028] sm:$0xff]
    %v729 = vld [vmem:[#allocation13 + $0x1030] sm:$0xff]
    %v730 = vld [vmem:[#allocation13 + $0x1038] sm:$0xff]
    %v731 = vld [vmem:[#allocation13 + $0x1040] sm:$0xff]
    %v732 = vld [vmem:[#allocation13 + $0x1048] sm:$0xff]
    %v733 = vld [vmem:[#allocation13 + $0x1050] sm:$0xff]
    %v734 = vld [vmem:[#allocation13 + $0x1058] sm:$0xff]
    %v735 = vld [vmem:[#allocation13 + $0x1060] sm:$0xff]
    %v736 = vld [vmem:[#allocation13 + $0x1068] sm:$0xff]
    %v737 = vld [vmem:[#allocation13 + $0x1070] sm:$0xff]
    %v738 = vld [vmem:[#allocation13 + $0x1078] sm:$0xff]
    %v739 = vld [vmem:[#allocation13 + $0x1080] sm:$0xff]
    %v740 = vld [vmem:[#allocation13 + $0x1088] sm:$0xff]
    %v741 = vld [vmem:[#allocation13 + $0x1090] sm:$0xff]
    %v742 = vld [vmem:[#allocation13 + $0x1098] sm:$0xff]
    %v743 = vld [vmem:[#allocation13 + $0x10a0] sm:$0xff]
    %v744 = vld [vmem:[#allocation13 + $0x10a8] sm:$0xff]
    %v745 = vld [vmem:[#allocation13 + $0x10b0] sm:$0xff]
    %v746 = vld [vmem:[#allocation13 + $0x10b8] sm:$0xff]
    %v747 = vld [vmem:[#allocation13 + $0x10c0] sm:$0xff]
    %v748 = vld [vmem:[#allocation13 + $0x10c8] sm:$0xff]
    %v749 = vld [vmem:[#allocation13 + $0x10d0] sm:$0xff]
    %v750 = vld [vmem:[#allocation13 + $0x10d8] sm:$0xff]
    %v751 = vld [vmem:[#allocation13 + $0x10e0] sm:$0xff]
    %v752 = vld [vmem:[#allocation13 + $0x10e8] sm:$0xff]
    %v753 = vld [vmem:[#allocation13 + $0x10f0] sm:$0xff]
    %v754 = vld [vmem:[#allocation13 + $0x10f8] sm:$0xff]
    %v755 = vld [vmem:[#allocation13 + $0x1100] sm:$0xff]
    %v756 = vld [vmem:[#allocation13 + $0x1108] sm:$0xff]
    %v757 = vld [vmem:[#allocation13 + $0x1110] sm:$0xff]
    %v758 = vld [vmem:[#allocation13 + $0x1118] sm:$0xff]
    %v759 = vld [vmem:[#allocation13 + $0x1120] sm:$0xff]
    %v760 = vld [vmem:[#allocation13 + $0x1128] sm:$0xff]
    %v761 = vld [vmem:[#allocation13 + $0x1130] sm:$0xff]
    %v762 = vld [vmem:[#allocation13 + $0x1138] sm:$0xff]
    %v763 = vld [vmem:[#allocation13 + $0x1140] sm:$0xff]
    %v764 = vld [vmem:[#allocation13 + $0x1148] sm:$0xff]
    %v765 = vld [vmem:[#allocation13 + $0x1150] sm:$0xff]
    %v766 = vld [vmem:[#allocation13 + $0x1158] sm:$0xff]
    %v767 = vld [vmem:[#allocation13 + $0x1160] sm:$0xff]
    %v768 = vld [vmem:[#allocation13 + $0x1168] sm:$0xff]
    %v769 = vld [vmem:[#allocation13 + $0x1170] sm:$0xff]
    %v770 = vld [vmem:[#allocation13 + $0x1178] sm:$0xff]
    %v771 = vld [vmem:[#allocation13 + $0x1180] sm:$0xff]
    %v772 = vld [vmem:[#allocation13 + $0x1188] sm:$0xff]
    %v773 = vld [vmem:[#allocation13 + $0x1190] sm:$0xff]
    %v774 = vld [vmem:[#allocation13 + $0x1198] sm:$0xff]
    %v775 = vld [vmem:[#allocation13 + $0x11a0] sm:$0xff]
    %v776 = vld [vmem:[#allocation13 + $0x11a8] sm:$0xff]
    %v777 = vld [vmem:[#allocation13 + $0x11b0] sm:$0xff]
    %v778 = vld [vmem:[#allocation13 + $0x11b8] sm:$0xff]
    %v779 = vld [vmem:[#allocation13 + $0x11c0] sm:$0xff]
    %v780 = vld [vmem:[#allocation13 + $0x11c8] sm:$0xff]
    %v781 = vld [vmem:[#allocation13 + $0x11d0] sm:$0xff]
    %v782 = vld [vmem:[#allocation13 + $0x11d8] sm:$0xff]
    %v783 = vld [vmem:[#allocation13 + $0x11e0] sm:$0xff]
    %v784 = vld [vmem:[#allocation13 + $0x11e8] sm:$0xff]
    %v785 = vld [vmem:[#allocation13 + $0x11f0] sm:$0xff]
    %v786 = vld [vmem:[#allocation13 + $0x11f8] sm:$0xff]
    %v796 = vunpack.c.l.b16 %v202
    %v797 = vunpack.c.h.b16 %v202
    %v798 = vunpack.c.l.b16 %v203
    %v799 = vunpack.c.h.b16 %v203
    %v800 = vunpack.c.l.b16 %v204
    %v801 = vunpack.c.h.b16 %v204
    %v802 = vunpack.c.l.b16 %v205
    %v803 = vunpack.c.h.b16 %v205
    %v804 = vunpack.c.l.b16 %v206
    %v805 = vunpack.c.h.b16 %v206
    %v806 = vunpack.c.l.b16 %v207
    %v807 = vunpack.c.h.b16 %v207
    %v808 = vunpack.c.l.b16 %v208
    %v809 = vunpack.c.h.b16 %v208
    %v810 = vunpack.c.l.b16 %v209
    %v811 = vunpack.c.h.b16 %v209
    %v812 = vunpack.c.l.b16 %v210
    %v813 = vunpack.c.h.b16 %v210
    %v814 = vpack.c.b16 %v802, %v796
    %v815 = vpack.c.b16 %v803, %v797
    %v816 = vpack.c.b16 %v804, %v798
    %v817 = vpack.c.b16 %v805, %v799
    %v818 = vpack.c.b16 %v806, %v800
    %v819 = vpack.c.b16 %v807, %v801
    %v820 = vpack.c.b16 %v808, %v808
    %v821 = vpack.c.b16 %v809, %v809
    %v822 = vpack.c.b16 %v810, %v810
    %v823 = vpack.c.b16 %v811, %v811
    %v824 = vpack.c.b16 %v812, %v812
    %v825 = vpack.c.b16 %v813, %v813
    %v1414 = vunpack.c.l.b16 %v211
    %v1415 = vunpack.c.h.b16 %v211
    %v1416 = vunpack.c.l.b16 %v212
    %v1417 = vunpack.c.h.b16 %v212
    %v1418 = vunpack.c.l.b16 %v213
    %v1419 = vunpack.c.h.b16 %v213
    %v1420 = vunpack.c.l.b16 %v214
    %v1421 = vunpack.c.h.b16 %v214
    %v1422 = vunpack.c.l.b16 %v215
    %v1423 = vunpack.c.h.b16 %v215
    %v1424 = vunpack.c.l.b16 %v216
    %v1425 = vunpack.c.h.b16 %v216
    %v1426 = vunpack.c.l.b16 %v217
    %v1427 = vunpack.c.h.b16 %v217
    %v1428 = vunpack.c.l.b16 %v218
    %v1429 = vunpack.c.h.b16 %v218
    %v1430 = vunpack.c.l.b16 %v219
    %v1431 = vunpack.c.h.b16 %v219
    %v1432 = vunpack.c.l.b16 %v220
    %v1433 = vunpack.c.h.b16 %v220
    %v1434 = vunpack.c.l.b16 %v221
    %v1435 = vunpack.c.h.b16 %v221
    %v1436 = vunpack.c.l.b16 %v222
    %v1437 = vunpack.c.h.b16 %v222
    %v1438 = vunpack.c.l.b16 %v223
    %v1439 = vunpack.c.h.b16 %v223
    %v1440 = vunpack.c.l.b16 %v224
    %v1441 = vunpack.c.h.b16 %v224
    %v1442 = vunpack.c.l.b16 %v225
    %v1443 = vunpack.c.h.b16 %v225
    %v1444 = vunpack.c.l.b16 %v226
    %v1445 = vunpack.c.h.b16 %v226
    %v1446 = vunpack.c.l.b16 %v227
    %v1447 = vunpack.c.h.b16 %v227
    %v1448 = vunpack.c.l.b16 %v228
    %v1449 = vunpack.c.h.b16 %v228
    %v1450 = vunpack.c.l.b16 %v229
    %v1451 = vunpack.c.h.b16 %v229
    %v1452 = vunpack.c.l.b16 %v230
    %v1453 = vunpack.c.h.b16 %v230
    %v1454 = vunpack.c.l.b16 %v231
    %v1455 = vunpack.c.h.b16 %v231
    %v1456 = vunpack.c.l.b16 %v232
    %v1457 = vunpack.c.h.b16 %v232
    %v1458 = vunpack.c.l.b16 %v233
    %v1459 = vunpack.c.h.b16 %v233
    %v1460 = vunpack.c.l.b16 %v234
    %v1461 = vunpack.c.h.b16 %v234
    %v1462 = vunpack.c.l.b16 %v235
    %v1463 = vunpack.c.h.b16 %v235
    %v1464 = vunpack.c.l.b16 %v236
    %v1465 = vunpack.c.h.b16 %v236
    %v1466 = vunpack.c.l.b16 %v237
    %v1467 = vunpack.c.h.b16 %v237
    %v1468 = vunpack.c.l.b16 %v238
    %v1469 = vunpack.c.h.b16 %v238
    %v1470 = vunpack.c.l.b16 %v239
    %v1471 = vunpack.c.h.b16 %v239
    %v1472 = vunpack.c.l.b16 %v240
    %v1473 = vunpack.c.h.b16 %v240
    %v1474 = vunpack.c.l.b16 %v241
    %v1475 = vunpack.c.h.b16 %v241
    %v1476 = vunpack.c.l.b16 %v242
    %v1477 = vunpack.c.h.b16 %v242
    %v1478 = vunpack.c.l.b16 %v243
    %v1479 = vunpack.c.h.b16 %v243
    %v1480 = vunpack.c.l.b16 %v244
    %v1481 = vunpack.c.h.b16 %v244
    %v1482 = vunpack.c.l.b16 %v245
    %v1483 = vunpack.c.h.b16 %v245
    %v1484 = vunpack.c.l.b16 %v246
    %v1485 = vunpack.c.h.b16 %v246
    %v1486 = vunpack.c.l.b16 %v247
    %v1487 = vunpack.c.h.b16 %v247
    %v1488 = vunpack.c.l.b16 %v248
    %v1489 = vunpack.c.h.b16 %v248
    %v1490 = vunpack.c.l.b16 %v249
    %v1491 = vunpack.c.h.b16 %v249
    %v1492 = vunpack.c.l.b16 %v250
    %v1493 = vunpack.c.h.b16 %v250
    %v1494 = vunpack.c.l.b16 %v251
    %v1495 = vunpack.c.h.b16 %v251
    %v1496 = vunpack.c.l.b16 %v252
    %v1497 = vunpack.c.h.b16 %v252
    %v1498 = vunpack.c.l.b16 %v253
    %v1499 = vunpack.c.h.b16 %v253
    %v1500 = vunpack.c.l.b16 %v254
    %v1501 = vunpack.c.h.b16 %v254
    %v1502 = vunpack.c.l.b16 %v255
    %v1503 = vunpack.c.h.b16 %v255
    %v1504 = vunpack.c.l.b16 %v256
    %v1505 = vunpack.c.h.b16 %v256
    %v1506 = vunpack.c.l.b16 %v257
    %v1507 = vunpack.c.h.b16 %v257
    %v1508 = vunpack.c.l.b16 %v258
    %v1509 = vunpack.c.h.b16 %v258
    %v1510 = vunpack.c.l.b16 %v259
    %v1511 = vunpack.c.h.b16 %v259
    %v1512 = vunpack.c.l.b16 %v260
    %v1513 = vunpack.c.h.b16 %v260
    %v1514 = vunpack.c.l.b16 %v261
    %v1515 = vunpack.c.h.b16 %v261
    %v1516 = vunpack.c.l.b16 %v262
    %v1517 = vunpack.c.h.b16 %v262
    %v1518 = vunpack.c.l.b16 %v263
    %v1519 = vunpack.c.h.b16 %v263
    %v1520 = vunpack.c.l.b16 %v264
    %v1521 = vunpack.c.h.b16 %v264
    %v1522 = vunpack.c.l.b16 %v265
    %v1523 = vunpack.c.h.b16 %v265
    %v1524 = vunpack.c.l.b16 %v266
    %v1525 = vunpack.c.h.b16 %v266
    %v1526 = vunpack.c.l.b16 %v267
    %v1527 = vunpack.c.h.b16 %v267
    %v1528 = vunpack.c.l.b16 %v268
    %v1529 = vunpack.c.h.b16 %v268
    %v1530 = vunpack.c.l.b16 %v269
    %v1531 = vunpack.c.h.b16 %v269
    %v1532 = vunpack.c.l.b16 %v270
    %v1533 = vunpack.c.h.b16 %v270
    %v1534 = vunpack.c.l.b16 %v271
    %v1535 = vunpack.c.h.b16 %v271
    %v1536 = vunpack.c.l.b16 %v272
    %v1537 = vunpack.c.h.b16 %v272
    %v1538 = vunpack.c.l.b16 %v273
    %v1539 = vunpack.c.h.b16 %v273
    %v1540 = vunpack.c.l.b16 %v274
    %v1541 = vunpack.c.h.b16 %v274
    %v1542 = vunpack.c.l.b16 %v275
    %v1543 = vunpack.c.h.b16 %v275
    %v1544 = vunpack.c.l.b16 %v276
    %v1545 = vunpack.c.h.b16 %v276
    %v1546 = vunpack.c.l.b16 %v277
    %v1547 = vunpack.c.h.b16 %v277
    %v1548 = vunpack.c.l.b16 %v278
    %v1549 = vunpack.c.h.b16 %v278
    %v1550 = vunpack.c.l.b16 %v279
    %v1551 = vunpack.c.h.b16 %v279
    %v1552 = vunpack.c.l.b16 %v280
    %v1553 = vunpack.c.h.b16 %v280
    %v1554 = vunpack.c.l.b16 %v281
    %v1555 = vunpack.c.h.b16 %v281
    %v1556 = vunpack.c.l.b16 %v282
    %v1557 = vunpack.c.h.b16 %v282
    %v1558 = vunpack.c.l.b16 %v283
    %v1559 = vunpack.c.h.b16 %v283
    %v1560 = vunpack.c.l.b16 %v284
    %v1561 = vunpack.c.h.b16 %v284
    %v1562 = vunpack.c.l.b16 %v285
    %v1563 = vunpack.c.h.b16 %v285
    %v1564 = vunpack.c.l.b16 %v286
    %v1565 = vunpack.c.h.b16 %v286
    %v1566 = vunpack.c.l.b16 %v287
    %v1567 = vunpack.c.h.b16 %v287
    %v1568 = vunpack.c.l.b16 %v288
    %v1569 = vunpack.c.h.b16 %v288
    %v1570 = vunpack.c.l.b16 %v289
    %v1571 = vunpack.c.h.b16 %v289
    %v1572 = vunpack.c.l.b16 %v290
    %v1573 = vunpack.c.h.b16 %v290
    %v1574 = vunpack.c.l.b16 %v291
    %v1575 = vunpack.c.h.b16 %v291
    %v1576 = vunpack.c.l.b16 %v292
    %v1577 = vunpack.c.h.b16 %v292
    %v1578 = vunpack.c.l.b16 %v293
    %v1579 = vunpack.c.h.b16 %v293
    %v1580 = vunpack.c.l.b16 %v294
    %v1581 = vunpack.c.h.b16 %v294
    %v1582 = vunpack.c.l.b16 %v295
    %v1583 = vunpack.c.h.b16 %v295
    %v1584 = vunpack.c.l.b16 %v296
    %v1585 = vunpack.c.h.b16 %v296
    %v1586 = vunpack.c.l.b16 %v297
    %v1587 = vunpack.c.h.b16 %v297
    %v1588 = vunpack.c.l.b16 %v298
    %v1589 = vunpack.c.h.b16 %v298
    %v1590 = vunpack.c.l.b16 %v299
    %v1591 = vunpack.c.h.b16 %v299
    %v1592 = vunpack.c.l.b16 %v300
    %v1593 = vunpack.c.h.b16 %v300
    %v1594 = vunpack.c.l.b16 %v301
    %v1595 = vunpack.c.h.b16 %v301
    %v1596 = vunpack.c.l.b16 %v302
    %v1597 = vunpack.c.h.b16 %v302
    %v1598 = vunpack.c.l.b16 %v303
    %v1599 = vunpack.c.h.b16 %v303
    %v1600 = vunpack.c.l.b16 %v304
    %v1601 = vunpack.c.h.b16 %v304
    %v1602 = vunpack.c.l.b16 %v305
    %v1603 = vunpack.c.h.b16 %v305
    %v1604 = vunpack.c.l.b16 %v306
    %v1605 = vunpack.c.h.b16 %v306
    %v1606 = vunpack.c.l.b16 %v307
    %v1607 = vunpack.c.h.b16 %v307
    %v1608 = vunpack.c.l.b16 %v308
    %v1609 = vunpack.c.h.b16 %v308
    %v1610 = vunpack.c.l.b16 %v309
    %v1611 = vunpack.c.h.b16 %v309
    %v1612 = vunpack.c.l.b16 %v310
    %v1613 = vunpack.c.h.b16 %v310
    %v1614 = vunpack.c.l.b16 %v311
    %v1615 = vunpack.c.h.b16 %v311
    %v1616 = vunpack.c.l.b16 %v312
    %v1617 = vunpack.c.h.b16 %v312
    %v1618 = vunpack.c.l.b16 %v313
    %v1619 = vunpack.c.h.b16 %v313
    %v1620 = vunpack.c.l.b16 %v314
    %v1621 = vunpack.c.h.b16 %v314
    %v1622 = vunpack.c.l.b16 %v315
    %v1623 = vunpack.c.h.b16 %v315
    %v1624 = vunpack.c.l.b16 %v316
    %v1625 = vunpack.c.h.b16 %v316
    %v1626 = vunpack.c.l.b16 %v317
    %v1627 = vunpack.c.h.b16 %v317
    %v1628 = vunpack.c.l.b16 %v318
    %v1629 = vunpack.c.h.b16 %v318
    %v1630 = vunpack.c.l.b16 %v319
    %v1631 = vunpack.c.h.b16 %v319
    %v1632 = vunpack.c.l.b16 %v320
    %v1633 = vunpack.c.h.b16 %v320
    %v1634 = vunpack.c.l.b16 %v321
    %v1635 = vunpack.c.h.b16 %v321
    %v1636 = vunpack.c.l.b16 %v322
    %v1637 = vunpack.c.h.b16 %v322
    %v1638 = vunpack.c.l.b16 %v323
    %v1639 = vunpack.c.h.b16 %v323
    %v1640 = vunpack.c.l.b16 %v324
    %v1641 = vunpack.c.h.b16 %v324
    %v1642 = vunpack.c.l.b16 %v325
    %v1643 = vunpack.c.h.b16 %v325
    %v1644 = vunpack.c.l.b16 %v326
    %v1645 = vunpack.c.h.b16 %v326
    %v1646 = vunpack.c.l.b16 %v327
    %v1647 = vunpack.c.h.b16 %v327
    %v1648 = vunpack.c.l.b16 %v328
    %v1649 = vunpack.c.h.b16 %v328
    %v1650 = vunpack.c.l.b16 %v329
    %v1651 = vunpack.c.h.b16 %v329
    %v1652 = vunpack.c.l.b16 %v330
    %v1653 = vunpack.c.h.b16 %v330
    %v1654 = vunpack.c.l.b16 %v331
    %v1655 = vunpack.c.h.b16 %v331
    %v1656 = vunpack.c.l.b16 %v332
    %v1657 = vunpack.c.h.b16 %v332
    %v1658 = vunpack.c.l.b16 %v333
    %v1659 = vunpack.c.h.b16 %v333
    %v1660 = vunpack.c.l.b16 %v334
    %v1661 = vunpack.c.h.b16 %v334
    %v1662 = vunpack.c.l.b16 %v335
    %v1663 = vunpack.c.h.b16 %v335
    %v1664 = vunpack.c.l.b16 %v336
    %v1665 = vunpack.c.h.b16 %v336
    %v1666 = vunpack.c.l.b16 %v337
    %v1667 = vunpack.c.h.b16 %v337
    %v1668 = vunpack.c.l.b16 %v338
    %v1669 = vunpack.c.h.b16 %v338
    %v1670 = vunpack.c.l.b16 %v339
    %v1671 = vunpack.c.h.b16 %v339
    %v1672 = vunpack.c.l.b16 %v340
    %v1673 = vunpack.c.h.b16 %v340
    %v1674 = vunpack.c.l.b16 %v341
    %v1675 = vunpack.c.h.b16 %v341
    %v1676 = vunpack.c.l.b16 %v342
    %v1677 = vunpack.c.h.b16 %v342
    %v1678 = vunpack.c.l.b16 %v343
    %v1679 = vunpack.c.h.b16 %v343
    %v1680 = vunpack.c.l.b16 %v344
    %v1681 = vunpack.c.h.b16 %v344
    %v1682 = vunpack.c.l.b16 %v345
    %v1683 = vunpack.c.h.b16 %v345
    %v1684 = vunpack.c.l.b16 %v346
    %v1685 = vunpack.c.h.b16 %v346
    %v1686 = vunpack.c.l.b16 %v347
    %v1687 = vunpack.c.h.b16 %v347
    %v1688 = vunpack.c.l.b16 %v348
    %v1689 = vunpack.c.h.b16 %v348
    %v1690 = vunpack.c.l.b16 %v349
    %v1691 = vunpack.c.h.b16 %v349
    %v1692 = vunpack.c.l.b16 %v350
    %v1693 = vunpack.c.h.b16 %v350
    %v1694 = vunpack.c.l.b16 %v351
    %v1695 = vunpack.c.h.b16 %v351
    %v1696 = vunpack.c.l.b16 %v352
    %v1697 = vunpack.c.h.b16 %v352
    %v1698 = vunpack.c.l.b16 %v353
    %v1699 = vunpack.c.h.b16 %v353
    %v1700 = vunpack.c.l.b16 %v354
    %v1701 = vunpack.c.h.b16 %v354
    %v1702 = vunpack.c.l.b16 %v355
    %v1703 = vunpack.c.h.b16 %v355
    %v1704 = vunpack.c.l.b16 %v356
    %v1705 = vunpack.c.h.b16 %v356
    %v1706 = vunpack.c.l.b16 %v357
    %v1707 = vunpack.c.h.b16 %v357
    %v1708 = vunpack.c.l.b16 %v358
    %v1709 = vunpack.c.h.b16 %v358
    %v1710 = vunpack.c.l.b16 %v359
    %v1711 = vunpack.c.h.b16 %v359
    %v1712 = vunpack.c.l.b16 %v360
    %v1713 = vunpack.c.h.b16 %v360
    %v1714 = vunpack.c.l.b16 %v361
    %v1715 = vunpack.c.h.b16 %v361
    %v1716 = vunpack.c.l.b16 %v362
    %v1717 = vunpack.c.h.b16 %v362
    %v1718 = vunpack.c.l.b16 %v363
    %v1719 = vunpack.c.h.b16 %v363
    %v1720 = vunpack.c.l.b16 %v364
    %v1721 = vunpack.c.h.b16 %v364
    %v1722 = vunpack.c.l.b16 %v365
    %v1723 = vunpack.c.h.b16 %v365
    %v1724 = vunpack.c.l.b16 %v366
    %v1725 = vunpack.c.h.b16 %v366
    %v1726 = vunpack.c.l.b16 %v367
    %v1727 = vunpack.c.h.b16 %v367
    %v1728 = vunpack.c.l.b16 %v368
    %v1729 = vunpack.c.h.b16 %v368
    %v1730 = vunpack.c.l.b16 %v369
    %v1731 = vunpack.c.h.b16 %v369
    %v1732 = vunpack.c.l.b16 %v370
    %v1733 = vunpack.c.h.b16 %v370
    %v1734 = vunpack.c.l.b16 %v371
    %v1735 = vunpack.c.h.b16 %v371
    %v1736 = vunpack.c.l.b16 %v372
    %v1737 = vunpack.c.h.b16 %v372
    %v1738 = vunpack.c.l.b16 %v373
    %v1739 = vunpack.c.h.b16 %v373
    %v1740 = vunpack.c.l.b16 %v374
    %v1741 = vunpack.c.h.b16 %v374
    %v1742 = vunpack.c.l.b16 %v375
    %v1743 = vunpack.c.h.b16 %v375
    %v1744 = vunpack.c.l.b16 %v376
    %v1745 = vunpack.c.h.b16 %v376
    %v1746 = vunpack.c.l.b16 %v377
    %v1747 = vunpack.c.h.b16 %v377
    %v1748 = vunpack.c.l.b16 %v378
    %v1749 = vunpack.c.h.b16 %v378
    %v1750 = vunpack.c.l.b16 %v379
    %v1751 = vunpack.c.h.b16 %v379
    %v1752 = vunpack.c.l.b16 %v380
    %v1753 = vunpack.c.h.b16 %v380
    %v1754 = vunpack.c.l.b16 %v381
    %v1755 = vunpack.c.h.b16 %v381
    %v1756 = vunpack.c.l.b16 %v382
    %v1757 = vunpack.c.h.b16 %v382
    %v1758 = vunpack.c.l.b16 %v383
    %v1759 = vunpack.c.h.b16 %v383
    %v1760 = vunpack.c.l.b16 %v384
    %v1761 = vunpack.c.h.b16 %v384
    %v1762 = vunpack.c.l.b16 %v385
    %v1763 = vunpack.c.h.b16 %v385
    %v1764 = vunpack.c.l.b16 %v386
    %v1765 = vunpack.c.h.b16 %v386
    %v1766 = vunpack.c.l.b16 %v387
    %v1767 = vunpack.c.h.b16 %v387
    %v1768 = vunpack.c.l.b16 %v388
    %v1769 = vunpack.c.h.b16 %v388
    %v1770 = vunpack.c.l.b16 %v389
    %v1771 = vunpack.c.h.b16 %v389
    %v1772 = vunpack.c.l.b16 %v390
    %v1773 = vunpack.c.h.b16 %v390
    %v1774 = vunpack.c.l.b16 %v391
    %v1775 = vunpack.c.h.b16 %v391
    %v1776 = vunpack.c.l.b16 %v392
    %v1777 = vunpack.c.h.b16 %v392
    %v1778 = vunpack.c.l.b16 %v393
    %v1779 = vunpack.c.h.b16 %v393
    %v1780 = vunpack.c.l.b16 %v394
    %v1781 = vunpack.c.h.b16 %v394
    %v1782 = vunpack.c.l.b16 %v395
    %v1783 = vunpack.c.h.b16 %v395
    %v1784 = vunpack.c.l.b16 %v396
    %v1785 = vunpack.c.h.b16 %v396
    %v1786 = vunpack.c.l.b16 %v397
    %v1787 = vunpack.c.h.b16 %v397
    %v1788 = vunpack.c.l.b16 %v398
    %v1789 = vunpack.c.h.b16 %v398
    %v1790 = vunpack.c.l.b16 %v399
    %v1791 = vunpack.c.h.b16 %v399
    %v1792 = vunpack.c.l.b16 %v400
    %v1793 = vunpack.c.h.b16 %v400
    %v1794 = vunpack.c.l.b16 %v401
    %v1795 = vunpack.c.h.b16 %v401
    %v1796 = vunpack.c.l.b16 %v402
    %v1797 = vunpack.c.h.b16 %v402
    %v1798 = vunpack.c.l.b16 %v403
    %v1799 = vunpack.c.h.b16 %v403
    %v1800 = vunpack.c.l.b16 %v404
    %v1801 = vunpack.c.h.b16 %v404
    %v1802 = vunpack.c.l.b16 %v405
    %v1803 = vunpack.c.h.b16 %v405
    %v1804 = vunpack.c.l.b16 %v406
    %v1805 = vunpack.c.h.b16 %v406
    %v1806 = vunpack.c.l.b16 %v407
    %v1807 = vunpack.c.h.b16 %v407
    %v1808 = vunpack.c.l.b16 %v408
    %v1809 = vunpack.c.h.b16 %v408
    %v1810 = vunpack.c.l.b16 %v409
    %v1811 = vunpack.c.h.b16 %v409
    %v1812 = vunpack.c.l.b16 %v410
    %v1813 = vunpack.c.h.b16 %v410
    %v1814 = vunpack.c.l.b16 %v411
    %v1815 = vunpack.c.h.b16 %v411
    %v1816 = vunpack.c.l.b16 %v412
    %v1817 = vunpack.c.h.b16 %v412
    %v1818 = vunpack.c.l.b16 %v413
    %v1819 = vunpack.c.h.b16 %v413
    %v1820 = vunpack.c.l.b16 %v414
    %v1821 = vunpack.c.h.b16 %v414
    %v1822 = vunpack.c.l.b16 %v415
    %v1823 = vunpack.c.h.b16 %v415
    %v1824 = vunpack.c.l.b16 %v416
    %v1825 = vunpack.c.h.b16 %v416
    %v1826 = vunpack.c.l.b16 %v417
    %v1827 = vunpack.c.h.b16 %v417
    %v1828 = vunpack.c.l.b16 %v418
    %v1829 = vunpack.c.h.b16 %v418
    %v1830 = vunpack.c.l.b16 %v419
    %v1831 = vunpack.c.h.b16 %v419
    %v1832 = vunpack.c.l.b16 %v420
    %v1833 = vunpack.c.h.b16 %v420
    %v1834 = vunpack.c.l.b16 %v421
    %v1835 = vunpack.c.h.b16 %v421
    %v1836 = vunpack.c.l.b16 %v422
    %v1837 = vunpack.c.h.b16 %v422
    %v1838 = vunpack.c.l.b16 %v423
    %v1839 = vunpack.c.h.b16 %v423
    %v1840 = vunpack.c.l.b16 %v424
    %v1841 = vunpack.c.h.b16 %v424
    %v1842 = vunpack.c.l.b16 %v425
    %v1843 = vunpack.c.h.b16 %v425
    %v1844 = vunpack.c.l.b16 %v426
    %v1845 = vunpack.c.h.b16 %v426
    %v1846 = vunpack.c.l.b16 %v427
    %v1847 = vunpack.c.h.b16 %v427
    %v1848 = vunpack.c.l.b16 %v428
    %v1849 = vunpack.c.h.b16 %v428
    %v1850 = vunpack.c.l.b16 %v429
    %v1851 = vunpack.c.h.b16 %v429
    %v1852 = vunpack.c.l.b16 %v430
    %v1853 = vunpack.c.h.b16 %v430
    %v1854 = vunpack.c.l.b16 %v431
    %v1855 = vunpack.c.h.b16 %v431
    %v1856 = vunpack.c.l.b16 %v432
    %v1857 = vunpack.c.h.b16 %v432
    %v1858 = vunpack.c.l.b16 %v433
    %v1859 = vunpack.c.h.b16 %v433
    %v1860 = vunpack.c.l.b16 %v434
    %v1861 = vunpack.c.h.b16 %v434
    %v1862 = vunpack.c.l.b16 %v435
    %v1863 = vunpack.c.h.b16 %v435
    %v1864 = vunpack.c.l.b16 %v436
    %v1865 = vunpack.c.h.b16 %v436
    %v1866 = vunpack.c.l.b16 %v437
    %v1867 = vunpack.c.h.b16 %v437
    %v1868 = vunpack.c.l.b16 %v438
    %v1869 = vunpack.c.h.b16 %v438
    %v1870 = vunpack.c.l.b16 %v439
    %v1871 = vunpack.c.h.b16 %v439
    %v1872 = vunpack.c.l.b16 %v440
    %v1873 = vunpack.c.h.b16 %v440
    %v1874 = vunpack.c.l.b16 %v441
    %v1875 = vunpack.c.h.b16 %v441
    %v1876 = vunpack.c.l.b16 %v442
    %v1877 = vunpack.c.h.b16 %v442
    %v1878 = vunpack.c.l.b16 %v443
    %v1879 = vunpack.c.h.b16 %v443
    %v1880 = vunpack.c.l.b16 %v444
    %v1881 = vunpack.c.h.b16 %v444
    %v1882 = vunpack.c.l.b16 %v445
    %v1883 = vunpack.c.h.b16 %v445
    %v1884 = vunpack.c.l.b16 %v446
    %v1885 = vunpack.c.h.b16 %v446
    %v1886 = vunpack.c.l.b16 %v447
    %v1887 = vunpack.c.h.b16 %v447
    %v1888 = vunpack.c.l.b16 %v448
    %v1889 = vunpack.c.h.b16 %v448
    %v1890 = vunpack.c.l.b16 %v449
    %v1891 = vunpack.c.h.b16 %v449
    %v1892 = vunpack.c.l.b16 %v450
    %v1893 = vunpack.c.h.b16 %v450
    %v1894 = vunpack.c.l.b16 %v451
    %v1895 = vunpack.c.h.b16 %v451
    %v1896 = vunpack.c.l.b16 %v452
    %v1897 = vunpack.c.h.b16 %v452
    %v1898 = vunpack.c.l.b16 %v453
    %v1899 = vunpack.c.h.b16 %v453
    %v1900 = vunpack.c.l.b16 %v454
    %v1901 = vunpack.c.h.b16 %v454
    %v1902 = vunpack.c.l.b16 %v455
    %v1903 = vunpack.c.h.b16 %v455
    %v1904 = vunpack.c.l.b16 %v456
    %v1905 = vunpack.c.h.b16 %v456
    %v1906 = vunpack.c.l.b16 %v457
    %v1907 = vunpack.c.h.b16 %v457
    %v1908 = vunpack.c.l.b16 %v458
    %v1909 = vunpack.c.h.b16 %v458
    %v1910 = vunpack.c.l.b16 %v459
    %v1911 = vunpack.c.h.b16 %v459
    %v1912 = vunpack.c.l.b16 %v460
    %v1913 = vunpack.c.h.b16 %v460
    %v1914 = vunpack.c.l.b16 %v461
    %v1915 = vunpack.c.h.b16 %v461
    %v1916 = vunpack.c.l.b16 %v462
    %v1917 = vunpack.c.h.b16 %v462
    %v1918 = vunpack.c.l.b16 %v463
    %v1919 = vunpack.c.h.b16 %v463
    %v1920 = vunpack.c.l.b16 %v464
    %v1921 = vunpack.c.h.b16 %v464
    %v1922 = vunpack.c.l.b16 %v465
    %v1923 = vunpack.c.h.b16 %v465
    %v1924 = vunpack.c.l.b16 %v466
    %v1925 = vunpack.c.h.b16 %v466
    %v1926 = vunpack.c.l.b16 %v467
    %v1927 = vunpack.c.h.b16 %v467
    %v1928 = vunpack.c.l.b16 %v468
    %v1929 = vunpack.c.h.b16 %v468
    %v1930 = vunpack.c.l.b16 %v469
    %v1931 = vunpack.c.h.b16 %v469
    %v1932 = vunpack.c.l.b16 %v470
    %v1933 = vunpack.c.h.b16 %v470
    %v1934 = vunpack.c.l.b16 %v471
    %v1935 = vunpack.c.h.b16 %v471
    %v1936 = vunpack.c.l.b16 %v472
    %v1937 = vunpack.c.h.b16 %v472
    %v1938 = vunpack.c.l.b16 %v473
    %v1939 = vunpack.c.h.b16 %v473
    %v1940 = vunpack.c.l.b16 %v474
    %v1941 = vunpack.c.h.b16 %v474
    %v1942 = vunpack.c.l.b16 %v475
    %v1943 = vunpack.c.h.b16 %v475
    %v1944 = vunpack.c.l.b16 %v476
    %v1945 = vunpack.c.h.b16 %v476
    %v1946 = vunpack.c.l.b16 %v477
    %v1947 = vunpack.c.h.b16 %v477
    %v1948 = vunpack.c.l.b16 %v478
    %v1949 = vunpack.c.h.b16 %v478
    %v1950 = vunpack.c.l.b16 %v479
    %v1951 = vunpack.c.h.b16 %v479
    %v1952 = vunpack.c.l.b16 %v480
    %v1953 = vunpack.c.h.b16 %v480
    %v1954 = vunpack.c.l.b16 %v481
    %v1955 = vunpack.c.h.b16 %v481
    %v1956 = vunpack.c.l.b16 %v482
    %v1957 = vunpack.c.h.b16 %v482
    %v1958 = vunpack.c.l.b16 %v483
    %v1959 = vunpack.c.h.b16 %v483
    %v1960 = vunpack.c.l.b16 %v484
    %v1961 = vunpack.c.h.b16 %v484
    %v1962 = vunpack.c.l.b16 %v485
    %v1963 = vunpack.c.h.b16 %v485
    %v1964 = vunpack.c.l.b16 %v486
    %v1965 = vunpack.c.h.b16 %v486
    %v1966 = vunpack.c.l.b16 %v487
    %v1967 = vunpack.c.h.b16 %v487
    %v1968 = vunpack.c.l.b16 %v488
    %v1969 = vunpack.c.h.b16 %v488
    %v1970 = vunpack.c.l.b16 %v489
    %v1971 = vunpack.c.h.b16 %v489
    %v1972 = vunpack.c.l.b16 %v490
    %v1973 = vunpack.c.h.b16 %v490
    %v1974 = vunpack.c.l.b16 %v491
    %v1975 = vunpack.c.h.b16 %v491
    %v1976 = vunpack.c.l.b16 %v492
    %v1977 = vunpack.c.h.b16 %v492
    %v1978 = vunpack.c.l.b16 %v493
    %v1979 = vunpack.c.h.b16 %v493
    %v1980 = vunpack.c.l.b16 %v494
    %v1981 = vunpack.c.h.b16 %v494
    %v1982 = vunpack.c.l.b16 %v495
    %v1983 = vunpack.c.h.b16 %v495
    %v1984 = vunpack.c.l.b16 %v496
    %v1985 = vunpack.c.h.b16 %v496
    %v1986 = vunpack.c.l.b16 %v497
    %v1987 = vunpack.c.h.b16 %v497
    %v1988 = vunpack.c.l.b16 %v498
    %v1989 = vunpack.c.h.b16 %v498
    %v1990 = vunpack.c.l.b16 %v499
    %v1991 = vunpack.c.h.b16 %v499
    %v1992 = vunpack.c.l.b16 %v500
    %v1993 = vunpack.c.h.b16 %v500
    %v1994 = vunpack.c.l.b16 %v501
    %v1995 = vunpack.c.h.b16 %v501
    %v1996 = vunpack.c.l.b16 %v502
    %v1997 = vunpack.c.h.b16 %v502
    %v1998 = vunpack.c.l.b16 %v503
    %v1999 = vunpack.c.h.b16 %v503
    %v2000 = vunpack.c.l.b16 %v504
    %v2001 = vunpack.c.h.b16 %v504
    %v2002 = vunpack.c.l.b16 %v505
    %v2003 = vunpack.c.h.b16 %v505
    %v2004 = vunpack.c.l.b16 %v506
    %v2005 = vunpack.c.h.b16 %v506
    %v2006 = vunpack.c.l.b16 %v507
    %v2007 = vunpack.c.h.b16 %v507
    %v2008 = vunpack.c.l.b16 %v508
    %v2009 = vunpack.c.h.b16 %v508
    %v2010 = vunpack.c.l.b16 %v509
    %v2011 = vunpack.c.h.b16 %v509
    %v2012 = vunpack.c.l.b16 %v510
    %v2013 = vunpack.c.h.b16 %v510
    %v2014 = vunpack.c.l.b16 %v511
    %v2015 = vunpack.c.h.b16 %v511
    %v2016 = vunpack.c.l.b16 %v512
    %v2017 = vunpack.c.h.b16 %v512
    %v2018 = vunpack.c.l.b16 %v513
    %v2019 = vunpack.c.h.b16 %v513
    %v2020 = vunpack.c.l.b16 %v514
    %v2021 = vunpack.c.h.b16 %v514
    %v2022 = vunpack.c.l.b16 %v515
    %v2023 = vunpack.c.h.b16 %v515
    %v2024 = vunpack.c.l.b16 %v516
    %v2025 = vunpack.c.h.b16 %v516
    %v2026 = vunpack.c.l.b16 %v517
    %v2027 = vunpack.c.h.b16 %v517
    %v2028 = vunpack.c.l.b16 %v518
    %v2029 = vunpack.c.h.b16 %v518
    %v2030 = vunpack.c.l.b16 %v519
    %v2031 = vunpack.c.h.b16 %v519
    %v2032 = vunpack.c.l.b16 %v520
    %v2033 = vunpack.c.h.b16 %v520
    %v2034 = vunpack.c.l.b16 %v521
    %v2035 = vunpack.c.h.b16 %v521
    %v2036 = vunpack.c.l.b16 %v522
    %v2037 = vunpack.c.h.b16 %v522
    %v2038 = vunpack.c.l.b16 %v523
    %v2039 = vunpack.c.h.b16 %v523
    %v2040 = vunpack.c.l.b16 %v524
    %v2041 = vunpack.c.h.b16 %v524
    %v2042 = vunpack.c.l.b16 %v525
    %v2043 = vunpack.c.h.b16 %v525
    %v2044 = vunpack.c.l.b16 %v526
    %v2045 = vunpack.c.h.b16 %v526
    %v2046 = vunpack.c.l.b16 %v527
    %v2047 = vunpack.c.h.b16 %v527
    %v2048 = vunpack.c.l.b16 %v528
    %v2049 = vunpack.c.h.b16 %v528
    %v2050 = vunpack.c.l.b16 %v529
    %v2051 = vunpack.c.h.b16 %v529
    %v2052 = vunpack.c.l.b16 %v530
    %v2053 = vunpack.c.h.b16 %v530
    %v2054 = vunpack.c.l.b16 %v531
    %v2055 = vunpack.c.h.b16 %v531
    %v2056 = vunpack.c.l.b16 %v532
    %v2057 = vunpack.c.h.b16 %v532
    %v2058 = vunpack.c.l.b16 %v533
    %v2059 = vunpack.c.h.b16 %v533
    %v2060 = vunpack.c.l.b16 %v534
    %v2061 = vunpack.c.h.b16 %v534
    %v2062 = vunpack.c.l.b16 %v535
    %v2063 = vunpack.c.h.b16 %v535
    %v2064 = vunpack.c.l.b16 %v536
    %v2065 = vunpack.c.h.b16 %v536
    %v2066 = vunpack.c.l.b16 %v537
    %v2067 = vunpack.c.h.b16 %v537
    %v2068 = vunpack.c.l.b16 %v538
    %v2069 = vunpack.c.h.b16 %v538
    %v2070 = vunpack.c.l.b16 %v539
    %v2071 = vunpack.c.h.b16 %v539
    %v2072 = vunpack.c.l.b16 %v540
    %v2073 = vunpack.c.h.b16 %v540
    %v2074 = vunpack.c.l.b16 %v541
    %v2075 = vunpack.c.h.b16 %v541
    %v2076 = vunpack.c.l.b16 %v542
    %v2077 = vunpack.c.h.b16 %v542
    %v2078 = vunpack.c.l.b16 %v543
    %v2079 = vunpack.c.h.b16 %v543
    %v2080 = vunpack.c.l.b16 %v544
    %v2081 = vunpack.c.h.b16 %v544
    %v2082 = vunpack.c.l.b16 %v545
    %v2083 = vunpack.c.h.b16 %v545
    %v2084 = vunpack.c.l.b16 %v546
    %v2085 = vunpack.c.h.b16 %v546
    %v2086 = vunpack.c.l.b16 %v547
    %v2087 = vunpack.c.h.b16 %v547
    %v2088 = vunpack.c.l.b16 %v548
    %v2089 = vunpack.c.h.b16 %v548
    %v2090 = vunpack.c.l.b16 %v549
    %v2091 = vunpack.c.h.b16 %v549
    %v2092 = vunpack.c.l.b16 %v550
    %v2093 = vunpack.c.h.b16 %v550
    %v2094 = vunpack.c.l.b16 %v551
    %v2095 = vunpack.c.h.b16 %v551
    %v2096 = vunpack.c.l.b16 %v552
    %v2097 = vunpack.c.h.b16 %v552
    %v2098 = vunpack.c.l.b16 %v553
    %v2099 = vunpack.c.h.b16 %v553
    %v2100 = vunpack.c.l.b16 %v554
    %v2101 = vunpack.c.h.b16 %v554
    %v2102 = vunpack.c.l.b16 %v555
    %v2103 = vunpack.c.h.b16 %v555
    %v2104 = vunpack.c.l.b16 %v556
    %v2105 = vunpack.c.h.b16 %v556
    %v2106 = vunpack.c.l.b16 %v557
    %v2107 = vunpack.c.h.b16 %v557
    %v2108 = vunpack.c.l.b16 %v558
    %v2109 = vunpack.c.h.b16 %v558
    %v2110 = vunpack.c.l.b16 %v559
    %v2111 = vunpack.c.h.b16 %v559
    %v2112 = vunpack.c.l.b16 %v560
    %v2113 = vunpack.c.h.b16 %v560
    %v2114 = vunpack.c.l.b16 %v561
    %v2115 = vunpack.c.h.b16 %v561
    %v2116 = vunpack.c.l.b16 %v562
    %v2117 = vunpack.c.h.b16 %v562
    %v2118 = vunpack.c.l.b16 %v563
    %v2119 = vunpack.c.h.b16 %v563
    %v2120 = vunpack.c.l.b16 %v564
    %v2121 = vunpack.c.h.b16 %v564
    %v2122 = vunpack.c.l.b16 %v565
    %v2123 = vunpack.c.h.b16 %v565
    %v2124 = vunpack.c.l.b16 %v566
    %v2125 = vunpack.c.h.b16 %v566
    %v2126 = vunpack.c.l.b16 %v567
    %v2127 = vunpack.c.h.b16 %v567
    %v2128 = vunpack.c.l.b16 %v568
    %v2129 = vunpack.c.h.b16 %v568
    %v2130 = vunpack.c.l.b16 %v569
    %v2131 = vunpack.c.h.b16 %v569
    %v2132 = vunpack.c.l.b16 %v570
    %v2133 = vunpack.c.h.b16 %v570
    %v2134 = vunpack.c.l.b16 %v571
    %v2135 = vunpack.c.h.b16 %v571
    %v2136 = vunpack.c.l.b16 %v572
    %v2137 = vunpack.c.h.b16 %v572
    %v2138 = vunpack.c.l.b16 %v573
    %v2139 = vunpack.c.h.b16 %v573
    %v2140 = vunpack.c.l.b16 %v574
    %v2141 = vunpack.c.h.b16 %v574
    %v2142 = vunpack.c.l.b16 %v575
    %v2143 = vunpack.c.h.b16 %v575
    %v2144 = vunpack.c.l.b16 %v576
    %v2145 = vunpack.c.h.b16 %v576
    %v2146 = vunpack.c.l.b16 %v577
    %v2147 = vunpack.c.h.b16 %v577
    %v2148 = vunpack.c.l.b16 %v578
    %v2149 = vunpack.c.h.b16 %v578
    %v2150 = vunpack.c.l.b16 %v579
    %v2151 = vunpack.c.h.b16 %v579
    %v2152 = vunpack.c.l.b16 %v580
    %v2153 = vunpack.c.h.b16 %v580
    %v2154 = vunpack.c.l.b16 %v581
    %v2155 = vunpack.c.h.b16 %v581
    %v2156 = vunpack.c.l.b16 %v582
    %v2157 = vunpack.c.h.b16 %v582
    %v2158 = vunpack.c.l.b16 %v583
    %v2159 = vunpack.c.h.b16 %v583
    %v2160 = vunpack.c.l.b16 %v584
    %v2161 = vunpack.c.h.b16 %v584
    %v2162 = vunpack.c.l.b16 %v585
    %v2163 = vunpack.c.h.b16 %v585
    %v2164 = vunpack.c.l.b16 %v586
    %v2165 = vunpack.c.h.b16 %v586
    %v2166 = vunpack.c.l.b16 %v587
    %v2167 = vunpack.c.h.b16 %v587
    %v2168 = vunpack.c.l.b16 %v588
    %v2169 = vunpack.c.h.b16 %v588
    %v2170 = vunpack.c.l.b16 %v589
    %v2171 = vunpack.c.h.b16 %v589
    %v2172 = vunpack.c.l.b16 %v590
    %v2173 = vunpack.c.h.b16 %v590
    %v2174 = vunpack.c.l.b16 %v591
    %v2175 = vunpack.c.h.b16 %v591
    %v2176 = vunpack.c.l.b16 %v592
    %v2177 = vunpack.c.h.b16 %v592
    %v2178 = vunpack.c.l.b16 %v593
    %v2179 = vunpack.c.h.b16 %v593
    %v2180 = vunpack.c.l.b16 %v594
    %v2181 = vunpack.c.h.b16 %v594
    %v2182 = vunpack.c.l.b16 %v595
    %v2183 = vunpack.c.h.b16 %v595
    %v2184 = vunpack.c.l.b16 %v596
    %v2185 = vunpack.c.h.b16 %v596
    %v2186 = vunpack.c.l.b16 %v597
    %v2187 = vunpack.c.h.b16 %v597
    %v2188 = vunpack.c.l.b16 %v598
    %v2189 = vunpack.c.h.b16 %v598
    %v2190 = vunpack.c.l.b16 %v599
    %v2191 = vunpack.c.h.b16 %v599
    %v2192 = vunpack.c.l.b16 %v600
    %v2193 = vunpack.c.h.b16 %v600
    %v2194 = vunpack.c.l.b16 %v601
    %v2195 = vunpack.c.h.b16 %v601
    %v2196 = vunpack.c.l.b16 %v602
    %v2197 = vunpack.c.h.b16 %v602
    %v2198 = vunpack.c.l.b16 %v603
    %v2199 = vunpack.c.h.b16 %v603
    %v2200 = vunpack.c.l.b16 %v604
    %v2201 = vunpack.c.h.b16 %v604
    %v2202 = vunpack.c.l.b16 %v605
    %v2203 = vunpack.c.h.b16 %v605
    %v2204 = vunpack.c.l.b16 %v606
    %v2205 = vunpack.c.h.b16 %v606
    %v2206 = vunpack.c.l.b16 %v607
    %v2207 = vunpack.c.h.b16 %v607
    %v2208 = vunpack.c.l.b16 %v608
    %v2209 = vunpack.c.h.b16 %v608
    %v2210 = vunpack.c.l.b16 %v609
    %v2211 = vunpack.c.h.b16 %v609
    %v2212 = vunpack.c.l.b16 %v610
    %v2213 = vunpack.c.h.b16 %v610
    %v2214 = vunpack.c.l.b16 %v611
    %v2215 = vunpack.c.h.b16 %v611
    %v2216 = vunpack.c.l.b16 %v612
    %v2217 = vunpack.c.h.b16 %v612
    %v2218 = vunpack.c.l.b16 %v613
    %v2219 = vunpack.c.h.b16 %v613
    %v2220 = vunpack.c.l.b16 %v614
    %v2221 = vunpack.c.h.b16 %v614
    %v2222 = vunpack.c.l.b16 %v615
    %v2223 = vunpack.c.h.b16 %v615
    %v2224 = vunpack.c.l.b16 %v616
    %v2225 = vunpack.c.h.b16 %v616
    %v2226 = vunpack.c.l.b16 %v617
    %v2227 = vunpack.c.h.b16 %v617
    %v2228 = vunpack.c.l.b16 %v618
    %v2229 = vunpack.c.h.b16 %v618
    %v2230 = vunpack.c.l.b16 %v619
    %v2231 = vunpack.c.h.b16 %v619
    %v2232 = vunpack.c.l.b16 %v620
    %v2233 = vunpack.c.h.b16 %v620
    %v2234 = vunpack.c.l.b16 %v621
    %v2235 = vunpack.c.h.b16 %v621
    %v2236 = vunpack.c.l.b16 %v622
    %v2237 = vunpack.c.h.b16 %v622
    %v2238 = vunpack.c.l.b16 %v623
    %v2239 = vunpack.c.h.b16 %v623
    %v2240 = vunpack.c.l.b16 %v624
    %v2241 = vunpack.c.h.b16 %v624
    %v2242 = vunpack.c.l.b16 %v625
    %v2243 = vunpack.c.h.b16 %v625
    %v2244 = vunpack.c.l.b16 %v626
    %v2245 = vunpack.c.h.b16 %v626
    %v2246 = vunpack.c.l.b16 %v627
    %v2247 = vunpack.c.h.b16 %v627
    %v2248 = vunpack.c.l.b16 %v628
    %v2249 = vunpack.c.h.b16 %v628
    %v2250 = vunpack.c.l.b16 %v629
    %v2251 = vunpack.c.h.b16 %v629
    %v2252 = vunpack.c.l.b16 %v630
    %v2253 = vunpack.c.h.b16 %v630
    %v2254 = vunpack.c.l.b16 %v631
    %v2255 = vunpack.c.h.b16 %v631
    %v2256 = vunpack.c.l.b16 %v632
    %v2257 = vunpack.c.h.b16 %v632
    %v2258 = vunpack.c.l.b16 %v633
    %v2259 = vunpack.c.h.b16 %v633
    %v2260 = vunpack.c.l.b16 %v634
    %v2261 = vunpack.c.h.b16 %v634
    %v2262 = vunpack.c.l.b16 %v635
    %v2263 = vunpack.c.h.b16 %v635
    %v2264 = vunpack.c.l.b16 %v636
    %v2265 = vunpack.c.h.b16 %v636
    %v2266 = vunpack.c.l.b16 %v637
    %v2267 = vunpack.c.h.b16 %v637
    %v2268 = vunpack.c.l.b16 %v638
    %v2269 = vunpack.c.h.b16 %v638
    %v2270 = vunpack.c.l.b16 %v639
    %v2271 = vunpack.c.h.b16 %v639
    %v2272 = vunpack.c.l.b16 %v640
    %v2273 = vunpack.c.h.b16 %v640
    %v2274 = vunpack.c.l.b16 %v641
    %v2275 = vunpack.c.h.b16 %v641
    %v2276 = vunpack.c.l.b16 %v642
    %v2277 = vunpack.c.h.b16 %v642
    %v2278 = vunpack.c.l.b16 %v643
    %v2279 = vunpack.c.h.b16 %v643
    %v2280 = vunpack.c.l.b16 %v644
    %v2281 = vunpack.c.h.b16 %v644
    %v2282 = vunpack.c.l.b16 %v645
    %v2283 = vunpack.c.h.b16 %v645
    %v2284 = vunpack.c.l.b16 %v646
    %v2285 = vunpack.c.h.b16 %v646
    %v2286 = vunpack.c.l.b16 %v647
    %v2287 = vunpack.c.h.b16 %v647
    %v2288 = vunpack.c.l.b16 %v648
    %v2289 = vunpack.c.h.b16 %v648
    %v2290 = vunpack.c.l.b16 %v649
    %v2291 = vunpack.c.h.b16 %v649
    %v2292 = vunpack.c.l.b16 %v650
    %v2293 = vunpack.c.h.b16 %v650
    %v2294 = vunpack.c.l.b16 %v651
    %v2295 = vunpack.c.h.b16 %v651
    %v2296 = vunpack.c.l.b16 %v652
    %v2297 = vunpack.c.h.b16 %v652
    %v2298 = vunpack.c.l.b16 %v653
    %v2299 = vunpack.c.h.b16 %v653
    %v2300 = vunpack.c.l.b16 %v654
    %v2301 = vunpack.c.h.b16 %v654
    %v2302 = vunpack.c.l.b16 %v655
    %v2303 = vunpack.c.h.b16 %v655
    %v2304 = vunpack.c.l.b16 %v656
    %v2305 = vunpack.c.h.b16 %v656
    %v2306 = vunpack.c.l.b16 %v657
    %v2307 = vunpack.c.h.b16 %v657
    %v2308 = vunpack.c.l.b16 %v658
    %v2309 = vunpack.c.h.b16 %v658
    %v2310 = vunpack.c.l.b16 %v659
    %v2311 = vunpack.c.h.b16 %v659
    %v2312 = vunpack.c.l.b16 %v660
    %v2313 = vunpack.c.h.b16 %v660
    %v2314 = vunpack.c.l.b16 %v661
    %v2315 = vunpack.c.h.b16 %v661
    %v2316 = vunpack.c.l.b16 %v662
    %v2317 = vunpack.c.h.b16 %v662
    %v2318 = vunpack.c.l.b16 %v663
    %v2319 = vunpack.c.h.b16 %v663
    %v2320 = vunpack.c.l.b16 %v664
    %v2321 = vunpack.c.h.b16 %v664
    %v2322 = vunpack.c.l.b16 %v665
    %v2323 = vunpack.c.h.b16 %v665
    %v2324 = vunpack.c.l.b16 %v666
    %v2325 = vunpack.c.h.b16 %v666
    %v2326 = vunpack.c.l.b16 %v667
    %v2327 = vunpack.c.h.b16 %v667
    %v2328 = vunpack.c.l.b16 %v668
    %v2329 = vunpack.c.h.b16 %v668
    %v2330 = vunpack.c.l.b16 %v669
    %v2331 = vunpack.c.h.b16 %v669
    %v2332 = vunpack.c.l.b16 %v670
    %v2333 = vunpack.c.h.b16 %v670
    %v2334 = vunpack.c.l.b16 %v671
    %v2335 = vunpack.c.h.b16 %v671
    %v2336 = vunpack.c.l.b16 %v672
    %v2337 = vunpack.c.h.b16 %v672
    %v2338 = vunpack.c.l.b16 %v673
    %v2339 = vunpack.c.h.b16 %v673
    %v2340 = vunpack.c.l.b16 %v674
    %v2341 = vunpack.c.h.b16 %v674
    %v2342 = vunpack.c.l.b16 %v675
    %v2343 = vunpack.c.h.b16 %v675
    %v2344 = vunpack.c.l.b16 %v676
    %v2345 = vunpack.c.h.b16 %v676
    %v2346 = vunpack.c.l.b16 %v677
    %v2347 = vunpack.c.h.b16 %v677
    %v2348 = vunpack.c.l.b16 %v678
    %v2349 = vunpack.c.h.b16 %v678
    %v2350 = vunpack.c.l.b16 %v679
    %v2351 = vunpack.c.h.b16 %v679
    %v2352 = vunpack.c.l.b16 %v680
    %v2353 = vunpack.c.h.b16 %v680
    %v2354 = vunpack.c.l.b16 %v681
    %v2355 = vunpack.c.h.b16 %v681
    %v2356 = vunpack.c.l.b16 %v682
    %v2357 = vunpack.c.h.b16 %v682
    %v2358 = vunpack.c.l.b16 %v683
    %v2359 = vunpack.c.h.b16 %v683
    %v2360 = vunpack.c.l.b16 %v684
    %v2361 = vunpack.c.h.b16 %v684
    %v2362 = vunpack.c.l.b16 %v685
    %v2363 = vunpack.c.h.b16 %v685
    %v2364 = vunpack.c.l.b16 %v686
    %v2365 = vunpack.c.h.b16 %v686
    %v2366 = vunpack.c.l.b16 %v687
    %v2367 = vunpack.c.h.b16 %v687
    %v2368 = vunpack.c.l.b16 %v688
    %v2369 = vunpack.c.h.b16 %v688
    %v2370 = vunpack.c.l.b16 %v689
    %v2371 = vunpack.c.h.b16 %v689
    %v2372 = vunpack.c.l.b16 %v690
    %v2373 = vunpack.c.h.b16 %v690
    %v2374 = vunpack.c.l.b16 %v691
    %v2375 = vunpack.c.h.b16 %v691
    %v2376 = vunpack.c.l.b16 %v692
    %v2377 = vunpack.c.h.b16 %v692
    %v2378 = vunpack.c.l.b16 %v693
    %v2379 = vunpack.c.h.b16 %v693
    %v2380 = vunpack.c.l.b16 %v694
    %v2381 = vunpack.c.h.b16 %v694
    %v2382 = vunpack.c.l.b16 %v695
    %v2383 = vunpack.c.h.b16 %v695
    %v2384 = vunpack.c.l.b16 %v696
    %v2385 = vunpack.c.h.b16 %v696
    %v2386 = vunpack.c.l.b16 %v697
    %v2387 = vunpack.c.h.b16 %v697
    %v2388 = vunpack.c.l.b16 %v698
    %v2389 = vunpack.c.h.b16 %v698
    %v2390 = vunpack.c.l.b16 %v699
    %v2391 = vunpack.c.h.b16 %v699
    %v2392 = vunpack.c.l.b16 %v700
    %v2393 = vunpack.c.h.b16 %v700
    %v2394 = vunpack.c.l.b16 %v701
    %v2395 = vunpack.c.h.b16 %v701
    %v2396 = vunpack.c.l.b16 %v702
    %v2397 = vunpack.c.h.b16 %v702
    %v2398 = vunpack.c.l.b16 %v703
    %v2399 = vunpack.c.h.b16 %v703
    %v2400 = vunpack.c.l.b16 %v704
    %v2401 = vunpack.c.h.b16 %v704
    %v2402 = vunpack.c.l.b16 %v705
    %v2403 = vunpack.c.h.b16 %v705
    %v2404 = vunpack.c.l.b16 %v706
    %v2405 = vunpack.c.h.b16 %v706
    %v2406 = vunpack.c.l.b16 %v707
    %v2407 = vunpack.c.h.b16 %v707
    %v2408 = vunpack.c.l.b16 %v708
    %v2409 = vunpack.c.h.b16 %v708
    %v2410 = vunpack.c.l.b16 %v709
    %v2411 = vunpack.c.h.b16 %v709
    %v2412 = vunpack.c.l.b16 %v710
    %v2413 = vunpack.c.h.b16 %v710
    %v2414 = vunpack.c.l.b16 %v711
    %v2415 = vunpack.c.h.b16 %v711
    %v2416 = vunpack.c.l.b16 %v712
    %v2417 = vunpack.c.h.b16 %v712
    %v2418 = vunpack.c.l.b16 %v713
    %v2419 = vunpack.c.h.b16 %v713
    %v2420 = vunpack.c.l.b16 %v714
    %v2421 = vunpack.c.h.b16 %v714
    %v2422 = vunpack.c.l.b16 %v715
    %v2423 = vunpack.c.h.b16 %v715
    %v2424 = vunpack.c.l.b16 %v716
    %v2425 = vunpack.c.h.b16 %v716
    %v2426 = vunpack.c.l.b16 %v717
    %v2427 = vunpack.c.h.b16 %v717
    %v2428 = vunpack.c.l.b16 %v718
    %v2429 = vunpack.c.h.b16 %v718
    %v2430 = vunpack.c.l.b16 %v719
    %v2431 = vunpack.c.h.b16 %v719
    %v2432 = vunpack.c.l.b16 %v720
    %v2433 = vunpack.c.h.b16 %v720
    %v2434 = vunpack.c.l.b16 %v721
    %v2435 = vunpack.c.h.b16 %v721
    %v2436 = vunpack.c.l.b16 %v722
    %v2437 = vunpack.c.h.b16 %v722
    %v2438 = vunpack.c.l.b16 %v723
    %v2439 = vunpack.c.h.b16 %v723
    %v2440 = vunpack.c.l.b16 %v724
    %v2441 = vunpack.c.h.b16 %v724
    %v2442 = vunpack.c.l.b16 %v725
    %v2443 = vunpack.c.h.b16 %v725
    %v2444 = vunpack.c.l.b16 %v726
    %v2445 = vunpack.c.h.b16 %v726
    %v2446 = vunpack.c.l.b16 %v727
    %v2447 = vunpack.c.h.b16 %v727
    %v2448 = vunpack.c.l.b16 %v728
    %v2449 = vunpack.c.h.b16 %v728
    %v2450 = vunpack.c.l.b16 %v729
    %v2451 = vunpack.c.h.b16 %v729
    %v2452 = vunpack.c.l.b16 %v730
    %v2453 = vunpack.c.h.b16 %v730
    %v2454 = vunpack.c.l.b16 %v731
    %v2455 = vunpack.c.h.b16 %v731
    %v2456 = vunpack.c.l.b16 %v732
    %v2457 = vunpack.c.h.b16 %v732
    %v2458 = vunpack.c.l.b16 %v733
    %v2459 = vunpack.c.h.b16 %v733
    %v2460 = vunpack.c.l.b16 %v734
    %v2461 = vunpack.c.h.b16 %v734
    %v2462 = vunpack.c.l.b16 %v735
    %v2463 = vunpack.c.h.b16 %v735
    %v2464 = vunpack.c.l.b16 %v736
    %v2465 = vunpack.c.h.b16 %v736
    %v2466 = vunpack.c.l.b16 %v737
    %v2467 = vunpack.c.h.b16 %v737
    %v2468 = vunpack.c.l.b16 %v738
    %v2469 = vunpack.c.h.b16 %v738
    %v2470 = vunpack.c.l.b16 %v739
    %v2471 = vunpack.c.h.b16 %v739
    %v2472 = vunpack.c.l.b16 %v740
    %v2473 = vunpack.c.h.b16 %v740
    %v2474 = vunpack.c.l.b16 %v741
    %v2475 = vunpack.c.h.b16 %v741
    %v2476 = vunpack.c.l.b16 %v742
    %v2477 = vunpack.c.h.b16 %v742
    %v2478 = vunpack.c.l.b16 %v743
    %v2479 = vunpack.c.h.b16 %v743
    %v2480 = vunpack.c.l.b16 %v744
    %v2481 = vunpack.c.h.b16 %v744
    %v2482 = vunpack.c.l.b16 %v745
    %v2483 = vunpack.c.h.b16 %v745
    %v2484 = vunpack.c.l.b16 %v746
    %v2485 = vunpack.c.h.b16 %v746
    %v2486 = vunpack.c.l.b16 %v747
    %v2487 = vunpack.c.h.b16 %v747
    %v2488 = vunpack.c.l.b16 %v748
    %v2489 = vunpack.c.h.b16 %v748
    %v2490 = vunpack.c.l.b16 %v749
    %v2491 = vunpack.c.h.b16 %v749
    %v2492 = vunpack.c.l.b16 %v750
    %v2493 = vunpack.c.h.b16 %v750
    %v2494 = vunpack.c.l.b16 %v751
    %v2495 = vunpack.c.h.b16 %v751
    %v2496 = vunpack.c.l.b16 %v752
    %v2497 = vunpack.c.h.b16 %v752
    %v2498 = vunpack.c.l.b16 %v753
    %v2499 = vunpack.c.h.b16 %v753
    %v2500 = vunpack.c.l.b16 %v754
    %v2501 = vunpack.c.h.b16 %v754
    %v2502 = vunpack.c.l.b16 %v755
    %v2503 = vunpack.c.h.b16 %v755
    %v2504 = vunpack.c.l.b16 %v756
    %v2505 = vunpack.c.h.b16 %v756
    %v2506 = vunpack.c.l.b16 %v757
    %v2507 = vunpack.c.h.b16 %v757
    %v2508 = vunpack.c.l.b16 %v758
    %v2509 = vunpack.c.h.b16 %v758
    %v2510 = vunpack.c.l.b16 %v759
    %v2511 = vunpack.c.h.b16 %v759
    %v2512 = vunpack.c.l.b16 %v760
    %v2513 = vunpack.c.h.b16 %v760
    %v2514 = vunpack.c.l.b16 %v761
    %v2515 = vunpack.c.h.b16 %v761
    %v2516 = vunpack.c.l.b16 %v762
    %v2517 = vunpack.c.h.b16 %v762
    %v2518 = vunpack.c.l.b16 %v763
    %v2519 = vunpack.c.h.b16 %v763
    %v2520 = vunpack.c.l.b16 %v764
    %v2521 = vunpack.c.h.b16 %v764
    %v2522 = vunpack.c.l.b16 %v765
    %v2523 = vunpack.c.h.b16 %v765
    %v2524 = vunpack.c.l.b16 %v766
    %v2525 = vunpack.c.h.b16 %v766
    %v2526 = vunpack.c.l.b16 %v767
    %v2527 = vunpack.c.h.b16 %v767
    %v2528 = vunpack.c.l.b16 %v768
    %v2529 = vunpack.c.h.b16 %v768
    %v2530 = vunpack.c.l.b16 %v769
    %v2531 = vunpack.c.h.b16 %v769
    %v2532 = vunpack.c.l.b16 %v770
    %v2533 = vunpack.c.h.b16 %v770
    %v2534 = vunpack.c.l.b16 %v771
    %v2535 = vunpack.c.h.b16 %v771
    %v2536 = vunpack.c.l.b16 %v772
    %v2537 = vunpack.c.h.b16 %v772
    %v2538 = vunpack.c.l.b16 %v773
    %v2539 = vunpack.c.h.b16 %v773
    %v2540 = vunpack.c.l.b16 %v774
    %v2541 = vunpack.c.h.b16 %v774
    %v2542 = vunpack.c.l.b16 %v775
    %v2543 = vunpack.c.h.b16 %v775
    %v2544 = vunpack.c.l.b16 %v776
    %v2545 = vunpack.c.h.b16 %v776
    %v2546 = vunpack.c.l.b16 %v777
    %v2547 = vunpack.c.h.b16 %v777
    %v2548 = vunpack.c.l.b16 %v778
    %v2549 = vunpack.c.h.b16 %v778
    %v2550 = vunpack.c.l.b16 %v779
    %v2551 = vunpack.c.h.b16 %v779
    %v2552 = vunpack.c.l.b16 %v780
    %v2553 = vunpack.c.h.b16 %v780
    %v2554 = vunpack.c.l.b16 %v781
    %v2555 = vunpack.c.h.b16 %v781
    %v2556 = vunpack.c.l.b16 %v782
    %v2557 = vunpack.c.h.b16 %v782
    %v2558 = vunpack.c.l.b16 %v783
    %v2559 = vunpack.c.h.b16 %v783
    %v2560 = vunpack.c.l.b16 %v784
    %v2561 = vunpack.c.h.b16 %v784
    %v2562 = vunpack.c.l.b16 %v785
    %v2563 = vunpack.c.h.b16 %v785
    %v2564 = vunpack.c.l.b16 %v786
    %v2565 = vunpack.c.h.b16 %v786
    %v2566 = vpack.c.b16 %v1426, %v1414
    %v2567 = vpack.c.b16 %v1427, %v1415
    %v2568 = vpack.c.b16 %v1428, %v1416
    %v2569 = vpack.c.b16 %v1429, %v1417
    %v2570 = vpack.c.b16 %v1430, %v1418
    %v2571 = vpack.c.b16 %v1431, %v1419
    %v2572 = vpack.c.b16 %v1432, %v1420
    %v2573 = vpack.c.b16 %v1433, %v1421
    %v2574 = vpack.c.b16 %v1434, %v1422
    %v2575 = vpack.c.b16 %v1435, %v1423
    %v2576 = vpack.c.b16 %v1436, %v1424
    %v2577 = vpack.c.b16 %v1437, %v1425
    %v2578 = vpack.c.b16 %v1450, %v1438
    %v2579 = vpack.c.b16 %v1451, %v1439
    %v2580 = vpack.c.b16 %v1452, %v1440
    %v2581 = vpack.c.b16 %v1453, %v1441
    %v2582 = vpack.c.b16 %v1454, %v1442
    %v2583 = vpack.c.b16 %v1455, %v1443
    %v2584 = vpack.c.b16 %v1456, %v1444
    %v2585 = vpack.c.b16 %v1457, %v1445
    %v2586 = vpack.c.b16 %v1458, %v1446
    %v2587 = vpack.c.b16 %v1459, %v1447
    %v2588 = vpack.c.b16 %v1460, %v1448
    %v2589 = vpack.c.b16 %v1461, %v1449
    %v2590 = vpack.c.b16 %v1474, %v1462
    %v2591 = vpack.c.b16 %v1475, %v1463
    %v2592 = vpack.c.b16 %v1476, %v1464
    %v2593 = vpack.c.b16 %v1477, %v1465
    %v2594 = vpack.c.b16 %v1478, %v1466
    %v2595 = vpack.c.b16 %v1479, %v1467
    %v2596 = vpack.c.b16 %v1480, %v1468
    %v2597 = vpack.c.b16 %v1481, %v1469
    %v2598 = vpack.c.b16 %v1482, %v1470
    %v2599 = vpack.c.b16 %v1483, %v1471
    %v2600 = vpack.c.b16 %v1484, %v1472
    %v2601 = vpack.c.b16 %v1485, %v1473
    %v2602 = vpack.c.b16 %v1498, %v1486
    %v2603 = vpack.c.b16 %v1499, %v1487
    %v2604 = vpack.c.b16 %v1500, %v1488
    %v2605 = vpack.c.b16 %v1501, %v1489
    %v2606 = vpack.c.b16 %v1502, %v1490
    %v2607 = vpack.c.b16 %v1503, %v1491
    %v2608 = vpack.c.b16 %v1504, %v1492
    %v2609 = vpack.c.b16 %v1505, %v1493
    %v2610 = vpack.c.b16 %v1506, %v1494
    %v2611 = vpack.c.b16 %v1507, %v1495
    %v2612 = vpack.c.b16 %v1508, %v1496
    %v2613 = vpack.c.b16 %v1509, %v1497
    %v2614 = vpack.c.b16 %v1522, %v1510
    %v2615 = vpack.c.b16 %v1523, %v1511
    %v2616 = vpack.c.b16 %v1524, %v1512
    %v2617 = vpack.c.b16 %v1525, %v1513
    %v2618 = vpack.c.b16 %v1526, %v1514
    %v2619 = vpack.c.b16 %v1527, %v1515
    %v2620 = vpack.c.b16 %v1528, %v1516
    %v2621 = vpack.c.b16 %v1529, %v1517
    %v2622 = vpack.c.b16 %v1530, %v1518
    %v2623 = vpack.c.b16 %v1531, %v1519
    %v2624 = vpack.c.b16 %v1532, %v1520
    %v2625 = vpack.c.b16 %v1533, %v1521
    %v2626 = vpack.c.b16 %v1546, %v1534
    %v2627 = vpack.c.b16 %v1547, %v1535
    %v2628 = vpack.c.b16 %v1548, %v1536
    %v2629 = vpack.c.b16 %v1549, %v1537
    %v2630 = vpack.c.b16 %v1550, %v1538
    %v2631 = vpack.c.b16 %v1551, %v1539
    %v2632 = vpack.c.b16 %v1552, %v1540
    %v2633 = vpack.c.b16 %v1553, %v1541
    %v2634 = vpack.c.b16 %v1554, %v1542
    %v2635 = vpack.c.b16 %v1555, %v1543
    %v2636 = vpack.c.b16 %v1556, %v1544
    %v2637 = vpack.c.b16 %v1557, %v1545
    %v2638 = vpack.c.b16 %v1570, %v1558
    %v2639 = vpack.c.b16 %v1571, %v1559
    %v2640 = vpack.c.b16 %v1572, %v1560
    %v2641 = vpack.c.b16 %v1573, %v1561
    %v2642 = vpack.c.b16 %v1574, %v1562
    %v2643 = vpack.c.b16 %v1575, %v1563
    %v2644 = vpack.c.b16 %v1576, %v1564
    %v2645 = vpack.c.b16 %v1577, %v1565
    %v2646 = vpack.c.b16 %v1578, %v1566
    %v2647 = vpack.c.b16 %v1579, %v1567
    %v2648 = vpack.c.b16 %v1580, %v1568
    %v2649 = vpack.c.b16 %v1581, %v1569
    %v2650 = vpack.c.b16 %v1594, %v1582
    %v2651 = vpack.c.b16 %v1595, %v1583
    %v2652 = vpack.c.b16 %v1596, %v1584
    %v2653 = vpack.c.b16 %v1597, %v1585
    %v2654 = vpack.c.b16 %v1598, %v1586
    %v2655 = vpack.c.b16 %v1599, %v1587
    %v2656 = vpack.c.b16 %v1600, %v1588
    %v2657 = vpack.c.b16 %v1601, %v1589
    %v2658 = vpack.c.b16 %v1602, %v1590
    %v2659 = vpack.c.b16 %v1603, %v1591
    %v2660 = vpack.c.b16 %v1604, %v1592
    %v2661 = vpack.c.b16 %v1605, %v1593
    %v2662 = vpack.c.b16 %v1618, %v1606
    %v2663 = vpack.c.b16 %v1619, %v1607
    %v2664 = vpack.c.b16 %v1620, %v1608
    %v2665 = vpack.c.b16 %v1621, %v1609
    %v2666 = vpack.c.b16 %v1622, %v1610
    %v2667 = vpack.c.b16 %v1623, %v1611
    %v2668 = vpack.c.b16 %v1624, %v1612
    %v2669 = vpack.c.b16 %v1625, %v1613
    %v2670 = vpack.c.b16 %v1626, %v1614
    %v2671 = vpack.c.b16 %v1627, %v1615
    %v2672 = vpack.c.b16 %v1628, %v1616
    %v2673 = vpack.c.b16 %v1629, %v1617
    %v2674 = vpack.c.b16 %v1642, %v1630
    %v2675 = vpack.c.b16 %v1643, %v1631
    %v2676 = vpack.c.b16 %v1644, %v1632
    %v2677 = vpack.c.b16 %v1645, %v1633
    %v2678 = vpack.c.b16 %v1646, %v1634
    %v2679 = vpack.c.b16 %v1647, %v1635
    %v2680 = vpack.c.b16 %v1648, %v1636
    %v2681 = vpack.c.b16 %v1649, %v1637
    %v2682 = vpack.c.b16 %v1650, %v1638
    %v2683 = vpack.c.b16 %v1651, %v1639
    %v2684 = vpack.c.b16 %v1652, %v1640
    %v2685 = vpack.c.b16 %v1653, %v1641
    %v2686 = vpack.c.b16 %v1666, %v1654
    %v2687 = vpack.c.b16 %v1667, %v1655
    %v2688 = vpack.c.b16 %v1668, %v1656
    %v2689 = vpack.c.b16 %v1669, %v1657
    %v2690 = vpack.c.b16 %v1670, %v1658
    %v2691 = vpack.c.b16 %v1671, %v1659
    %v2692 = vpack.c.b16 %v1672, %v1660
    %v2693 = vpack.c.b16 %v1673, %v1661
    %v2694 = vpack.c.b16 %v1674, %v1662
    %v2695 = vpack.c.b16 %v1675, %v1663
    %v2696 = vpack.c.b16 %v1676, %v1664
    %v2697 = vpack.c.b16 %v1677, %v1665
    %v2698 = vpack.c.b16 %v1690, %v1678
    %v2699 = vpack.c.b16 %v1691, %v1679
    %v2700 = vpack.c.b16 %v1692, %v1680
    %v2701 = vpack.c.b16 %v1693, %v1681
    %v2702 = vpack.c.b16 %v1694, %v1682
    %v2703 = vpack.c.b16 %v1695, %v1683
    %v2704 = vpack.c.b16 %v1696, %v1684
    %v2705 = vpack.c.b16 %v1697, %v1685
    %v2706 = vpack.c.b16 %v1698, %v1686
    %v2707 = vpack.c.b16 %v1699, %v1687
    %v2708 = vpack.c.b16 %v1700, %v1688
    %v2709 = vpack.c.b16 %v1701, %v1689
    %v2710 = vpack.c.b16 %v1714, %v1702
    %v2711 = vpack.c.b16 %v1715, %v1703
    %v2712 = vpack.c.b16 %v1716, %v1704
    %v2713 = vpack.c.b16 %v1717, %v1705
    %v2714 = vpack.c.b16 %v1718, %v1706
    %v2715 = vpack.c.b16 %v1719, %v1707
    %v2716 = vpack.c.b16 %v1720, %v1708
    %v2717 = vpack.c.b16 %v1721, %v1709
    %v2718 = vpack.c.b16 %v1722, %v1710
    %v2719 = vpack.c.b16 %v1723, %v1711
    %v2720 = vpack.c.b16 %v1724, %v1712
    %v2721 = vpack.c.b16 %v1725, %v1713
    %v2722 = vpack.c.b16 %v1738, %v1726
    %v2723 = vpack.c.b16 %v1739, %v1727
    %v2724 = vpack.c.b16 %v1740, %v1728
    %v2725 = vpack.c.b16 %v1741, %v1729
    %v2726 = vpack.c.b16 %v1742, %v1730
    %v2727 = vpack.c.b16 %v1743, %v1731
    %v2728 = vpack.c.b16 %v1744, %v1732
    %v2729 = vpack.c.b16 %v1745, %v1733
    %v2730 = vpack.c.b16 %v1746, %v1734
    %v2731 = vpack.c.b16 %v1747, %v1735
    %v2732 = vpack.c.b16 %v1748, %v1736
    %v2733 = vpack.c.b16 %v1749, %v1737
    %v2734 = vpack.c.b16 %v1762, %v1750
    %v2735 = vpack.c.b16 %v1763, %v1751
    %v2736 = vpack.c.b16 %v1764, %v1752
    %v2737 = vpack.c.b16 %v1765, %v1753
    %v2738 = vpack.c.b16 %v1766, %v1754
    %v2739 = vpack.c.b16 %v1767, %v1755
    %v2740 = vpack.c.b16 %v1768, %v1756
    %v2741 = vpack.c.b16 %v1769, %v1757
    %v2742 = vpack.c.b16 %v1770, %v1758
    %v2743 = vpack.c.b16 %v1771, %v1759
    %v2744 = vpack.c.b16 %v1772, %v1760
    %v2745 = vpack.c.b16 %v1773, %v1761
    %v2746 = vpack.c.b16 %v1786, %v1774
    %v2747 = vpack.c.b16 %v1787, %v1775
    %v2748 = vpack.c.b16 %v1788, %v1776
    %v2749 = vpack.c.b16 %v1789, %v1777
    %v2750 = vpack.c.b16 %v1790, %v1778
    %v2751 = vpack.c.b16 %v1791, %v1779
    %v2752 = vpack.c.b16 %v1792, %v1780
    %v2753 = vpack.c.b16 %v1793, %v1781
    %v2754 = vpack.c.b16 %v1794, %v1782
    %v2755 = vpack.c.b16 %v1795, %v1783
    %v2756 = vpack.c.b16 %v1796, %v1784
    %v2757 = vpack.c.b16 %v1797, %v1785
    %v2758 = vpack.c.b16 %v1810, %v1798
    %v2759 = vpack.c.b16 %v1811, %v1799
    %v2760 = vpack.c.b16 %v1812, %v1800
    %v2761 = vpack.c.b16 %v1813, %v1801
    %v2762 = vpack.c.b16 %v1814, %v1802
    %v2763 = vpack.c.b16 %v1815, %v1803
    %v2764 = vpack.c.b16 %v1816, %v1804
    %v2765 = vpack.c.b16 %v1817, %v1805
    %v2766 = vpack.c.b16 %v1818, %v1806
    %v2767 = vpack.c.b16 %v1819, %v1807
    %v2768 = vpack.c.b16 %v1820, %v1808
    %v2769 = vpack.c.b16 %v1821, %v1809
    %v2770 = vpack.c.b16 %v1834, %v1822
    %v2771 = vpack.c.b16 %v1835, %v1823
    %v2772 = vpack.c.b16 %v1836, %v1824
    %v2773 = vpack.c.b16 %v1837, %v1825
    %v2774 = vpack.c.b16 %v1838, %v1826
    %v2775 = vpack.c.b16 %v1839, %v1827
    %v2776 = vpack.c.b16 %v1840, %v1828
    %v2777 = vpack.c.b16 %v1841, %v1829
    %v2778 = vpack.c.b16 %v1842, %v1830
    %v2779 = vpack.c.b16 %v1843, %v1831
    %v2780 = vpack.c.b16 %v1844, %v1832
    %v2781 = vpack.c.b16 %v1845, %v1833
    %v2782 = vpack.c.b16 %v1858, %v1846
    %v2783 = vpack.c.b16 %v1859, %v1847
    %v2784 = vpack.c.b16 %v1860, %v1848
    %v2785 = vpack.c.b16 %v1861, %v1849
    %v2786 = vpack.c.b16 %v1862, %v1850
    %v2787 = vpack.c.b16 %v1863, %v1851
    %v2788 = vpack.c.b16 %v1864, %v1852
    %v2789 = vpack.c.b16 %v1865, %v1853
    %v2790 = vpack.c.b16 %v1866, %v1854
    %v2791 = vpack.c.b16 %v1867, %v1855
    %v2792 = vpack.c.b16 %v1868, %v1856
    %v2793 = vpack.c.b16 %v1869, %v1857
    %v2794 = vpack.c.b16 %v1882, %v1870
    %v2795 = vpack.c.b16 %v1883, %v1871
    %v2796 = vpack.c.b16 %v1884, %v1872
    %v2797 = vpack.c.b16 %v1885, %v1873
    %v2798 = vpack.c.b16 %v1886, %v1874
    %v2799 = vpack.c.b16 %v1887, %v1875
    %v2800 = vpack.c.b16 %v1888, %v1876
    %v2801 = vpack.c.b16 %v1889, %v1877
    %v2802 = vpack.c.b16 %v1890, %v1878
    %v2803 = vpack.c.b16 %v1891, %v1879
    %v2804 = vpack.c.b16 %v1892, %v1880
    %v2805 = vpack.c.b16 %v1893, %v1881
    %v2806 = vpack.c.b16 %v1906, %v1894
    %v2807 = vpack.c.b16 %v1907, %v1895
    %v2808 = vpack.c.b16 %v1908, %v1896
    %v2809 = vpack.c.b16 %v1909, %v1897
    %v2810 = vpack.c.b16 %v1910, %v1898
    %v2811 = vpack.c.b16 %v1911, %v1899
    %v2812 = vpack.c.b16 %v1912, %v1900
    %v2813 = vpack.c.b16 %v1913, %v1901
    %v2814 = vpack.c.b16 %v1914, %v1902
    %v2815 = vpack.c.b16 %v1915, %v1903
    %v2816 = vpack.c.b16 %v1916, %v1904
    %v2817 = vpack.c.b16 %v1917, %v1905
    %v2818 = vpack.c.b16 %v1930, %v1918
    %v2819 = vpack.c.b16 %v1931, %v1919
    %v2820 = vpack.c.b16 %v1932, %v1920
    %v2821 = vpack.c.b16 %v1933, %v1921
    %v2822 = vpack.c.b16 %v1934, %v1922
    %v2823 = vpack.c.b16 %v1935, %v1923
    %v2824 = vpack.c.b16 %v1936, %v1924
    %v2825 = vpack.c.b16 %v1937, %v1925
    %v2826 = vpack.c.b16 %v1938, %v1926
    %v2827 = vpack.c.b16 %v1939, %v1927
    %v2828 = vpack.c.b16 %v1940, %v1928
    %v2829 = vpack.c.b16 %v1941, %v1929
    %v2830 = vpack.c.b16 %v1954, %v1942
    %v2831 = vpack.c.b16 %v1955, %v1943
    %v2832 = vpack.c.b16 %v1956, %v1944
    %v2833 = vpack.c.b16 %v1957, %v1945
    %v2834 = vpack.c.b16 %v1958, %v1946
    %v2835 = vpack.c.b16 %v1959, %v1947
    %v2836 = vpack.c.b16 %v1960, %v1948
    %v2837 = vpack.c.b16 %v1961, %v1949
    %v2838 = vpack.c.b16 %v1962, %v1950
    %v2839 = vpack.c.b16 %v1963, %v1951
    %v2840 = vpack.c.b16 %v1964, %v1952
    %v2841 = vpack.c.b16 %v1965, %v1953
    %v2842 = vpack.c.b16 %v1978, %v1966
    %v2843 = vpack.c.b16 %v1979, %v1967
    %v2844 = vpack.c.b16 %v1980, %v1968
    %v2845 = vpack.c.b16 %v1981, %v1969
    %v2846 = vpack.c.b16 %v1982, %v1970
    %v2847 = vpack.c.b16 %v1983, %v1971
    %v2848 = vpack.c.b16 %v1984, %v1972
    %v2849 = vpack.c.b16 %v1985, %v1973
    %v2850 = vpack.c.b16 %v1986, %v1974
    %v2851 = vpack.c.b16 %v1987, %v1975
    %v2852 = vpack.c.b16 %v1988, %v1976
    %v2853 = vpack.c.b16 %v1989, %v1977
    %v2854 = vpack.c.b16 %v2002, %v1990
    %v2855 = vpack.c.b16 %v2003, %v1991
    %v2856 = vpack.c.b16 %v2004, %v1992
    %v2857 = vpack.c.b16 %v2005, %v1993
    %v2858 = vpack.c.b16 %v2006, %v1994
    %v2859 = vpack.c.b16 %v2007, %v1995
    %v2860 = vpack.c.b16 %v2008, %v1996
    %v2861 = vpack.c.b16 %v2009, %v1997
    %v2862 = vpack.c.b16 %v2010, %v1998
    %v2863 = vpack.c.b16 %v2011, %v1999
    %v2864 = vpack.c.b16 %v2012, %v2000
    %v2865 = vpack.c.b16 %v2013, %v2001
    %v2866 = vpack.c.b16 %v2026, %v2014
    %v2867 = vpack.c.b16 %v2027, %v2015
    %v2868 = vpack.c.b16 %v2028, %v2016
    %v2869 = vpack.c.b16 %v2029, %v2017
    %v2870 = vpack.c.b16 %v2030, %v2018
    %v2871 = vpack.c.b16 %v2031, %v2019
    %v2872 = vpack.c.b16 %v2032, %v2020
    %v2873 = vpack.c.b16 %v2033, %v2021
    %v2874 = vpack.c.b16 %v2034, %v2022
    %v2875 = vpack.c.b16 %v2035, %v2023
    %v2876 = vpack.c.b16 %v2036, %v2024
    %v2877 = vpack.c.b16 %v2037, %v2025
    %v2878 = vpack.c.b16 %v2050, %v2038
    %v2879 = vpack.c.b16 %v2051, %v2039
    %v2880 = vpack.c.b16 %v2052, %v2040
    %v2881 = vpack.c.b16 %v2053, %v2041
    %v2882 = vpack.c.b16 %v2054, %v2042
    %v2883 = vpack.c.b16 %v2055, %v2043
    %v2884 = vpack.c.b16 %v2056, %v2044
    %v2885 = vpack.c.b16 %v2057, %v2045
    %v2886 = vpack.c.b16 %v2058, %v2046
    %v2887 = vpack.c.b16 %v2059, %v2047
    %v2888 = vpack.c.b16 %v2060, %v2048
    %v2889 = vpack.c.b16 %v2061, %v2049
    %v2890 = vpack.c.b16 %v2074, %v2062
    %v2891 = vpack.c.b16 %v2075, %v2063
    %v2892 = vpack.c.b16 %v2076, %v2064
    %v2893 = vpack.c.b16 %v2077, %v2065
    %v2894 = vpack.c.b16 %v2078, %v2066
    %v2895 = vpack.c.b16 %v2079, %v2067
    %v2896 = vpack.c.b16 %v2080, %v2068
    %v2897 = vpack.c.b16 %v2081, %v2069
    %v2898 = vpack.c.b16 %v2082, %v2070
    %v2899 = vpack.c.b16 %v2083, %v2071
    %v2900 = vpack.c.b16 %v2084, %v2072
    %v2901 = vpack.c.b16 %v2085, %v2073
    %v2902 = vpack.c.b16 %v2098, %v2086
    %v2903 = vpack.c.b16 %v2099, %v2087
    %v2904 = vpack.c.b16 %v2100, %v2088
    %v2905 = vpack.c.b16 %v2101, %v2089
    %v2906 = vpack.c.b16 %v2102, %v2090
    %v2907 = vpack.c.b16 %v2103, %v2091
    %v2908 = vpack.c.b16 %v2104, %v2092
    %v2909 = vpack.c.b16 %v2105, %v2093
    %v2910 = vpack.c.b16 %v2106, %v2094
    %v2911 = vpack.c.b16 %v2107, %v2095
    %v2912 = vpack.c.b16 %v2108, %v2096
    %v2913 = vpack.c.b16 %v2109, %v2097
    %v2914 = vpack.c.b16 %v2122, %v2110
    %v2915 = vpack.c.b16 %v2123, %v2111
    %v2916 = vpack.c.b16 %v2124, %v2112
    %v2917 = vpack.c.b16 %v2125, %v2113
    %v2918 = vpack.c.b16 %v2126, %v2114
    %v2919 = vpack.c.b16 %v2127, %v2115
    %v2920 = vpack.c.b16 %v2128, %v2116
    %v2921 = vpack.c.b16 %v2129, %v2117
    %v2922 = vpack.c.b16 %v2130, %v2118
    %v2923 = vpack.c.b16 %v2131, %v2119
    %v2924 = vpack.c.b16 %v2132, %v2120
    %v2925 = vpack.c.b16 %v2133, %v2121
    %v2926 = vpack.c.b16 %v2146, %v2134
    %v2927 = vpack.c.b16 %v2147, %v2135
    %v2928 = vpack.c.b16 %v2148, %v2136
    %v2929 = vpack.c.b16 %v2149, %v2137
    %v2930 = vpack.c.b16 %v2150, %v2138
    %v2931 = vpack.c.b16 %v2151, %v2139
    %v2932 = vpack.c.b16 %v2152, %v2140
    %v2933 = vpack.c.b16 %v2153, %v2141
    %v2934 = vpack.c.b16 %v2154, %v2142
    %v2935 = vpack.c.b16 %v2155, %v2143
    %v2936 = vpack.c.b16 %v2156, %v2144
    %v2937 = vpack.c.b16 %v2157, %v2145
    %v2938 = vpack.c.b16 %v2170, %v2158
    %v2939 = vpack.c.b16 %v2171, %v2159
    %v2940 = vpack.c.b16 %v2172, %v2160
    %v2941 = vpack.c.b16 %v2173, %v2161
    %v2942 = vpack.c.b16 %v2174, %v2162
    %v2943 = vpack.c.b16 %v2175, %v2163
    %v2944 = vpack.c.b16 %v2176, %v2164
    %v2945 = vpack.c.b16 %v2177, %v2165
    %v2946 = vpack.c.b16 %v2178, %v2166
    %v2947 = vpack.c.b16 %v2179, %v2167
    %v2948 = vpack.c.b16 %v2180, %v2168
    %v2949 = vpack.c.b16 %v2181, %v2169
    %v2950 = vpack.c.b16 %v2194, %v2182
    %v2951 = vpack.c.b16 %v2195, %v2183
    %v2952 = vpack.c.b16 %v2196, %v2184
    %v2953 = vpack.c.b16 %v2197, %v2185
    %v2954 = vpack.c.b16 %v2198, %v2186
    %v2955 = vpack.c.b16 %v2199, %v2187
    %v2956 = vpack.c.b16 %v2200, %v2188
    %v2957 = vpack.c.b16 %v2201, %v2189
    %v2958 = vpack.c.b16 %v2202, %v2190
    %v2959 = vpack.c.b16 %v2203, %v2191
    %v2960 = vpack.c.b16 %v2204, %v2192
    %v2961 = vpack.c.b16 %v2205, %v2193
    %v2962 = vpack.c.b16 %v2218, %v2206
    %v2963 = vpack.c.b16 %v2219, %v2207
    %v2964 = vpack.c.b16 %v2220, %v2208
    %v2965 = vpack.c.b16 %v2221, %v2209
    %v2966 = vpack.c.b16 %v2222, %v2210
    %v2967 = vpack.c.b16 %v2223, %v2211
    %v2968 = vpack.c.b16 %v2224, %v2212
    %v2969 = vpack.c.b16 %v2225, %v2213
    %v2970 = vpack.c.b16 %v2226, %v2214
    %v2971 = vpack.c.b16 %v2227, %v2215
    %v2972 = vpack.c.b16 %v2228, %v2216
    %v2973 = vpack.c.b16 %v2229, %v2217
    %v2974 = vpack.c.b16 %v2242, %v2230
    %v2975 = vpack.c.b16 %v2243, %v2231
    %v2976 = vpack.c.b16 %v2244, %v2232
    %v2977 = vpack.c.b16 %v2245, %v2233
    %v2978 = vpack.c.b16 %v2246, %v2234
    %v2979 = vpack.c.b16 %v2247, %v2235
    %v2980 = vpack.c.b16 %v2248, %v2236
    %v2981 = vpack.c.b16 %v2249, %v2237
    %v2982 = vpack.c.b16 %v2250, %v2238
    %v2983 = vpack.c.b16 %v2251, %v2239
    %v2984 = vpack.c.b16 %v2252, %v2240
    %v2985 = vpack.c.b16 %v2253, %v2241
    %v2986 = vpack.c.b16 %v2266, %v2254
    %v2987 = vpack.c.b16 %v2267, %v2255
    %v2988 = vpack.c.b16 %v2268, %v2256
    %v2989 = vpack.c.b16 %v2269, %v2257
    %v2990 = vpack.c.b16 %v2270, %v2258
    %v2991 = vpack.c.b16 %v2271, %v2259
    %v2992 = vpack.c.b16 %v2272, %v2260
    %v2993 = vpack.c.b16 %v2273, %v2261
    %v2994 = vpack.c.b16 %v2274, %v2262
    %v2995 = vpack.c.b16 %v2275, %v2263
    %v2996 = vpack.c.b16 %v2276, %v2264
    %v2997 = vpack.c.b16 %v2277, %v2265
    %v2998 = vpack.c.b16 %v2290, %v2278
    %v2999 = vpack.c.b16 %v2291, %v2279
    %v3000 = vpack.c.b16 %v2292, %v2280
    %v3001 = vpack.c.b16 %v2293, %v2281
    %v3002 = vpack.c.b16 %v2294, %v2282
    %v3003 = vpack.c.b16 %v2295, %v2283
    %v3004 = vpack.c.b16 %v2296, %v2284
    %v3005 = vpack.c.b16 %v2297, %v2285
    %v3006 = vpack.c.b16 %v2298, %v2286
    %v3007 = vpack.c.b16 %v2299, %v2287
    %v3008 = vpack.c.b16 %v2300, %v2288
    %v3009 = vpack.c.b16 %v2301, %v2289
    %v3010 = vpack.c.b16 %v2314, %v2302
    %v3011 = vpack.c.b16 %v2315, %v2303
    %v3012 = vpack.c.b16 %v2316, %v2304
    %v3013 = vpack.c.b16 %v2317, %v2305
    %v3014 = vpack.c.b16 %v2318, %v2306
    %v3015 = vpack.c.b16 %v2319, %v2307
    %v3016 = vpack.c.b16 %v2320, %v2308
    %v3017 = vpack.c.b16 %v2321, %v2309
    %v3018 = vpack.c.b16 %v2322, %v2310
    %v3019 = vpack.c.b16 %v2323, %v2311
    %v3020 = vpack.c.b16 %v2324, %v2312
    %v3021 = vpack.c.b16 %v2325, %v2313
    %v3022 = vpack.c.b16 %v2338, %v2326
    %v3023 = vpack.c.b16 %v2339, %v2327
    %v3024 = vpack.c.b16 %v2340, %v2328
    %v3025 = vpack.c.b16 %v2341, %v2329
    %v3026 = vpack.c.b16 %v2342, %v2330
    %v3027 = vpack.c.b16 %v2343, %v2331
    %v3028 = vpack.c.b16 %v2344, %v2332
    %v3029 = vpack.c.b16 %v2345, %v2333
    %v3030 = vpack.c.b16 %v2346, %v2334
    %v3031 = vpack.c.b16 %v2347, %v2335
    %v3032 = vpack.c.b16 %v2348, %v2336
    %v3033 = vpack.c.b16 %v2349, %v2337
    %v3034 = vpack.c.b16 %v2362, %v2350
    %v3035 = vpack.c.b16 %v2363, %v2351
    %v3036 = vpack.c.b16 %v2364, %v2352
    %v3037 = vpack.c.b16 %v2365, %v2353
    %v3038 = vpack.c.b16 %v2366, %v2354
    %v3039 = vpack.c.b16 %v2367, %v2355
    %v3040 = vpack.c.b16 %v2368, %v2356
    %v3041 = vpack.c.b16 %v2369, %v2357
    %v3042 = vpack.c.b16 %v2370, %v2358
    %v3043 = vpack.c.b16 %v2371, %v2359
    %v3044 = vpack.c.b16 %v2372, %v2360
    %v3045 = vpack.c.b16 %v2373, %v2361
    %v3046 = vpack.c.b16 %v2386, %v2374
    %v3047 = vpack.c.b16 %v2387, %v2375
    %v3048 = vpack.c.b16 %v2388, %v2376
    %v3049 = vpack.c.b16 %v2389, %v2377
    %v3050 = vpack.c.b16 %v2390, %v2378
    %v3051 = vpack.c.b16 %v2391, %v2379
    %v3052 = vpack.c.b16 %v2392, %v2380
    %v3053 = vpack.c.b16 %v2393, %v2381
    %v3054 = vpack.c.b16 %v2394, %v2382
    %v3055 = vpack.c.b16 %v2395, %v2383
    %v3056 = vpack.c.b16 %v2396, %v2384
    %v3057 = vpack.c.b16 %v2397, %v2385
    %v3058 = vpack.c.b16 %v2410, %v2398
    %v3059 = vpack.c.b16 %v2411, %v2399
    %v3060 = vpack.c.b16 %v2412, %v2400
    %v3061 = vpack.c.b16 %v2413, %v2401
    %v3062 = vpack.c.b16 %v2414, %v2402
    %v3063 = vpack.c.b16 %v2415, %v2403
    %v3064 = vpack.c.b16 %v2416, %v2404
    %v3065 = vpack.c.b16 %v2417, %v2405
    %v3066 = vpack.c.b16 %v2418, %v2406
    %v3067 = vpack.c.b16 %v2419, %v2407
    %v3068 = vpack.c.b16 %v2420, %v2408
    %v3069 = vpack.c.b16 %v2421, %v2409
    %v3070 = vpack.c.b16 %v2434, %v2422
    %v3071 = vpack.c.b16 %v2435, %v2423
    %v3072 = vpack.c.b16 %v2436, %v2424
    %v3073 = vpack.c.b16 %v2437, %v2425
    %v3074 = vpack.c.b16 %v2438, %v2426
    %v3075 = vpack.c.b16 %v2439, %v2427
    %v3076 = vpack.c.b16 %v2440, %v2428
    %v3077 = vpack.c.b16 %v2441, %v2429
    %v3078 = vpack.c.b16 %v2442, %v2430
    %v3079 = vpack.c.b16 %v2443, %v2431
    %v3080 = vpack.c.b16 %v2444, %v2432
    %v3081 = vpack.c.b16 %v2445, %v2433
    %v3082 = vpack.c.b16 %v2458, %v2446
    %v3083 = vpack.c.b16 %v2459, %v2447
    %v3084 = vpack.c.b16 %v2460, %v2448
    %v3085 = vpack.c.b16 %v2461, %v2449
    %v3086 = vpack.c.b16 %v2462, %v2450
    %v3087 = vpack.c.b16 %v2463, %v2451
    %v3088 = vpack.c.b16 %v2464, %v2452
    %v3089 = vpack.c.b16 %v2465, %v2453
    %v3090 = vpack.c.b16 %v2466, %v2454
    %v3091 = vpack.c.b16 %v2467, %v2455
    %v3092 = vpack.c.b16 %v2468, %v2456
    %v3093 = vpack.c.b16 %v2469, %v2457
    %v3094 = vpack.c.b16 %v2482, %v2470
    %v3095 = vpack.c.b16 %v2483, %v2471
    %v3096 = vpack.c.b16 %v2484, %v2472
    %v3097 = vpack.c.b16 %v2485, %v2473
    %v3098 = vpack.c.b16 %v2486, %v2474
    %v3099 = vpack.c.b16 %v2487, %v2475
    %v3100 = vpack.c.b16 %v2488, %v2476
    %v3101 = vpack.c.b16 %v2489, %v2477
    %v3102 = vpack.c.b16 %v2490, %v2478
    %v3103 = vpack.c.b16 %v2491, %v2479
    %v3104 = vpack.c.b16 %v2492, %v2480
    %v3105 = vpack.c.b16 %v2493, %v2481
    %v3106 = vpack.c.b16 %v2506, %v2494
    %v3107 = vpack.c.b16 %v2507, %v2495
    %v3108 = vpack.c.b16 %v2508, %v2496
    %v3109 = vpack.c.b16 %v2509, %v2497
    %v3110 = vpack.c.b16 %v2510, %v2498
    %v3111 = vpack.c.b16 %v2511, %v2499
    %v3112 = vpack.c.b16 %v2512, %v2500
    %v3113 = vpack.c.b16 %v2513, %v2501
    %v3114 = vpack.c.b16 %v2514, %v2502
    %v3115 = vpack.c.b16 %v2515, %v2503
    %v3116 = vpack.c.b16 %v2516, %v2504
    %v3117 = vpack.c.b16 %v2517, %v2505
    %v3118 = vpack.c.b16 %v2530, %v2518
    %v3119 = vpack.c.b16 %v2531, %v2519
    %v3120 = vpack.c.b16 %v2532, %v2520
    %v3121 = vpack.c.b16 %v2533, %v2521
    %v3122 = vpack.c.b16 %v2534, %v2522
    %v3123 = vpack.c.b16 %v2535, %v2523
    %v3124 = vpack.c.b16 %v2536, %v2524
    %v3125 = vpack.c.b16 %v2537, %v2525
    %v3126 = vpack.c.b16 %v2538, %v2526
    %v3127 = vpack.c.b16 %v2539, %v2527
    %v3128 = vpack.c.b16 %v2540, %v2528
    %v3129 = vpack.c.b16 %v2541, %v2529
    %v3130 = vpack.c.b16 %v2554, %v2542
    %v3131 = vpack.c.b16 %v2555, %v2543
    %v3132 = vpack.c.b16 %v2556, %v2544
    %v3133 = vpack.c.b16 %v2557, %v2545
    %v3134 = vpack.c.b16 %v2558, %v2546
    %v3135 = vpack.c.b16 %v2559, %v2547
    %v3136 = vpack.c.b16 %v2560, %v2548
    %v3137 = vpack.c.b16 %v2561, %v2549
    %v3138 = vpack.c.b16 %v2562, %v2550
    %v3139 = vpack.c.b16 %v2563, %v2551
    %v3140 = vpack.c.b16 %v2564, %v2552
    %v3141 = vpack.c.b16 %v2565, %v2553
    %3718 = vmatprep.subr.bf16.mxu0 %v2567
    %3719 = vmatpush1.bf16.msra.mxu0 %v2566
    %3720 = vmatprep.subr.bf16.mxu0 %v2579
    %3721 = vmatpush1.bf16.msra.mxu0 %v2578
    %3722 = vmatprep.subr.bf16.mxu0 %v2591
    %3723 = vmatpush1.bf16.msra.mxu0 %v2590
    %3724 = vmatprep.subr.bf16.mxu0 %v2603
    %3725 = vmatpush1.bf16.msra.mxu0 %v2602
    %3726 = vmatprep.subr.bf16.mxu0 %v2615
    %3727 = vmatpush1.bf16.msra.mxu0 %v2614
    %3728 = vmatprep.subr.bf16.mxu0 %v2627
    %3729 = vmatpush1.bf16.msra.mxu0 %v2626
    %3730 = vmatprep.subr.bf16.mxu0 %v2639
    %3731 = vmatpush1.bf16.msra.mxu0 %v2638
    %3732 = vmatprep.subr.bf16.mxu0 %v2651
    %3733 = vmatpush1.bf16.msra.mxu0 %v2650
    %3734 = vmatprep.subr.bf16.mxu0 %v2663
    %3735 = vmatpush1.bf16.msra.mxu0 %v2662
    %3736 = vmatprep.subr.bf16.mxu0 %v2675
    %3737 = vmatpush1.bf16.msra.mxu0 %v2674
    %3738 = vmatprep.subr.bf16.mxu0 %v2687
    %3739 = vmatpush1.bf16.msra.mxu0 %v2686
    %3740 = vmatprep.subr.bf16.mxu0 %v2699
    %3741 = vmatpush1.bf16.msra.mxu0 %v2698
    %3742 = vmatprep.subr.bf16.mxu0 %v2711
    %3743 = vmatpush1.bf16.msra.mxu0 %v2710
    %3744 = vmatprep.subr.bf16.mxu0 %v2723
    %3745 = vmatpush1.bf16.msra.mxu0 %v2722
    %3746 = vmatprep.subr.bf16.mxu0 %v2735
    %3747 = vmatpush1.bf16.msra.mxu0 %v2734
    %3748 = vmatprep.subr.bf16.mxu0 %v2747
    %3749 = vmatpush1.bf16.msra.mxu0 %v2746
    %3750 = vmatprep.mubr.bf16.mxu0 %v815
    %3751 = vmatmul.mubr.bf16.gmra.mrb[0].mxu0 %v814
    %v3752 = vpop.f32.mrb[0].mxu0
    %v3753 = vadd.f32 0.0, %v3752
    %v3754 = vpop.f32.mrb[0].mxu0
    %v3755 = vadd.f32 0.0, %v3754
    %v3756 = vpop.f32.mrb[0].mxu0
    %v3757 = vadd.f32 0.0, %v3756
    %v3758 = vpop.f32.mrb[0].mxu0
    %v3759 = vadd.f32 0.0, %v3758
    %3760 = vmatprep.mubr.bf16.mxu0 %v821
    %3761 = vmatmul.mubr.bf16.gmra.mrb[0].mxu0 %v820
    %v3762 = vpop.f32.mrb[0].mxu0
    %v3763 = vadd.f32 0.0, %v3762
    %v3764 = vpop.f32.mrb[0].mxu0
    %v3765 = vadd.f32 0.0, %v3764
    %v3766 = vpop.f32.mrb[0].mxu0
    %v3767 = vpop.f32.mrb[0].mxu0
    %3768 = vdwg.mxu0
    %3769 = vmatprep.subr.bf16.mxu0 %v2759
    %3770 = vmatpush1.bf16.msra.mxu0 %v2758
    %3771 = vmatprep.subr.bf16.mxu0 %v2771
    %3772 = vmatpush1.bf16.msra.mxu0 %v2770
    %3773 = vmatprep.subr.bf16.mxu0 %v2783
    %3774 = vmatpush1.bf16.msra.mxu0 %v2782
    %3775 = vmatprep.subr.bf16.mxu0 %v2795
    %3776 = vmatpush1.bf16.msra.mxu0 %v2794
    %3777 = vmatprep.subr.bf16.mxu0 %v2807
    %3778 = vmatpush1.bf16.msra.mxu0 %v2806
    %3779 = vmatprep.subr.bf16.mxu0 %v2819
    %3780 = vmatpush1.bf16.msra.mxu0 %v2818
    %3781 = vmatprep.subr.bf16.mxu0 %v2831
    %3782 = vmatpush1.bf16.msra.mxu0 %v2830
    %3783 = vmatprep.subr.bf16.mxu0 %v2843
    %3784 = vmatpush1.bf16.msra.mxu0 %v2842
    %3785 = vmatprep.subr.bf16.mxu0 %v2855
    %3786 = vmatpush1.bf16.msra.mxu0 %v2854
    %3787 = vmatprep.subr.bf16.mxu0 %v2867
    %3788 = vmatpush1.bf16.msra.mxu0 %v2866
    %3789 = vmatprep.subr.bf16.mxu0 %v2879
    %3790 = vmatpush1.bf16.msra.mxu0 %v2878
    %3791 = vmatprep.subr.bf16.mxu0 %v2891
    %3792 = vmatpush1.bf16.msra.mxu0 %v2890
    %3793 = vmatprep.subr.bf16.mxu0 %v2903
    %3794 = vmatpush1.bf16.msra.mxu0 %v2902
    %3795 = vmatprep.subr.bf16.mxu0 %v2915
    %3796 = vmatpush1.bf16.msra.mxu0 %v2914
    %3797 = vmatprep.subr.bf16.mxu0 %v2927
    %3798 = vmatpush1.bf16.msra.mxu0 %v2926
    %3799 = vmatprep.subr.bf16.mxu0 %v2939
    %3800 = vmatpush1.bf16.msra.mxu0 %v2938
    %3801 = vmatprep.mubr.bf16.mxu0 %v817
    %3802 = vmatmul.mubr.bf16.gmra.mrb[0].mxu0 %v816
    %v3803 = vpop.f32.mrb[0].mxu0
    %v3804 = vadd.f32 %v3753, %v3803
    %v3805 = vpop.f32.mrb[0].mxu0
    %v3806 = vadd.f32 %v3755, %v3805
    %v3807 = vpop.f32.mrb[0].mxu0
    %v3808 = vadd.f32 %v3757, %v3807
    %v3809 = vpop.f32.mrb[0].mxu0
    %v3810 = vadd.f32 %v3759, %v3809
    %3811 = vmatprep.mubr.bf16.mxu0 %v823
    %3812 = vmatmul.mubr.bf16.gmra.mrb[0].mxu0 %v822
    %v3813 = vpop.f32.mrb[0].mxu0
    %v3814 = vadd.f32 %v3763, %v3813
    %v3815 = vpop.f32.mrb[0].mxu0
    %v3816 = vadd.f32 %v3765, %v3815
    %v3817 = vpop.f32.mrb[0].mxu0
    %v3818 = vpop.f32.mrb[0].mxu0
    %3819 = vdwg.mxu0
    %3820 = vmatprep.subr.bf16.mxu0 %v2951
    %3821 = vmatpush1.bf16.msra.mxu0 %v2950
    %3822 = vmatprep.subr.bf16.mxu0 %v2963
    %3823 = vmatpush1.bf16.msra.mxu0 %v2962
    %3824 = vmatprep.subr.bf16.mxu0 %v2975
    %3825 = vmatpush1.bf16.msra.mxu0 %v2974
    %3826 = vmatprep.subr.bf16.mxu0 %v2987
    %3827 = vmatpush1.bf16.msra.mxu0 %v2986
    %3828 = vmatprep.subr.bf16.mxu0 %v2999
    %3829 = vmatpush1.bf16.msra.mxu0 %v2998
    %3830 = vmatprep.subr.bf16.mxu0 %v3011
    %3831 = vmatpush1.bf16.msra.mxu0 %v3010
    %3832 = vmatprep.subr.bf16.mxu0 %v3023
    %3833 = vmatpush1.bf16.msra.mxu0 %v3022
    %3834 = vmatprep.subr.bf16.mxu0 %v3035
    %3835 = vmatpush1.bf16.msra.mxu0 %v3034
    %3836 = vmatprep.subr.bf16.mxu0 %v3047
    %3837 = vmatpush1.bf16.msra.mxu0 %v3046
    %3838 = vmatprep.subr.bf16.mxu0 %v3059
    %3839 = vmatpush1.bf16.msra.mxu0 %v3058
    %3840 = vmatprep.subr.bf16.mxu0 %v3071
    %3841 = vmatpush1.bf16.msra.mxu0 %v3070
    %3842 = vmatprep.subr.bf16.mxu0 %v3083
    %3843 = vmatpush1.bf16.msra.mxu0 %v3082
    %3844 = vmatprep.subr.bf16.mxu0 %v3095
    %3845 = vmatpush1.bf16.msra.mxu0 %v3094
    %3846 = vmatprep.subr.bf16.mxu0 %v3107
    %3847 = vmatpush1.bf16.msra.mxu0 %v3106
    %3848 = vmatprep.subr.bf16.mxu0 %v3119
    %3849 = vmatpush1.bf16.msra.mxu0 %v3118
    %3850 = vmatprep.subr.bf16.mxu0 %v3131
    %3851 = vmatpush1.bf16.msra.mxu0 %v3130
    %3852 = vmatprep.mubr.bf16.mxu0 %v819
    %3853 = vmatmul.mubr.bf16.gmra.mrb[0].mxu0 %v818
    %v3854 = vpop.f32.mrb[0].mxu0
    %v3855 = vadd.f32 %v3804, %v3854
    %v3856 = vpop.f32.mrb[0].mxu0
    %v3857 = vadd.f32 %v3806, %v3856
    %v3858 = vpop.f32.mrb[0].mxu0
    %v3859 = vadd.f32 %v3808, %v3858
    %v3860 = vpop.f32.mrb[0].mxu0
    %v3861 = vadd.f32 %v3810, %v3860
    %3862 = vmatprep.mubr.bf16.mxu0 %v825
    %3863 = vmatmul.mubr.bf16.gmra.mrb[0].mxu0 %v824
    %v3864 = vpop.f32.mrb[0].mxu0
    %v3865 = vadd.f32 %v3814, %v3864
    %v3866 = vpop.f32.mrb[0].mxu0
    %v3867 = vadd.f32 %v3816, %v3866
    %v3868 = vpop.f32.mrb[0].mxu0
    %v3869 = vpop.f32.mrb[0].mxu0
    %3870 = vdwg.mxu0
    %3871 = vmatprep.subr.bf16.mxu0 %v2569
    %3872 = vmatpush1.bf16.msra.mxu0 %v2568
    %3873 = vmatprep.subr.bf16.mxu0 %v2581
    %3874 = vmatpush1.bf16.msra.mxu0 %v2580
    %3875 = vmatprep.subr.bf16.mxu0 %v2593
    %3876 = vmatpush1.bf16.msra.mxu0 %v2592
    %3877 = vmatprep.subr.bf16.mxu0 %v2605
    %3878 = vmatpush1.bf16.msra.mxu0 %v2604
    %3879 = vmatprep.subr.bf16.mxu0 %v2617
    %3880 = vmatpush1.bf16.msra.mxu0 %v2616
    %3881 = vmatprep.subr.bf16.mxu0 %v2629
    %3882 = vmatpush1.bf16.msra.mxu0 %v2628
    %3883 = vmatprep.subr.bf16.mxu0 %v2641
    %3884 = vmatpush1.bf16.msra.mxu0 %v2640
    %3885 = vmatprep.subr.bf16.mxu0 %v2653
    %3886 = vmatpush1.bf16.msra.mxu0 %v2652
    %3887 = vmatprep.subr.bf16.mxu0 %v2665
    %3888 = vmatpush1.bf16.msra.mxu0 %v2664
    %3889 = vmatprep.subr.bf16.mxu0 %v2677
    %3890 = vmatpush1.bf16.msra.mxu0 %v2676
    %3891 = vmatprep.subr.bf16.mxu0 %v2689
    %3892 = vmatpush1.bf16.msra.mxu0 %v2688
    %3893 = vmatprep.subr.bf16.mxu0 %v2701
    %3894 = vmatpush1.bf16.msra.mxu0 %v2700
    %3895 = vmatprep.subr.bf16.mxu0 %v2713
    %3896 = vmatpush1.bf16.msra.mxu0 %v2712
    %3897 = vmatprep.subr.bf16.mxu0 %v2725
    %3898 = vmatpush1.bf16.msra.mxu0 %v2724
    %3899 = vmatprep.subr.bf16.mxu0 %v2737
    %3900 = vmatpush1.bf16.msra.mxu0 %v2736
    %3901 = vmatprep.subr.bf16.mxu0 %v2749
    %3902 = vmatpush1.bf16.msra.mxu0 %v2748
    %3903 = vmatprep.mubr.bf16.mxu0 %v815
    %3904 = vmatmul.mubr.bf16.gmra.mrb[0].mxu0 %v814
    %v3905 = vpop.f32.mrb[0].mxu0
    %v3906 = vadd.f32 0.0, %v3905
    %v3907 = vpop.f32.mrb[0].mxu0
    %v3908 = vadd.f32 0.0, %v3907
    %v3909 = vpop.f32.mrb[0].mxu0
    %v3910 = vadd.f32 0.0, %v3909
    %v3911 = vpop.f32.mrb[0].mxu0
    %v3912 = vadd.f32 0.0, %v3911
    %3913 = vmatprep.mubr.bf16.mxu0 %v821
    %3914 = vmatmul.mubr.bf16.gmra.mrb[0].mxu0 %v820
    %v3915 = vpop.f32.mrb[0].mxu0
    %v3916 = vadd.f32 0.0, %v3915
    %v3917 = vpop.f32.mrb[0].mxu0
    %v3918 = vadd.f32 0.0, %v3917
    %v3919 = vpop.f32.mrb[0].mxu0
    %v3920 = vpop.f32.mrb[0].mxu0
    %3921 = vdwg.mxu0
    %3922 = vmatprep.subr.bf16.mxu0 %v2761
    %3923 = vmatpush1.bf16.msra.mxu0 %v2760
    %3924 = vmatprep.subr.bf16.mxu0 %v2773
    %3925 = vmatpush1.bf16.msra.mxu0 %v2772
    %3926 = vmatprep.subr.bf16.mxu0 %v2785
    %3927 = vmatpush1.bf16.msra.mxu0 %v2784
    %3928 = vmatprep.subr.bf16.mxu0 %v2797
    %3929 = vmatpush1.bf16.msra.mxu0 %v2796
    %3930 = vmatprep.subr.bf16.mxu0 %v2809
    %3931 = vmatpush1.bf16.msra.mxu0 %v2808
    %3932 = vmatprep.subr.bf16.mxu0 %v2821
    %3933 = vmatpush1.bf16.msra.mxu0 %v2820
    %3934 = vmatprep.subr.bf16.mxu0 %v2833
    %3935 = vmatpush1.bf16.msra.mxu0 %v2832
    %3936 = vmatprep.subr.bf16.mxu0 %v2845
    %3937 = vmatpush1.bf16.msra.mxu0 %v2844
    %3938 = vmatprep.subr.bf16.mxu0 %v2857
    %3939 = vmatpush1.bf16.msra.mxu0 %v2856
    %3940 = vmatprep.subr.bf16.mxu0 %v2869
    %3941 = vmatpush1.bf16.msra.mxu0 %v2868
    %3942 = vmatprep.subr.bf16.mxu0 %v2881
    %3943 = vmatpush1.bf16.msra.mxu0 %v2880
    %3944 = vmatprep.subr.bf16.mxu0 %v2893
    %3945 = vmatpush1.bf16.msra.mxu0 %v2892
    %3946 = vmatprep.subr.bf16.mxu0 %v2905
    %3947 = vmatpush1.bf16.msra.mxu0 %v2904
    %3948 = vmatprep.subr.bf16.mxu0 %v2917
    %3949 = vmatpush1.bf16.msra.mxu0 %v2916
    %3950 = vmatprep.subr.bf16.mxu0 %v2929
    %3951 = vmatpush1.bf16.msra.mxu0 %v2928
    %3952 = vmatprep.subr.bf16.mxu0 %v2941
    %3953 = vmatpush1.bf16.msra.mxu0 %v2940
    %3954 = vmatprep.mubr.bf16.mxu0 %v817
    %3955 = vmatmul.mubr.bf16.gmra.mrb[0].mxu0 %v816
    %v3956 = vpop.f32.mrb[0].mxu0
    %v3957 = vadd.f32 %v3906, %v3956
    %v3958 = vpop.f32.mrb[0].mxu0
    %v3959 = vadd.f32 %v3908, %v3958
    %v3960 = vpop.f32.mrb[0].mxu0
    %v3961 = vadd.f32 %v3910, %v3960
    %v3962 = vpop.f32.mrb[0].mxu0
    %v3963 = vadd.f32 %v3912, %v3962
    %3964 = vmatprep.mubr.bf16.mxu0 %v823
    %3965 = vmatmul.mubr.bf16.gmra.mrb[0].mxu0 %v822
    %v3966 = vpop.f32.mrb[0].mxu0
    %v3967 = vadd.f32 %v3916, %v3966
    %v3968 = vpop.f32.mrb[0].mxu0
    %v3969 = vadd.f32 %v3918, %v3968
    %v3970 = vpop.f32.mrb[0].mxu0
    %v3971 = vpop.f32.mrb[0].mxu0
    %3972 = vdwg.mxu0
    %3973 = vmatprep.subr.bf16.mxu0 %v2953
    %3974 = vmatpush1.bf16.msra.mxu0 %v2952
    %3975 = vmatprep.subr.bf16.mxu0 %v2965
    %3976 = vmatpush1.bf16.msra.mxu0 %v2964
    %3977 = vmatprep.subr.bf16.mxu0 %v2977
    %3978 = vmatpush1.bf16.msra.mxu0 %v2976
    %3979 = vmatprep.subr.bf16.mxu0 %v2989
    %3980 = vmatpush1.bf16.msra.mxu0 %v2988
    %3981 = vmatprep.subr.bf16.mxu0 %v3001
    %3982 = vmatpush1.bf16.msra.mxu0 %v3000
    %3983 = vmatprep.subr.bf16.mxu0 %v3013
    %3984 = vmatpush1.bf16.msra.mxu0 %v3012
    %3985 = vmatprep.subr.bf16.mxu0 %v3025
    %3986 = vmatpush1.bf16.msra.mxu0 %v3024
    %3987 = vmatprep.subr.bf16.mxu0 %v3037
    %3988 = vmatpush1.bf16.msra.mxu0 %v3036
    %3989 = vmatprep.subr.bf16.mxu0 %v3049
    %3990 = vmatpush1.bf16.msra.mxu0 %v3048
    %3991 = vmatprep.subr.bf16.mxu0 %v3061
    %3992 = vmatpush1.bf16.msra.mxu0 %v3060
    %3993 = vmatprep.subr.bf16.mxu0 %v3073
    %3994 = vmatpush1.bf16.msra.mxu0 %v3072
    %3995 = vmatprep.subr.bf16.mxu0 %v3085
    %3996 = vmatpush1.bf16.msra.mxu0 %v3084
    %3997 = vmatprep.subr.bf16.mxu0 %v3097
    %3998 = vmatpush1.bf16.msra.mxu0 %v3096
    %3999 = vmatprep.subr.bf16.mxu0 %v3109
    %4000 = vmatpush1.bf16.msra.mxu0 %v3108
    %4001 = vmatprep.subr.bf16.mxu0 %v3121
    %4002 = vmatpush1.bf16.msra.mxu0 %v3120
    %4003 = vmatprep.subr.bf16.mxu0 %v3133
    %4004 = vmatpush1.bf16.msra.mxu0 %v3132
    %4005 = vmatprep.mubr.bf16.mxu0 %v819
    %4006 = vmatmul.mubr.bf16.gmra.mrb[0].mxu0 %v818
    %v4007 = vpop.f32.mrb[0].mxu0
    %v4008 = vadd.f32 %v3957, %v4007
    %v4009 = vpop.f32.mrb[0].mxu0
    %v4010 = vadd.f32 %v3959, %v4009
    %v4011 = vpop.f32.mrb[0].mxu0
    %v4012 = vadd.f32 %v3961, %v4011
    %v4013 = vpop.f32.mrb[0].mxu0
    %v4014 = vadd.f32 %v3963, %v4013
    %4015 = vmatprep.mubr.bf16.mxu0 %v825
    %4016 = vmatmul.mubr.bf16.gmra.mrb[0].mxu0 %v824
    %v4017 = vpop.f32.mrb[0].mxu0
    %v4018 = vadd.f32 %v3967, %v4017
    %v4019 = vpop.f32.mrb[0].mxu0
    %v4020 = vadd.f32 %v3969, %v4019
    %v4021 = vpop.f32.mrb[0].mxu0
    %v4022 = vpop.f32.mrb[0].mxu0
    %4023 = vdwg.mxu0
    %4024 = vmatprep.subr.bf16.mxu0 %v2571
    %4025 = vmatpush1.bf16.msra.mxu0 %v2570
    %4026 = vmatprep.subr.bf16.mxu0 %v2583
    %4027 = vmatpush1.bf16.msra.mxu0 %v2582
    %4028 = vmatprep.subr.bf16.mxu0 %v2595
    %4029 = vmatpush1.bf16.msra.mxu0 %v2594
    %4030 = vmatprep.subr.bf16.mxu0 %v2607
    %4031 = vmatpush1.bf16.msra.mxu0 %v2606
    %4032 = vmatprep.subr.bf16.mxu0 %v2619
    %4033 = vmatpush1.bf16.msra.mxu0 %v2618
    %4034 = vmatprep.subr.bf16.mxu0 %v2631
    %4035 = vmatpush1.bf16.msra.mxu0 %v2630
    %4036 = vmatprep.subr.bf16.mxu0 %v2643
    %4037 = vmatpush1.bf16.msra.mxu0 %v2642
    %4038 = vmatprep.subr.bf16.mxu0 %v2655
    %4039 = vmatpush1.bf16.msra.mxu0 %v2654
    %4040 = vmatprep.subr.bf16.mxu0 %v2667
    %4041 = vmatpush1.bf16.msra.mxu0 %v2666
    %4042 = vmatprep.subr.bf16.mxu0 %v2679
    %4043 = vmatpush1.bf16.msra.mxu0 %v2678
    %4044 = vmatprep.subr.bf16.mxu0 %v2691
    %4045 = vmatpush1.bf16.msra.mxu0 %v2690
    %4046 = vmatprep.subr.bf16.mxu0 %v2703
    %4047 = vmatpush1.bf16.msra.mxu0 %v2702
    %4048 = vmatprep.subr.bf16.mxu0 %v2715
    %4049 = vmatpush1.bf16.msra.mxu0 %v2714
    %4050 = vmatprep.subr.bf16.mxu0 %v2727
    %4051 = vmatpush1.bf16.msra.mxu0 %v2726
    %4052 = vmatprep.subr.bf16.mxu0 %v2739
    %4053 = vmatpush1.bf16.msra.mxu0 %v2738
    %4054 = vmatprep.subr.bf16.mxu0 %v2751
    %4055 = vmatpush1.bf16.msra.mxu0 %v2750
    %4056 = vmatprep.mubr.bf16.mxu0 %v815
    %4057 = vmatmul.mubr.bf16.gmra.mrb[0].mxu0 %v814
    %v4058 = vpop.f32.mrb[0].mxu0
    %v4059 = vadd.f32 0.0, %v4058
    %v4060 = vpop.f32.mrb[0].mxu0
    %v4061 = vadd.f32 0.0, %v4060
    %v4062 = vpop.f32.mrb[0].mxu0
    %v4063 = vadd.f32 0.0, %v4062
    %v4064 = vpop.f32.mrb[0].mxu0
    %v4065 = vadd.f32 0.0, %v4064
    %4066 = vmatprep.mubr.bf16.mxu0 %v821
    %4067 = vmatmul.mubr.bf16.gmra.mrb[0].mxu0 %v820
    %v4068 = vpop.f32.mrb[0].mxu0
    %v4069 = vadd.f32 0.0, %v4068
    %v4070 = vpop.f32.mrb[0].mxu0
    %v4071 = vadd.f32 0.0, %v4070
    %v4072 = vpop.f32.mrb[0].mxu0
    %v4073 = vpop.f32.mrb[0].mxu0
    %4074 = vdwg.mxu0
    %4075 = vmatprep.subr.bf16.mxu0 %v2763
    %4076 = vmatpush1.bf16.msra.mxu0 %v2762
    %4077 = vmatprep.subr.bf16.mxu0 %v2775
    %4078 = vmatpush1.bf16.msra.mxu0 %v2774
    %4079 = vmatprep.subr.bf16.mxu0 %v2787
    %4080 = vmatpush1.bf16.msra.mxu0 %v2786
    %4081 = vmatprep.subr.bf16.mxu0 %v2799
    %4082 = vmatpush1.bf16.msra.mxu0 %v2798
    %4083 = vmatprep.subr.bf16.mxu0 %v2811
    %4084 = vmatpush1.bf16.msra.mxu0 %v2810
    %4085 = vmatprep.subr.bf16.mxu0 %v2823
    %4086 = vmatpush1.bf16.msra.mxu0 %v2822
    %4087 = vmatprep.subr.bf16.mxu0 %v2835
    %4088 = vmatpush1.bf16.msra.mxu0 %v2834
    %4089 = vmatprep.subr.bf16.mxu0 %v2847
    %4090 = vmatpush1.bf16.msra.mxu0 %v2846
    %4091 = vmatprep.subr.bf16.mxu0 %v2859
    %4092 = vmatpush1.bf16.msra.mxu0 %v2858
    %4093 = vmatprep.subr.bf16.mxu0 %v2871
    %4094 = vmatpush1.bf16.msra.mxu0 %v2870
    %4095 = vmatprep.subr.bf16.mxu0 %v2883
    %4096 = vmatpush1.bf16.msra.mxu0 %v2882
    %4097 = vmatprep.subr.bf16.mxu0 %v2895
    %4098 = vmatpush1.bf16.msra.mxu0 %v2894
    %4099 = vmatprep.subr.bf16.mxu0 %v2907
    %4100 = vmatpush1.bf16.msra.mxu0 %v2906
    %4101 = vmatprep.subr.bf16.mxu0 %v2919
    %4102 = vmatpush1.bf16.msra.mxu0 %v2918
    %4103 = vmatprep.subr.bf16.mxu0 %v2931
    %4104 = vmatpush1.bf16.msra.mxu0 %v2930
    %4105 = vmatprep.subr.bf16.mxu0 %v2943
    %4106 = vmatpush1.bf16.msra.mxu0 %v2942
    %4107 = vmatprep.mubr.bf16.mxu0 %v817
    %4108 = vmatmul.mubr.bf16.gmra.mrb[0].mxu0 %v816
    %v4109 = vpop.f32.mrb[0].mxu0
    %v4110 = vadd.f32 %v4059, %v4109
    %v4111 = vpop.f32.mrb[0].mxu0
    %v4112 = vadd.f32 %v4061, %v4111
    %v4113 = vpop.f32.mrb[0].mxu0
    %v4114 = vadd.f32 %v4063, %v4113
    %v4115 = vpop.f32.mrb[0].mxu0
    %v4116 = vadd.f32 %v4065, %v4115
    %4117 = vmatprep.mubr.bf16.mxu0 %v823
    %4118 = vmatmul.mubr.bf16.gmra.mrb[0].mxu0 %v822
    %v4119 = vpop.f32.mrb[0].mxu0
    %v4120 = vadd.f32 %v4069, %v4119
    %v4121 = vpop.f32.mrb[0].mxu0
    %v4122 = vadd.f32 %v4071, %v4121
    %v4123 = vpop.f32.mrb[0].mxu0
    %v4124 = vpop.f32.mrb[0].mxu0
    %4125 = vdwg.mxu0
    %4126 = vmatprep.subr.bf16.mxu0 %v2955
    %4127 = vmatpush1.bf16.msra.mxu0 %v2954
    %4128 = vmatprep.subr.bf16.mxu0 %v2967
    %4129 = vmatpush1.bf16.msra.mxu0 %v2966
    %4130 = vmatprep.subr.bf16.mxu0 %v2979
    %4131 = vmatpush1.bf16.msra.mxu0 %v2978
    %4132 = vmatprep.subr.bf16.mxu0 %v2991
    %4133 = vmatpush1.bf16.msra.mxu0 %v2990
    %4134 = vmatprep.subr.bf16.mxu0 %v3003
    %4135 = vmatpush1.bf16.msra.mxu0 %v3002
    %4136 = vmatprep.subr.bf16.mxu0 %v3015
    %4137 = vmatpush1.bf16.msra.mxu0 %v3014
    %4138 = vmatprep.subr.bf16.mxu0 %v3027
    %4139 = vmatpush1.bf16.msra.mxu0 %v3026
    %4140 = vmatprep.subr.bf16.mxu0 %v3039
    %4141 = vmatpush1.bf16.msra.mxu0 %v3038
    %4142 = vmatprep.subr.bf16.mxu0 %v3051
    %4143 = vmatpush1.bf16.msra.mxu0 %v3050
    %4144 = vmatprep.subr.bf16.mxu0 %v3063
    %4145 = vmatpush1.bf16.msra.mxu0 %v3062
    %4146 = vmatprep.subr.bf16.mxu0 %v3075
    %4147 = vmatpush1.bf16.msra.mxu0 %v3074
    %4148 = vmatprep.subr.bf16.mxu0 %v3087
    %4149 = vmatpush1.bf16.msra.mxu0 %v3086
    %4150 = vmatprep.subr.bf16.mxu0 %v3099
    %4151 = vmatpush1.bf16.msra.mxu0 %v3098
    %4152 = vmatprep.subr.bf16.mxu0 %v3111
    %4153 = vmatpush1.bf16.msra.mxu0 %v3110
    %4154 = vmatprep.subr.bf16.mxu0 %v3123
    %4155 = vmatpush1.bf16.msra.mxu0 %v3122
    %4156 = vmatprep.subr.bf16.mxu0 %v3135
    %4157 = vmatpush1.bf16.msra.mxu0 %v3134
    %4158 = vmatprep.mubr.bf16.mxu0 %v819
    %4159 = vmatmul.mubr.bf16.gmra.mrb[0].mxu0 %v818
    %v4160 = vpop.f32.mrb[0].mxu0
    %v4161 = vadd.f32 %v4110, %v4160
    %v4162 = vpop.f32.mrb[0].mxu0
    %v4163 = vadd.f32 %v4112, %v4162
    %v4164 = vpop.f32.mrb[0].mxu0
    %v4165 = vadd.f32 %v4114, %v4164
    %v4166 = vpop.f32.mrb[0].mxu0
    %v4167 = vadd.f32 %v4116, %v4166
    %4168 = vmatprep.mubr.bf16.mxu0 %v825
    %4169 = vmatmul.mubr.bf16.gmra.mrb[0].mxu0 %v824
    %v4170 = vpop.f32.mrb[0].mxu0
    %v4171 = vadd.f32 %v4120, %v4170
    %v4172 = vpop.f32.mrb[0].mxu0
    %v4173 = vadd.f32 %v4122, %v4172
    %v4174 = vpop.f32.mrb[0].mxu0
    %v4175 = vpop.f32.mrb[0].mxu0
    %4176 = vdwg.mxu0
    %4177 = vmatprep.subr.bf16.mxu0 %v2573
    %4178 = vmatpush1.bf16.msra.mxu0 %v2572
    %4179 = vmatprep.subr.bf16.mxu0 %v2585
    %4180 = vmatpush1.bf16.msra.mxu0 %v2584
    %4181 = vmatprep.subr.bf16.mxu0 %v2597
    %4182 = vmatpush1.bf16.msra.mxu0 %v2596
    %4183 = vmatprep.subr.bf16.mxu0 %v2609
    %4184 = vmatpush1.bf16.msra.mxu0 %v2608
    %4185 = vmatprep.subr.bf16.mxu0 %v2621
    %4186 = vmatpush1.bf16.msra.mxu0 %v2620
    %4187 = vmatprep.subr.bf16.mxu0 %v2633
    %4188 = vmatpush1.bf16.msra.mxu0 %v2632
    %4189 = vmatprep.subr.bf16.mxu0 %v2645
    %4190 = vmatpush1.bf16.msra.mxu0 %v2644
    %4191 = vmatprep.subr.bf16.mxu0 %v2657
    %4192 = vmatpush1.bf16.msra.mxu0 %v2656
    %4193 = vmatprep.subr.bf16.mxu0 %v2669
    %4194 = vmatpush1.bf16.msra.mxu0 %v2668
    %4195 = vmatprep.subr.bf16.mxu0 %v2681
    %4196 = vmatpush1.bf16.msra.mxu0 %v2680
    %4197 = vmatprep.subr.bf16.mxu0 %v2693
    %4198 = vmatpush1.bf16.msra.mxu0 %v2692
    %4199 = vmatprep.subr.bf16.mxu0 %v2705
    %4200 = vmatpush1.bf16.msra.mxu0 %v2704
    %4201 = vmatprep.subr.bf16.mxu0 %v2717
    %4202 = vmatpush1.bf16.msra.mxu0 %v2716
    %4203 = vmatprep.subr.bf16.mxu0 %v2729
    %4204 = vmatpush1.bf16.msra.mxu0 %v2728
    %4205 = vmatprep.subr.bf16.mxu0 %v2741
    %4206 = vmatpush1.bf16.msra.mxu0 %v2740
    %4207 = vmatprep.subr.bf16.mxu0 %v2753
    %4208 = vmatpush1.bf16.msra.mxu0 %v2752
    %4209 = vmatprep.mubr.bf16.mxu0 %v815
    %4210 = vmatmul.mubr.bf16.gmra.mrb[0].mxu0 %v814
    %v4211 = vpop.f32.mrb[0].mxu0
    %v4212 = vadd.f32 0.0, %v4211
    %v4213 = vpop.f32.mrb[0].mxu0
    %v4214 = vadd.f32 0.0, %v4213
    %v4215 = vpop.f32.mrb[0].mxu0
    %v4216 = vadd.f32 0.0, %v4215
    %v4217 = vpop.f32.mrb[0].mxu0
    %v4218 = vadd.f32 0.0, %v4217
    %4219 = vmatprep.mubr.bf16.mxu0 %v821
    %4220 = vmatmul.mubr.bf16.gmra.mrb[0].mxu0 %v820
    %v4221 = vpop.f32.mrb[0].mxu0
    %v4222 = vadd.f32 0.0, %v4221
    %v4223 = vpop.f32.mrb[0].mxu0
    %v4224 = vadd.f32 0.0, %v4223
    %v4225 = vpop.f32.mrb[0].mxu0
    %v4226 = vpop.f32.mrb[0].mxu0
    %4227 = vdwg.mxu0
    %4228 = vmatprep.subr.bf16.mxu0 %v2765
    %4229 = vmatpush1.bf16.msra.mxu0 %v2764
    %4230 = vmatprep.subr.bf16.mxu0 %v2777
    %4231 = vmatpush1.bf16.msra.mxu0 %v2776
    %4232 = vmatprep.subr.bf16.mxu0 %v2789
    %4233 = vmatpush1.bf16.msra.mxu0 %v2788
    %4234 = vmatprep.subr.bf16.mxu0 %v2801
    %4235 = vmatpush1.bf16.msra.mxu0 %v2800
    %4236 = vmatprep.subr.bf16.mxu0 %v2813
    %4237 = vmatpush1.bf16.msra.mxu0 %v2812
    %4238 = vmatprep.subr.bf16.mxu0 %v2825
    %4239 = vmatpush1.bf16.msra.mxu0 %v2824
    %4240 = vmatprep.subr.bf16.mxu0 %v2837
    %4241 = vmatpush1.bf16.msra.mxu0 %v2836
    %4242 = vmatprep.subr.bf16.mxu0 %v2849
    %4243 = vmatpush1.bf16.msra.mxu0 %v2848
    %4244 = vmatprep.subr.bf16.mxu0 %v2861
    %4245 = vmatpush1.bf16.msra.mxu0 %v2860
    %4246 = vmatprep.subr.bf16.mxu0 %v2873
    %4247 = vmatpush1.bf16.msra.mxu0 %v2872
    %4248 = vmatprep.subr.bf16.mxu0 %v2885
    %4249 = vmatpush1.bf16.msra.mxu0 %v2884
    %4250 = vmatprep.subr.bf16.mxu0 %v2897
    %4251 = vmatpush1.bf16.msra.mxu0 %v2896
    %4252 = vmatprep.subr.bf16.mxu0 %v2909
    %4253 = vmatpush1.bf16.msra.mxu0 %v2908
    %4254 = vmatprep.subr.bf16.mxu0 %v2921
    %4255 = vmatpush1.bf16.msra.mxu0 %v2920
    %4256 = vmatprep.subr.bf16.mxu0 %v2933
    %4257 = vmatpush1.bf16.msra.mxu0 %v2932
    %4258 = vmatprep.subr.bf16.mxu0 %v2945
    %4259 = vmatpush1.bf16.msra.mxu0 %v2944
    %4260 = vmatprep.mubr.bf16.mxu0 %v817
    %4261 = vmatmul.mubr.bf16.gmra.mrb[0].mxu0 %v816
    %v4262 = vpop.f32.mrb[0].mxu0
    %v4263 = vadd.f32 %v4212, %v4262
    %v4264 = vpop.f32.mrb[0].mxu0
    %v4265 = vadd.f32 %v4214, %v4264
    %v4266 = vpop.f32.mrb[0].mxu0
    %v4267 = vadd.f32 %v4216, %v4266
    %v4268 = vpop.f32.mrb[0].mxu0
    %v4269 = vadd.f32 %v4218, %v4268
    %4270 = vmatprep.mubr.bf16.mxu0 %v823
    %4271 = vmatmul.mubr.bf16.gmra.mrb[0].mxu0 %v822
    %v4272 = vpop.f32.mrb[0].mxu0
    %v4273 = vadd.f32 %v4222, %v4272
    %v4274 = vpop.f32.mrb[0].mxu0
    %v4275 = vadd.f32 %v4224, %v4274
    %v4276 = vpop.f32.mrb[0].mxu0
    %v4277 = vpop.f32.mrb[0].mxu0
    %4278 = vdwg.mxu0
    %4279 = vmatprep.subr.bf16.mxu0 %v2957
    %4280 = vmatpush1.bf16.msra.mxu0 %v2956
    %4281 = vmatprep.subr.bf16.mxu0 %v2969
    %4282 = vmatpush1.bf16.msra.mxu0 %v2968
    %4283 = vmatprep.subr.bf16.mxu0 %v2981
    %4284 = vmatpush1.bf16.msra.mxu0 %v2980
    %4285 = vmatprep.subr.bf16.mxu0 %v2993
    %4286 = vmatpush1.bf16.msra.mxu0 %v2992
    %4287 = vmatprep.subr.bf16.mxu0 %v3005
    %4288 = vmatpush1.bf16.msra.mxu0 %v3004
    %4289 = vmatprep.subr.bf16.mxu0 %v3017
    %4290 = vmatpush1.bf16.msra.mxu0 %v3016
    %4291 = vmatprep.subr.bf16.mxu0 %v3029
    %4292 = vmatpush1.bf16.msra.mxu0 %v3028
    %4293 = vmatprep.subr.bf16.mxu0 %v3041
    %4294 = vmatpush1.bf16.msra.mxu0 %v3040
    %4295 = vmatprep.subr.bf16.mxu0 %v3053
    %4296 = vmatpush1.bf16.msra.mxu0 %v3052
    %4297 = vmatprep.subr.bf16.mxu0 %v3065
    %4298 = vmatpush1.bf16.msra.mxu0 %v3064
    %4299 = vmatprep.subr.bf16.mxu0 %v3077
    %4300 = vmatpush1.bf16.msra.mxu0 %v3076
    %4301 = vmatprep.subr.bf16.mxu0 %v3089
    %4302 = vmatpush1.bf16.msra.mxu0 %v3088
    %4303 = vmatprep.subr.bf16.mxu0 %v3101
    %4304 = vmatpush1.bf16.msra.mxu0 %v3100
    %4305 = vmatprep.subr.bf16.mxu0 %v3113
    %4306 = vmatpush1.bf16.msra.mxu0 %v3112
    %4307 = vmatprep.subr.bf16.mxu0 %v3125
    %4308 = vmatpush1.bf16.msra.mxu0 %v3124
    %4309 = vmatprep.subr.bf16.mxu0 %v3137
    %4310 = vmatpush1.bf16.msra.mxu0 %v3136
    %4311 = vmatprep.mubr.bf16.mxu0 %v819
    %4312 = vmatmul.mubr.bf16.gmra.mrb[0].mxu0 %v818
    %v4313 = vpop.f32.mrb[0].mxu0
    %v4314 = vadd.f32 %v4263, %v4313
    %v4315 = vpop.f32.mrb[0].mxu0
    %v4316 = vadd.f32 %v4265, %v4315
    %v4317 = vpop.f32.mrb[0].mxu0
    %v4318 = vadd.f32 %v4267, %v4317
    %v4319 = vpop.f32.mrb[0].mxu0
    %v4320 = vadd.f32 %v4269, %v4319
    %4321 = vmatprep.mubr.bf16.mxu0 %v825
    %4322 = vmatmul.mubr.bf16.gmra.mrb[0].mxu0 %v824
    %v4323 = vpop.f32.mrb[0].mxu0
    %v4324 = vadd.f32 %v4273, %v4323
    %v4325 = vpop.f32.mrb[0].mxu0
    %v4326 = vadd.f32 %v4275, %v4325
    %v4327 = vpop.f32.mrb[0].mxu0
    %v4328 = vpop.f32.mrb[0].mxu0
    %4329 = vdwg.mxu0
    %4330 = vmatprep.subr.bf16.mxu0 %v2575
    %4331 = vmatpush1.bf16.msra.mxu0 %v2574
    %4332 = vmatprep.subr.bf16.mxu0 %v2587
    %4333 = vmatpush1.bf16.msra.mxu0 %v2586
    %4334 = vmatprep.subr.bf16.mxu0 %v2599
    %4335 = vmatpush1.bf16.msra.mxu0 %v2598
    %4336 = vmatprep.subr.bf16.mxu0 %v2611
    %4337 = vmatpush1.bf16.msra.mxu0 %v2610
    %4338 = vmatprep.subr.bf16.mxu0 %v2623
    %4339 = vmatpush1.bf16.msra.mxu0 %v2622
    %4340 = vmatprep.subr.bf16.mxu0 %v2635
    %4341 = vmatpush1.bf16.msra.mxu0 %v2634
    %4342 = vmatprep.subr.bf16.mxu0 %v2647
    %4343 = vmatpush1.bf16.msra.mxu0 %v2646
    %4344 = vmatprep.subr.bf16.mxu0 %v2659
    %4345 = vmatpush1.bf16.msra.mxu0 %v2658
    %4346 = vmatprep.subr.bf16.mxu0 %v2671
    %4347 = vmatpush1.bf16.msra.mxu0 %v2670
    %4348 = vmatprep.subr.bf16.mxu0 %v2683
    %4349 = vmatpush1.bf16.msra.mxu0 %v2682
    %4350 = vmatprep.subr.bf16.mxu0 %v2695
    %4351 = vmatpush1.bf16.msra.mxu0 %v2694
    %4352 = vmatprep.subr.bf16.mxu0 %v2707
    %4353 = vmatpush1.bf16.msra.mxu0 %v2706
    %4354 = vmatprep.subr.bf16.mxu0 %v2719
    %4355 = vmatpush1.bf16.msra.mxu0 %v2718
    %4356 = vmatprep.subr.bf16.mxu0 %v2731
    %4357 = vmatpush1.bf16.msra.mxu0 %v2730
    %4358 = vmatprep.subr.bf16.mxu0 %v2743
    %4359 = vmatpush1.bf16.msra.mxu0 %v2742
    %4360 = vmatprep.subr.bf16.mxu0 %v2755
    %4361 = vmatpush1.bf16.msra.mxu0 %v2754
    %4362 = vmatprep.mubr.bf16.mxu0 %v815
    %4363 = vmatmul.mubr.bf16.gmra.mrb[0].mxu0 %v814
    %v4364 = vpop.f32.mrb[0].mxu0
    %v4365 = vadd.f32 0.0, %v4364
    %v4366 = vpop.f32.mrb[0].mxu0
    %v4367 = vadd.f32 0.0, %v4366
    %v4368 = vpop.f32.mrb[0].mxu0
    %v4369 = vadd.f32 0.0, %v4368
    %v4370 = vpop.f32.mrb[0].mxu0
    %v4371 = vadd.f32 0.0, %v4370
    %4372 = vmatprep.mubr.bf16.mxu0 %v821
    %4373 = vmatmul.mubr.bf16.gmra.mrb[0].mxu0 %v820
    %v4374 = vpop.f32.mrb[0].mxu0
    %v4375 = vadd.f32 0.0, %v4374
    %v4376 = vpop.f32.mrb[0].mxu0
    %v4377 = vadd.f32 0.0, %v4376
    %v4378 = vpop.f32.mrb[0].mxu0
    %v4379 = vpop.f32.mrb[0].mxu0
    %4380 = vdwg.mxu0
    %4381 = vmatprep.subr.bf16.mxu0 %v2767
    %4382 = vmatpush1.bf16.msra.mxu0 %v2766
    %4383 = vmatprep.subr.bf16.mxu0 %v2779
    %4384 = vmatpush1.bf16.msra.mxu0 %v2778
    %4385 = vmatprep.subr.bf16.mxu0 %v2791
    %4386 = vmatpush1.bf16.msra.mxu0 %v2790
    %4387 = vmatprep.subr.bf16.mxu0 %v2803
    %4388 = vmatpush1.bf16.msra.mxu0 %v2802
    %4389 = vmatprep.subr.bf16.mxu0 %v2815
    %4390 = vmatpush1.bf16.msra.mxu0 %v2814
    %4391 = vmatprep.subr.bf16.mxu0 %v2827
    %4392 = vmatpush1.bf16.msra.mxu0 %v2826
    %4393 = vmatprep.subr.bf16.mxu0 %v2839
    %4394 = vmatpush1.bf16.msra.mxu0 %v2838
    %4395 = vmatprep.subr.bf16.mxu0 %v2851
    %4396 = vmatpush1.bf16.msra.mxu0 %v2850
    %4397 = vmatprep.subr.bf16.mxu0 %v2863
    %4398 = vmatpush1.bf16.msra.mxu0 %v2862
    %4399 = vmatprep.subr.bf16.mxu0 %v2875
    %4400 = vmatpush1.bf16.msra.mxu0 %v2874
    %4401 = vmatprep.subr.bf16.mxu0 %v2887
    %4402 = vmatpush1.bf16.msra.mxu0 %v2886
    %4403 = vmatprep.subr.bf16.mxu0 %v2899
    %4404 = vmatpush1.bf16.msra.mxu0 %v2898
    %4405 = vmatprep.subr.bf16.mxu0 %v2911
    %4406 = vmatpush1.bf16.msra.mxu0 %v2910
    %4407 = vmatprep.subr.bf16.mxu0 %v2923
    %4408 = vmatpush1.bf16.msra.mxu0 %v2922
    %4409 = vmatprep.subr.bf16.mxu0 %v2935
    %4410 = vmatpush1.bf16.msra.mxu0 %v2934
    %4411 = vmatprep.subr.bf16.mxu0 %v2947
    %4412 = vmatpush1.bf16.msra.mxu0 %v2946
    %4413 = vmatprep.mubr.bf16.mxu0 %v817
    %4414 = vmatmul.mubr.bf16.gmra.mrb[0].mxu0 %v816
    %v4415 = vpop.f32.mrb[0].mxu0
    %v4416 = vadd.f32 %v4365, %v4415
    %v4417 = vpop.f32.mrb[0].mxu0
    %v4418 = vadd.f32 %v4367, %v4417
    %v4419 = vpop.f32.mrb[0].mxu0
    %v4420 = vadd.f32 %v4369, %v4419
    %v4421 = vpop.f32.mrb[0].mxu0
    %v4422 = vadd.f32 %v4371, %v4421
    %4423 = vmatprep.mubr.bf16.mxu0 %v823
    %4424 = vmatmul.mubr.bf16.gmra.mrb[0].mxu0 %v822
    %v4425 = vpop.f32.mrb[0].mxu0
    %v4426 = vadd.f32 %v4375, %v4425
    %v4427 = vpop.f32.mrb[0].mxu0
    %v4428 = vadd.f32 %v4377, %v4427
    %v4429 = vpop.f32.mrb[0].mxu0
    %v4430 = vpop.f32.mrb[0].mxu0
    %4431 = vdwg.mxu0
    %4432 = vmatprep.subr.bf16.mxu0 %v2959
    %4433 = vmatpush1.bf16.msra.mxu0 %v2958
    %4434 = vmatprep.subr.bf16.mxu0 %v2971
    %4435 = vmatpush1.bf16.msra.mxu0 %v2970
    %4436 = vmatprep.subr.bf16.mxu0 %v2983
    %4437 = vmatpush1.bf16.msra.mxu0 %v2982
    %4438 = vmatprep.subr.bf16.mxu0 %v2995
    %4439 = vmatpush1.bf16.msra.mxu0 %v2994
    %4440 = vmatprep.subr.bf16.mxu0 %v3007
    %4441 = vmatpush1.bf16.msra.mxu0 %v3006
    %4442 = vmatprep.subr.bf16.mxu0 %v3019
    %4443 = vmatpush1.bf16.msra.mxu0 %v3018
    %4444 = vmatprep.subr.bf16.mxu0 %v3031
    %4445 = vmatpush1.bf16.msra.mxu0 %v3030
    %4446 = vmatprep.subr.bf16.mxu0 %v3043
    %4447 = vmatpush1.bf16.msra.mxu0 %v3042
    %4448 = vmatprep.subr.bf16.mxu0 %v3055
    %4449 = vmatpush1.bf16.msra.mxu0 %v3054
    %4450 = vmatprep.subr.bf16.mxu0 %v3067
    %4451 = vmatpush1.bf16.msra.mxu0 %v3066
    %4452 = vmatprep.subr.bf16.mxu0 %v3079
    %4453 = vmatpush1.bf16.msra.mxu0 %v3078
    %4454 = vmatprep.subr.bf16.mxu0 %v3091
    %4455 = vmatpush1.bf16.msra.mxu0 %v3090
    %4456 = vmatprep.subr.bf16.mxu0 %v3103
    %4457 = vmatpush1.bf16.msra.mxu0 %v3102
    %4458 = vmatprep.subr.bf16.mxu0 %v3115
    %4459 = vmatpush1.bf16.msra.mxu0 %v3114
    %4460 = vmatprep.subr.bf16.mxu0 %v3127
    %4461 = vmatpush1.bf16.msra.mxu0 %v3126
    %4462 = vmatprep.subr.bf16.mxu0 %v3139
    %4463 = vmatpush1.bf16.msra.mxu0 %v3138
    %4464 = vmatprep.mubr.bf16.mxu0 %v819
    %4465 = vmatmul.mubr.bf16.gmra.mrb[0].mxu0 %v818
    %v4466 = vpop.f32.mrb[0].mxu0
    %v4467 = vadd.f32 %v4416, %v4466
    %v4468 = vpop.f32.mrb[0].mxu0
    %v4469 = vadd.f32 %v4418, %v4468
    %v4470 = vpop.f32.mrb[0].mxu0
    %v4471 = vadd.f32 %v4420, %v4470
    %v4472 = vpop.f32.mrb[0].mxu0
    %v4473 = vadd.f32 %v4422, %v4472
    %4474 = vmatprep.mubr.bf16.mxu0 %v825
    %4475 = vmatmul.mubr.bf16.gmra.mrb[0].mxu0 %v824
    %v4476 = vpop.f32.mrb[0].mxu0
    %v4477 = vadd.f32 %v4426, %v4476
    %v4478 = vpop.f32.mrb[0].mxu0
    %v4479 = vadd.f32 %v4428, %v4478
    %v4480 = vpop.f32.mrb[0].mxu0
    %v4481 = vpop.f32.mrb[0].mxu0
    %4482 = vdwg.mxu0
    %4483 = vmatprep.subr.bf16.mxu0 %v2577
    %4484 = vmatpush1.bf16.msra.mxu0 %v2576
    %4485 = vmatprep.subr.bf16.mxu0 %v2589
    %4486 = vmatpush1.bf16.msra.mxu0 %v2588
    %4487 = vmatprep.subr.bf16.mxu0 %v2601
    %4488 = vmatpush1.bf16.msra.mxu0 %v2600
    %4489 = vmatprep.subr.bf16.mxu0 %v2613
    %4490 = vmatpush1.bf16.msra.mxu0 %v2612
    %4491 = vmatprep.subr.bf16.mxu0 %v2625
    %4492 = vmatpush1.bf16.msra.mxu0 %v2624
    %4493 = vmatprep.subr.bf16.mxu0 %v2637
    %4494 = vmatpush1.bf16.msra.mxu0 %v2636
    %4495 = vmatprep.subr.bf16.mxu0 %v2649
    %4496 = vmatpush1.bf16.msra.mxu0 %v2648
    %4497 = vmatprep.subr.bf16.mxu0 %v2661
    %4498 = vmatpush1.bf16.msra.mxu0 %v2660
    %4499 = vmatprep.subr.bf16.mxu0 %v2673
    %4500 = vmatpush1.bf16.msra.mxu0 %v2672
    %4501 = vmatprep.subr.bf16.mxu0 %v2685
    %4502 = vmatpush1.bf16.msra.mxu0 %v2684
    %4503 = vmatprep.subr.bf16.mxu0 %v2697
    %4504 = vmatpush1.bf16.msra.mxu0 %v2696
    %4505 = vmatprep.subr.bf16.mxu0 %v2709
    %4506 = vmatpush1.bf16.msra.mxu0 %v2708
    %4507 = vmatprep.subr.bf16.mxu0 %v2721
    %4508 = vmatpush1.bf16.msra.mxu0 %v2720
    %4509 = vmatprep.subr.bf16.mxu0 %v2733
    %4510 = vmatpush1.bf16.msra.mxu0 %v2732
    %4511 = vmatprep.subr.bf16.mxu0 %v2745
    %4512 = vmatpush1.bf16.msra.mxu0 %v2744
    %4513 = vmatprep.subr.bf16.mxu0 %v2757
    %4514 = vmatpush1.bf16.msra.mxu0 %v2756
    %4515 = vmatprep.mubr.bf16.mxu0 %v815
    %4516 = vmatmul.mubr.bf16.gmra.mrb[0].mxu0 %v814
    %v4517 = vpop.f32.mrb[0].mxu0
    %v4518 = vadd.f32 0.0, %v4517
    %v4519 = vpop.f32.mrb[0].mxu0
    %v4520 = vadd.f32 0.0, %v4519
    %v4521 = vpop.f32.mrb[0].mxu0
    %v4522 = vadd.f32 0.0, %v4521
    %v4523 = vpop.f32.mrb[0].mxu0
    %v4524 = vadd.f32 0.0, %v4523
    %4525 = vmatprep.mubr.bf16.mxu0 %v821
    %4526 = vmatmul.mubr.bf16.gmra.mrb[0].mxu0 %v820
    %v4527 = vpop.f32.mrb[0].mxu0
    %v4528 = vadd.f32 0.0, %v4527
    %v4529 = vpop.f32.mrb[0].mxu0
    %v4530 = vadd.f32 0.0, %v4529
    %v4531 = vpop.f32.mrb[0].mxu0
    %v4532 = vpop.f32.mrb[0].mxu0
    %4533 = vdwg.mxu0
    %4534 = vmatprep.subr.bf16.mxu0 %v2769
    %4535 = vmatpush1.bf16.msra.mxu0 %v2768
    %4536 = vmatprep.subr.bf16.mxu0 %v2781
    %4537 = vmatpush1.bf16.msra.mxu0 %v2780
    %4538 = vmatprep.subr.bf16.mxu0 %v2793
    %4539 = vmatpush1.bf16.msra.mxu0 %v2792
    %4540 = vmatprep.subr.bf16.mxu0 %v2805
    %4541 = vmatpush1.bf16.msra.mxu0 %v2804
    %4542 = vmatprep.subr.bf16.mxu0 %v2817
    %4543 = vmatpush1.bf16.msra.mxu0 %v2816
    %4544 = vmatprep.subr.bf16.mxu0 %v2829
    %4545 = vmatpush1.bf16.msra.mxu0 %v2828
    %4546 = vmatprep.subr.bf16.mxu0 %v2841
    %4547 = vmatpush1.bf16.msra.mxu0 %v2840
    %4548 = vmatprep.subr.bf16.mxu0 %v2853
    %4549 = vmatpush1.bf16.msra.mxu0 %v2852
    %4550 = vmatprep.subr.bf16.mxu0 %v2865
    %4551 = vmatpush1.bf16.msra.mxu0 %v2864
    %4552 = vmatprep.subr.bf16.mxu0 %v2877
    %4553 = vmatpush1.bf16.msra.mxu0 %v2876
    %4554 = vmatprep.subr.bf16.mxu0 %v2889
    %4555 = vmatpush1.bf16.msra.mxu0 %v2888
    %4556 = vmatprep.subr.bf16.mxu0 %v2901
    %4557 = vmatpush1.bf16.msra.mxu0 %v2900
    %4558 = vmatprep.subr.bf16.mxu0 %v2913
    %4559 = vmatpush1.bf16.msra.mxu0 %v2912
    %4560 = vmatprep.subr.bf16.mxu0 %v2925
    %4561 = vmatpush1.bf16.msra.mxu0 %v2924
    %4562 = vmatprep.subr.bf16.mxu0 %v2937
    %4563 = vmatpush1.bf16.msra.mxu0 %v2936
    %4564 = vmatprep.subr.bf16.mxu0 %v2949
    %4565 = vmatpush1.bf16.msra.mxu0 %v2948
    %4566 = vmatprep.mubr.bf16.mxu0 %v817
    %4567 = vmatmul.mubr.bf16.gmra.mrb[0].mxu0 %v816
    %v4568 = vpop.f32.mrb[0].mxu0
    %v4569 = vadd.f32 %v4518, %v4568
    %v4570 = vpop.f32.mrb[0].mxu0
    %v4571 = vadd.f32 %v4520, %v4570
    %v4572 = vpop.f32.mrb[0].mxu0
    %v4573 = vadd.f32 %v4522, %v4572
    %v4574 = vpop.f32.mrb[0].mxu0
    %v4575 = vadd.f32 %v4524, %v4574
    %4576 = vmatprep.mubr.bf16.mxu0 %v823
    %4577 = vmatmul.mubr.bf16.gmra.mrb[0].mxu0 %v822
    %v4578 = vpop.f32.mrb[0].mxu0
    %v4579 = vadd.f32 %v4528, %v4578
    %v4580 = vpop.f32.mrb[0].mxu0
    %v4581 = vadd.f32 %v4530, %v4580
    %v4582 = vpop.f32.mrb[0].mxu0
    %v4583 = vpop.f32.mrb[0].mxu0
    %4584 = vdwg.mxu0
    %4585 = vmatprep.subr.bf16.mxu0 %v2961
    %4586 = vmatpush1.bf16.msra.mxu0 %v2960
    %4587 = vmatprep.subr.bf16.mxu0 %v2973
    %4588 = vmatpush1.bf16.msra.mxu0 %v2972
    %4589 = vmatprep.subr.bf16.mxu0 %v2985
    %4590 = vmatpush1.bf16.msra.mxu0 %v2984
    %4591 = vmatprep.subr.bf16.mxu0 %v2997
    %4592 = vmatpush1.bf16.msra.mxu0 %v2996
    %4593 = vmatprep.subr.bf16.mxu0 %v3009
    %4594 = vmatpush1.bf16.msra.mxu0 %v3008
    %4595 = vmatprep.subr.bf16.mxu0 %v3021
    %4596 = vmatpush1.bf16.msra.mxu0 %v3020
    %4597 = vmatprep.subr.bf16.mxu0 %v3033
    %4598 = vmatpush1.bf16.msra.mxu0 %v3032
    %4599 = vmatprep.subr.bf16.mxu0 %v3045
    %4600 = vmatpush1.bf16.msra.mxu0 %v3044
    %4601 = vmatprep.subr.bf16.mxu0 %v3057
    %4602 = vmatpush1.bf16.msra.mxu0 %v3056
    %4603 = vmatprep.subr.bf16.mxu0 %v3069
    %4604 = vmatpush1.bf16.msra.mxu0 %v3068
    %4605 = vmatprep.subr.bf16.mxu0 %v3081
    %4606 = vmatpush1.bf16.msra.mxu0 %v3080
    %4607 = vmatprep.subr.bf16.mxu0 %v3093
    %4608 = vmatpush1.bf16.msra.mxu0 %v3092
    %4609 = vmatprep.subr.bf16.mxu0 %v3105
    %4610 = vmatpush1.bf16.msra.mxu0 %v3104
    %4611 = vmatprep.subr.bf16.mxu0 %v3117
    %4612 = vmatpush1.bf16.msra.mxu0 %v3116
    %4613 = vmatprep.subr.bf16.mxu0 %v3129
    %4614 = vmatpush1.bf16.msra.mxu0 %v3128
    %4615 = vmatprep.subr.bf16.mxu0 %v3141
    %4616 = vmatpush1.bf16.msra.mxu0 %v3140
    %4617 = vmatprep.mubr.bf16.mxu0 %v819
    %4618 = vmatmul.mubr.bf16.gmra.mrb[0].mxu0 %v818
    %v4619 = vpop.f32.mrb[0].mxu0
    %v4620 = vadd.f32 %v4569, %v4619
    %v4621 = vpop.f32.mrb[0].mxu0
    %v4622 = vadd.f32 %v4571, %v4621
    %v4623 = vpop.f32.mrb[0].mxu0
    %v4624 = vadd.f32 %v4573, %v4623
    %v4625 = vpop.f32.mrb[0].mxu0
    %v4626 = vadd.f32 %v4575, %v4625
    %4627 = vmatprep.mubr.bf16.mxu0 %v825
    %4628 = vmatmul.mubr.bf16.gmra.mrb[0].mxu0 %v824
    %v4629 = vpop.f32.mrb[0].mxu0
    %v4630 = vadd.f32 %v4579, %v4629
    %v4631 = vpop.f32.mrb[0].mxu0
    %v4632 = vadd.f32 %v4581, %v4631
    %v4633 = vpop.f32.mrb[0].mxu0
    %v4634 = vpop.f32.mrb[0].mxu0
    %4635 = vdwg.mxu0
    %v4660 = vcombine.low %v3855, %v3857
    %v4661 = vcombine.high %v3855, %v3857
    %v4662 = vcombine.low %v4008, %v4010
    %v4663 = vcombine.high %v4008, %v4010
    %v4664 = vcombine.low %v4161, %v4163
    %v4665 = vcombine.high %v4161, %v4163
    %v4666 = vcombine.low %v4314, %v4316
    %v4667 = vcombine.high %v4314, %v4316
    %v4668 = vcombine.low %v4467, %v4469
    %v4669 = vcombine.high %v4467, %v4469
    %v4670 = vcombine.low %v4620, %v4622
    %v4671 = vcombine.high %v4620, %v4622
    %v4672 = vcombine.low %v3859, %v3861
    %v4673 = vcombine.high %v3859, %v3861
    %v4674 = vcombine.low %v4012, %v4014
    %v4675 = vcombine.high %v4012, %v4014
    %v4676 = vcombine.low %v4165, %v4167
    %v4677 = vcombine.high %v4165, %v4167
    %v4678 = vcombine.low %v4318, %v4320
    %v4679 = vcombine.high %v4318, %v4320
    %v4680 = vcombine.low %v4471, %v4473
    %v4681 = vcombine.high %v4471, %v4473
    %v4682 = vcombine.low %v4624, %v4626
    %v4683 = vcombine.high %v4624, %v4626
    %v4708 = vld [vmem:[#allocation15] sm:$0xff]
    %v4709 = vld [vmem:[#allocation15 + $0x8] sm:$0xf]
    %v4712 = vlaneseq
    %v4713 = vshrl.u32 %v4712, 7
    %v4714 = vsub.s32 0, %v4713
    %v4715 = vrot.slane %v4708, %v4714
    %v4716 = vlaneseq
    %v4717 = vshrl.u32 %v4716, 7
    %v4718 = vsub.s32 1, %v4717
    %v4719 = vrot.slane %v4708, %v4718
    %v4720 = vlaneseq
    %v4721 = vshrl.u32 %v4720, 7
    %v4722 = vsub.s32 2, %v4721
    %v4723 = vrot.slane %v4708, %v4722
    %v4724 = vlaneseq
    %v4725 = vshrl.u32 %v4724, 7
    %v4726 = vsub.s32 3, %v4725
    %v4727 = vrot.slane %v4708, %v4726
    %v4728 = vlaneseq
    %v4729 = vshrl.u32 %v4728, 7
    %v4730 = vsub.s32 4, %v4729
    %v4731 = vrot.slane %v4708, %v4730
    %v4732 = vlaneseq
    %v4733 = vshrl.u32 %v4732, 7
    %v4734 = vsub.s32 5, %v4733
    %v4735 = vrot.slane %v4708, %v4734
    %v4736 = vlaneseq
    %v4737 = vshrl.u32 %v4736, 7
    %v4738 = vsub.s32 6, %v4737
    %v4739 = vrot.slane %v4708, %v4738
    %v4740 = vlaneseq
    %v4741 = vshrl.u32 %v4740, 7
    %v4742 = vsub.s32 7, %v4741
    %v4743 = vrot.slane %v4708, %v4742
    %v4744 = vlaneseq
    %v4745 = vshrl.u32 %v4744, 7
    %v4746 = vsub.s32 0, %v4745
    %v4747 = vrot.slane %v4709, %v4746
    %v4748 = vlaneseq
    %v4749 = vshrl.u32 %v4748, 7
    %v4750 = vsub.s32 1, %v4749
    %v4751 = vrot.slane %v4709, %v4750
    %v4752 = vlaneseq
    %v4753 = vshrl.u32 %v4752, 7
    %v4754 = vsub.s32 2, %v4753
    %v4755 = vrot.slane %v4709, %v4754
    %v4756 = vlaneseq
    %v4757 = vshrl.u32 %v4756, 7
    %v4758 = vsub.s32 3, %v4757
    %v4759 = vrot.slane %v4709, %v4758
    %v4772 = vadd.f32 %v3865, %v4715
    %v4773 = vadd.f32 %v3867, %v4719
    %v4774 = vadd.f32 %v4018, %v4723
    %v4775 = vadd.f32 %v4020, %v4727
    %v4776 = vadd.f32 %v4171, %v4731
    %v4777 = vadd.f32 %v4173, %v4735
    %v4778 = vadd.f32 %v4324, %v4739
    %v4779 = vadd.f32 %v4326, %v4743
    %v4780 = vadd.f32 %v4477, %v4747
    %v4781 = vadd.f32 %v4479, %v4751
    %v4782 = vadd.f32 %v4630, %v4755
    %v4783 = vadd.f32 %v4632, %v4759
    %v4784 = vlaneseq
    %v4785 = vshrl.u32 %v4784, 7
    %v4786 = vsub.s32 0, %v4785
    %v4787 = vrot.slane %v4772, %v4786
    %v4788 = vlaneseq
    %v4789 = vshrl.u32 %v4788, 7
    %v4790 = vsub.s32 0, %v4789
    %v4791 = vrot.slane %v4773, %v4790
    %v4792 = vlaneseq
    %v4793 = vshrl.u32 %v4792, 7
    %v4794 = vsub.s32 0, %v4793
    %v4795 = vrot.slane %v4774, %v4794
    %v4796 = vlaneseq
    %v4797 = vshrl.u32 %v4796, 7
    %v4798 = vsub.s32 0, %v4797
    %v4799 = vrot.slane %v4775, %v4798
    %v4800 = vlaneseq
    %v4801 = vshrl.u32 %v4800, 7
    %v4802 = vsub.s32 0, %v4801
    %v4803 = vrot.slane %v4776, %v4802
    %v4804 = vlaneseq
    %v4805 = vshrl.u32 %v4804, 7
    %v4806 = vsub.s32 0, %v4805
    %v4807 = vrot.slane %v4777, %v4806
    %v4808 = vlaneseq
    %v4809 = vshrl.u32 %v4808, 7
    %v4810 = vsub.s32 0, %v4809
    %v4811 = vrot.slane %v4778, %v4810
    %v4812 = vlaneseq
    %v4813 = vshrl.u32 %v4812, 7
    %v4814 = vsub.s32 0, %v4813
    %v4815 = vrot.slane %v4779, %v4814
    %v4816 = vlaneseq
    %v4817 = vshrl.u32 %v4816, 7
    %v4818 = vsub.s32 0, %v4817
    %v4819 = vrot.slane %v4780, %v4818
    %v4820 = vlaneseq
    %v4821 = vshrl.u32 %v4820, 7
    %v4822 = vsub.s32 0, %v4821
    %v4823 = vrot.slane %v4781, %v4822
    %v4824 = vlaneseq
    %v4825 = vshrl.u32 %v4824, 7
    %v4826 = vsub.s32 0, %v4825
    %v4827 = vrot.slane %v4782, %v4826
    %v4828 = vlaneseq
    %v4829 = vshrl.u32 %v4828, 7
    %v4830 = vsub.s32 0, %v4829
    %v4831 = vrot.slane %v4783, %v4830
    %v4832 = vlaneseq
    %v4833 = vshrl.u32 %v4832, 7
    %v4834 = vsub.s32 1, %v4833
    %v4835 = vrot.slane %v4772, %v4834
    %v4836 = vlaneseq
    %v4837 = vshrl.u32 %v4836, 7
    %v4838 = vsub.s32 1, %v4837
    %v4839 = vrot.slane %v4773, %v4838
    %v4840 = vlaneseq
    %v4841 = vshrl.u32 %v4840, 7
    %v4842 = vsub.s32 1, %v4841
    %v4843 = vrot.slane %v4774, %v4842
    %v4844 = vlaneseq
    %v4845 = vshrl.u32 %v4844, 7
    %v4846 = vsub.s32 1, %v4845
    %v4847 = vrot.slane %v4775, %v4846
    %v4848 = vlaneseq
    %v4849 = vshrl.u32 %v4848, 7
    %v4850 = vsub.s32 1, %v4849
    %v4851 = vrot.slane %v4776, %v4850
    %v4852 = vlaneseq
    %v4853 = vshrl.u32 %v4852, 7
    %v4854 = vsub.s32 1, %v4853
    %v4855 = vrot.slane %v4777, %v4854
    %v4856 = vlaneseq
    %v4857 = vshrl.u32 %v4856, 7
    %v4858 = vsub.s32 1, %v4857
    %v4859 = vrot.slane %v4778, %v4858
    %v4860 = vlaneseq
    %v4861 = vshrl.u32 %v4860, 7
    %v4862 = vsub.s32 1, %v4861
    %v4863 = vrot.slane %v4779, %v4862
    %v4864 = vlaneseq
    %v4865 = vshrl.u32 %v4864, 7
    %v4866 = vsub.s32 1, %v4865
    %v4867 = vrot.slane %v4780, %v4866
    %v4868 = vlaneseq
    %v4869 = vshrl.u32 %v4868, 7
    %v4870 = vsub.s32 1, %v4869
    %v4871 = vrot.slane %v4781, %v4870
    %v4872 = vlaneseq
    %v4873 = vshrl.u32 %v4872, 7
    %v4874 = vsub.s32 1, %v4873
    %v4875 = vrot.slane %v4782, %v4874
    %v4876 = vlaneseq
    %v4877 = vshrl.u32 %v4876, 7
    %v4878 = vsub.s32 1, %v4877
    %v4879 = vrot.slane %v4783, %v4878
    %vm4880 = vcmask 1043456
    %v4881 = vsel %vm4880, %v4787, %v4835
    %v4882 = vsel %vm4880, %v4791, %v4839
    %v4883 = vsel %vm4880, %v4795, %v4843
    %v4884 = vsel %vm4880, %v4799, %v4847
    %v4885 = vsel %vm4880, %v4803, %v4851
    %v4886 = vsel %vm4880, %v4807, %v4855
    %v4887 = vsel %vm4880, %v4811, %v4859
    %v4888 = vsel %vm4880, %v4815, %v4863
    %v4889 = vsel %vm4880, %v4819, %v4867
    %v4890 = vsel %vm4880, %v4823, %v4871
    %v4891 = vsel %vm4880, %v4827, %v4875
    %v4892 = vsel %vm4880, %v4831, %v4879
    %v4893 = vld [vmem:[#allocation10] sm:$0xff]
    %v4894 = vld [vmem:[#allocation10 + $0x8] sm:$0xf]
    %v4895 = vld [vmem:[#allocation10 + $0xc] sm:$0xff]
    %v4896 = vld [vmem:[#allocation10 + $0x14] sm:$0xf]
    %v4897 = vld [vmem:[#allocation12] sm:$0xff]
    %v4898 = vld [vmem:[#allocation12 + $0x8] sm:$0xf]
    %v4899 = vld [vmem:[#allocation12 + $0xc] sm:$0xff]
    %v4900 = vld [vmem:[#allocation12 + $0x14] sm:$0xf]
    %s4901 = smul.u32 4, 48
    %s4902 = smul.u32 %s4901, 12
    %s4903 = sshll.u32 %s4902, 4
    %4904 = dma.done [#allocation6], %s4903
    %v4905 = vld [vmem:[#allocation2] sm:$0xff]
    %v4906 = vld [vmem:[#allocation2 + $0x8] sm:$0xff]
    %v4907 = vld [vmem:[#allocation2 + $0x10] sm:$0xff]
    %v4908 = vld [vmem:[#allocation2 + $0x18] sm:$0xff]
    %v4909 = vld [vmem:[#allocation2 + $0x20] sm:$0xff]
    %v4910 = vld [vmem:[#allocation2 + $0x28] sm:$0xff]
    %v4911 = vld [vmem:[#allocation2 + $0x30] sm:$0xff]
    %v4912 = vld [vmem:[#allocation2 + $0x38] sm:$0xff]
    %v4913 = vld [vmem:[#allocation2 + $0x40] sm:$0xff]
    %v4914 = vld [vmem:[#allocation2 + $0x48] sm:$0xff]
    %v4915 = vld [vmem:[#allocation2 + $0x50] sm:$0xff]
    %v4916 = vld [vmem:[#allocation2 + $0x58] sm:$0xff]
    %v4917 = vld [vmem:[#allocation2 + $0x60] sm:$0xff]
    %v4918 = vld [vmem:[#allocation2 + $0x68] sm:$0xff]
    %v4919 = vld [vmem:[#allocation2 + $0x70] sm:$0xff]
    %v4920 = vld [vmem:[#allocation2 + $0x78] sm:$0xff]
    %v4921 = vld [vmem:[#allocation2 + $0x80] sm:$0xff]
    %v4922 = vld [vmem:[#allocation2 + $0x88] sm:$0xff]
    %v4923 = vld [vmem:[#allocation2 + $0x90] sm:$0xff]
    %v4924 = vld [vmem:[#allocation2 + $0x98] sm:$0xff]
    %v4925 = vld [vmem:[#allocation2 + $0xa0] sm:$0xff]
    %v4926 = vld [vmem:[#allocation2 + $0xa8] sm:$0xff]
    %v4927 = vld [vmem:[#allocation2 + $0xb0] sm:$0xff]
    %v4928 = vld [vmem:[#allocation2 + $0xb8] sm:$0xff]
    %v4929 = vld [vmem:[#allocation2 + $0xc0] sm:$0xff]
    %v4930 = vld [vmem:[#allocation2 + $0xc8] sm:$0xff]
    %v4931 = vld [vmem:[#allocation2 + $0xd0] sm:$0xff]
    %v4932 = vld [vmem:[#allocation2 + $0xd8] sm:$0xff]
    %v4933 = vld [vmem:[#allocation2 + $0xe0] sm:$0xff]
    %v4934 = vld [vmem:[#allocation2 + $0xe8] sm:$0xff]
    %v4935 = vld [vmem:[#allocation2 + $0xf0] sm:$0xff]
    %v4936 = vld [vmem:[#allocation2 + $0xf8] sm:$0xff]
    %v4937 = vld [vmem:[#allocation2 + $0x100] sm:$0xff]
    %v4938 = vld [vmem:[#allocation2 + $0x108] sm:$0xff]
    %v4939 = vld [vmem:[#allocation2 + $0x110] sm:$0xff]
    %v4940 = vld [vmem:[#allocation2 + $0x118] sm:$0xff]
    %v4941 = vld [vmem:[#allocation2 + $0x120] sm:$0xff]
    %v4942 = vld [vmem:[#allocation2 + $0x128] sm:$0xff]
    %v4943 = vld [vmem:[#allocation2 + $0x130] sm:$0xff]
    %v4944 = vld [vmem:[#allocation2 + $0x138] sm:$0xff]
    %v4945 = vld [vmem:[#allocation2 + $0x140] sm:$0xff]
    %v4946 = vld [vmem:[#allocation2 + $0x148] sm:$0xff]
    %v4947 = vld [vmem:[#allocation2 + $0x150] sm:$0xff]
    %v4948 = vld [vmem:[#allocation2 + $0x158] sm:$0xff]
    %v4949 = vld [vmem:[#allocation2 + $0x160] sm:$0xff]
    %v4950 = vld [vmem:[#allocation2 + $0x168] sm:$0xff]
    %v4951 = vld [vmem:[#allocation2 + $0x170] sm:$0xff]
    %v4952 = vld [vmem:[#allocation2 + $0x178] sm:$0xff]
    %v4953 = vld [vmem:[#allocation2 + $0x180] sm:$0xff]
    %v4954 = vld [vmem:[#allocation2 + $0x188] sm:$0xff]
    %v4955 = vld [vmem:[#allocation2 + $0x190] sm:$0xff]
    %v4956 = vld [vmem:[#allocation2 + $0x198] sm:$0xff]
    %v4957 = vld [vmem:[#allocation2 + $0x1a0] sm:$0xff]
    %v4958 = vld [vmem:[#allocation2 + $0x1a8] sm:$0xff]
    %v4959 = vld [vmem:[#allocation2 + $0x1b0] sm:$0xff]
    %v4960 = vld [vmem:[#allocation2 + $0x1b8] sm:$0xff]
    %v4961 = vld [vmem:[#allocation2 + $0x1c0] sm:$0xff]
    %v4962 = vld [vmem:[#allocation2 + $0x1c8] sm:$0xff]
    %v4963 = vld [vmem:[#allocation2 + $0x1d0] sm:$0xff]
    %v4964 = vld [vmem:[#allocation2 + $0x1d8] sm:$0xff]
    %v4965 = vld [vmem:[#allocation2 + $0x1e0] sm:$0xff]
    %v4966 = vld [vmem:[#allocation2 + $0x1e8] sm:$0xff]
    %v4967 = vld [vmem:[#allocation2 + $0x1f0] sm:$0xff]
    %v4968 = vld [vmem:[#allocation2 + $0x1f8] sm:$0xff]
    %v4969 = vld [vmem:[#allocation2 + $0x200] sm:$0xff]
    %v4970 = vld [vmem:[#allocation2 + $0x208] sm:$0xff]
    %v4971 = vld [vmem:[#allocation2 + $0x210] sm:$0xff]
    %v4972 = vld [vmem:[#allocation2 + $0x218] sm:$0xff]
    %v4973 = vld [vmem:[#allocation2 + $0x220] sm:$0xff]
    %v4974 = vld [vmem:[#allocation2 + $0x228] sm:$0xff]
    %v4975 = vld [vmem:[#allocation2 + $0x230] sm:$0xff]
    %v4976 = vld [vmem:[#allocation2 + $0x238] sm:$0xff]
    %v4977 = vld [vmem:[#allocation2 + $0x240] sm:$0xff]
    %v4978 = vld [vmem:[#allocation2 + $0x248] sm:$0xff]
    %v4979 = vld [vmem:[#allocation2 + $0x250] sm:$0xff]
    %v4980 = vld [vmem:[#allocation2 + $0x258] sm:$0xff]
    %v4981 = vld [vmem:[#allocation2 + $0x260] sm:$0xff]
    %v4982 = vld [vmem:[#allocation2 + $0x268] sm:$0xff]
    %v4983 = vld [vmem:[#allocation2 + $0x270] sm:$0xff]
    %v4984 = vld [vmem:[#allocation2 + $0x278] sm:$0xff]
    %v4985 = vld [vmem:[#allocation2 + $0x280] sm:$0xff]
    %v4986 = vld [vmem:[#allocation2 + $0x288] sm:$0xff]
    %v4987 = vld [vmem:[#allocation2 + $0x290] sm:$0xff]
    %v4988 = vld [vmem:[#allocation2 + $0x298] sm:$0xff]
    %v4989 = vld [vmem:[#allocation2 + $0x2a0] sm:$0xff]
    %v4990 = vld [vmem:[#allocation2 + $0x2a8] sm:$0xff]
    %v4991 = vld [vmem:[#allocation2 + $0x2b0] sm:$0xff]
    %v4992 = vld [vmem:[#allocation2 + $0x2b8] sm:$0xff]
    %v4993 = vld [vmem:[#allocation2 + $0x2c0] sm:$0xff]
    %v4994 = vld [vmem:[#allocation2 + $0x2c8] sm:$0xff]
    %v4995 = vld [vmem:[#allocation2 + $0x2d0] sm:$0xff]
    %v4996 = vld [vmem:[#allocation2 + $0x2d8] sm:$0xff]
    %v4997 = vld [vmem:[#allocation2 + $0x2e0] sm:$0xff]
    %v4998 = vld [vmem:[#allocation2 + $0x2e8] sm:$0xff]
    %v4999 = vld [vmem:[#allocation2 + $0x2f0] sm:$0xff]
    %v5000 = vld [vmem:[#allocation2 + $0x2f8] sm:$0xff]
    %v5001 = vld [vmem:[#allocation2 + $0x300] sm:$0xff]
    %v5002 = vld [vmem:[#allocation2 + $0x308] sm:$0xff]
    %v5003 = vld [vmem:[#allocation2 + $0x310] sm:$0xff]
    %v5004 = vld [vmem:[#allocation2 + $0x318] sm:$0xff]
    %v5005 = vld [vmem:[#allocation2 + $0x320] sm:$0xff]
    %v5006 = vld [vmem:[#allocation2 + $0x328] sm:$0xff]
    %v5007 = vld [vmem:[#allocation2 + $0x330] sm:$0xff]
    %v5008 = vld [vmem:[#allocation2 + $0x338] sm:$0xff]
    %v5009 = vld [vmem:[#allocation2 + $0x340] sm:$0xff]
    %v5010 = vld [vmem:[#allocation2 + $0x348] sm:$0xff]
    %v5011 = vld [vmem:[#allocation2 + $0x350] sm:$0xff]
    %v5012 = vld [vmem:[#allocation2 + $0x358] sm:$0xff]
    %v5013 = vld [vmem:[#allocation2 + $0x360] sm:$0xff]
    %v5014 = vld [vmem:[#allocation2 + $0x368] sm:$0xff]
    %v5015 = vld [vmem:[#allocation2 + $0x370] sm:$0xff]
    %v5016 = vld [vmem:[#allocation2 + $0x378] sm:$0xff]
    %v5017 = vld [vmem:[#allocation2 + $0x380] sm:$0xff]
    %v5018 = vld [vmem:[#allocation2 + $0x388] sm:$0xff]
    %v5019 = vld [vmem:[#allocation2 + $0x390] sm:$0xff]
    %v5020 = vld [vmem:[#allocation2 + $0x398] sm:$0xff]
    %v5021 = vld [vmem:[#allocation2 + $0x3a0] sm:$0xff]
    %v5022 = vld [vmem:[#allocation2 + $0x3a8] sm:$0xff]
    %v5023 = vld [vmem:[#allocation2 + $0x3b0] sm:$0xff]
    %v5024 = vld [vmem:[#allocation2 + $0x3b8] sm:$0xff]
    %v5025 = vld [vmem:[#allocation2 + $0x3c0] sm:$0xff]
    %v5026 = vld [vmem:[#allocation2 + $0x3c8] sm:$0xff]
    %v5027 = vld [vmem:[#allocation2 + $0x3d0] sm:$0xff]
    %v5028 = vld [vmem:[#allocation2 + $0x3d8] sm:$0xff]
    %v5029 = vld [vmem:[#allocation2 + $0x3e0] sm:$0xff]
    %v5030 = vld [vmem:[#allocation2 + $0x3e8] sm:$0xff]
    %v5031 = vld [vmem:[#allocation2 + $0x3f0] sm:$0xff]
    %v5032 = vld [vmem:[#allocation2 + $0x3f8] sm:$0xff]
    %v5033 = vld [vmem:[#allocation2 + $0x400] sm:$0xff]
    %v5034 = vld [vmem:[#allocation2 + $0x408] sm:$0xff]
    %v5035 = vld [vmem:[#allocation2 + $0x410] sm:$0xff]
    %v5036 = vld [vmem:[#allocation2 + $0x418] sm:$0xff]
    %v5037 = vld [vmem:[#allocation2 + $0x420] sm:$0xff]
    %v5038 = vld [vmem:[#allocation2 + $0x428] sm:$0xff]
    %v5039 = vld [vmem:[#allocation2 + $0x430] sm:$0xff]
    %v5040 = vld [vmem:[#allocation2 + $0x438] sm:$0xff]
    %v5041 = vld [vmem:[#allocation2 + $0x440] sm:$0xff]
    %v5042 = vld [vmem:[#allocation2 + $0x448] sm:$0xff]
    %v5043 = vld [vmem:[#allocation2 + $0x450] sm:$0xff]
    %v5044 = vld [vmem:[#allocation2 + $0x458] sm:$0xff]
    %v5045 = vld [vmem:[#allocation2 + $0x460] sm:$0xff]
    %v5046 = vld [vmem:[#allocation2 + $0x468] sm:$0xff]
    %v5047 = vld [vmem:[#allocation2 + $0x470] sm:$0xff]
    %v5048 = vld [vmem:[#allocation2 + $0x478] sm:$0xff]
    %v5049 = vld [vmem:[#allocation2 + $0x480] sm:$0xff]
    %v5050 = vld [vmem:[#allocation2 + $0x488] sm:$0xff]
    %v5051 = vld [vmem:[#allocation2 + $0x490] sm:$0xff]
    %v5052 = vld [vmem:[#allocation2 + $0x498] sm:$0xff]
    %v5053 = vld [vmem:[#allocation2 + $0x4a0] sm:$0xff]
    %v5054 = vld [vmem:[#allocation2 + $0x4a8] sm:$0xff]
    %v5055 = vld [vmem:[#allocation2 + $0x4b0] sm:$0xff]
    %v5056 = vld [vmem:[#allocation2 + $0x4b8] sm:$0xff]
    %v5057 = vld [vmem:[#allocation2 + $0x4c0] sm:$0xff]
    %v5058 = vld [vmem:[#allocation2 + $0x4c8] sm:$0xff]
    %v5059 = vld [vmem:[#allocation2 + $0x4d0] sm:$0xff]
    %v5060 = vld [vmem:[#allocation2 + $0x4d8] sm:$0xff]
    %v5061 = vld [vmem:[#allocation2 + $0x4e0] sm:$0xff]
    %v5062 = vld [vmem:[#allocation2 + $0x4e8] sm:$0xff]
    %v5063 = vld [vmem:[#allocation2 + $0x4f0] sm:$0xff]
    %v5064 = vld [vmem:[#allocation2 + $0x4f8] sm:$0xff]
    %v5065 = vld [vmem:[#allocation2 + $0x500] sm:$0xff]
    %v5066 = vld [vmem:[#allocation2 + $0x508] sm:$0xff]
    %v5067 = vld [vmem:[#allocation2 + $0x510] sm:$0xff]
    %v5068 = vld [vmem:[#allocation2 + $0x518] sm:$0xff]
    %v5069 = vld [vmem:[#allocation2 + $0x520] sm:$0xff]
    %v5070 = vld [vmem:[#allocation2 + $0x528] sm:$0xff]
    %v5071 = vld [vmem:[#allocation2 + $0x530] sm:$0xff]
    %v5072 = vld [vmem:[#allocation2 + $0x538] sm:$0xff]
    %v5073 = vld [vmem:[#allocation2 + $0x540] sm:$0xff]
    %v5074 = vld [vmem:[#allocation2 + $0x548] sm:$0xff]
    %v5075 = vld [vmem:[#allocation2 + $0x550] sm:$0xff]
    %v5076 = vld [vmem:[#allocation2 + $0x558] sm:$0xff]
    %v5077 = vld [vmem:[#allocation2 + $0x560] sm:$0xff]
    %v5078 = vld [vmem:[#allocation2 + $0x568] sm:$0xff]
    %v5079 = vld [vmem:[#allocation2 + $0x570] sm:$0xff]
    %v5080 = vld [vmem:[#allocation2 + $0x578] sm:$0xff]
    %v5081 = vld [vmem:[#allocation2 + $0x580] sm:$0xff]
    %v5082 = vld [vmem:[#allocation2 + $0x588] sm:$0xff]
    %v5083 = vld [vmem:[#allocation2 + $0x590] sm:$0xff]
    %v5084 = vld [vmem:[#allocation2 + $0x598] sm:$0xff]
    %v5085 = vld [vmem:[#allocation2 + $0x5a0] sm:$0xff]
    %v5086 = vld [vmem:[#allocation2 + $0x5a8] sm:$0xff]
    %v5087 = vld [vmem:[#allocation2 + $0x5b0] sm:$0xff]
    %v5088 = vld [vmem:[#allocation2 + $0x5b8] sm:$0xff]
    %v5089 = vld [vmem:[#allocation2 + $0x5c0] sm:$0xff]
    %v5090 = vld [vmem:[#allocation2 + $0x5c8] sm:$0xff]
    %v5091 = vld [vmem:[#allocation2 + $0x5d0] sm:$0xff]
    %v5092 = vld [vmem:[#allocation2 + $0x5d8] sm:$0xff]
    %v5093 = vld [vmem:[#allocation2 + $0x5e0] sm:$0xff]
    %v5094 = vld [vmem:[#allocation2 + $0x5e8] sm:$0xff]
    %v5095 = vld [vmem:[#allocation2 + $0x5f0] sm:$0xff]
    %v5096 = vld [vmem:[#allocation2 + $0x5f8] sm:$0xff]
    %v5097 = vld [vmem:[#allocation2 + $0x600] sm:$0xff]
    %v5098 = vld [vmem:[#allocation2 + $0x608] sm:$0xff]
    %v5099 = vld [vmem:[#allocation2 + $0x610] sm:$0xff]
    %v5100 = vld [vmem:[#allocation2 + $0x618] sm:$0xff]
    %v5101 = vld [vmem:[#allocation2 + $0x620] sm:$0xff]
    %v5102 = vld [vmem:[#allocation2 + $0x628] sm:$0xff]
    %v5103 = vld [vmem:[#allocation2 + $0x630] sm:$0xff]
    %v5104 = vld [vmem:[#allocation2 + $0x638] sm:$0xff]
    %v5105 = vld [vmem:[#allocation2 + $0x640] sm:$0xff]
    %v5106 = vld [vmem:[#allocation2 + $0x648] sm:$0xff]
    %v5107 = vld [vmem:[#allocation2 + $0x650] sm:$0xff]
    %v5108 = vld [vmem:[#allocation2 + $0x658] sm:$0xff]
    %v5109 = vld [vmem:[#allocation2 + $0x660] sm:$0xff]
    %v5110 = vld [vmem:[#allocation2 + $0x668] sm:$0xff]
    %v5111 = vld [vmem:[#allocation2 + $0x670] sm:$0xff]
    %v5112 = vld [vmem:[#allocation2 + $0x678] sm:$0xff]
    %v5113 = vld [vmem:[#allocation2 + $0x680] sm:$0xff]
    %v5114 = vld [vmem:[#allocation2 + $0x688] sm:$0xff]
    %v5115 = vld [vmem:[#allocation2 + $0x690] sm:$0xff]
    %v5116 = vld [vmem:[#allocation2 + $0x698] sm:$0xff]
    %v5117 = vld [vmem:[#allocation2 + $0x6a0] sm:$0xff]
    %v5118 = vld [vmem:[#allocation2 + $0x6a8] sm:$0xff]
    %v5119 = vld [vmem:[#allocation2 + $0x6b0] sm:$0xff]
    %v5120 = vld [vmem:[#allocation2 + $0x6b8] sm:$0xff]
    %v5121 = vld [vmem:[#allocation2 + $0x6c0] sm:$0xff]
    %v5122 = vld [vmem:[#allocation2 + $0x6c8] sm:$0xff]
    %v5123 = vld [vmem:[#allocation2 + $0x6d0] sm:$0xff]
    %v5124 = vld [vmem:[#allocation2 + $0x6d8] sm:$0xff]
    %v5125 = vld [vmem:[#allocation2 + $0x6e0] sm:$0xff]
    %v5126 = vld [vmem:[#allocation2 + $0x6e8] sm:$0xff]
    %v5127 = vld [vmem:[#allocation2 + $0x6f0] sm:$0xff]
    %v5128 = vld [vmem:[#allocation2 + $0x6f8] sm:$0xff]
    %v5129 = vld [vmem:[#allocation2 + $0x700] sm:$0xff]
    %v5130 = vld [vmem:[#allocation2 + $0x708] sm:$0xff]
    %v5131 = vld [vmem:[#allocation2 + $0x710] sm:$0xff]
    %v5132 = vld [vmem:[#allocation2 + $0x718] sm:$0xff]
    %v5133 = vld [vmem:[#allocation2 + $0x720] sm:$0xff]
    %v5134 = vld [vmem:[#allocation2 + $0x728] sm:$0xff]
    %v5135 = vld [vmem:[#allocation2 + $0x730] sm:$0xff]
    %v5136 = vld [vmem:[#allocation2 + $0x738] sm:$0xff]
    %v5137 = vld [vmem:[#allocation2 + $0x740] sm:$0xff]
    %v5138 = vld [vmem:[#allocation2 + $0x748] sm:$0xff]
    %v5139 = vld [vmem:[#allocation2 + $0x750] sm:$0xff]
    %v5140 = vld [vmem:[#allocation2 + $0x758] sm:$0xff]
    %v5141 = vld [vmem:[#allocation2 + $0x760] sm:$0xff]
    %v5142 = vld [vmem:[#allocation2 + $0x768] sm:$0xff]
    %v5143 = vld [vmem:[#allocation2 + $0x770] sm:$0xff]
    %v5144 = vld [vmem:[#allocation2 + $0x778] sm:$0xff]
    %v5145 = vld [vmem:[#allocation2 + $0x780] sm:$0xff]
    %v5146 = vld [vmem:[#allocation2 + $0x788] sm:$0xff]
    %v5147 = vld [vmem:[#allocation2 + $0x790] sm:$0xff]
    %v5148 = vld [vmem:[#allocation2 + $0x798] sm:$0xff]
    %v5149 = vld [vmem:[#allocation2 + $0x7a0] sm:$0xff]
    %v5150 = vld [vmem:[#allocation2 + $0x7a8] sm:$0xff]
    %v5151 = vld [vmem:[#allocation2 + $0x7b0] sm:$0xff]
    %v5152 = vld [vmem:[#allocation2 + $0x7b8] sm:$0xff]
    %v5153 = vld [vmem:[#allocation2 + $0x7c0] sm:$0xff]
    %v5154 = vld [vmem:[#allocation2 + $0x7c8] sm:$0xff]
    %v5155 = vld [vmem:[#allocation2 + $0x7d0] sm:$0xff]
    %v5156 = vld [vmem:[#allocation2 + $0x7d8] sm:$0xff]
    %v5157 = vld [vmem:[#allocation2 + $0x7e0] sm:$0xff]
    %v5158 = vld [vmem:[#allocation2 + $0x7e8] sm:$0xff]
    %v5159 = vld [vmem:[#allocation2 + $0x7f0] sm:$0xff]
    %v5160 = vld [vmem:[#allocation2 + $0x7f8] sm:$0xff]
    %v5161 = vld [vmem:[#allocation2 + $0x800] sm:$0xff]
    %v5162 = vld [vmem:[#allocation2 + $0x808] sm:$0xff]
    %v5163 = vld [vmem:[#allocation2 + $0x810] sm:$0xff]
    %v5164 = vld [vmem:[#allocation2 + $0x818] sm:$0xff]
    %v5165 = vld [vmem:[#allocation2 + $0x820] sm:$0xff]
    %v5166 = vld [vmem:[#allocation2 + $0x828] sm:$0xff]
    %v5167 = vld [vmem:[#allocation2 + $0x830] sm:$0xff]
    %v5168 = vld [vmem:[#allocation2 + $0x838] sm:$0xff]
    %v5169 = vld [vmem:[#allocation2 + $0x840] sm:$0xff]
    %v5170 = vld [vmem:[#allocation2 + $0x848] sm:$0xff]
    %v5171 = vld [vmem:[#allocation2 + $0x850] sm:$0xff]
    %v5172 = vld [vmem:[#allocation2 + $0x858] sm:$0xff]
    %v5173 = vld [vmem:[#allocation2 + $0x860] sm:$0xff]
    %v5174 = vld [vmem:[#allocation2 + $0x868] sm:$0xff]
    %v5175 = vld [vmem:[#allocation2 + $0x870] sm:$0xff]
    %v5176 = vld [vmem:[#allocation2 + $0x878] sm:$0xff]
    %v5177 = vld [vmem:[#allocation2 + $0x880] sm:$0xff]
    %v5178 = vld [vmem:[#allocation2 + $0x888] sm:$0xff]
    %v5179 = vld [vmem:[#allocation2 + $0x890] sm:$0xff]
    %v5180 = vld [vmem:[#allocation2 + $0x898] sm:$0xff]
    %v5181 = vld [vmem:[#allocation2 + $0x8a0] sm:$0xff]
    %v5182 = vld [vmem:[#allocation2 + $0x8a8] sm:$0xff]
    %v5183 = vld [vmem:[#allocation2 + $0x8b0] sm:$0xff]
    %v5184 = vld [vmem:[#allocation2 + $0x8b8] sm:$0xff]
    %v5185 = vld [vmem:[#allocation2 + $0x8c0] sm:$0xff]
    %v5186 = vld [vmem:[#allocation2 + $0x8c8] sm:$0xff]
    %v5187 = vld [vmem:[#allocation2 + $0x8d0] sm:$0xff]
    %v5188 = vld [vmem:[#allocation2 + $0x8d8] sm:$0xff]
    %v5189 = vld [vmem:[#allocation2 + $0x8e0] sm:$0xff]
    %v5190 = vld [vmem:[#allocation2 + $0x8e8] sm:$0xff]
    %v5191 = vld [vmem:[#allocation2 + $0x8f0] sm:$0xff]
    %v5192 = vld [vmem:[#allocation2 + $0x8f8] sm:$0xff]
    %v5193 = vcombine.high %v4660, %v4660
    %v5194 = vcombine.high %v4662, %v4662
    %v5195 = vcombine.high %v4664, %v4664
    %v5196 = vcombine.high %v4666, %v4666
    %v5197 = vcombine.high %v4668, %v4668
    %v5198 = vcombine.high %v4670, %v4670
    %v5205 = vcombine.low %v4660, %v4660
    %v5206 = vcombine.low %v4662, %v4662
    %v5207 = vcombine.low %v4664, %v4664
    %v5208 = vcombine.low %v4666, %v4666
    %v5209 = vcombine.low %v4668, %v4668
    %v5210 = vcombine.low %v4670, %v4670
    %v5217 = vsel %vm4880, %v4660, %v5205
    %v5218 = vsel %vm4880, %v5193, %v4660
    %v5219 = vsel %vm4880, %v4662, %v5206
    %v5220 = vsel %vm4880, %v5194, %v4662
    %v5221 = vsel %vm4880, %v4664, %v5207
    %v5222 = vsel %vm4880, %v5195, %v4664
    %v5223 = vsel %vm4880, %v4666, %v5208
    %v5224 = vsel %vm4880, %v5196, %v4666
    %v5225 = vsel %vm4880, %v4668, %v5209
    %v5226 = vsel %vm4880, %v5197, %v4668
    %v5227 = vsel %vm4880, %v4670, %v5210
    %v5228 = vsel %vm4880, %v5198, %v4670
    %v5229 = vadd.f32 %v5217, %v4881
    %v5230 = vadd.f32 %v5218, %v4882
    %v5231 = vadd.f32 %v5219, %v4883
    %v5232 = vadd.f32 %v5220, %v4884
    %v5233 = vadd.f32 %v5221, %v4885
    %v5234 = vadd.f32 %v5222, %v4886
    %v5235 = vadd.f32 %v5223, %v4887
    %v5236 = vadd.f32 %v5224, %v4888
    %v5237 = vadd.f32 %v5225, %v4889
    %v5238 = vadd.f32 %v5226, %v4890
    %v5239 = vadd.f32 %v5227, %v4891
    %v5240 = vadd.f32 %v5228, %v4892
    %v5245 = vcombine.low %v4893, %v4895
    %v5246 = vcombine.high %v4893, %v4895
    %v5247 = vcombine.low %v4894, %v4896
    %v5251 = vpack.c.bf16 %v5245, %v5245
    %v5252 = vpack.c.bf16 %v5246, %v5246
    %v5253 = vpack.c.bf16 %v5247, %v5247
    %5254 = vmatprep.subr.bf16.mxu0 %v4906
    %5255 = vmatpush1.bf16.msra.mxu0 %v4905
    %5256 = vmatprep.subr.bf16.mxu0 %v4918
    %5257 = vmatpush1.bf16.msra.mxu0 %v4917
    %5258 = vmatprep.subr.bf16.mxu0 %v4930
    %5259 = vmatpush1.bf16.msra.mxu0 %v4929
    %5260 = vmatprep.subr.bf16.mxu0 %v4942
    %5261 = vmatpush1.bf16.msra.mxu0 %v4941
    %5262 = vmatprep.subr.bf16.mxu0 %v4954
    %5263 = vmatpush1.bf16.msra.mxu0 %v4953
    %5264 = vmatprep.subr.bf16.mxu0 %v4966
    %5265 = vmatpush1.bf16.msra.mxu0 %v4965
    %5266 = vmatprep.subr.bf16.mxu0 %v4978
    %5267 = vmatpush1.bf16.msra.mxu0 %v4977
    %5268 = vmatprep.subr.bf16.mxu0 %v4990
    %5269 = vmatpush1.bf16.msra.mxu0 %v4989
    %5270 = vmatprep.subr.bf16.mxu0 %v5002
    %5271 = vmatpush1.bf16.msra.mxu0 %v5001
    %5272 = vmatprep.subr.bf16.mxu0 %v5014
    %5273 = vmatpush1.bf16.msra.mxu0 %v5013
    %5274 = vmatprep.subr.bf16.mxu0 %v5026
    %5275 = vmatpush1.bf16.msra.mxu0 %v5025
    %5276 = vmatprep.subr.bf16.mxu0 %v5038
    %5277 = vmatpush1.bf16.msra.mxu0 %v5037
    %5278 = vmatprep.subr.bf16.mxu0 %v5050
    %5279 = vmatpush1.bf16.msra.mxu0 %v5049
    %5280 = vmatprep.subr.bf16.mxu0 %v5062
    %5281 = vmatpush1.bf16.msra.mxu0 %v5061
    %5282 = vmatprep.subr.bf16.mxu0 %v5074
    %5283 = vmatpush1.bf16.msra.mxu0 %v5073
    %5284 = vmatprep.subr.bf16.mxu0 %v5086
    %5285 = vmatpush1.bf16.msra.mxu0 %v5085
    %5286 = vmatprep.mubr.bf16.mxu0 %v5252
    %5287 = vmatmul.mubr.bf16.gmra.mrb[0].mxu0 %v5251
    %v5288 = vpop.f32.mrb[0].mxu0
    %v5289 = vadd.f32 0.0, %v5288
    %v5290 = vpop.f32.mrb[0].mxu0
    %v5291 = vadd.f32 0.0, %v5290
    %v5292 = vpop.f32.mrb[0].mxu0
    %v5293 = vpop.f32.mrb[0].mxu0
    %5294 = vdwg.mxu0
    %5295 = vmatprep.subr.bf16.mxu0 %v5098
    %5296 = vmatpush1.bf16.msra.mxu0 %v5097
    %5297 = vmatprep.subr.bf16.mxu0 %v5110
    %5298 = vmatpush1.bf16.msra.mxu0 %v5109
    %5299 = vmatprep.subr.bf16.mxu0 %v5122
    %5300 = vmatpush1.bf16.msra.mxu0 %v5121
    %5301 = vmatprep.subr.bf16.mxu0 %v5134
    %5302 = vmatpush1.bf16.msra.mxu0 %v5133
    %5303 = vmatprep.subr.bf16.mxu0 %v5146
    %5304 = vmatpush1.bf16.msra.mxu0 %v5145
    %5305 = vmatprep.subr.bf16.mxu0 %v5158
    %5306 = vmatpush1.bf16.msra.mxu0 %v5157
    %5307 = vmatprep.subr.bf16.mxu0 %v5170
    %5308 = vmatpush1.bf16.msra.mxu0 %v5169
    %5309 = vmatprep.subr.bf16.mxu0 %v5182
    %5310 = vmatpush1.bf16.msra.mxu0 %v5181
    %5311 = vmatprep.subr.bf16.mxu0 0
    %5312 = vmatpush1.bf16.msra.mxu0 0
    %5313 = vmatprep.subr.bf16.mxu0 0
    %5314 = vmatpush1.bf16.msra.mxu0 0
    %5315 = vmatprep.subr.bf16.mxu0 0
    %5316 = vmatpush1.bf16.msra.mxu0 0
    %5317 = vmatprep.subr.bf16.mxu0 0
    %5318 = vmatpush1.bf16.msra.mxu0 0
    %5319 = vmatprep.subr.bf16.mxu0 0
    %5320 = vmatpush1.bf16.msra.mxu0 0
    %5321 = vmatprep.subr.bf16.mxu0 0
    %5322 = vmatpush1.bf16.msra.mxu0 0
    %5323 = vmatprep.subr.bf16.mxu0 0
    %5324 = vmatpush1.bf16.msra.mxu0 0
    %5325 = vmatprep.subr.bf16.mxu0 0
    %5326 = vmatpush1.bf16.msra.mxu0 0
    %5327 = vmatprep.mubr.bf16.mxu0 0
    %5328 = vmatmul.mubr.bf16.gmra.mrb[0].mxu0 %v5253
    %v5329 = vpop.f32.mrb[0].mxu0
    %v5330 = vadd.f32 %v5289, %v5329
    %v5331 = vpop.f32.mrb[0].mxu0
    %v5332 = vadd.f32 %v5291, %v5331
    %v5333 = vpop.f32.mrb[0].mxu0
    %v5334 = vpop.f32.mrb[0].mxu0
    %5335 = vdwg.mxu0
    %5336 = vmatprep.subr.bf16.mxu0 %v4908
    %5337 = vmatpush1.bf16.msra.mxu0 %v4907
    %5338 = vmatprep.subr.bf16.mxu0 %v4920
    %5339 = vmatpush1.bf16.msra.mxu0 %v4919
    %5340 = vmatprep.subr.bf16.mxu0 %v4932
    %5341 = vmatpush1.bf16.msra.mxu0 %v4931
    %5342 = vmatprep.subr.bf16.mxu0 %v4944
    %5343 = vmatpush1.bf16.msra.mxu0 %v4943
    %5344 = vmatprep.subr.bf16.mxu0 %v4956
    %5345 = vmatpush1.bf16.msra.mxu0 %v4955
    %5346 = vmatprep.subr.bf16.mxu0 %v4968
    %5347 = vmatpush1.bf16.msra.mxu0 %v4967
    %5348 = vmatprep.subr.bf16.mxu0 %v4980
    %5349 = vmatpush1.bf16.msra.mxu0 %v4979
    %5350 = vmatprep.subr.bf16.mxu0 %v4992
    %5351 = vmatpush1.bf16.msra.mxu0 %v4991
    %5352 = vmatprep.subr.bf16.mxu0 %v5004
    %5353 = vmatpush1.bf16.msra.mxu0 %v5003
    %5354 = vmatprep.subr.bf16.mxu0 %v5016
    %5355 = vmatpush1.bf16.msra.mxu0 %v5015
    %5356 = vmatprep.subr.bf16.mxu0 %v5028
    %5357 = vmatpush1.bf16.msra.mxu0 %v5027
    %5358 = vmatprep.subr.bf16.mxu0 %v5040
    %5359 = vmatpush1.bf16.msra.mxu0 %v5039
    %5360 = vmatprep.subr.bf16.mxu0 %v5052
    %5361 = vmatpush1.bf16.msra.mxu0 %v5051
    %5362 = vmatprep.subr.bf16.mxu0 %v5064
    %5363 = vmatpush1.bf16.msra.mxu0 %v5063
    %5364 = vmatprep.subr.bf16.mxu0 %v5076
    %5365 = vmatpush1.bf16.msra.mxu0 %v5075
    %5366 = vmatprep.subr.bf16.mxu0 %v5088
    %5367 = vmatpush1.bf16.msra.mxu0 %v5087
    %5368 = vmatprep.mubr.bf16.mxu0 %v5252
    %5369 = vmatmul.mubr.bf16.gmra.mrb[0].mxu0 %v5251
    %v5370 = vpop.f32.mrb[0].mxu0
    %v5371 = vadd.f32 0.0, %v5370
    %v5372 = vpop.f32.mrb[0].mxu0
    %v5373 = vadd.f32 0.0, %v5372
    %v5374 = vpop.f32.mrb[0].mxu0
    %v5375 = vpop.f32.mrb[0].mxu0
    %5376 = vdwg.mxu0
    %5377 = vmatprep.subr.bf16.mxu0 %v5100
    %5378 = vmatpush1.bf16.msra.mxu0 %v5099
    %5379 = vmatprep.subr.bf16.mxu0 %v5112
    %5380 = vmatpush1.bf16.msra.mxu0 %v5111
    %5381 = vmatprep.subr.bf16.mxu0 %v5124
    %5382 = vmatpush1.bf16.msra.mxu0 %v5123
    %5383 = vmatprep.subr.bf16.mxu0 %v5136
    %5384 = vmatpush1.bf16.msra.mxu0 %v5135
    %5385 = vmatprep.subr.bf16.mxu0 %v5148
    %5386 = vmatpush1.bf16.msra.mxu0 %v5147
    %5387 = vmatprep.subr.bf16.mxu0 %v5160
    %5388 = vmatpush1.bf16.msra.mxu0 %v5159
    %5389 = vmatprep.subr.bf16.mxu0 %v5172
    %5390 = vmatpush1.bf16.msra.mxu0 %v5171
    %5391 = vmatprep.subr.bf16.mxu0 %v5184
    %5392 = vmatpush1.bf16.msra.mxu0 %v5183
    %5393 = vmatprep.subr.bf16.mxu0 0
    %5394 = vmatpush1.bf16.msra.mxu0 0
    %5395 = vmatprep.subr.bf16.mxu0 0
    %5396 = vmatpush1.bf16.msra.mxu0 0
    %5397 = vmatprep.subr.bf16.mxu0 0
    %5398 = vmatpush1.bf16.msra.mxu0 0
    %5399 = vmatprep.subr.bf16.mxu0 0
    %5400 = vmatpush1.bf16.msra.mxu0 0
    %5401 = vmatprep.subr.bf16.mxu0 0
    %5402 = vmatpush1.bf16.msra.mxu0 0
    %5403 = vmatprep.subr.bf16.mxu0 0
    %5404 = vmatpush1.bf16.msra.mxu0 0
    %5405 = vmatprep.subr.bf16.mxu0 0
    %5406 = vmatpush1.bf16.msra.mxu0 0
    %5407 = vmatprep.subr.bf16.mxu0 0
    %5408 = vmatpush1.bf16.msra.mxu0 0
    %5409 = vmatprep.mubr.bf16.mxu0 0
    %5410 = vmatmul.mubr.bf16.gmra.mrb[0].mxu0 %v5253
    %v5411 = vpop.f32.mrb[0].mxu0
    %v5412 = vadd.f32 %v5371, %v5411
    %v5413 = vpop.f32.mrb[0].mxu0
    %v5414 = vadd.f32 %v5373, %v5413
    %v5415 = vpop.f32.mrb[0].mxu0
    %v5416 = vpop.f32.mrb[0].mxu0
    %5417 = vdwg.mxu0
    %5418 = vmatprep.subr.bf16.mxu0 %v4910
    %5419 = vmatpush1.bf16.msra.mxu0 %v4909
    %5420 = vmatprep.subr.bf16.mxu0 %v4922
    %5421 = vmatpush1.bf16.msra.mxu0 %v4921
    %5422 = vmatprep.subr.bf16.mxu0 %v4934
    %5423 = vmatpush1.bf16.msra.mxu0 %v4933
    %5424 = vmatprep.subr.bf16.mxu0 %v4946
    %5425 = vmatpush1.bf16.msra.mxu0 %v4945
    %5426 = vmatprep.subr.bf16.mxu0 %v4958
    %5427 = vmatpush1.bf16.msra.mxu0 %v4957
    %5428 = vmatprep.subr.bf16.mxu0 %v4970
    %5429 = vmatpush1.bf16.msra.mxu0 %v4969
    %5430 = vmatprep.subr.bf16.mxu0 %v4982
    %5431 = vmatpush1.bf16.msra.mxu0 %v4981
    %5432 = vmatprep.subr.bf16.mxu0 %v4994
    %5433 = vmatpush1.bf16.msra.mxu0 %v4993
    %5434 = vmatprep.subr.bf16.mxu0 %v5006
    %5435 = vmatpush1.bf16.msra.mxu0 %v5005
    %5436 = vmatprep.subr.bf16.mxu0 %v5018
    %5437 = vmatpush1.bf16.msra.mxu0 %v5017
    %5438 = vmatprep.subr.bf16.mxu0 %v5030
    %5439 = vmatpush1.bf16.msra.mxu0 %v5029
    %5440 = vmatprep.subr.bf16.mxu0 %v5042
    %5441 = vmatpush1.bf16.msra.mxu0 %v5041
    %5442 = vmatprep.subr.bf16.mxu0 %v5054
    %5443 = vmatpush1.bf16.msra.mxu0 %v5053
    %5444 = vmatprep.subr.bf16.mxu0 %v5066
    %5445 = vmatpush1.bf16.msra.mxu0 %v5065
    %5446 = vmatprep.subr.bf16.mxu0 %v5078
    %5447 = vmatpush1.bf16.msra.mxu0 %v5077
    %5448 = vmatprep.subr.bf16.mxu0 %v5090
    %5449 = vmatpush1.bf16.msra.mxu0 %v5089
    %5450 = vmatprep.mubr.bf16.mxu0 %v5252
    %5451 = vmatmul.mubr.bf16.gmra.mrb[0].mxu0 %v5251
    %v5452 = vpop.f32.mrb[0].mxu0
    %v5453 = vadd.f32 0.0, %v5452
    %v5454 = vpop.f32.mrb[0].mxu0
    %v5455 = vadd.f32 0.0, %v5454
    %v5456 = vpop.f32.mrb[0].mxu0
    %v5457 = vpop.f32.mrb[0].mxu0
    %5458 = vdwg.mxu0
    %5459 = vmatprep.subr.bf16.mxu0 %v5102
    %5460 = vmatpush1.bf16.msra.mxu0 %v5101
    %5461 = vmatprep.subr.bf16.mxu0 %v5114
    %5462 = vmatpush1.bf16.msra.mxu0 %v5113
    %5463 = vmatprep.subr.bf16.mxu0 %v5126
    %5464 = vmatpush1.bf16.msra.mxu0 %v5125
    %5465 = vmatprep.subr.bf16.mxu0 %v5138
    %5466 = vmatpush1.bf16.msra.mxu0 %v5137
    %5467 = vmatprep.subr.bf16.mxu0 %v5150
    %5468 = vmatpush1.bf16.msra.mxu0 %v5149
    %5469 = vmatprep.subr.bf16.mxu0 %v5162
    %5470 = vmatpush1.bf16.msra.mxu0 %v5161
    %5471 = vmatprep.subr.bf16.mxu0 %v5174
    %5472 = vmatpush1.bf16.msra.mxu0 %v5173
    %5473 = vmatprep.subr.bf16.mxu0 %v5186
    %5474 = vmatpush1.bf16.msra.mxu0 %v5185
    %5475 = vmatprep.subr.bf16.mxu0 0
    %5476 = vmatpush1.bf16.msra.mxu0 0
    %5477 = vmatprep.subr.bf16.mxu0 0
    %5478 = vmatpush1.bf16.msra.mxu0 0
    %5479 = vmatprep.subr.bf16.mxu0 0
    %5480 = vmatpush1.bf16.msra.mxu0 0
    %5481 = vmatprep.subr.bf16.mxu0 0
    %5482 = vmatpush1.bf16.msra.mxu0 0
    %5483 = vmatprep.subr.bf16.mxu0 0
    %5484 = vmatpush1.bf16.msra.mxu0 0
    %5485 = vmatprep.subr.bf16.mxu0 0
    %5486 = vmatpush1.bf16.msra.mxu0 0
    %5487 = vmatprep.subr.bf16.mxu0 0
    %5488 = vmatpush1.bf16.msra.mxu0 0
    %5489 = vmatprep.subr.bf16.mxu0 0
    %5490 = vmatpush1.bf16.msra.mxu0 0
    %5491 = vmatprep.mubr.bf16.mxu0 0
    %5492 = vmatmul.mubr.bf16.gmra.mrb[0].mxu0 %v5253
    %v5493 = vpop.f32.mrb[0].mxu0
    %v5494 = vadd.f32 %v5453, %v5493
    %v5495 = vpop.f32.mrb[0].mxu0
    %v5496 = vadd.f32 %v5455, %v5495
    %v5497 = vpop.f32.mrb[0].mxu0
    %v5498 = vpop.f32.mrb[0].mxu0
    %5499 = vdwg.mxu0
    %5500 = vmatprep.subr.bf16.mxu0 %v4912
    %5501 = vmatpush1.bf16.msra.mxu0 %v4911
    %5502 = vmatprep.subr.bf16.mxu0 %v4924
    %5503 = vmatpush1.bf16.msra.mxu0 %v4923
    %5504 = vmatprep.subr.bf16.mxu0 %v4936
    %5505 = vmatpush1.bf16.msra.mxu0 %v4935
    %5506 = vmatprep.subr.bf16.mxu0 %v4948
    %5507 = vmatpush1.bf16.msra.mxu0 %v4947
    %5508 = vmatprep.subr.bf16.mxu0 %v4960
    %5509 = vmatpush1.bf16.msra.mxu0 %v4959
    %5510 = vmatprep.subr.bf16.mxu0 %v4972
    %5511 = vmatpush1.bf16.msra.mxu0 %v4971
    %5512 = vmatprep.subr.bf16.mxu0 %v4984
    %5513 = vmatpush1.bf16.msra.mxu0 %v4983
    %5514 = vmatprep.subr.bf16.mxu0 %v4996
    %5515 = vmatpush1.bf16.msra.mxu0 %v4995
    %5516 = vmatprep.subr.bf16.mxu0 %v5008
    %5517 = vmatpush1.bf16.msra.mxu0 %v5007
    %5518 = vmatprep.subr.bf16.mxu0 %v5020
    %5519 = vmatpush1.bf16.msra.mxu0 %v5019
    %5520 = vmatprep.subr.bf16.mxu0 %v5032
    %5521 = vmatpush1.bf16.msra.mxu0 %v5031
    %5522 = vmatprep.subr.bf16.mxu0 %v5044
    %5523 = vmatpush1.bf16.msra.mxu0 %v5043
    %5524 = vmatprep.subr.bf16.mxu0 %v5056
    %5525 = vmatpush1.bf16.msra.mxu0 %v5055
    %5526 = vmatprep.subr.bf16.mxu0 %v5068
    %5527 = vmatpush1.bf16.msra.mxu0 %v5067
    %5528 = vmatprep.subr.bf16.mxu0 %v5080
    %5529 = vmatpush1.bf16.msra.mxu0 %v5079
    %5530 = vmatprep.subr.bf16.mxu0 %v5092
    %5531 = vmatpush1.bf16.msra.mxu0 %v5091
    %5532 = vmatprep.mubr.bf16.mxu0 %v5252
    %5533 = vmatmul.mubr.bf16.gmra.mrb[0].mxu0 %v5251
    %v5534 = vpop.f32.mrb[0].mxu0
    %v5535 = vadd.f32 0.0, %v5534
    %v5536 = vpop.f32.mrb[0].mxu0
    %v5537 = vadd.f32 0.0, %v5536
    %v5538 = vpop.f32.mrb[0].mxu0
    %v5539 = vpop.f32.mrb[0].mxu0
    %5540 = vdwg.mxu0
    %5541 = vmatprep.subr.bf16.mxu0 %v5104
    %5542 = vmatpush1.bf16.msra.mxu0 %v5103
    %5543 = vmatprep.subr.bf16.mxu0 %v5116
    %5544 = vmatpush1.bf16.msra.mxu0 %v5115
    %5545 = vmatprep.subr.bf16.mxu0 %v5128
    %5546 = vmatpush1.bf16.msra.mxu0 %v5127
    %5547 = vmatprep.subr.bf16.mxu0 %v5140
    %5548 = vmatpush1.bf16.msra.mxu0 %v5139
    %5549 = vmatprep.subr.bf16.mxu0 %v5152
    %5550 = vmatpush1.bf16.msra.mxu0 %v5151
    %5551 = vmatprep.subr.bf16.mxu0 %v5164
    %5552 = vmatpush1.bf16.msra.mxu0 %v5163
    %5553 = vmatprep.subr.bf16.mxu0 %v5176
    %5554 = vmatpush1.bf16.msra.mxu0 %v5175
    %5555 = vmatprep.subr.bf16.mxu0 %v5188
    %5556 = vmatpush1.bf16.msra.mxu0 %v5187
    %5557 = vmatprep.subr.bf16.mxu0 0
    %5558 = vmatpush1.bf16.msra.mxu0 0
    %5559 = vmatprep.subr.bf16.mxu0 0
    %5560 = vmatpush1.bf16.msra.mxu0 0
    %5561 = vmatprep.subr.bf16.mxu0 0
    %5562 = vmatpush1.bf16.msra.mxu0 0
    %5563 = vmatprep.subr.bf16.mxu0 0
    %5564 = vmatpush1.bf16.msra.mxu0 0
    %5565 = vmatprep.subr.bf16.mxu0 0
    %5566 = vmatpush1.bf16.msra.mxu0 0
    %5567 = vmatprep.subr.bf16.mxu0 0
    %5568 = vmatpush1.bf16.msra.mxu0 0
    %5569 = vmatprep.subr.bf16.mxu0 0
    %5570 = vmatpush1.bf16.msra.mxu0 0
    %5571 = vmatprep.subr.bf16.mxu0 0
    %5572 = vmatpush1.bf16.msra.mxu0 0
    %5573 = vmatprep.mubr.bf16.mxu0 0
    %5574 = vmatmul.mubr.bf16.gmra.mrb[0].mxu0 %v5253
    %v5575 = vpop.f32.mrb[0].mxu0
    %v5576 = vadd.f32 %v5535, %v5575
    %v5577 = vpop.f32.mrb[0].mxu0
    %v5578 = vadd.f32 %v5537, %v5577
    %v5579 = vpop.f32.mrb[0].mxu0
    %v5580 = vpop.f32.mrb[0].mxu0
    %5581 = vdwg.mxu0
    %5582 = vmatprep.subr.bf16.mxu0 %v4914
    %5583 = vmatpush1.bf16.msra.mxu0 %v4913
    %5584 = vmatprep.subr.bf16.mxu0 %v4926
    %5585 = vmatpush1.bf16.msra.mxu0 %v4925
    %5586 = vmatprep.subr.bf16.mxu0 %v4938
    %5587 = vmatpush1.bf16.msra.mxu0 %v4937
    %5588 = vmatprep.subr.bf16.mxu0 %v4950
    %5589 = vmatpush1.bf16.msra.mxu0 %v4949
    %5590 = vmatprep.subr.bf16.mxu0 %v4962
    %5591 = vmatpush1.bf16.msra.mxu0 %v4961
    %5592 = vmatprep.subr.bf16.mxu0 %v4974
    %5593 = vmatpush1.bf16.msra.mxu0 %v4973
    %5594 = vmatprep.subr.bf16.mxu0 %v4986
    %5595 = vmatpush1.bf16.msra.mxu0 %v4985
    %5596 = vmatprep.subr.bf16.mxu0 %v4998
    %5597 = vmatpush1.bf16.msra.mxu0 %v4997
    %5598 = vmatprep.subr.bf16.mxu0 %v5010
    %5599 = vmatpush1.bf16.msra.mxu0 %v5009
    %5600 = vmatprep.subr.bf16.mxu0 %v5022
    %5601 = vmatpush1.bf16.msra.mxu0 %v5021
    %5602 = vmatprep.subr.bf16.mxu0 %v5034
    %5603 = vmatpush1.bf16.msra.mxu0 %v5033
    %5604 = vmatprep.subr.bf16.mxu0 %v5046
    %5605 = vmatpush1.bf16.msra.mxu0 %v5045
    %5606 = vmatprep.subr.bf16.mxu0 %v5058
    %5607 = vmatpush1.bf16.msra.mxu0 %v5057
    %5608 = vmatprep.subr.bf16.mxu0 %v5070
    %5609 = vmatpush1.bf16.msra.mxu0 %v5069
    %5610 = vmatprep.subr.bf16.mxu0 %v5082
    %5611 = vmatpush1.bf16.msra.mxu0 %v5081
    %5612 = vmatprep.subr.bf16.mxu0 %v5094
    %5613 = vmatpush1.bf16.msra.mxu0 %v5093
    %5614 = vmatprep.mubr.bf16.mxu0 %v5252
    %5615 = vmatmul.mubr.bf16.gmra.mrb[0].mxu0 %v5251
    %v5616 = vpop.f32.mrb[0].mxu0
    %v5617 = vadd.f32 0.0, %v5616
    %v5618 = vpop.f32.mrb[0].mxu0
    %v5619 = vadd.f32 0.0, %v5618
    %v5620 = vpop.f32.mrb[0].mxu0
    %v5621 = vpop.f32.mrb[0].mxu0
    %5622 = vdwg.mxu0
    %5623 = vmatprep.subr.bf16.mxu0 %v5106
    %5624 = vmatpush1.bf16.msra.mxu0 %v5105
    %5625 = vmatprep.subr.bf16.mxu0 %v5118
    %5626 = vmatpush1.bf16.msra.mxu0 %v5117
    %5627 = vmatprep.subr.bf16.mxu0 %v5130
    %5628 = vmatpush1.bf16.msra.mxu0 %v5129
    %5629 = vmatprep.subr.bf16.mxu0 %v5142
    %5630 = vmatpush1.bf16.msra.mxu0 %v5141
    %5631 = vmatprep.subr.bf16.mxu0 %v5154
    %5632 = vmatpush1.bf16.msra.mxu0 %v5153
    %5633 = vmatprep.subr.bf16.mxu0 %v5166
    %5634 = vmatpush1.bf16.msra.mxu0 %v5165
    %5635 = vmatprep.subr.bf16.mxu0 %v5178
    %5636 = vmatpush1.bf16.msra.mxu0 %v5177
    %5637 = vmatprep.subr.bf16.mxu0 %v5190
    %5638 = vmatpush1.bf16.msra.mxu0 %v5189
    %5639 = vmatprep.subr.bf16.mxu0 0
    %5640 = vmatpush1.bf16.msra.mxu0 0
    %5641 = vmatprep.subr.bf16.mxu0 0
    %5642 = vmatpush1.bf16.msra.mxu0 0
    %5643 = vmatprep.subr.bf16.mxu0 0
    %5644 = vmatpush1.bf16.msra.mxu0 0
    %5645 = vmatprep.subr.bf16.mxu0 0
    %5646 = vmatpush1.bf16.msra.mxu0 0
    %5647 = vmatprep.subr.bf16.mxu0 0
    %5648 = vmatpush1.bf16.msra.mxu0 0
    %5649 = vmatprep.subr.bf16.mxu0 0
    %5650 = vmatpush1.bf16.msra.mxu0 0
    %5651 = vmatprep.subr.bf16.mxu0 0
    %5652 = vmatpush1.bf16.msra.mxu0 0
    %5653 = vmatprep.subr.bf16.mxu0 0
    %5654 = vmatpush1.bf16.msra.mxu0 0
    %5655 = vmatprep.mubr.bf16.mxu0 0
    %5656 = vmatmul.mubr.bf16.gmra.mrb[0].mxu0 %v5253
    %v5657 = vpop.f32.mrb[0].mxu0
    %v5658 = vadd.f32 %v5617, %v5657
    %v5659 = vpop.f32.mrb[0].mxu0
    %v5660 = vadd.f32 %v5619, %v5659
    %v5661 = vpop.f32.mrb[0].mxu0
    %v5662 = vpop.f32.mrb[0].mxu0
    %5663 = vdwg.mxu0
    %5664 = vmatprep.subr.bf16.mxu0 %v4916
    %5665 = vmatpush1.bf16.msra.mxu0 %v4915
    %5666 = vmatprep.subr.bf16.mxu0 %v4928
    %5667 = vmatpush1.bf16.msra.mxu0 %v4927
    %5668 = vmatprep.subr.bf16.mxu0 %v4940
    %5669 = vmatpush1.bf16.msra.mxu0 %v4939
    %5670 = vmatprep.subr.bf16.mxu0 %v4952
    %5671 = vmatpush1.bf16.msra.mxu0 %v4951
    %5672 = vmatprep.subr.bf16.mxu0 %v4964
    %5673 = vmatpush1.bf16.msra.mxu0 %v4963
    %5674 = vmatprep.subr.bf16.mxu0 %v4976
    %5675 = vmatpush1.bf16.msra.mxu0 %v4975
    %5676 = vmatprep.subr.bf16.mxu0 %v4988
    %5677 = vmatpush1.bf16.msra.mxu0 %v4987
    %5678 = vmatprep.subr.bf16.mxu0 %v5000
    %5679 = vmatpush1.bf16.msra.mxu0 %v4999
    %5680 = vmatprep.subr.bf16.mxu0 %v5012
    %5681 = vmatpush1.bf16.msra.mxu0 %v5011
    %5682 = vmatprep.subr.bf16.mxu0 %v5024
    %5683 = vmatpush1.bf16.msra.mxu0 %v5023
    %5684 = vmatprep.subr.bf16.mxu0 %v5036
    %5685 = vmatpush1.bf16.msra.mxu0 %v5035
    %5686 = vmatprep.subr.bf16.mxu0 %v5048
    %5687 = vmatpush1.bf16.msra.mxu0 %v5047
    %5688 = vmatprep.subr.bf16.mxu0 %v5060
    %5689 = vmatpush1.bf16.msra.mxu0 %v5059
    %5690 = vmatprep.subr.bf16.mxu0 %v5072
    %5691 = vmatpush1.bf16.msra.mxu0 %v5071
    %5692 = vmatprep.subr.bf16.mxu0 %v5084
    %5693 = vmatpush1.bf16.msra.mxu0 %v5083
    %5694 = vmatprep.subr.bf16.mxu0 %v5096
    %5695 = vmatpush1.bf16.msra.mxu0 %v5095
    %5696 = vmatprep.mubr.bf16.mxu0 %v5252
    %5697 = vmatmul.mubr.bf16.gmra.mrb[0].mxu0 %v5251
    %v5698 = vpop.f32.mrb[0].mxu0
    %v5699 = vadd.f32 0.0, %v5698
    %v5700 = vpop.f32.mrb[0].mxu0
    %v5701 = vadd.f32 0.0, %v5700
    %v5702 = vpop.f32.mrb[0].mxu0
    %v5703 = vpop.f32.mrb[0].mxu0
    %5704 = vdwg.mxu0
    %5705 = vmatprep.subr.bf16.mxu0 %v5108
    %5706 = vmatpush1.bf16.msra.mxu0 %v5107
    %5707 = vmatprep.subr.bf16.mxu0 %v5120
    %5708 = vmatpush1.bf16.msra.mxu0 %v5119
    %5709 = vmatprep.subr.bf16.mxu0 %v5132
    %5710 = vmatpush1.bf16.msra.mxu0 %v5131
    %5711 = vmatprep.subr.bf16.mxu0 %v5144
    %5712 = vmatpush1.bf16.msra.mxu0 %v5143
    %5713 = vmatprep.subr.bf16.mxu0 %v5156
    %5714 = vmatpush1.bf16.msra.mxu0 %v5155
    %5715 = vmatprep.subr.bf16.mxu0 %v5168
    %5716 = vmatpush1.bf16.msra.mxu0 %v5167
    %5717 = vmatprep.subr.bf16.mxu0 %v5180
    %5718 = vmatpush1.bf16.msra.mxu0 %v5179
    %5719 = vmatprep.subr.bf16.mxu0 %v5192
    %5720 = vmatpush1.bf16.msra.mxu0 %v5191
    %5721 = vmatprep.subr.bf16.mxu0 0
    %5722 = vmatpush1.bf16.msra.mxu0 0
    %5723 = vmatprep.subr.bf16.mxu0 0
    %5724 = vmatpush1.bf16.msra.mxu0 0
    %5725 = vmatprep.subr.bf16.mxu0 0
    %5726 = vmatpush1.bf16.msra.mxu0 0
    %5727 = vmatprep.subr.bf16.mxu0 0
    %5728 = vmatpush1.bf16.msra.mxu0 0
    %5729 = vmatprep.subr.bf16.mxu0 0
    %5730 = vmatpush1.bf16.msra.mxu0 0
    %5731 = vmatprep.subr.bf16.mxu0 0
    %5732 = vmatpush1.bf16.msra.mxu0 0
    %5733 = vmatprep.subr.bf16.mxu0 0
    %5734 = vmatpush1.bf16.msra.mxu0 0
    %5735 = vmatprep.subr.bf16.mxu0 0
    %5736 = vmatpush1.bf16.msra.mxu0 0
    %5737 = vmatprep.mubr.bf16.mxu0 0
    %5738 = vmatmul.mubr.bf16.gmra.mrb[0].mxu0 %v5253
    %v5739 = vpop.f32.mrb[0].mxu0
    %v5740 = vadd.f32 %v5699, %v5739
    %v5741 = vpop.f32.mrb[0].mxu0
    %v5742 = vadd.f32 %v5701, %v5741
    %v5743 = vpop.f32.mrb[0].mxu0
    %v5744 = vpop.f32.mrb[0].mxu0
    %5745 = vdwg.mxu0
    %v5746 = vadd.f32 %v5229, %v5330
    %v5747 = vadd.f32 %v5230, %v5332
    %v5748 = vadd.f32 %v5231, %v5412
    %v5749 = vadd.f32 %v5232, %v5414
    %v5750 = vadd.f32 %v5233, %v5494
    %v5751 = vadd.f32 %v5234, %v5496
    %v5752 = vadd.f32 %v5235, %v5576
    %v5753 = vadd.f32 %v5236, %v5578
    %v5754 = vadd.f32 %v5237, %v5658
    %v5755 = vadd.f32 %v5238, %v5660
    %v5756 = vadd.f32 %v5239, %v5740
    %v5757 = vadd.f32 %v5240, %v5742
    %v5758 = vxor.u32 %v5746, 2147483648
    %v5759 = vxor.u32 %v5747, 2147483648
    %v5760 = vxor.u32 %v5748, 2147483648
    %v5761 = vmul.f32 %v5758, 1.442695
    %v5762 = vpow.pop %v5761
    %v5763 = vmul.f32 %v5759, 1.442695
    %v5764 = vpow.pop %v5763
    %v5765 = vmul.f32 %v5760, 1.442695
    %v5766 = vpow.pop %v5765
    %v5767 = vadd.f32 %v5762, 1.0
    %v5768 = vadd.f32 %v5764, 1.0
    %v5769 = vadd.f32 %v5766, 1.0
    %v5770 = vrcp.pop %v5767
    %v5771 = vmul.f32 1.0, %v5770
    %v5772 = vrcp.pop %v5768
    %v5773 = vmul.f32 1.0, %v5772
    %v5774 = vrcp.pop %v5769
    %v5775 = vmul.f32 1.0, %v5774
    %v5776 = vxor.u32 %v5749, 2147483648
    %v5777 = vxor.u32 %v5750, 2147483648
    %v5778 = vxor.u32 %v5751, 2147483648
    %v5779 = vmul.f32 %v5776, 1.442695
    %v5780 = vpow.pop %v5779
    %v5781 = vmul.f32 %v5777, 1.442695
    %v5782 = vpow.pop %v5781
    %v5783 = vmul.f32 %v5778, 1.442695
    %v5784 = vpow.pop %v5783
    %v5785 = vadd.f32 %v5780, 1.0
    %v5786 = vadd.f32 %v5782, 1.0
    %v5787 = vadd.f32 %v5784, 1.0
    %v5788 = vrcp.pop %v5785
    %v5789 = vmul.f32 1.0, %v5788
    %v5790 = vrcp.pop %v5786
    %v5791 = vmul.f32 1.0, %v5790
    %v5792 = vrcp.pop %v5787
    %v5793 = vmul.f32 1.0, %v5792
    %v5794 = vtanh.pop %v5752
    %v5795 = vtanh.pop %v5753
    %v5796 = vtanh.pop %v5754
    %v5797 = vxor.u32 %v5755, 2147483648
    %v5798 = vxor.u32 %v5756, 2147483648
    %v5799 = vxor.u32 %v5757, 2147483648
    %v5800 = vmul.f32 %v5797, 1.442695
    %v5801 = vpow.pop %v5800
    %v5802 = vmul.f32 %v5798, 1.442695
    %v5803 = vpow.pop %v5802
    %v5804 = vmul.f32 %v5799, 1.442695
    %v5805 = vpow.pop %v5804
    %v5806 = vadd.f32 %v5801, 1.0
    %v5807 = vadd.f32 %v5803, 1.0
    %v5808 = vadd.f32 %v5805, 1.0
    %v5809 = vrcp.pop %v5806
    %v5810 = vmul.f32 1.0, %v5809
    %v5811 = vrcp.pop %v5807
    %v5812 = vmul.f32 1.0, %v5811
    %v5813 = vrcp.pop %v5808
    %v5814 = vmul.f32 1.0, %v5813
    %v5819 = vcombine.low %v4897, %v4899
    %v5820 = vcombine.high %v4897, %v4899
    %v5821 = vcombine.low %v4898, %v4900
    %v5825 = vmul.f32 %v5789, %v5819
    %v5826 = vmul.f32 %v5791, %v5820
    %v5827 = vmul.f32 %v5793, %v5821
    %v5828 = vmul.f32 %v5771, %v5794
    %v5829 = vmul.f32 %v5773, %v5795
    %v5830 = vmul.f32 %v5775, %v5796
    %v5831 = vadd.f32 %v5825, %v5828
    %v5832 = vadd.f32 %v5826, %v5829
    %v5833 = vadd.f32 %v5827, %v5830
    %v5834 = vtanh.pop %v5831
    %v5835 = vtanh.pop %v5832
    %v5836 = vtanh.pop %v5833
    %v5837 = vmul.f32 %v5810, %v5834
    %v5838 = vmul.f32 %v5812, %v5835
    %v5839 = vmul.f32 %v5814, %v5836
    %v5840 = vcombine.high %v4661, %v4661
    %v5841 = vcombine.high %v4663, %v4663
    %v5842 = vcombine.high %v4665, %v4665
    %v5843 = vcombine.high %v4667, %v4667
    %v5844 = vcombine.high %v4669, %v4669
    %v5845 = vcombine.high %v4671, %v4671
    %v5852 = vcombine.low %v4661, %v4661
    %v5853 = vcombine.low %v4663, %v4663
    %v5854 = vcombine.low %v4665, %v4665
    %v5855 = vcombine.low %v4667, %v4667
    %v5856 = vcombine.low %v4669, %v4669
    %v5857 = vcombine.low %v4671, %v4671
    %v5864 = vsel %vm4880, %v4661, %v5852
    %v5865 = vsel %vm4880, %v5840, %v4661
    %v5866 = vsel %vm4880, %v4663, %v5853
    %v5867 = vsel %vm4880, %v5841, %v4663
    %v5868 = vsel %vm4880, %v4665, %v5854
    %v5869 = vsel %vm4880, %v5842, %v4665
    %v5870 = vsel %vm4880, %v4667, %v5855
    %v5871 = vsel %vm4880, %v5843, %v4667
    %v5872 = vsel %vm4880, %v4669, %v5856
    %v5873 = vsel %vm4880, %v5844, %v4669
    %v5874 = vsel %vm4880, %v4671, %v5857
    %v5875 = vsel %vm4880, %v5845, %v4671
    %v5876 = vadd.f32 %v5864, %v4881
    %v5877 = vadd.f32 %v5865, %v4882
    %v5878 = vadd.f32 %v5866, %v4883
    %v5879 = vadd.f32 %v5867, %v4884
    %v5880 = vadd.f32 %v5868, %v4885
    %v5881 = vadd.f32 %v5869, %v4886
    %v5882 = vadd.f32 %v5870, %v4887
    %v5883 = vadd.f32 %v5871, %v4888
    %v5884 = vadd.f32 %v5872, %v4889
    %v5885 = vadd.f32 %v5873, %v4890
    %v5886 = vadd.f32 %v5874, %v4891
    %v5887 = vadd.f32 %v5875, %v4892
    %v5888 = vpack.c.bf16 %v5837, %v5837
    %v5889 = vpack.c.bf16 %v5838, %v5838
    %v5890 = vpack.c.bf16 %v5839, %v5839
    %5891 = vmatprep.subr.bf16.mxu0 %v4906
    %5892 = vmatpush1.bf16.msra.mxu0 %v4905
    %5893 = vmatprep.subr.bf16.mxu0 %v4918
    %5894 = vmatpush1.bf16.msra.mxu0 %v4917
    %5895 = vmatprep.subr.bf16.mxu0 %v4930
    %5896 = vmatpush1.bf16.msra.mxu0 %v4929
    %5897 = vmatprep.subr.bf16.mxu0 %v4942
    %5898 = vmatpush1.bf16.msra.mxu0 %v4941
    %5899 = vmatprep.subr.bf16.mxu0 %v4954
    %5900 = vmatpush1.bf16.msra.mxu0 %v4953
    %5901 = vmatprep.subr.bf16.mxu0 %v4966
    %5902 = vmatpush1.bf16.msra.mxu0 %v4965
    %5903 = vmatprep.subr.bf16.mxu0 %v4978
    %5904 = vmatpush1.bf16.msra.mxu0 %v4977
    %5905 = vmatprep.subr.bf16.mxu0 %v4990
    %5906 = vmatpush1.bf16.msra.mxu0 %v4989
    %5907 = vmatprep.subr.bf16.mxu0 %v5002
    %5908 = vmatpush1.bf16.msra.mxu0 %v5001
    %5909 = vmatprep.subr.bf16.mxu0 %v5014
    %5910 = vmatpush1.bf16.msra.mxu0 %v5013
    %5911 = vmatprep.subr.bf16.mxu0 %v5026
    %5912 = vmatpush1.bf16.msra.mxu0 %v5025
    %5913 = vmatprep.subr.bf16.mxu0 %v5038
    %5914 = vmatpush1.bf16.msra.mxu0 %v5037
    %5915 = vmatprep.subr.bf16.mxu0 %v5050
    %5916 = vmatpush1.bf16.msra.mxu0 %v5049
    %5917 = vmatprep.subr.bf16.mxu0 %v5062
    %5918 = vmatpush1.bf16.msra.mxu0 %v5061
    %5919 = vmatprep.subr.bf16.mxu0 %v5074
    %5920 = vmatpush1.bf16.msra.mxu0 %v5073
    %5921 = vmatprep.subr.bf16.mxu0 %v5086
    %5922 = vmatpush1.bf16.msra.mxu0 %v5085
    %5923 = vmatprep.mubr.bf16.mxu0 %v5889
    %5924 = vmatmul.mubr.bf16.gmra.mrb[0].mxu0 %v5888
    %v5925 = vpop.f32.mrb[0].mxu0
    %v5926 = vadd.f32 0.0, %v5925
    %v5927 = vpop.f32.mrb[0].mxu0
    %v5928 = vadd.f32 0.0, %v5927
    %v5929 = vpop.f32.mrb[0].mxu0
    %v5930 = vpop.f32.mrb[0].mxu0
    %5931 = vdwg.mxu0
    %5932 = vmatprep.subr.bf16.mxu0 %v5098
    %5933 = vmatpush1.bf16.msra.mxu0 %v5097
    %5934 = vmatprep.subr.bf16.mxu0 %v5110
    %5935 = vmatpush1.bf16.msra.mxu0 %v5109
    %5936 = vmatprep.subr.bf16.mxu0 %v5122
    %5937 = vmatpush1.bf16.msra.mxu0 %v5121
    %5938 = vmatprep.subr.bf16.mxu0 %v5134
    %5939 = vmatpush1.bf16.msra.mxu0 %v5133
    %5940 = vmatprep.subr.bf16.mxu0 %v5146
    %5941 = vmatpush1.bf16.msra.mxu0 %v5145
    %5942 = vmatprep.subr.bf16.mxu0 %v5158
    %5943 = vmatpush1.bf16.msra.mxu0 %v5157
    %5944 = vmatprep.subr.bf16.mxu0 %v5170
    %5945 = vmatpush1.bf16.msra.mxu0 %v5169
    %5946 = vmatprep.subr.bf16.mxu0 %v5182
    %5947 = vmatpush1.bf16.msra.mxu0 %v5181
    %5948 = vmatprep.subr.bf16.mxu0 0
    %5949 = vmatpush1.bf16.msra.mxu0 0
    %5950 = vmatprep.subr.bf16.mxu0 0
    %5951 = vmatpush1.bf16.msra.mxu0 0
    %5952 = vmatprep.subr.bf16.mxu0 0
    %5953 = vmatpush1.bf16.msra.mxu0 0
    %5954 = vmatprep.subr.bf16.mxu0 0
    %5955 = vmatpush1.bf16.msra.mxu0 0
    %5956 = vmatprep.subr.bf16.mxu0 0
    %5957 = vmatpush1.bf16.msra.mxu0 0
    %5958 = vmatprep.subr.bf16.mxu0 0
    %5959 = vmatpush1.bf16.msra.mxu0 0
    %5960 = vmatprep.subr.bf16.mxu0 0
    %5961 = vmatpush1.bf16.msra.mxu0 0
    %5962 = vmatprep.subr.bf16.mxu0 0
    %5963 = vmatpush1.bf16.msra.mxu0 0
    %5964 = vmatprep.mubr.bf16.mxu0 0
    %5965 = vmatmul.mubr.bf16.gmra.mrb[0].mxu0 %v5890
    %v5966 = vpop.f32.mrb[0].mxu0
    %v5967 = vadd.f32 %v5926, %v5966
    %v5968 = vpop.f32.mrb[0].mxu0
    %v5969 = vadd.f32 %v5928, %v5968
    %v5970 = vpop.f32.mrb[0].mxu0
    %v5971 = vpop.f32.mrb[0].mxu0
    %5972 = vdwg.mxu0
    %5973 = vmatprep.subr.bf16.mxu0 %v4908
    %5974 = vmatpush1.bf16.msra.mxu0 %v4907
    %5975 = vmatprep.subr.bf16.mxu0 %v4920
    %5976 = vmatpush1.bf16.msra.mxu0 %v4919
    %5977 = vmatprep.subr.bf16.mxu0 %v4932
    %5978 = vmatpush1.bf16.msra.mxu0 %v4931
    %5979 = vmatprep.subr.bf16.mxu0 %v4944
    %5980 = vmatpush1.bf16.msra.mxu0 %v4943
    %5981 = vmatprep.subr.bf16.mxu0 %v4956
    %5982 = vmatpush1.bf16.msra.mxu0 %v4955
    %5983 = vmatprep.subr.bf16.mxu0 %v4968
    %5984 = vmatpush1.bf16.msra.mxu0 %v4967
    %5985 = vmatprep.subr.bf16.mxu0 %v4980
    %5986 = vmatpush1.bf16.msra.mxu0 %v4979
    %5987 = vmatprep.subr.bf16.mxu0 %v4992
    %5988 = vmatpush1.bf16.msra.mxu0 %v4991
    %5989 = vmatprep.subr.bf16.mxu0 %v5004
    %5990 = vmatpush1.bf16.msra.mxu0 %v5003
    %5991 = vmatprep.subr.bf16.mxu0 %v5016
    %5992 = vmatpush1.bf16.msra.mxu0 %v5015
    %5993 = vmatprep.subr.bf16.mxu0 %v5028
    %5994 = vmatpush1.bf16.msra.mxu0 %v5027
    %5995 = vmatprep.subr.bf16.mxu0 %v5040
    %5996 = vmatpush1.bf16.msra.mxu0 %v5039
    %5997 = vmatprep.subr.bf16.mxu0 %v5052
    %5998 = vmatpush1.bf16.msra.mxu0 %v5051
    %5999 = vmatprep.subr.bf16.mxu0 %v5064
    %6000 = vmatpush1.bf16.msra.mxu0 %v5063
    %6001 = vmatprep.subr.bf16.mxu0 %v5076
    %6002 = vmatpush1.bf16.msra.mxu0 %v5075
    %6003 = vmatprep.subr.bf16.mxu0 %v5088
    %6004 = vmatpush1.bf16.msra.mxu0 %v5087
    %6005 = vmatprep.mubr.bf16.mxu0 %v5889
    %6006 = vmatmul.mubr.bf16.gmra.mrb[0].mxu0 %v5888
    %v6007 = vpop.f32.mrb[0].mxu0
    %v6008 = vadd.f32 0.0, %v6007
    %v6009 = vpop.f32.mrb[0].mxu0
    %v6010 = vadd.f32 0.0, %v6009
    %v6011 = vpop.f32.mrb[0].mxu0
    %v6012 = vpop.f32.mrb[0].mxu0
    %6013 = vdwg.mxu0
    %6014 = vmatprep.subr.bf16.mxu0 %v5100
    %6015 = vmatpush1.bf16.msra.mxu0 %v5099
    %6016 = vmatprep.subr.bf16.mxu0 %v5112
    %6017 = vmatpush1.bf16.msra.mxu0 %v5111
    %6018 = vmatprep.subr.bf16.mxu0 %v5124
    %6019 = vmatpush1.bf16.msra.mxu0 %v5123
    %6020 = vmatprep.subr.bf16.mxu0 %v5136
    %6021 = vmatpush1.bf16.msra.mxu0 %v5135
    %6022 = vmatprep.subr.bf16.mxu0 %v5148
    %6023 = vmatpush1.bf16.msra.mxu0 %v5147
    %6024 = vmatprep.subr.bf16.mxu0 %v5160
    %6025 = vmatpush1.bf16.msra.mxu0 %v5159
    %6026 = vmatprep.subr.bf16.mxu0 %v5172
    %6027 = vmatpush1.bf16.msra.mxu0 %v5171
    %6028 = vmatprep.subr.bf16.mxu0 %v5184
    %6029 = vmatpush1.bf16.msra.mxu0 %v5183
    %6030 = vmatprep.subr.bf16.mxu0 0
    %6031 = vmatpush1.bf16.msra.mxu0 0
    %6032 = vmatprep.subr.bf16.mxu0 0
    %6033 = vmatpush1.bf16.msra.mxu0 0
    %6034 = vmatprep.subr.bf16.mxu0 0
    %6035 = vmatpush1.bf16.msra.mxu0 0
    %6036 = vmatprep.subr.bf16.mxu0 0
    %6037 = vmatpush1.bf16.msra.mxu0 0
    %6038 = vmatprep.subr.bf16.mxu0 0
    %6039 = vmatpush1.bf16.msra.mxu0 0
    %6040 = vmatprep.subr.bf16.mxu0 0
    %6041 = vmatpush1.bf16.msra.mxu0 0
    %6042 = vmatprep.subr.bf16.mxu0 0
    %6043 = vmatpush1.bf16.msra.mxu0 0
    %6044 = vmatprep.subr.bf16.mxu0 0
    %6045 = vmatpush1.bf16.msra.mxu0 0
    %6046 = vmatprep.mubr.bf16.mxu0 0
    %6047 = vmatmul.mubr.bf16.gmra.mrb[0].mxu0 %v5890
    %v6048 = vpop.f32.mrb[0].mxu0
    %v6049 = vadd.f32 %v6008, %v6048
    %v6050 = vpop.f32.mrb[0].mxu0
    %v6051 = vadd.f32 %v6010, %v6050
    %v6052 = vpop.f32.mrb[0].mxu0
    %v6053 = vpop.f32.mrb[0].mxu0
    %6054 = vdwg.mxu0
    %6055 = vmatprep.subr.bf16.mxu0 %v4910
    %6056 = vmatpush1.bf16.msra.mxu0 %v4909
    %6057 = vmatprep.subr.bf16.mxu0 %v4922
    %6058 = vmatpush1.bf16.msra.mxu0 %v4921
    %6059 = vmatprep.subr.bf16.mxu0 %v4934
    %6060 = vmatpush1.bf16.msra.mxu0 %v4933
    %6061 = vmatprep.subr.bf16.mxu0 %v4946
    %6062 = vmatpush1.bf16.msra.mxu0 %v4945
    %6063 = vmatprep.subr.bf16.mxu0 %v4958
    %6064 = vmatpush1.bf16.msra.mxu0 %v4957
    %6065 = vmatprep.subr.bf16.mxu0 %v4970
    %6066 = vmatpush1.bf16.msra.mxu0 %v4969
    %6067 = vmatprep.subr.bf16.mxu0 %v4982
    %6068 = vmatpush1.bf16.msra.mxu0 %v4981
    %6069 = vmatprep.subr.bf16.mxu0 %v4994
    %6070 = vmatpush1.bf16.msra.mxu0 %v4993
    %6071 = vmatprep.subr.bf16.mxu0 %v5006
    %6072 = vmatpush1.bf16.msra.mxu0 %v5005
    %6073 = vmatprep.subr.bf16.mxu0 %v5018
    %6074 = vmatpush1.bf16.msra.mxu0 %v5017
    %6075 = vmatprep.subr.bf16.mxu0 %v5030
    %6076 = vmatpush1.bf16.msra.mxu0 %v5029
    %6077 = vmatprep.subr.bf16.mxu0 %v5042
    %6078 = vmatpush1.bf16.msra.mxu0 %v5041
    %6079 = vmatprep.subr.bf16.mxu0 %v5054
    %6080 = vmatpush1.bf16.msra.mxu0 %v5053
    %6081 = vmatprep.subr.bf16.mxu0 %v5066
    %6082 = vmatpush1.bf16.msra.mxu0 %v5065
    %6083 = vmatprep.subr.bf16.mxu0 %v5078
    %6084 = vmatpush1.bf16.msra.mxu0 %v5077
    %6085 = vmatprep.subr.bf16.mxu0 %v5090
    %6086 = vmatpush1.bf16.msra.mxu0 %v5089
    %6087 = vmatprep.mubr.bf16.mxu0 %v5889
    %6088 = vmatmul.mubr.bf16.gmra.mrb[0].mxu0 %v5888
    %v6089 = vpop.f32.mrb[0].mxu0
    %v6090 = vadd.f32 0.0, %v6089
    %v6091 = vpop.f32.mrb[0].mxu0
    %v6092 = vadd.f32 0.0, %v6091
    %v6093 = vpop.f32.mrb[0].mxu0
    %v6094 = vpop.f32.mrb[0].mxu0
    %6095 = vdwg.mxu0
    %6096 = vmatprep.subr.bf16.mxu0 %v5102
    %6097 = vmatpush1.bf16.msra.mxu0 %v5101
    %6098 = vmatprep.subr.bf16.mxu0 %v5114
    %6099 = vmatpush1.bf16.msra.mxu0 %v5113
    %6100 = vmatprep.subr.bf16.mxu0 %v5126
    %6101 = vmatpush1.bf16.msra.mxu0 %v5125
    %6102 = vmatprep.subr.bf16.mxu0 %v5138
    %6103 = vmatpush1.bf16.msra.mxu0 %v5137
    %6104 = vmatprep.subr.bf16.mxu0 %v5150
    %6105 = vmatpush1.bf16.msra.mxu0 %v5149
    %6106 = vmatprep.subr.bf16.mxu0 %v5162
    %6107 = vmatpush1.bf16.msra.mxu0 %v5161
    %6108 = vmatprep.subr.bf16.mxu0 %v5174
    %6109 = vmatpush1.bf16.msra.mxu0 %v5173
    %6110 = vmatprep.subr.bf16.mxu0 %v5186
    %6111 = vmatpush1.bf16.msra.mxu0 %v5185
    %6112 = vmatprep.subr.bf16.mxu0 0
    %6113 = vmatpush1.bf16.msra.mxu0 0
    %6114 = vmatprep.subr.bf16.mxu0 0
    %6115 = vmatpush1.bf16.msra.mxu0 0
    %6116 = vmatprep.subr.bf16.mxu0 0
    %6117 = vmatpush1.bf16.msra.mxu0 0
    %6118 = vmatprep.subr.bf16.mxu0 0
    %6119 = vmatpush1.bf16.msra.mxu0 0
    %6120 = vmatprep.subr.bf16.mxu0 0
    %6121 = vmatpush1.bf16.msra.mxu0 0
    %6122 = vmatprep.subr.bf16.mxu0 0
    %6123 = vmatpush1.bf16.msra.mxu0 0
    %6124 = vmatprep.subr.bf16.mxu0 0
    %6125 = vmatpush1.bf16.msra.mxu0 0
    %6126 = vmatprep.subr.bf16.mxu0 0
    %6127 = vmatpush1.bf16.msra.mxu0 0
    %6128 = vmatprep.mubr.bf16.mxu0 0
    %6129 = vmatmul.mubr.bf16.gmra.mrb[0].mxu0 %v5890
    %v6130 = vpop.f32.mrb[0].mxu0
    %v6131 = vadd.f32 %v6090, %v6130
    %v6132 = vpop.f32.mrb[0].mxu0
    %v6133 = vadd.f32 %v6092, %v6132
    %v6134 = vpop.f32.mrb[0].mxu0
    %v6135 = vpop.f32.mrb[0].mxu0
    %6136 = vdwg.mxu0
    %6137 = vmatprep.subr.bf16.mxu0 %v4912
    %6138 = vmatpush1.bf16.msra.mxu0 %v4911
    %6139 = vmatprep.subr.bf16.mxu0 %v4924
    %6140 = vmatpush1.bf16.msra.mxu0 %v4923
    %6141 = vmatprep.subr.bf16.mxu0 %v4936
    %6142 = vmatpush1.bf16.msra.mxu0 %v4935
    %6143 = vmatprep.subr.bf16.mxu0 %v4948
    %6144 = vmatpush1.bf16.msra.mxu0 %v4947
    %6145 = vmatprep.subr.bf16.mxu0 %v4960
    %6146 = vmatpush1.bf16.msra.mxu0 %v4959
    %6147 = vmatprep.subr.bf16.mxu0 %v4972
    %6148 = vmatpush1.bf16.msra.mxu0 %v4971
    %6149 = vmatprep.subr.bf16.mxu0 %v4984
    %6150 = vmatpush1.bf16.msra.mxu0 %v4983
    %6151 = vmatprep.subr.bf16.mxu0 %v4996
    %6152 = vmatpush1.bf16.msra.mxu0 %v4995
    %6153 = vmatprep.subr.bf16.mxu0 %v5008
    %6154 = vmatpush1.bf16.msra.mxu0 %v5007
    %6155 = vmatprep.subr.bf16.mxu0 %v5020
    %6156 = vmatpush1.bf16.msra.mxu0 %v5019
    %6157 = vmatprep.subr.bf16.mxu0 %v5032
    %6158 = vmatpush1.bf16.msra.mxu0 %v5031
    %6159 = vmatprep.subr.bf16.mxu0 %v5044
    %6160 = vmatpush1.bf16.msra.mxu0 %v5043
    %6161 = vmatprep.subr.bf16.mxu0 %v5056
    %6162 = vmatpush1.bf16.msra.mxu0 %v5055
    %6163 = vmatprep.subr.bf16.mxu0 %v5068
    %6164 = vmatpush1.bf16.msra.mxu0 %v5067
    %6165 = vmatprep.subr.bf16.mxu0 %v5080
    %6166 = vmatpush1.bf16.msra.mxu0 %v5079
    %6167 = vmatprep.subr.bf16.mxu0 %v5092
    %6168 = vmatpush1.bf16.msra.mxu0 %v5091
    %6169 = vmatprep.mubr.bf16.mxu0 %v5889
    %6170 = vmatmul.mubr.bf16.gmra.mrb[0].mxu0 %v5888
    %v6171 = vpop.f32.mrb[0].mxu0
    %v6172 = vadd.f32 0.0, %v6171
    %v6173 = vpop.f32.mrb[0].mxu0
    %v6174 = vadd.f32 0.0, %v6173
    %v6175 = vpop.f32.mrb[0].mxu0
    %v6176 = vpop.f32.mrb[0].mxu0
    %6177 = vdwg.mxu0
    %6178 = vmatprep.subr.bf16.mxu0 %v5104
    %6179 = vmatpush1.bf16.msra.mxu0 %v5103
    %6180 = vmatprep.subr.bf16.mxu0 %v5116
    %6181 = vmatpush1.bf16.msra.mxu0 %v5115
    %6182 = vmatprep.subr.bf16.mxu0 %v5128
    %6183 = vmatpush1.bf16.msra.mxu0 %v5127
    %6184 = vmatprep.subr.bf16.mxu0 %v5140
    %6185 = vmatpush1.bf16.msra.mxu0 %v5139
    %6186 = vmatprep.subr.bf16.mxu0 %v5152
    %6187 = vmatpush1.bf16.msra.mxu0 %v5151
    %6188 = vmatprep.subr.bf16.mxu0 %v5164
    %6189 = vmatpush1.bf16.msra.mxu0 %v5163
    %6190 = vmatprep.subr.bf16.mxu0 %v5176
    %6191 = vmatpush1.bf16.msra.mxu0 %v5175
    %6192 = vmatprep.subr.bf16.mxu0 %v5188
    %6193 = vmatpush1.bf16.msra.mxu0 %v5187
    %6194 = vmatprep.subr.bf16.mxu0 0
    %6195 = vmatpush1.bf16.msra.mxu0 0
    %6196 = vmatprep.subr.bf16.mxu0 0
    %6197 = vmatpush1.bf16.msra.mxu0 0
    %6198 = vmatprep.subr.bf16.mxu0 0
    %6199 = vmatpush1.bf16.msra.mxu0 0
    %6200 = vmatprep.subr.bf16.mxu0 0
    %6201 = vmatpush1.bf16.msra.mxu0 0
    %6202 = vmatprep.subr.bf16.mxu0 0
    %6203 = vmatpush1.bf16.msra.mxu0 0
    %6204 = vmatprep.subr.bf16.mxu0 0
    %6205 = vmatpush1.bf16.msra.mxu0 0
    %6206 = vmatprep.subr.bf16.mxu0 0
    %6207 = vmatpush1.bf16.msra.mxu0 0
    %6208 = vmatprep.subr.bf16.mxu0 0
    %6209 = vmatpush1.bf16.msra.mxu0 0
    %6210 = vmatprep.mubr.bf16.mxu0 0
    %6211 = vmatmul.mubr.bf16.gmra.mrb[0].mxu0 %v5890
    %v6212 = vpop.f32.mrb[0].mxu0
    %v6213 = vadd.f32 %v6172, %v6212
    %v6214 = vpop.f32.mrb[0].mxu0
    %v6215 = vadd.f32 %v6174, %v6214
    %v6216 = vpop.f32.mrb[0].mxu0
    %v6217 = vpop.f32.mrb[0].mxu0
    %6218 = vdwg.mxu0
    %6219 = vmatprep.subr.bf16.mxu0 %v4914
    %6220 = vmatpush1.bf16.msra.mxu0 %v4913
    %6221 = vmatprep.subr.bf16.mxu0 %v4926
    %6222 = vmatpush1.bf16.msra.mxu0 %v4925
    %6223 = vmatprep.subr.bf16.mxu0 %v4938
    %6224 = vmatpush1.bf16.msra.mxu0 %v4937
    %6225 = vmatprep.subr.bf16.mxu0 %v4950
    %6226 = vmatpush1.bf16.msra.mxu0 %v4949
    %6227 = vmatprep.subr.bf16.mxu0 %v4962
    %6228 = vmatpush1.bf16.msra.mxu0 %v4961
    %6229 = vmatprep.subr.bf16.mxu0 %v4974
    %6230 = vmatpush1.bf16.msra.mxu0 %v4973
    %6231 = vmatprep.subr.bf16.mxu0 %v4986
    %6232 = vmatpush1.bf16.msra.mxu0 %v4985
    %6233 = vmatprep.subr.bf16.mxu0 %v4998
    %6234 = vmatpush1.bf16.msra.mxu0 %v4997
    %6235 = vmatprep.subr.bf16.mxu0 %v5010
    %6236 = vmatpush1.bf16.msra.mxu0 %v5009
    %6237 = vmatprep.subr.bf16.mxu0 %v5022
    %6238 = vmatpush1.bf16.msra.mxu0 %v5021
    %6239 = vmatprep.subr.bf16.mxu0 %v5034
    %6240 = vmatpush1.bf16.msra.mxu0 %v5033
    %6241 = vmatprep.subr.bf16.mxu0 %v5046
    %6242 = vmatpush1.bf16.msra.mxu0 %v5045
    %6243 = vmatprep.subr.bf16.mxu0 %v5058
    %6244 = vmatpush1.bf16.msra.mxu0 %v5057
    %6245 = vmatprep.subr.bf16.mxu0 %v5070
    %6246 = vmatpush1.bf16.msra.mxu0 %v5069
    %6247 = vmatprep.subr.bf16.mxu0 %v5082
    %6248 = vmatpush1.bf16.msra.mxu0 %v5081
    %6249 = vmatprep.subr.bf16.mxu0 %v5094
    %6250 = vmatpush1.bf16.msra.mxu0 %v5093
    %6251 = vmatprep.mubr.bf16.mxu0 %v5889
    %6252 = vmatmul.mubr.bf16.gmra.mrb[0].mxu0 %v5888
    %v6253 = vpop.f32.mrb[0].mxu0
    %v6254 = vadd.f32 0.0, %v6253
    %v6255 = vpop.f32.mrb[0].mxu0
    %v6256 = vadd.f32 0.0, %v6255
    %v6257 = vpop.f32.mrb[0].mxu0
    %v6258 = vpop.f32.mrb[0].mxu0
    %6259 = vdwg.mxu0
    %6260 = vmatprep.subr.bf16.mxu0 %v5106
    %6261 = vmatpush1.bf16.msra.mxu0 %v5105
    %6262 = vmatprep.subr.bf16.mxu0 %v5118
    %6263 = vmatpush1.bf16.msra.mxu0 %v5117
    %6264 = vmatprep.subr.bf16.mxu0 %v5130
    %6265 = vmatpush1.bf16.msra.mxu0 %v5129
    %6266 = vmatprep.subr.bf16.mxu0 %v5142
    %6267 = vmatpush1.bf16.msra.mxu0 %v5141
    %6268 = vmatprep.subr.bf16.mxu0 %v5154
    %6269 = vmatpush1.bf16.msra.mxu0 %v5153
    %6270 = vmatprep.subr.bf16.mxu0 %v5166
    %6271 = vmatpush1.bf16.msra.mxu0 %v5165
    %6272 = vmatprep.subr.bf16.mxu0 %v5178
    %6273 = vmatpush1.bf16.msra.mxu0 %v5177
    %6274 = vmatprep.subr.bf16.mxu0 %v5190
    %6275 = vmatpush1.bf16.msra.mxu0 %v5189
    %6276 = vmatprep.subr.bf16.mxu0 0
    %6277 = vmatpush1.bf16.msra.mxu0 0
    %6278 = vmatprep.subr.bf16.mxu0 0
    %6279 = vmatpush1.bf16.msra.mxu0 0
    %6280 = vmatprep.subr.bf16.mxu0 0
    %6281 = vmatpush1.bf16.msra.mxu0 0
    %6282 = vmatprep.subr.bf16.mxu0 0
    %6283 = vmatpush1.bf16.msra.mxu0 0
    %6284 = vmatprep.subr.bf16.mxu0 0
    %6285 = vmatpush1.bf16.msra.mxu0 0
    %6286 = vmatprep.subr.bf16.mxu0 0
    %6287 = vmatpush1.bf16.msra.mxu0 0
    %6288 = vmatprep.subr.bf16.mxu0 0
    %6289 = vmatpush1.bf16.msra.mxu0 0
    %6290 = vmatprep.subr.bf16.mxu0 0
    %6291 = vmatpush1.bf16.msra.mxu0 0
    %6292 = vmatprep.mubr.bf16.mxu0 0
    %6293 = vmatmul.mubr.bf16.gmra.mrb[0].mxu0 %v5890
    %v6294 = vpop.f32.mrb[0].mxu0
    %v6295 = vadd.f32 %v6254, %v6294
    %v6296 = vpop.f32.mrb[0].mxu0
    %v6297 = vadd.f32 %v6256, %v6296
    %v6298 = vpop.f32.mrb[0].mxu0
    %v6299 = vpop.f32.mrb[0].mxu0
    %6300 = vdwg.mxu0
    %6301 = vmatprep.subr.bf16.mxu0 %v4916
    %6302 = vmatpush1.bf16.msra.mxu0 %v4915
    %6303 = vmatprep.subr.bf16.mxu0 %v4928
    %6304 = vmatpush1.bf16.msra.mxu0 %v4927
    %6305 = vmatprep.subr.bf16.mxu0 %v4940
    %6306 = vmatpush1.bf16.msra.mxu0 %v4939
    %6307 = vmatprep.subr.bf16.mxu0 %v4952
    %6308 = vmatpush1.bf16.msra.mxu0 %v4951
    %6309 = vmatprep.subr.bf16.mxu0 %v4964
    %6310 = vmatpush1.bf16.msra.mxu0 %v4963
    %6311 = vmatprep.subr.bf16.mxu0 %v4976
    %6312 = vmatpush1.bf16.msra.mxu0 %v4975
    %6313 = vmatprep.subr.bf16.mxu0 %v4988
    %6314 = vmatpush1.bf16.msra.mxu0 %v4987
    %6315 = vmatprep.subr.bf16.mxu0 %v5000
    %6316 = vmatpush1.bf16.msra.mxu0 %v4999
    %6317 = vmatprep.subr.bf16.mxu0 %v5012
    %6318 = vmatpush1.bf16.msra.mxu0 %v5011
    %6319 = vmatprep.subr.bf16.mxu0 %v5024
    %6320 = vmatpush1.bf16.msra.mxu0 %v5023
    %6321 = vmatprep.subr.bf16.mxu0 %v5036
    %6322 = vmatpush1.bf16.msra.mxu0 %v5035
    %6323 = vmatprep.subr.bf16.mxu0 %v5048
    %6324 = vmatpush1.bf16.msra.mxu0 %v5047
    %6325 = vmatprep.subr.bf16.mxu0 %v5060
    %6326 = vmatpush1.bf16.msra.mxu0 %v5059
    %6327 = vmatprep.subr.bf16.mxu0 %v5072
    %6328 = vmatpush1.bf16.msra.mxu0 %v5071
    %6329 = vmatprep.subr.bf16.mxu0 %v5084
    %6330 = vmatpush1.bf16.msra.mxu0 %v5083
    %6331 = vmatprep.subr.bf16.mxu0 %v5096
    %6332 = vmatpush1.bf16.msra.mxu0 %v5095
    %6333 = vmatprep.mubr.bf16.mxu0 %v5889
    %6334 = vmatmul.mubr.bf16.gmra.mrb[0].mxu0 %v5888
    %v6335 = vpop.f32.mrb[0].mxu0
    %v6336 = vadd.f32 0.0, %v6335
    %v6337 = vpop.f32.mrb[0].mxu0
    %v6338 = vadd.f32 0.0, %v6337
    %v6339 = vpop.f32.mrb[0].mxu0
    %v6340 = vpop.f32.mrb[0].mxu0
    %6341 = vdwg.mxu0
    %6342 = vmatprep.subr.bf16.mxu0 %v5108
    %6343 = vmatpush1.bf16.msra.mxu0 %v5107
    %6344 = vmatprep.subr.bf16.mxu0 %v5120
    %6345 = vmatpush1.bf16.msra.mxu0 %v5119
    %6346 = vmatprep.subr.bf16.mxu0 %v5132
    %6347 = vmatpush1.bf16.msra.mxu0 %v5131
    %6348 = vmatprep.subr.bf16.mxu0 %v5144
    %6349 = vmatpush1.bf16.msra.mxu0 %v5143
    %6350 = vmatprep.subr.bf16.mxu0 %v5156
    %6351 = vmatpush1.bf16.msra.mxu0 %v5155
    %6352 = vmatprep.subr.bf16.mxu0 %v5168
    %6353 = vmatpush1.bf16.msra.mxu0 %v5167
    %6354 = vmatprep.subr.bf16.mxu0 %v5180
    %6355 = vmatpush1.bf16.msra.mxu0 %v5179
    %6356 = vmatprep.subr.bf16.mxu0 %v5192
    %6357 = vmatpush1.bf16.msra.mxu0 %v5191
    %6358 = vmatprep.subr.bf16.mxu0 0
    %6359 = vmatpush1.bf16.msra.mxu0 0
    %6360 = vmatprep.subr.bf16.mxu0 0
    %6361 = vmatpush1.bf16.msra.mxu0 0
    %6362 = vmatprep.subr.bf16.mxu0 0
    %6363 = vmatpush1.bf16.msra.mxu0 0
    %6364 = vmatprep.subr.bf16.mxu0 0
    %6365 = vmatpush1.bf16.msra.mxu0 0
    %6366 = vmatprep.subr.bf16.mxu0 0
    %6367 = vmatpush1.bf16.msra.mxu0 0
    %6368 = vmatprep.subr.bf16.mxu0 0
    %6369 = vmatpush1.bf16.msra.mxu0 0
    %6370 = vmatprep.subr.bf16.mxu0 0
    %6371 = vmatpush1.bf16.msra.mxu0 0
    %6372 = vmatprep.subr.bf16.mxu0 0
    %6373 = vmatpush1.bf16.msra.mxu0 0
    %6374 = vmatprep.mubr.bf16.mxu0 0
    %6375 = vmatmul.mubr.bf16.gmra.mrb[0].mxu0 %v5890
    %v6376 = vpop.f32.mrb[0].mxu0
    %v6377 = vadd.f32 %v6336, %v6376
    %v6378 = vpop.f32.mrb[0].mxu0
    %v6379 = vadd.f32 %v6338, %v6378
    %v6380 = vpop.f32.mrb[0].mxu0
    %v6381 = vpop.f32.mrb[0].mxu0
    %6382 = vdwg.mxu0
    %v6383 = vadd.f32 %v5876, %v5967
    %v6384 = vadd.f32 %v5877, %v5969
    %v6385 = vadd.f32 %v5878, %v6049
    %v6386 = vadd.f32 %v5879, %v6051
    %v6387 = vadd.f32 %v5880, %v6131
    %v6388 = vadd.f32 %v5881, %v6133
    %v6389 = vadd.f32 %v5882, %v6213
    %v6390 = vadd.f32 %v5883, %v6215
    %v6391 = vadd.f32 %v5884, %v6295
    %v6392 = vadd.f32 %v5885, %v6297
    %v6393 = vadd.f32 %v5886, %v6377
    %v6394 = vadd.f32 %v5887, %v6379
    %v6395 = vxor.u32 %v6383, 2147483648
    %v6396 = vxor.u32 %v6384, 2147483648
    %v6397 = vxor.u32 %v6385, 2147483648
    %v6398 = vmul.f32 %v6395, 1.442695
    %v6399 = vpow.pop %v6398
    %v6400 = vmul.f32 %v6396, 1.442695
    %v6401 = vpow.pop %v6400
    %v6402 = vmul.f32 %v6397, 1.442695
    %v6403 = vpow.pop %v6402
    %v6404 = vadd.f32 %v6399, 1.0
    %v6405 = vadd.f32 %v6401, 1.0
    %v6406 = vadd.f32 %v6403, 1.0
    %v6407 = vrcp.pop %v6404
    %v6408 = vmul.f32 1.0, %v6407
    %v6409 = vrcp.pop %v6405
    %v6410 = vmul.f32 1.0, %v6409
    %v6411 = vrcp.pop %v6406
    %v6412 = vmul.f32 1.0, %v6411
    %v6413 = vxor.u32 %v6386, 2147483648
    %v6414 = vxor.u32 %v6387, 2147483648
    %v6415 = vxor.u32 %v6388, 2147483648
    %v6416 = vmul.f32 %v6413, 1.442695
    %v6417 = vpow.pop %v6416
    %v6418 = vmul.f32 %v6414, 1.442695
    %v6419 = vpow.pop %v6418
    %v6420 = vmul.f32 %v6415, 1.442695
    %v6421 = vpow.pop %v6420
    %v6422 = vadd.f32 %v6417, 1.0
    %v6423 = vadd.f32 %v6419, 1.0
    %v6424 = vadd.f32 %v6421, 1.0
    %v6425 = vrcp.pop %v6422
    %v6426 = vmul.f32 1.0, %v6425
    %v6427 = vrcp.pop %v6423
    %v6428 = vmul.f32 1.0, %v6427
    %v6429 = vrcp.pop %v6424
    %v6430 = vmul.f32 1.0, %v6429
    %v6431 = vtanh.pop %v6389
    %v6432 = vtanh.pop %v6390
    %v6433 = vtanh.pop %v6391
    %v6434 = vxor.u32 %v6392, 2147483648
    %v6435 = vxor.u32 %v6393, 2147483648
    %v6436 = vxor.u32 %v6394, 2147483648
    %v6437 = vmul.f32 %v6434, 1.442695
    %v6438 = vpow.pop %v6437
    %v6439 = vmul.f32 %v6435, 1.442695
    %v6440 = vpow.pop %v6439
    %v6441 = vmul.f32 %v6436, 1.442695
    %v6442 = vpow.pop %v6441
    %v6443 = vadd.f32 %v6438, 1.0
    %v6444 = vadd.f32 %v6440, 1.0
    %v6445 = vadd.f32 %v6442, 1.0
    %v6446 = vrcp.pop %v6443
    %v6447 = vmul.f32 1.0, %v6446
    %v6448 = vrcp.pop %v6444
    %v6449 = vmul.f32 1.0, %v6448
    %v6450 = vrcp.pop %v6445
    %v6451 = vmul.f32 1.0, %v6450
    %v6452 = vmul.f32 %v6426, %v5831
    %v6453 = vmul.f32 %v6428, %v5832
    %v6454 = vmul.f32 %v6430, %v5833
    %v6455 = vmul.f32 %v6408, %v6431
    %v6456 = vmul.f32 %v6410, %v6432
    %v6457 = vmul.f32 %v6412, %v6433
    %v6458 = vadd.f32 %v6452, %v6455
    %v6459 = vadd.f32 %v6453, %v6456
    %v6460 = vadd.f32 %v6454, %v6457
    %v6461 = vtanh.pop %v6458
    %v6462 = vtanh.pop %v6459
    %v6463 = vtanh.pop %v6460
    %v6464 = vmul.f32 %v6447, %v6461
    %v6465 = vmul.f32 %v6449, %v6462
    %v6466 = vmul.f32 %v6451, %v6463
    %v6467 = vcombine.high %v4672, %v4672
    %v6468 = vcombine.high %v4674, %v4674
    %v6469 = vcombine.high %v4676, %v4676
    %v6470 = vcombine.high %v4678, %v4678
    %v6471 = vcombine.high %v4680, %v4680
    %v6472 = vcombine.high %v4682, %v4682
    %v6479 = vcombine.low %v4672, %v4672
    %v6480 = vcombine.low %v4674, %v4674
    %v6481 = vcombine.low %v4676, %v4676
    %v6482 = vcombine.low %v4678, %v4678
    %v6483 = vcombine.low %v4680, %v4680
    %v6484 = vcombine.low %v4682, %v4682
    %v6491 = vsel %vm4880, %v4672, %v6479
    %v6492 = vsel %vm4880, %v6467, %v4672
    %v6493 = vsel %vm4880, %v4674, %v6480
    %v6494 = vsel %vm4880, %v6468, %v4674
    %v6495 = vsel %vm4880, %v4676, %v6481
    %v6496 = vsel %vm4880, %v6469, %v4676
    %v6497 = vsel %vm4880, %v4678, %v6482
    %v6498 = vsel %vm4880, %v6470, %v4678
    %v6499 = vsel %vm4880, %v4680, %v6483
    %v6500 = vsel %vm4880, %v6471, %v4680
    %v6501 = vsel %vm4880, %v4682, %v6484
    %v6502 = vsel %vm4880, %v6472, %v4682
    %v6503 = vadd.f32 %v6491, %v4881
    %v6504 = vadd.f32 %v6492, %v4882
    %v6505 = vadd.f32 %v6493, %v4883
    %v6506 = vadd.f32 %v6494, %v4884
    %v6507 = vadd.f32 %v6495, %v4885
    %v6508 = vadd.f32 %v6496, %v4886
    %v6509 = vadd.f32 %v6497, %v4887
    %v6510 = vadd.f32 %v6498, %v4888
    %v6511 = vadd.f32 %v6499, %v4889
    %v6512 = vadd.f32 %v6500, %v4890
    %v6513 = vadd.f32 %v6501, %v4891
    %v6514 = vadd.f32 %v6502, %v4892
    %v6515 = vpack.c.bf16 %v6464, %v6464
    %v6516 = vpack.c.bf16 %v6465, %v6465
    %v6517 = vpack.c.bf16 %v6466, %v6466
    %6518 = vmatprep.subr.bf16.mxu0 %v4906
    %6519 = vmatpush1.bf16.msra.mxu0 %v4905
    %6520 = vmatprep.subr.bf16.mxu0 %v4918
    %6521 = vmatpush1.bf16.msra.mxu0 %v4917
    %6522 = vmatprep.subr.bf16.mxu0 %v4930
    %6523 = vmatpush1.bf16.msra.mxu0 %v4929
    %6524 = vmatprep.subr.bf16.mxu0 %v4942
    %6525 = vmatpush1.bf16.msra.mxu0 %v4941
    %6526 = vmatprep.subr.bf16.mxu0 %v4954
    %6527 = vmatpush1.bf16.msra.mxu0 %v4953
    %6528 = vmatprep.subr.bf16.mxu0 %v4966
    %6529 = vmatpush1.bf16.msra.mxu0 %v4965
    %6530 = vmatprep.subr.bf16.mxu0 %v4978
    %6531 = vmatpush1.bf16.msra.mxu0 %v4977
    %6532 = vmatprep.subr.bf16.mxu0 %v4990
    %6533 = vmatpush1.bf16.msra.mxu0 %v4989
    %6534 = vmatprep.subr.bf16.mxu0 %v5002
    %6535 = vmatpush1.bf16.msra.mxu0 %v5001
    %6536 = vmatprep.subr.bf16.mxu0 %v5014
    %6537 = vmatpush1.bf16.msra.mxu0 %v5013
    %6538 = vmatprep.subr.bf16.mxu0 %v5026
    %6539 = vmatpush1.bf16.msra.mxu0 %v5025
    %6540 = vmatprep.subr.bf16.mxu0 %v5038
    %6541 = vmatpush1.bf16.msra.mxu0 %v5037
    %6542 = vmatprep.subr.bf16.mxu0 %v5050
    %6543 = vmatpush1.bf16.msra.mxu0 %v5049
    %6544 = vmatprep.subr.bf16.mxu0 %v5062
    %6545 = vmatpush1.bf16.msra.mxu0 %v5061
    %6546 = vmatprep.subr.bf16.mxu0 %v5074
    %6547 = vmatpush1.bf16.msra.mxu0 %v5073
    %6548 = vmatprep.subr.bf16.mxu0 %v5086
    %6549 = vmatpush1.bf16.msra.mxu0 %v5085
    %6550 = vmatprep.mubr.bf16.mxu0 %v6516
    %6551 = vmatmul.mubr.bf16.gmra.mrb[0].mxu0 %v6515
    %v6552 = vpop.f32.mrb[0].mxu0
    %v6553 = vadd.f32 0.0, %v6552
    %v6554 = vpop.f32.mrb[0].mxu0
    %v6555 = vadd.f32 0.0, %v6554
    %v6556 = vpop.f32.mrb[0].mxu0
    %v6557 = vpop.f32.mrb[0].mxu0
    %6558 = vdwg.mxu0
    %6559 = vmatprep.subr.bf16.mxu0 %v5098
    %6560 = vmatpush1.bf16.msra.mxu0 %v5097
    %6561 = vmatprep.subr.bf16.mxu0 %v5110
    %6562 = vmatpush1.bf16.msra.mxu0 %v5109
    %6563 = vmatprep.subr.bf16.mxu0 %v5122
    %6564 = vmatpush1.bf16.msra.mxu0 %v5121
    %6565 = vmatprep.subr.bf16.mxu0 %v5134
    %6566 = vmatpush1.bf16.msra.mxu0 %v5133
    %6567 = vmatprep.subr.bf16.mxu0 %v5146
    %6568 = vmatpush1.bf16.msra.mxu0 %v5145
    %6569 = vmatprep.subr.bf16.mxu0 %v5158
    %6570 = vmatpush1.bf16.msra.mxu0 %v5157
    %6571 = vmatprep.subr.bf16.mxu0 %v5170
    %6572 = vmatpush1.bf16.msra.mxu0 %v5169
    %6573 = vmatprep.subr.bf16.mxu0 %v5182
    %6574 = vmatpush1.bf16.msra.mxu0 %v5181
    %6575 = vmatprep.subr.bf16.mxu0 0
    %6576 = vmatpush1.bf16.msra.mxu0 0
    %6577 = vmatprep.subr.bf16.mxu0 0
    %6578 = vmatpush1.bf16.msra.mxu0 0
    %6579 = vmatprep.subr.bf16.mxu0 0
    %6580 = vmatpush1.bf16.msra.mxu0 0
    %6581 = vmatprep.subr.bf16.mxu0 0
    %6582 = vmatpush1.bf16.msra.mxu0 0
    %6583 = vmatprep.subr.bf16.mxu0 0
    %6584 = vmatpush1.bf16.msra.mxu0 0
    %6585 = vmatprep.subr.bf16.mxu0 0
    %6586 = vmatpush1.bf16.msra.mxu0 0
    %6587 = vmatprep.subr.bf16.mxu0 0
    %6588 = vmatpush1.bf16.msra.mxu0 0
    %6589 = vmatprep.subr.bf16.mxu0 0
    %6590 = vmatpush1.bf16.msra.mxu0 0
    %6591 = vmatprep.mubr.bf16.mxu0 0
    %6592 = vmatmul.mubr.bf16.gmra.mrb[0].mxu0 %v6517
    %v6593 = vpop.f32.mrb[0].mxu0
    %v6594 = vadd.f32 %v6553, %v6593
    %v6595 = vpop.f32.mrb[0].mxu0
    %v6596 = vadd.f32 %v6555, %v6595
    %v6597 = vpop.f32.mrb[0].mxu0
    %v6598 = vpop.f32.mrb[0].mxu0
    %6599 = vdwg.mxu0
    %6600 = vmatprep.subr.bf16.mxu0 %v4908
    %6601 = vmatpush1.bf16.msra.mxu0 %v4907
    %6602 = vmatprep.subr.bf16.mxu0 %v4920
    %6603 = vmatpush1.bf16.msra.mxu0 %v4919
    %6604 = vmatprep.subr.bf16.mxu0 %v4932
    %6605 = vmatpush1.bf16.msra.mxu0 %v4931
    %6606 = vmatprep.subr.bf16.mxu0 %v4944
    %6607 = vmatpush1.bf16.msra.mxu0 %v4943
    %6608 = vmatprep.subr.bf16.mxu0 %v4956
    %6609 = vmatpush1.bf16.msra.mxu0 %v4955
    %6610 = vmatprep.subr.bf16.mxu0 %v4968
    %6611 = vmatpush1.bf16.msra.mxu0 %v4967
    %6612 = vmatprep.subr.bf16.mxu0 %v4980
    %6613 = vmatpush1.bf16.msra.mxu0 %v4979
    %6614 = vmatprep.subr.bf16.mxu0 %v4992
    %6615 = vmatpush1.bf16.msra.mxu0 %v4991
    %6616 = vmatprep.subr.bf16.mxu0 %v5004
    %6617 = vmatpush1.bf16.msra.mxu0 %v5003
    %6618 = vmatprep.subr.bf16.mxu0 %v5016
    %6619 = vmatpush1.bf16.msra.mxu0 %v5015
    %6620 = vmatprep.subr.bf16.mxu0 %v5028
    %6621 = vmatpush1.bf16.msra.mxu0 %v5027
    %6622 = vmatprep.subr.bf16.mxu0 %v5040
    %6623 = vmatpush1.bf16.msra.mxu0 %v5039
    %6624 = vmatprep.subr.bf16.mxu0 %v5052
    %6625 = vmatpush1.bf16.msra.mxu0 %v5051
    %6626 = vmatprep.subr.bf16.mxu0 %v5064
    %6627 = vmatpush1.bf16.msra.mxu0 %v5063
    %6628 = vmatprep.subr.bf16.mxu0 %v5076
    %6629 = vmatpush1.bf16.msra.mxu0 %v5075
    %6630 = vmatprep.subr.bf16.mxu0 %v5088
    %6631 = vmatpush1.bf16.msra.mxu0 %v5087
    %6632 = vmatprep.mubr.bf16.mxu0 %v6516
    %6633 = vmatmul.mubr.bf16.gmra.mrb[0].mxu0 %v6515
    %v6634 = vpop.f32.mrb[0].mxu0
    %v6635 = vadd.f32 0.0, %v6634
    %v6636 = vpop.f32.mrb[0].mxu0
    %v6637 = vadd.f32 0.0, %v6636
    %v6638 = vpop.f32.mrb[0].mxu0
    %v6639 = vpop.f32.mrb[0].mxu0
    %6640 = vdwg.mxu0
    %6641 = vmatprep.subr.bf16.mxu0 %v5100
    %6642 = vmatpush1.bf16.msra.mxu0 %v5099
    %6643 = vmatprep.subr.bf16.mxu0 %v5112
    %6644 = vmatpush1.bf16.msra.mxu0 %v5111
    %6645 = vmatprep.subr.bf16.mxu0 %v5124
    %6646 = vmatpush1.bf16.msra.mxu0 %v5123
    %6647 = vmatprep.subr.bf16.mxu0 %v5136
    %6648 = vmatpush1.bf16.msra.mxu0 %v5135
    %6649 = vmatprep.subr.bf16.mxu0 %v5148
    %6650 = vmatpush1.bf16.msra.mxu0 %v5147
    %6651 = vmatprep.subr.bf16.mxu0 %v5160
    %6652 = vmatpush1.bf16.msra.mxu0 %v5159
    %6653 = vmatprep.subr.bf16.mxu0 %v5172
    %6654 = vmatpush1.bf16.msra.mxu0 %v5171
    %6655 = vmatprep.subr.bf16.mxu0 %v5184
    %6656 = vmatpush1.bf16.msra.mxu0 %v5183
    %6657 = vmatprep.subr.bf16.mxu0 0
    %6658 = vmatpush1.bf16.msra.mxu0 0
    %6659 = vmatprep.subr.bf16.mxu0 0
    %6660 = vmatpush1.bf16.msra.mxu0 0
    %6661 = vmatprep.subr.bf16.mxu0 0
    %6662 = vmatpush1.bf16.msra.mxu0 0
    %6663 = vmatprep.subr.bf16.mxu0 0
    %6664 = vmatpush1.bf16.msra.mxu0 0
    %6665 = vmatprep.subr.bf16.mxu0 0
    %6666 = vmatpush1.bf16.msra.mxu0 0
    %6667 = vmatprep.subr.bf16.mxu0 0
    %6668 = vmatpush1.bf16.msra.mxu0 0
    %6669 = vmatprep.subr.bf16.mxu0 0
    %6670 = vmatpush1.bf16.msra.mxu0 0
    %6671 = vmatprep.subr.bf16.mxu0 0
    %6672 = vmatpush1.bf16.msra.mxu0 0
    %6673 = vmatprep.mubr.bf16.mxu0 0
    %6674 = vmatmul.mubr.bf16.gmra.mrb[0].mxu0 %v6517
    %v6675 = vpop.f32.mrb[0].mxu0
    %v6676 = vadd.f32 %v6635, %v6675
    %v6677 = vpop.f32.mrb[0].mxu0
    %v6678 = vadd.f32 %v6637, %v6677
    %v6679 = vpop.f32.mrb[0].mxu0
    %v6680 = vpop.f32.mrb[0].mxu0
    %6681 = vdwg.mxu0
    %6682 = vmatprep.subr.bf16.mxu0 %v4910
    %6683 = vmatpush1.bf16.msra.mxu0 %v4909
    %6684 = vmatprep.subr.bf16.mxu0 %v4922
    %6685 = vmatpush1.bf16.msra.mxu0 %v4921
    %6686 = vmatprep.subr.bf16.mxu0 %v4934
    %6687 = vmatpush1.bf16.msra.mxu0 %v4933
    %6688 = vmatprep.subr.bf16.mxu0 %v4946
    %6689 = vmatpush1.bf16.msra.mxu0 %v4945
    %6690 = vmatprep.subr.bf16.mxu0 %v4958
    %6691 = vmatpush1.bf16.msra.mxu0 %v4957
    %6692 = vmatprep.subr.bf16.mxu0 %v4970
    %6693 = vmatpush1.bf16.msra.mxu0 %v4969
    %6694 = vmatprep.subr.bf16.mxu0 %v4982
    %6695 = vmatpush1.bf16.msra.mxu0 %v4981
    %6696 = vmatprep.subr.bf16.mxu0 %v4994
    %6697 = vmatpush1.bf16.msra.mxu0 %v4993
    %6698 = vmatprep.subr.bf16.mxu0 %v5006
    %6699 = vmatpush1.bf16.msra.mxu0 %v5005
    %6700 = vmatprep.subr.bf16.mxu0 %v5018
    %6701 = vmatpush1.bf16.msra.mxu0 %v5017
    %6702 = vmatprep.subr.bf16.mxu0 %v5030
    %6703 = vmatpush1.bf16.msra.mxu0 %v5029
    %6704 = vmatprep.subr.bf16.mxu0 %v5042
    %6705 = vmatpush1.bf16.msra.mxu0 %v5041
    %6706 = vmatprep.subr.bf16.mxu0 %v5054
    %6707 = vmatpush1.bf16.msra.mxu0 %v5053
    %6708 = vmatprep.subr.bf16.mxu0 %v5066
    %6709 = vmatpush1.bf16.msra.mxu0 %v5065
    %6710 = vmatprep.subr.bf16.mxu0 %v5078
    %6711 = vmatpush1.bf16.msra.mxu0 %v5077
    %6712 = vmatprep.subr.bf16.mxu0 %v5090
    %6713 = vmatpush1.bf16.msra.mxu0 %v5089
    %6714 = vmatprep.mubr.bf16.mxu0 %v6516
    %6715 = vmatmul.mubr.bf16.gmra.mrb[0].mxu0 %v6515
    %v6716 = vpop.f32.mrb[0].mxu0
    %v6717 = vadd.f32 0.0, %v6716
    %v6718 = vpop.f32.mrb[0].mxu0
    %v6719 = vadd.f32 0.0, %v6718
    %v6720 = vpop.f32.mrb[0].mxu0
    %v6721 = vpop.f32.mrb[0].mxu0
    %6722 = vdwg.mxu0
    %6723 = vmatprep.subr.bf16.mxu0 %v5102
    %6724 = vmatpush1.bf16.msra.mxu0 %v5101
    %6725 = vmatprep.subr.bf16.mxu0 %v5114
    %6726 = vmatpush1.bf16.msra.mxu0 %v5113
    %6727 = vmatprep.subr.bf16.mxu0 %v5126
    %6728 = vmatpush1.bf16.msra.mxu0 %v5125
    %6729 = vmatprep.subr.bf16.mxu0 %v5138
    %6730 = vmatpush1.bf16.msra.mxu0 %v5137
    %6731 = vmatprep.subr.bf16.mxu0 %v5150
    %6732 = vmatpush1.bf16.msra.mxu0 %v5149
    %6733 = vmatprep.subr.bf16.mxu0 %v5162
    %6734 = vmatpush1.bf16.msra.mxu0 %v5161
    %6735 = vmatprep.subr.bf16.mxu0 %v5174
    %6736 = vmatpush1.bf16.msra.mxu0 %v5173
    %6737 = vmatprep.subr.bf16.mxu0 %v5186
    %6738 = vmatpush1.bf16.msra.mxu0 %v5185
    %6739 = vmatprep.subr.bf16.mxu0 0
    %6740 = vmatpush1.bf16.msra.mxu0 0
    %6741 = vmatprep.subr.bf16.mxu0 0
    %6742 = vmatpush1.bf16.msra.mxu0 0
    %6743 = vmatprep.subr.bf16.mxu0 0
    %6744 = vmatpush1.bf16.msra.mxu0 0
    %6745 = vmatprep.subr.bf16.mxu0 0
    %6746 = vmatpush1.bf16.msra.mxu0 0
    %6747 = vmatprep.subr.bf16.mxu0 0
    %6748 = vmatpush1.bf16.msra.mxu0 0
    %6749 = vmatprep.subr.bf16.mxu0 0
    %6750 = vmatpush1.bf16.msra.mxu0 0
    %6751 = vmatprep.subr.bf16.mxu0 0
    %6752 = vmatpush1.bf16.msra.mxu0 0
    %6753 = vmatprep.subr.bf16.mxu0 0
    %6754 = vmatpush1.bf16.msra.mxu0 0
    %6755 = vmatprep.mubr.bf16.mxu0 0
    %6756 = vmatmul.mubr.bf16.gmra.mrb[0].mxu0 %v6517
    %v6757 = vpop.f32.mrb[0].mxu0
    %v6758 = vadd.f32 %v6717, %v6757
    %v6759 = vpop.f32.mrb[0].mxu0
    %v6760 = vadd.f32 %v6719, %v6759
    %v6761 = vpop.f32.mrb[0].mxu0
    %v6762 = vpop.f32.mrb[0].mxu0
    %6763 = vdwg.mxu0
    %6764 = vmatprep.subr.bf16.mxu0 %v4912
    %6765 = vmatpush1.bf16.msra.mxu0 %v4911
    %6766 = vmatprep.subr.bf16.mxu0 %v4924
    %6767 = vmatpush1.bf16.msra.mxu0 %v4923
    %6768 = vmatprep.subr.bf16.mxu0 %v4936
    %6769 = vmatpush1.bf16.msra.mxu0 %v4935
    %6770 = vmatprep.subr.bf16.mxu0 %v4948
    %6771 = vmatpush1.bf16.msra.mxu0 %v4947
    %6772 = vmatprep.subr.bf16.mxu0 %v4960
    %6773 = vmatpush1.bf16.msra.mxu0 %v4959
    %6774 = vmatprep.subr.bf16.mxu0 %v4972
    %6775 = vmatpush1.bf16.msra.mxu0 %v4971
    %6776 = vmatprep.subr.bf16.mxu0 %v4984
    %6777 = vmatpush1.bf16.msra.mxu0 %v4983
    %6778 = vmatprep.subr.bf16.mxu0 %v4996
    %6779 = vmatpush1.bf16.msra.mxu0 %v4995
    %6780 = vmatprep.subr.bf16.mxu0 %v5008
    %6781 = vmatpush1.bf16.msra.mxu0 %v5007
    %6782 = vmatprep.subr.bf16.mxu0 %v5020
    %6783 = vmatpush1.bf16.msra.mxu0 %v5019
    %6784 = vmatprep.subr.bf16.mxu0 %v5032
    %6785 = vmatpush1.bf16.msra.mxu0 %v5031
    %6786 = vmatprep.subr.bf16.mxu0 %v5044
    %6787 = vmatpush1.bf16.msra.mxu0 %v5043
    %6788 = vmatprep.subr.bf16.mxu0 %v5056
    %6789 = vmatpush1.bf16.msra.mxu0 %v5055
    %6790 = vmatprep.subr.bf16.mxu0 %v5068
    %6791 = vmatpush1.bf16.msra.mxu0 %v5067
    %6792 = vmatprep.subr.bf16.mxu0 %v5080
    %6793 = vmatpush1.bf16.msra.mxu0 %v5079
    %6794 = vmatprep.subr.bf16.mxu0 %v5092
    %6795 = vmatpush1.bf16.msra.mxu0 %v5091
    %6796 = vmatprep.mubr.bf16.mxu0 %v6516
    %6797 = vmatmul.mubr.bf16.gmra.mrb[0].mxu0 %v6515
    %v6798 = vpop.f32.mrb[0].mxu0
    %v6799 = vadd.f32 0.0, %v6798
    %v6800 = vpop.f32.mrb[0].mxu0
    %v6801 = vadd.f32 0.0, %v6800
    %v6802 = vpop.f32.mrb[0].mxu0
    %v6803 = vpop.f32.mrb[0].mxu0
    %6804 = vdwg.mxu0
    %6805 = vmatprep.subr.bf16.mxu0 %v5104
    %6806 = vmatpush1.bf16.msra.mxu0 %v5103
    %6807 = vmatprep.subr.bf16.mxu0 %v5116
    %6808 = vmatpush1.bf16.msra.mxu0 %v5115
    %6809 = vmatprep.subr.bf16.mxu0 %v5128
    %6810 = vmatpush1.bf16.msra.mxu0 %v5127
    %6811 = vmatprep.subr.bf16.mxu0 %v5140
    %6812 = vmatpush1.bf16.msra.mxu0 %v5139
    %6813 = vmatprep.subr.bf16.mxu0 %v5152
    %6814 = vmatpush1.bf16.msra.mxu0 %v5151
    %6815 = vmatprep.subr.bf16.mxu0 %v5164
    %6816 = vmatpush1.bf16.msra.mxu0 %v5163
    %6817 = vmatprep.subr.bf16.mxu0 %v5176
    %6818 = vmatpush1.bf16.msra.mxu0 %v5175
    %6819 = vmatprep.subr.bf16.mxu0 %v5188
    %6820 = vmatpush1.bf16.msra.mxu0 %v5187
    %6821 = vmatprep.subr.bf16.mxu0 0
    %6822 = vmatpush1.bf16.msra.mxu0 0
    %6823 = vmatprep.subr.bf16.mxu0 0
    %6824 = vmatpush1.bf16.msra.mxu0 0
    %6825 = vmatprep.subr.bf16.mxu0 0
    %6826 = vmatpush1.bf16.msra.mxu0 0
    %6827 = vmatprep.subr.bf16.mxu0 0
    %6828 = vmatpush1.bf16.msra.mxu0 0
    %6829 = vmatprep.subr.bf16.mxu0 0
    %6830 = vmatpush1.bf16.msra.mxu0 0
    %6831 = vmatprep.subr.bf16.mxu0 0
    %6832 = vmatpush1.bf16.msra.mxu0 0
    %6833 = vmatprep.subr.bf16.mxu0 0
    %6834 = vmatpush1.bf16.msra.mxu0 0
    %6835 = vmatprep.subr.bf16.mxu0 0
    %6836 = vmatpush1.bf16.msra.mxu0 0
    %6837 = vmatprep.mubr.bf16.mxu0 0
    %6838 = vmatmul.mubr.bf16.gmra.mrb[0].mxu0 %v6517
    %v6839 = vpop.f32.mrb[0].mxu0
    %v6840 = vadd.f32 %v6799, %v6839
    %v6841 = vpop.f32.mrb[0].mxu0
    %v6842 = vadd.f32 %v6801, %v6841
    %v6843 = vpop.f32.mrb[0].mxu0
    %v6844 = vpop.f32.mrb[0].mxu0
    %6845 = vdwg.mxu0
    %6846 = vmatprep.subr.bf16.mxu0 %v4914
    %6847 = vmatpush1.bf16.msra.mxu0 %v4913
    %6848 = vmatprep.subr.bf16.mxu0 %v4926
    %6849 = vmatpush1.bf16.msra.mxu0 %v4925
    %6850 = vmatprep.subr.bf16.mxu0 %v4938
    %6851 = vmatpush1.bf16.msra.mxu0 %v4937
    %6852 = vmatprep.subr.bf16.mxu0 %v4950
    %6853 = vmatpush1.bf16.msra.mxu0 %v4949
    %6854 = vmatprep.subr.bf16.mxu0 %v4962
    %6855 = vmatpush1.bf16.msra.mxu0 %v4961
    %6856 = vmatprep.subr.bf16.mxu0 %v4974
    %6857 = vmatpush1.bf16.msra.mxu0 %v4973
    %6858 = vmatprep.subr.bf16.mxu0 %v4986
    %6859 = vmatpush1.bf16.msra.mxu0 %v4985
    %6860 = vmatprep.subr.bf16.mxu0 %v4998
    %6861 = vmatpush1.bf16.msra.mxu0 %v4997
    %6862 = vmatprep.subr.bf16.mxu0 %v5010
    %6863 = vmatpush1.bf16.msra.mxu0 %v5009
    %6864 = vmatprep.subr.bf16.mxu0 %v5022
    %6865 = vmatpush1.bf16.msra.mxu0 %v5021
    %6866 = vmatprep.subr.bf16.mxu0 %v5034
    %6867 = vmatpush1.bf16.msra.mxu0 %v5033
    %6868 = vmatprep.subr.bf16.mxu0 %v5046
    %6869 = vmatpush1.bf16.msra.mxu0 %v5045
    %6870 = vmatprep.subr.bf16.mxu0 %v5058
    %6871 = vmatpush1.bf16.msra.mxu0 %v5057
    %6872 = vmatprep.subr.bf16.mxu0 %v5070
    %6873 = vmatpush1.bf16.msra.mxu0 %v5069
    %6874 = vmatprep.subr.bf16.mxu0 %v5082
    %6875 = vmatpush1.bf16.msra.mxu0 %v5081
    %6876 = vmatprep.subr.bf16.mxu0 %v5094
    %6877 = vmatpush1.bf16.msra.mxu0 %v5093
    %6878 = vmatprep.mubr.bf16.mxu0 %v6516
    %6879 = vmatmul.mubr.bf16.gmra.mrb[0].mxu0 %v6515
    %v6880 = vpop.f32.mrb[0].mxu0
    %v6881 = vadd.f32 0.0, %v6880
    %v6882 = vpop.f32.mrb[0].mxu0
    %v6883 = vadd.f32 0.0, %v6882
    %v6884 = vpop.f32.mrb[0].mxu0
    %v6885 = vpop.f32.mrb[0].mxu0
    %6886 = vdwg.mxu0
    %6887 = vmatprep.subr.bf16.mxu0 %v5106
    %6888 = vmatpush1.bf16.msra.mxu0 %v5105
    %6889 = vmatprep.subr.bf16.mxu0 %v5118
    %6890 = vmatpush1.bf16.msra.mxu0 %v5117
    %6891 = vmatprep.subr.bf16.mxu0 %v5130
    %6892 = vmatpush1.bf16.msra.mxu0 %v5129
    %6893 = vmatprep.subr.bf16.mxu0 %v5142
    %6894 = vmatpush1.bf16.msra.mxu0 %v5141
    %6895 = vmatprep.subr.bf16.mxu0 %v5154
    %6896 = vmatpush1.bf16.msra.mxu0 %v5153
    %6897 = vmatprep.subr.bf16.mxu0 %v5166
    %6898 = vmatpush1.bf16.msra.mxu0 %v5165
    %6899 = vmatprep.subr.bf16.mxu0 %v5178
    %6900 = vmatpush1.bf16.msra.mxu0 %v5177
    %6901 = vmatprep.subr.bf16.mxu0 %v5190
    %6902 = vmatpush1.bf16.msra.mxu0 %v5189
    %6903 = vmatprep.subr.bf16.mxu0 0
    %6904 = vmatpush1.bf16.msra.mxu0 0
    %6905 = vmatprep.subr.bf16.mxu0 0
    %6906 = vmatpush1.bf16.msra.mxu0 0
    %6907 = vmatprep.subr.bf16.mxu0 0
    %6908 = vmatpush1.bf16.msra.mxu0 0
    %6909 = vmatprep.subr.bf16.mxu0 0
    %6910 = vmatpush1.bf16.msra.mxu0 0
    %6911 = vmatprep.subr.bf16.mxu0 0
    %6912 = vmatpush1.bf16.msra.mxu0 0
    %6913 = vmatprep.subr.bf16.mxu0 0
    %6914 = vmatpush1.bf16.msra.mxu0 0
    %6915 = vmatprep.subr.bf16.mxu0 0
    %6916 = vmatpush1.bf16.msra.mxu0 0
    %6917 = vmatprep.subr.bf16.mxu0 0
    %6918 = vmatpush1.bf16.msra.mxu0 0
    %6919 = vmatprep.mubr.bf16.mxu0 0
    %6920 = vmatmul.mubr.bf16.gmra.mrb[0].mxu0 %v6517
    %v6921 = vpop.f32.mrb[0].mxu0
    %v6922 = vadd.f32 %v6881, %v6921
    %v6923 = vpop.f32.mrb[0].mxu0
    %v6924 = vadd.f32 %v6883, %v6923
    %v6925 = vpop.f32.mrb[0].mxu0
    %v6926 = vpop.f32.mrb[0].mxu0
    %6927 = vdwg.mxu0
    %6928 = vmatprep.subr.bf16.mxu0 %v4916
    %6929 = vmatpush1.bf16.msra.mxu0 %v4915
    %6930 = vmatprep.subr.bf16.mxu0 %v4928
    %6931 = vmatpush1.bf16.msra.mxu0 %v4927
    %6932 = vmatprep.subr.bf16.mxu0 %v4940
    %6933 = vmatpush1.bf16.msra.mxu0 %v4939
    %6934 = vmatprep.subr.bf16.mxu0 %v4952
    %6935 = vmatpush1.bf16.msra.mxu0 %v4951
    %6936 = vmatprep.subr.bf16.mxu0 %v4964
    %6937 = vmatpush1.bf16.msra.mxu0 %v4963
    %6938 = vmatprep.subr.bf16.mxu0 %v4976
    %6939 = vmatpush1.bf16.msra.mxu0 %v4975
    %6940 = vmatprep.subr.bf16.mxu0 %v4988
    %6941 = vmatpush1.bf16.msra.mxu0 %v4987
    %6942 = vmatprep.subr.bf16.mxu0 %v5000
    %6943 = vmatpush1.bf16.msra.mxu0 %v4999
    %6944 = vmatprep.subr.bf16.mxu0 %v5012
    %6945 = vmatpush1.bf16.msra.mxu0 %v5011
    %6946 = vmatprep.subr.bf16.mxu0 %v5024
    %6947 = vmatpush1.bf16.msra.mxu0 %v5023
    %6948 = vmatprep.subr.bf16.mxu0 %v5036
    %6949 = vmatpush1.bf16.msra.mxu0 %v5035
    %6950 = vmatprep.subr.bf16.mxu0 %v5048
    %6951 = vmatpush1.bf16.msra.mxu0 %v5047
    %6952 = vmatprep.subr.bf16.mxu0 %v5060
    %6953 = vmatpush1.bf16.msra.mxu0 %v5059
    %6954 = vmatprep.subr.bf16.mxu0 %v5072
    %6955 = vmatpush1.bf16.msra.mxu0 %v5071
    %6956 = vmatprep.subr.bf16.mxu0 %v5084
    %6957 = vmatpush1.bf16.msra.mxu0 %v5083
    %6958 = vmatprep.subr.bf16.mxu0 %v5096
    %6959 = vmatpush1.bf16.msra.mxu0 %v5095
    %6960 = vmatprep.mubr.bf16.mxu0 %v6516
    %6961 = vmatmul.mubr.bf16.gmra.mrb[0].mxu0 %v6515
    %v6962 = vpop.f32.mrb[0].mxu0
    %v6963 = vadd.f32 0.0, %v6962
    %v6964 = vpop.f32.mrb[0].mxu0
    %v6965 = vadd.f32 0.0, %v6964
    %v6966 = vpop.f32.mrb[0].mxu0
    %v6967 = vpop.f32.mrb[0].mxu0
    %6968 = vdwg.mxu0
    %6969 = vmatprep.subr.bf16.mxu0 %v5108
    %6970 = vmatpush1.bf16.msra.mxu0 %v5107
    %6971 = vmatprep.subr.bf16.mxu0 %v5120
    %6972 = vmatpush1.bf16.msra.mxu0 %v5119
    %6973 = vmatprep.subr.bf16.mxu0 %v5132
    %6974 = vmatpush1.bf16.msra.mxu0 %v5131
    %6975 = vmatprep.subr.bf16.mxu0 %v5144
    %6976 = vmatpush1.bf16.msra.mxu0 %v5143
    %6977 = vmatprep.subr.bf16.mxu0 %v5156
    %6978 = vmatpush1.bf16.msra.mxu0 %v5155
    %6979 = vmatprep.subr.bf16.mxu0 %v5168
    %6980 = vmatpush1.bf16.msra.mxu0 %v5167
    %6981 = vmatprep.subr.bf16.mxu0 %v5180
    %6982 = vmatpush1.bf16.msra.mxu0 %v5179
    %6983 = vmatprep.subr.bf16.mxu0 %v5192
    %6984 = vmatpush1.bf16.msra.mxu0 %v5191
    %6985 = vmatprep.subr.bf16.mxu0 0
    %6986 = vmatpush1.bf16.msra.mxu0 0
    %6987 = vmatprep.subr.bf16.mxu0 0
    %6988 = vmatpush1.bf16.msra.mxu0 0
    %6989 = vmatprep.subr.bf16.mxu0 0
    %6990 = vmatpush1.bf16.msra.mxu0 0
    %6991 = vmatprep.subr.bf16.mxu0 0
    %6992 = vmatpush1.bf16.msra.mxu0 0
    %6993 = vmatprep.subr.bf16.mxu0 0
    %6994 = vmatpush1.bf16.msra.mxu0 0
    %6995 = vmatprep.subr.bf16.mxu0 0
    %6996 = vmatpush1.bf16.msra.mxu0 0
    %6997 = vmatprep.subr.bf16.mxu0 0
    %6998 = vmatpush1.bf16.msra.mxu0 0
    %6999 = vmatprep.subr.bf16.mxu0 0
    %7000 = vmatpush1.bf16.msra.mxu0 0
    %7001 = vmatprep.mubr.bf16.mxu0 0
    %7002 = vmatmul.mubr.bf16.gmra.mrb[0].mxu0 %v6517
    %v7003 = vpop.f32.mrb[0].mxu0
    %v7004 = vadd.f32 %v6963, %v7003
    %v7005 = vpop.f32.mrb[0].mxu0
    %v7006 = vadd.f32 %v6965, %v7005
    %v7007 = vpop.f32.mrb[0].mxu0
    %v7008 = vpop.f32.mrb[0].mxu0
    %7009 = vdwg.mxu0
    %v7010 = vadd.f32 %v6503, %v6594
    %v7011 = vadd.f32 %v6504, %v6596
    %v7012 = vadd.f32 %v6505, %v6676
    %v7013 = vadd.f32 %v6506, %v6678
    %v7014 = vadd.f32 %v6507, %v6758
    %v7015 = vadd.f32 %v6508, %v6760
    %v7016 = vadd.f32 %v6509, %v6840
    %v7017 = vadd.f32 %v6510, %v6842
    %v7018 = vadd.f32 %v6511, %v6922
    %v7019 = vadd.f32 %v6512, %v6924
    %v7020 = vadd.f32 %v6513, %v7004
    %v7021 = vadd.f32 %v6514, %v7006
    %v7022 = vxor.u32 %v7010, 2147483648
    %v7023 = vxor.u32 %v7011, 2147483648
    %v7024 = vxor.u32 %v7012, 2147483648
    %v7025 = vmul.f32 %v7022, 1.442695
    %v7026 = vpow.pop %v7025
    %v7027 = vmul.f32 %v7023, 1.442695
    %v7028 = vpow.pop %v7027
    %v7029 = vmul.f32 %v7024, 1.442695
    %v7030 = vpow.pop %v7029
    %v7031 = vadd.f32 %v7026, 1.0
    %v7032 = vadd.f32 %v7028, 1.0
    %v7033 = vadd.f32 %v7030, 1.0
    %v7034 = vrcp.pop %v7031
    %v7035 = vmul.f32 1.0, %v7034
    %v7036 = vrcp.pop %v7032
    %v7037 = vmul.f32 1.0, %v7036
    %v7038 = vrcp.pop %v7033
    %v7039 = vmul.f32 1.0, %v7038
    %v7040 = vxor.u32 %v7013, 2147483648
    %v7041 = vxor.u32 %v7014, 2147483648
    %v7042 = vxor.u32 %v7015, 2147483648
    %v7043 = vmul.f32 %v7040, 1.442695
    %v7044 = vpow.pop %v7043
    %v7045 = vmul.f32 %v7041, 1.442695
    %v7046 = vpow.pop %v7045
    %v7047 = vmul.f32 %v7042, 1.442695
    %v7048 = vpow.pop %v7047
    %v7049 = vadd.f32 %v7044, 1.0
    %v7050 = vadd.f32 %v7046, 1.0
    %v7051 = vadd.f32 %v7048, 1.0
    %v7052 = vrcp.pop %v7049
    %v7053 = vmul.f32 1.0, %v7052
    %v7054 = vrcp.pop %v7050
    %v7055 = vmul.f32 1.0, %v7054
    %v7056 = vrcp.pop %v7051
    %v7057 = vmul.f32 1.0, %v7056
    %v7058 = vtanh.pop %v7016
    %v7059 = vtanh.pop %v7017
    %v7060 = vtanh.pop %v7018
    %v7061 = vxor.u32 %v7019, 2147483648
    %v7062 = vxor.u32 %v7020, 2147483648
    %v7063 = vxor.u32 %v7021, 2147483648
    %v7064 = vmul.f32 %v7061, 1.442695
    %v7065 = vpow.pop %v7064
    %v7066 = vmul.f32 %v7062, 1.442695
    %v7067 = vpow.pop %v7066
    %v7068 = vmul.f32 %v7063, 1.442695
    %v7069 = vpow.pop %v7068
    %v7070 = vadd.f32 %v7065, 1.0
    %v7071 = vadd.f32 %v7067, 1.0
    %v7072 = vadd.f32 %v7069, 1.0
    %v7073 = vrcp.pop %v7070
    %v7074 = vmul.f32 1.0, %v7073
    %v7075 = vrcp.pop %v7071
    %v7076 = vmul.f32 1.0, %v7075
    %v7077 = vrcp.pop %v7072
    %v7078 = vmul.f32 1.0, %v7077
    %v7079 = vmul.f32 %v7053, %v6458
    %v7080 = vmul.f32 %v7055, %v6459
    %v7081 = vmul.f32 %v7057, %v6460
    %v7082 = vmul.f32 %v7035, %v7058
    %v7083 = vmul.f32 %v7037, %v7059
    %v7084 = vmul.f32 %v7039, %v7060
    %v7085 = vadd.f32 %v7079, %v7082
    %v7086 = vadd.f32 %v7080, %v7083
    %v7087 = vadd.f32 %v7081, %v7084
    %v7088 = vtanh.pop %v7085
    %v7089 = vtanh.pop %v7086
    %v7090 = vtanh.pop %v7087
    %v7091 = vmul.f32 %v7074, %v7088
    %v7092 = vmul.f32 %v7076, %v7089
    %v7093 = vmul.f32 %v7078, %v7090
    %v7094 = vcombine.high %v4673, %v4673
    %v7095 = vcombine.high %v4675, %v4675
    %v7096 = vcombine.high %v4677, %v4677
    %v7097 = vcombine.high %v4679, %v4679
    %v7098 = vcombine.high %v4681, %v4681
    %v7099 = vcombine.high %v4683, %v4683
    %v7106 = vcombine.low %v4673, %v4673
    %v7107 = vcombine.low %v4675, %v4675
    %v7108 = vcombine.low %v4677, %v4677
    %v7109 = vcombine.low %v4679, %v4679
    %v7110 = vcombine.low %v4681, %v4681
    %v7111 = vcombine.low %v4683, %v4683
    %v7118 = vsel %vm4880, %v4673, %v7106
    %v7119 = vsel %vm4880, %v7094, %v4673
    %v7120 = vsel %vm4880, %v4675, %v7107
    %v7121 = vsel %vm4880, %v7095, %v4675
    %v7122 = vsel %vm4880, %v4677, %v7108
    %v7123 = vsel %vm4880, %v7096, %v4677
    %v7124 = vsel %vm4880, %v4679, %v7109
    %v7125 = vsel %vm4880, %v7097, %v4679
    %v7126 = vsel %vm4880, %v4681, %v7110
    %v7127 = vsel %vm4880, %v7098, %v4681
    %v7128 = vsel %vm4880, %v4683, %v7111
    %v7129 = vsel %vm4880, %v7099, %v4683
    %v7130 = vadd.f32 %v7118, %v4881
    %v7131 = vadd.f32 %v7119, %v4882
    %v7132 = vadd.f32 %v7120, %v4883
    %v7133 = vadd.f32 %v7121, %v4884
    %v7134 = vadd.f32 %v7122, %v4885
    %v7135 = vadd.f32 %v7123, %v4886
    %v7136 = vadd.f32 %v7124, %v4887
    %v7137 = vadd.f32 %v7125, %v4888
    %v7138 = vadd.f32 %v7126, %v4889
    %v7139 = vadd.f32 %v7127, %v4890
    %v7140 = vadd.f32 %v7128, %v4891
    %v7141 = vadd.f32 %v7129, %v4892
    %v7142 = vpack.c.bf16 %v7091, %v7091
    %v7143 = vpack.c.bf16 %v7092, %v7092
    %v7144 = vpack.c.bf16 %v7093, %v7093
    %7145 = vmatprep.subr.bf16.mxu0 %v4906
    %7146 = vmatpush1.bf16.msra.mxu0 %v4905
    %7147 = vmatprep.subr.bf16.mxu0 %v4918
    %7148 = vmatpush1.bf16.msra.mxu0 %v4917
    %7149 = vmatprep.subr.bf16.mxu0 %v4930
    %7150 = vmatpush1.bf16.msra.mxu0 %v4929
    %7151 = vmatprep.subr.bf16.mxu0 %v4942
    %7152 = vmatpush1.bf16.msra.mxu0 %v4941
    %7153 = vmatprep.subr.bf16.mxu0 %v4954
    %7154 = vmatpush1.bf16.msra.mxu0 %v4953
    %7155 = vmatprep.subr.bf16.mxu0 %v4966
    %7156 = vmatpush1.bf16.msra.mxu0 %v4965
    %7157 = vmatprep.subr.bf16.mxu0 %v4978
    %7158 = vmatpush1.bf16.msra.mxu0 %v4977
    %7159 = vmatprep.subr.bf16.mxu0 %v4990
    %7160 = vmatpush1.bf16.msra.mxu0 %v4989
    %7161 = vmatprep.subr.bf16.mxu0 %v5002
    %7162 = vmatpush1.bf16.msra.mxu0 %v5001
    %7163 = vmatprep.subr.bf16.mxu0 %v5014
    %7164 = vmatpush1.bf16.msra.mxu0 %v5013
    %7165 = vmatprep.subr.bf16.mxu0 %v5026
    %7166 = vmatpush1.bf16.msra.mxu0 %v5025
    %7167 = vmatprep.subr.bf16.mxu0 %v5038
    %7168 = vmatpush1.bf16.msra.mxu0 %v5037
    %7169 = vmatprep.subr.bf16.mxu0 %v5050
    %7170 = vmatpush1.bf16.msra.mxu0 %v5049
    %7171 = vmatprep.subr.bf16.mxu0 %v5062
    %7172 = vmatpush1.bf16.msra.mxu0 %v5061
    %7173 = vmatprep.subr.bf16.mxu0 %v5074
    %7174 = vmatpush1.bf16.msra.mxu0 %v5073
    %7175 = vmatprep.subr.bf16.mxu0 %v5086
    %7176 = vmatpush1.bf16.msra.mxu0 %v5085
    %7177 = vmatprep.mubr.bf16.mxu0 %v7143
    %7178 = vmatmul.mubr.bf16.gmra.mrb[0].mxu0 %v7142
    %v7179 = vpop.f32.mrb[0].mxu0
    %v7180 = vadd.f32 0.0, %v7179
    %v7181 = vpop.f32.mrb[0].mxu0
    %v7182 = vadd.f32 0.0, %v7181
    %v7183 = vpop.f32.mrb[0].mxu0
    %v7184 = vpop.f32.mrb[0].mxu0
    %7185 = vdwg.mxu0
    %7186 = vmatprep.subr.bf16.mxu0 %v5098
    %7187 = vmatpush1.bf16.msra.mxu0 %v5097
    %7188 = vmatprep.subr.bf16.mxu0 %v5110
    %7189 = vmatpush1.bf16.msra.mxu0 %v5109
    %7190 = vmatprep.subr.bf16.mxu0 %v5122
    %7191 = vmatpush1.bf16.msra.mxu0 %v5121
    %7192 = vmatprep.subr.bf16.mxu0 %v5134
    %7193 = vmatpush1.bf16.msra.mxu0 %v5133
    %7194 = vmatprep.subr.bf16.mxu0 %v5146
    %7195 = vmatpush1.bf16.msra.mxu0 %v5145
    %7196 = vmatprep.subr.bf16.mxu0 %v5158
    %7197 = vmatpush1.bf16.msra.mxu0 %v5157
    %7198 = vmatprep.subr.bf16.mxu0 %v5170
    %7199 = vmatpush1.bf16.msra.mxu0 %v5169
    %7200 = vmatprep.subr.bf16.mxu0 %v5182
    %7201 = vmatpush1.bf16.msra.mxu0 %v5181
    %7202 = vmatprep.subr.bf16.mxu0 0
    %7203 = vmatpush1.bf16.msra.mxu0 0
    %7204 = vmatprep.subr.bf16.mxu0 0
    %7205 = vmatpush1.bf16.msra.mxu0 0
    %7206 = vmatprep.subr.bf16.mxu0 0
    %7207 = vmatpush1.bf16.msra.mxu0 0
    %7208 = vmatprep.subr.bf16.mxu0 0
    %7209 = vmatpush1.bf16.msra.mxu0 0
    %7210 = vmatprep.subr.bf16.mxu0 0
    %7211 = vmatpush1.bf16.msra.mxu0 0
    %7212 = vmatprep.subr.bf16.mxu0 0
    %7213 = vmatpush1.bf16.msra.mxu0 0
    %7214 = vmatprep.subr.bf16.mxu0 0
    %7215 = vmatpush1.bf16.msra.mxu0 0
    %7216 = vmatprep.subr.bf16.mxu0 0
    %7217 = vmatpush1.bf16.msra.mxu0 0
    %7218 = vmatprep.mubr.bf16.mxu0 0
    %7219 = vmatmul.mubr.bf16.gmra.mrb[0].mxu0 %v7144
    %v7220 = vpop.f32.mrb[0].mxu0
    %v7221 = vadd.f32 %v7180, %v7220
    %v7222 = vpop.f32.mrb[0].mxu0
    %v7223 = vadd.f32 %v7182, %v7222
    %v7224 = vpop.f32.mrb[0].mxu0
    %v7225 = vpop.f32.mrb[0].mxu0
    %7226 = vdwg.mxu0
    %7227 = vmatprep.subr.bf16.mxu0 %v4908
    %7228 = vmatpush1.bf16.msra.mxu0 %v4907
    %7229 = vmatprep.subr.bf16.mxu0 %v4920
    %7230 = vmatpush1.bf16.msra.mxu0 %v4919
    %7231 = vmatprep.subr.bf16.mxu0 %v4932
    %7232 = vmatpush1.bf16.msra.mxu0 %v4931
    %7233 = vmatprep.subr.bf16.mxu0 %v4944
    %7234 = vmatpush1.bf16.msra.mxu0 %v4943
    %7235 = vmatprep.subr.bf16.mxu0 %v4956
    %7236 = vmatpush1.bf16.msra.mxu0 %v4955
    %7237 = vmatprep.subr.bf16.mxu0 %v4968
    %7238 = vmatpush1.bf16.msra.mxu0 %v4967
    %7239 = vmatprep.subr.bf16.mxu0 %v4980
    %7240 = vmatpush1.bf16.msra.mxu0 %v4979
    %7241 = vmatprep.subr.bf16.mxu0 %v4992
    %7242 = vmatpush1.bf16.msra.mxu0 %v4991
    %7243 = vmatprep.subr.bf16.mxu0 %v5004
    %7244 = vmatpush1.bf16.msra.mxu0 %v5003
    %7245 = vmatprep.subr.bf16.mxu0 %v5016
    %7246 = vmatpush1.bf16.msra.mxu0 %v5015
    %7247 = vmatprep.subr.bf16.mxu0 %v5028
    %7248 = vmatpush1.bf16.msra.mxu0 %v5027
    %7249 = vmatprep.subr.bf16.mxu0 %v5040
    %7250 = vmatpush1.bf16.msra.mxu0 %v5039
    %7251 = vmatprep.subr.bf16.mxu0 %v5052
    %7252 = vmatpush1.bf16.msra.mxu0 %v5051
    %7253 = vmatprep.subr.bf16.mxu0 %v5064
    %7254 = vmatpush1.bf16.msra.mxu0 %v5063
    %7255 = vmatprep.subr.bf16.mxu0 %v5076
    %7256 = vmatpush1.bf16.msra.mxu0 %v5075
    %7257 = vmatprep.subr.bf16.mxu0 %v5088
    %7258 = vmatpush1.bf16.msra.mxu0 %v5087
    %7259 = vmatprep.mubr.bf16.mxu0 %v7143
    %7260 = vmatmul.mubr.bf16.gmra.mrb[0].mxu0 %v7142
    %v7261 = vpop.f32.mrb[0].mxu0
    %v7262 = vadd.f32 0.0, %v7261
    %v7263 = vpop.f32.mrb[0].mxu0
    %v7264 = vadd.f32 0.0, %v7263
    %v7265 = vpop.f32.mrb[0].mxu0
    %v7266 = vpop.f32.mrb[0].mxu0
    %7267 = vdwg.mxu0
    %7268 = vmatprep.subr.bf16.mxu0 %v5100
    %7269 = vmatpush1.bf16.msra.mxu0 %v5099
    %7270 = vmatprep.subr.bf16.mxu0 %v5112
    %7271 = vmatpush1.bf16.msra.mxu0 %v5111
    %7272 = vmatprep.subr.bf16.mxu0 %v5124
    %7273 = vmatpush1.bf16.msra.mxu0 %v5123
    %7274 = vmatprep.subr.bf16.mxu0 %v5136
    %7275 = vmatpush1.bf16.msra.mxu0 %v5135
    %7276 = vmatprep.subr.bf16.mxu0 %v5148
    %7277 = vmatpush1.bf16.msra.mxu0 %v5147
    %7278 = vmatprep.subr.bf16.mxu0 %v5160
    %7279 = vmatpush1.bf16.msra.mxu0 %v5159
    %7280 = vmatprep.subr.bf16.mxu0 %v5172
    %7281 = vmatpush1.bf16.msra.mxu0 %v5171
    %7282 = vmatprep.subr.bf16.mxu0 %v5184
    %7283 = vmatpush1.bf16.msra.mxu0 %v5183
    %7284 = vmatprep.subr.bf16.mxu0 0
    %7285 = vmatpush1.bf16.msra.mxu0 0
    %7286 = vmatprep.subr.bf16.mxu0 0
    %7287 = vmatpush1.bf16.msra.mxu0 0
    %7288 = vmatprep.subr.bf16.mxu0 0
    %7289 = vmatpush1.bf16.msra.mxu0 0
    %7290 = vmatprep.subr.bf16.mxu0 0
    %7291 = vmatpush1.bf16.msra.mxu0 0
    %7292 = vmatprep.subr.bf16.mxu0 0
    %7293 = vmatpush1.bf16.msra.mxu0 0
    %7294 = vmatprep.subr.bf16.mxu0 0
    %7295 = vmatpush1.bf16.msra.mxu0 0
    %7296 = vmatprep.subr.bf16.mxu0 0
    %7297 = vmatpush1.bf16.msra.mxu0 0
    %7298 = vmatprep.subr.bf16.mxu0 0
    %7299 = vmatpush1.bf16.msra.mxu0 0
    %7300 = vmatprep.mubr.bf16.mxu0 0
    %7301 = vmatmul.mubr.bf16.gmra.mrb[0].mxu0 %v7144
    %v7302 = vpop.f32.mrb[0].mxu0
    %v7303 = vadd.f32 %v7262, %v7302
    %v7304 = vpop.f32.mrb[0].mxu0
    %v7305 = vadd.f32 %v7264, %v7304
    %v7306 = vpop.f32.mrb[0].mxu0
    %v7307 = vpop.f32.mrb[0].mxu0
    %7308 = vdwg.mxu0
    %7309 = vmatprep.subr.bf16.mxu0 %v4910
    %7310 = vmatpush1.bf16.msra.mxu0 %v4909
    %7311 = vmatprep.subr.bf16.mxu0 %v4922
    %7312 = vmatpush1.bf16.msra.mxu0 %v4921
    %7313 = vmatprep.subr.bf16.mxu0 %v4934
    %7314 = vmatpush1.bf16.msra.mxu0 %v4933
    %7315 = vmatprep.subr.bf16.mxu0 %v4946
    %7316 = vmatpush1.bf16.msra.mxu0 %v4945
    %7317 = vmatprep.subr.bf16.mxu0 %v4958
    %7318 = vmatpush1.bf16.msra.mxu0 %v4957
    %7319 = vmatprep.subr.bf16.mxu0 %v4970
    %7320 = vmatpush1.bf16.msra.mxu0 %v4969
    %7321 = vmatprep.subr.bf16.mxu0 %v4982
    %7322 = vmatpush1.bf16.msra.mxu0 %v4981
    %7323 = vmatprep.subr.bf16.mxu0 %v4994
    %7324 = vmatpush1.bf16.msra.mxu0 %v4993
    %7325 = vmatprep.subr.bf16.mxu0 %v5006
    %7326 = vmatpush1.bf16.msra.mxu0 %v5005
    %7327 = vmatprep.subr.bf16.mxu0 %v5018
    %7328 = vmatpush1.bf16.msra.mxu0 %v5017
    %7329 = vmatprep.subr.bf16.mxu0 %v5030
    %7330 = vmatpush1.bf16.msra.mxu0 %v5029
    %7331 = vmatprep.subr.bf16.mxu0 %v5042
    %7332 = vmatpush1.bf16.msra.mxu0 %v5041
    %7333 = vmatprep.subr.bf16.mxu0 %v5054
    %7334 = vmatpush1.bf16.msra.mxu0 %v5053
    %7335 = vmatprep.subr.bf16.mxu0 %v5066
    %7336 = vmatpush1.bf16.msra.mxu0 %v5065
    %7337 = vmatprep.subr.bf16.mxu0 %v5078
    %7338 = vmatpush1.bf16.msra.mxu0 %v5077
    %7339 = vmatprep.subr.bf16.mxu0 %v5090
    %7340 = vmatpush1.bf16.msra.mxu0 %v5089
    %7341 = vmatprep.mubr.bf16.mxu0 %v7143
    %7342 = vmatmul.mubr.bf16.gmra.mrb[0].mxu0 %v7142
    %v7343 = vpop.f32.mrb[0].mxu0
    %v7344 = vadd.f32 0.0, %v7343
    %v7345 = vpop.f32.mrb[0].mxu0
    %v7346 = vadd.f32 0.0, %v7345
    %v7347 = vpop.f32.mrb[0].mxu0
    %v7348 = vpop.f32.mrb[0].mxu0
    %7349 = vdwg.mxu0
    %7350 = vmatprep.subr.bf16.mxu0 %v5102
    %7351 = vmatpush1.bf16.msra.mxu0 %v5101
    %7352 = vmatprep.subr.bf16.mxu0 %v5114
    %7353 = vmatpush1.bf16.msra.mxu0 %v5113
    %7354 = vmatprep.subr.bf16.mxu0 %v5126
    %7355 = vmatpush1.bf16.msra.mxu0 %v5125
    %7356 = vmatprep.subr.bf16.mxu0 %v5138
    %7357 = vmatpush1.bf16.msra.mxu0 %v5137
    %7358 = vmatprep.subr.bf16.mxu0 %v5150
    %7359 = vmatpush1.bf16.msra.mxu0 %v5149
    %7360 = vmatprep.subr.bf16.mxu0 %v5162
    %7361 = vmatpush1.bf16.msra.mxu0 %v5161
    %7362 = vmatprep.subr.bf16.mxu0 %v5174
    %7363 = vmatpush1.bf16.msra.mxu0 %v5173
    %7364 = vmatprep.subr.bf16.mxu0 %v5186
    %7365 = vmatpush1.bf16.msra.mxu0 %v5185
    %7366 = vmatprep.subr.bf16.mxu0 0
    %7367 = vmatpush1.bf16.msra.mxu0 0
    %7368 = vmatprep.subr.bf16.mxu0 0
    %7369 = vmatpush1.bf16.msra.mxu0 0
    %7370 = vmatprep.subr.bf16.mxu0 0
    %7371 = vmatpush1.bf16.msra.mxu0 0
    %7372 = vmatprep.subr.bf16.mxu0 0
    %7373 = vmatpush1.bf16.msra.mxu0 0
    %7374 = vmatprep.subr.bf16.mxu0 0
    %7375 = vmatpush1.bf16.msra.mxu0 0
    %7376 = vmatprep.subr.bf16.mxu0 0
    %7377 = vmatpush1.bf16.msra.mxu0 0
    %7378 = vmatprep.subr.bf16.mxu0 0
    %7379 = vmatpush1.bf16.msra.mxu0 0
    %7380 = vmatprep.subr.bf16.mxu0 0
    %7381 = vmatpush1.bf16.msra.mxu0 0
    %7382 = vmatprep.mubr.bf16.mxu0 0
    %7383 = vmatmul.mubr.bf16.gmra.mrb[0].mxu0 %v7144
    %v7384 = vpop.f32.mrb[0].mxu0
    %v7385 = vadd.f32 %v7344, %v7384
    %v7386 = vpop.f32.mrb[0].mxu0
    %v7387 = vadd.f32 %v7346, %v7386
    %v7388 = vpop.f32.mrb[0].mxu0
    %v7389 = vpop.f32.mrb[0].mxu0
    %7390 = vdwg.mxu0
    %7391 = vmatprep.subr.bf16.mxu0 %v4912
    %7392 = vmatpush1.bf16.msra.mxu0 %v4911
    %7393 = vmatprep.subr.bf16.mxu0 %v4924
    %7394 = vmatpush1.bf16.msra.mxu0 %v4923
    %7395 = vmatprep.subr.bf16.mxu0 %v4936
    %7396 = vmatpush1.bf16.msra.mxu0 %v4935
    %7397 = vmatprep.subr.bf16.mxu0 %v4948
    %7398 = vmatpush1.bf16.msra.mxu0 %v4947
    %7399 = vmatprep.subr.bf16.mxu0 %v4960
    %7400 = vmatpush1.bf16.msra.mxu0 %v4959
    %7401 = vmatprep.subr.bf16.mxu0 %v4972
    %7402 = vmatpush1.bf16.msra.mxu0 %v4971
    %7403 = vmatprep.subr.bf16.mxu0 %v4984
    %7404 = vmatpush1.bf16.msra.mxu0 %v4983
    %7405 = vmatprep.subr.bf16.mxu0 %v4996
    %7406 = vmatpush1.bf16.msra.mxu0 %v4995
    %7407 = vmatprep.subr.bf16.mxu0 %v5008
    %7408 = vmatpush1.bf16.msra.mxu0 %v5007
    %7409 = vmatprep.subr.bf16.mxu0 %v5020
    %7410 = vmatpush1.bf16.msra.mxu0 %v5019
    %7411 = vmatprep.subr.bf16.mxu0 %v5032
    %7412 = vmatpush1.bf16.msra.mxu0 %v5031
    %7413 = vmatprep.subr.bf16.mxu0 %v5044
    %7414 = vmatpush1.bf16.msra.mxu0 %v5043
    %7415 = vmatprep.subr.bf16.mxu0 %v5056
    %7416 = vmatpush1.bf16.msra.mxu0 %v5055
    %7417 = vmatprep.subr.bf16.mxu0 %v5068
    %7418 = vmatpush1.bf16.msra.mxu0 %v5067
    %7419 = vmatprep.subr.bf16.mxu0 %v5080
    %7420 = vmatpush1.bf16.msra.mxu0 %v5079
    %7421 = vmatprep.subr.bf16.mxu0 %v5092
    %7422 = vmatpush1.bf16.msra.mxu0 %v5091
    %7423 = vmatprep.mubr.bf16.mxu0 %v7143
    %7424 = vmatmul.mubr.bf16.gmra.mrb[0].mxu0 %v7142
    %v7425 = vpop.f32.mrb[0].mxu0
    %v7426 = vadd.f32 0.0, %v7425
    %v7427 = vpop.f32.mrb[0].mxu0
    %v7428 = vadd.f32 0.0, %v7427
    %v7429 = vpop.f32.mrb[0].mxu0
    %v7430 = vpop.f32.mrb[0].mxu0
    %7431 = vdwg.mxu0
    %7432 = vmatprep.subr.bf16.mxu0 %v5104
    %7433 = vmatpush1.bf16.msra.mxu0 %v5103
    %7434 = vmatprep.subr.bf16.mxu0 %v5116
    %7435 = vmatpush1.bf16.msra.mxu0 %v5115
    %7436 = vmatprep.subr.bf16.mxu0 %v5128
    %7437 = vmatpush1.bf16.msra.mxu0 %v5127
    %7438 = vmatprep.subr.bf16.mxu0 %v5140
    %7439 = vmatpush1.bf16.msra.mxu0 %v5139
    %7440 = vmatprep.subr.bf16.mxu0 %v5152
    %7441 = vmatpush1.bf16.msra.mxu0 %v5151
    %7442 = vmatprep.subr.bf16.mxu0 %v5164
    %7443 = vmatpush1.bf16.msra.mxu0 %v5163
    %7444 = vmatprep.subr.bf16.mxu0 %v5176
    %7445 = vmatpush1.bf16.msra.mxu0 %v5175
    %7446 = vmatprep.subr.bf16.mxu0 %v5188
    %7447 = vmatpush1.bf16.msra.mxu0 %v5187
    %7448 = vmatprep.subr.bf16.mxu0 0
    %7449 = vmatpush1.bf16.msra.mxu0 0
    %7450 = vmatprep.subr.bf16.mxu0 0
    %7451 = vmatpush1.bf16.msra.mxu0 0
    %7452 = vmatprep.subr.bf16.mxu0 0
    %7453 = vmatpush1.bf16.msra.mxu0 0
    %7454 = vmatprep.subr.bf16.mxu0 0
    %7455 = vmatpush1.bf16.msra.mxu0 0
    %7456 = vmatprep.subr.bf16.mxu0 0
    %7457 = vmatpush1.bf16.msra.mxu0 0
    %7458 = vmatprep.subr.bf16.mxu0 0
    %7459 = vmatpush1.bf16.msra.mxu0 0
    %7460 = vmatprep.subr.bf16.mxu0 0
    %7461 = vmatpush1.bf16.msra.mxu0 0
    %7462 = vmatprep.subr.bf16.mxu0 0
    %7463 = vmatpush1.bf16.msra.mxu0 0
    %7464 = vmatprep.mubr.bf16.mxu0 0
    %7465 = vmatmul.mubr.bf16.gmra.mrb[0].mxu0 %v7144
    %v7466 = vpop.f32.mrb[0].mxu0
    %v7467 = vadd.f32 %v7426, %v7466
    %v7468 = vpop.f32.mrb[0].mxu0
    %v7469 = vadd.f32 %v7428, %v7468
    %v7470 = vpop.f32.mrb[0].mxu0
    %v7471 = vpop.f32.mrb[0].mxu0
    %7472 = vdwg.mxu0
    %7473 = vmatprep.subr.bf16.mxu0 %v4914
    %7474 = vmatpush1.bf16.msra.mxu0 %v4913
    %7475 = vmatprep.subr.bf16.mxu0 %v4926
    %7476 = vmatpush1.bf16.msra.mxu0 %v4925
    %7477 = vmatprep.subr.bf16.mxu0 %v4938
    %7478 = vmatpush1.bf16.msra.mxu0 %v4937
    %7479 = vmatprep.subr.bf16.mxu0 %v4950
    %7480 = vmatpush1.bf16.msra.mxu0 %v4949
    %7481 = vmatprep.subr.bf16.mxu0 %v4962
    %7482 = vmatpush1.bf16.msra.mxu0 %v4961
    %7483 = vmatprep.subr.bf16.mxu0 %v4974
    %7484 = vmatpush1.bf16.msra.mxu0 %v4973
    %7485 = vmatprep.subr.bf16.mxu0 %v4986
    %7486 = vmatpush1.bf16.msra.mxu0 %v4985
    %7487 = vmatprep.subr.bf16.mxu0 %v4998
    %7488 = vmatpush1.bf16.msra.mxu0 %v4997
    %7489 = vmatprep.subr.bf16.mxu0 %v5010
    %7490 = vmatpush1.bf16.msra.mxu0 %v5009
    %7491 = vmatprep.subr.bf16.mxu0 %v5022
    %7492 = vmatpush1.bf16.msra.mxu0 %v5021
    %7493 = vmatprep.subr.bf16.mxu0 %v5034
    %7494 = vmatpush1.bf16.msra.mxu0 %v5033
    %7495 = vmatprep.subr.bf16.mxu0 %v5046
    %7496 = vmatpush1.bf16.msra.mxu0 %v5045
    %7497 = vmatprep.subr.bf16.mxu0 %v5058
    %7498 = vmatpush1.bf16.msra.mxu0 %v5057
    %7499 = vmatprep.subr.bf16.mxu0 %v5070
    %7500 = vmatpush1.bf16.msra.mxu0 %v5069
    %7501 = vmatprep.subr.bf16.mxu0 %v5082
    %7502 = vmatpush1.bf16.msra.mxu0 %v5081
    %7503 = vmatprep.subr.bf16.mxu0 %v5094
    %7504 = vmatpush1.bf16.msra.mxu0 %v5093
    %7505 = vmatprep.mubr.bf16.mxu0 %v7143
    %7506 = vmatmul.mubr.bf16.gmra.mrb[0].mxu0 %v7142
    %v7507 = vpop.f32.mrb[0].mxu0
    %v7508 = vadd.f32 0.0, %v7507
    %v7509 = vpop.f32.mrb[0].mxu0
    %v7510 = vadd.f32 0.0, %v7509
    %v7511 = vpop.f32.mrb[0].mxu0
    %v7512 = vpop.f32.mrb[0].mxu0
    %7513 = vdwg.mxu0
    %7514 = vmatprep.subr.bf16.mxu0 %v5106
    %7515 = vmatpush1.bf16.msra.mxu0 %v5105
    %7516 = vmatprep.subr.bf16.mxu0 %v5118
    %7517 = vmatpush1.bf16.msra.mxu0 %v5117
    %7518 = vmatprep.subr.bf16.mxu0 %v5130
    %7519 = vmatpush1.bf16.msra.mxu0 %v5129
    %7520 = vmatprep.subr.bf16.mxu0 %v5142
    %7521 = vmatpush1.bf16.msra.mxu0 %v5141
    %7522 = vmatprep.subr.bf16.mxu0 %v5154
    %7523 = vmatpush1.bf16.msra.mxu0 %v5153
    %7524 = vmatprep.subr.bf16.mxu0 %v5166
    %7525 = vmatpush1.bf16.msra.mxu0 %v5165
    %7526 = vmatprep.subr.bf16.mxu0 %v5178
    %7527 = vmatpush1.bf16.msra.mxu0 %v5177
    %7528 = vmatprep.subr.bf16.mxu0 %v5190
    %7529 = vmatpush1.bf16.msra.mxu0 %v5189
    %7530 = vmatprep.subr.bf16.mxu0 0
    %7531 = vmatpush1.bf16.msra.mxu0 0
    %7532 = vmatprep.subr.bf16.mxu0 0
    %7533 = vmatpush1.bf16.msra.mxu0 0
    %7534 = vmatprep.subr.bf16.mxu0 0
    %7535 = vmatpush1.bf16.msra.mxu0 0
    %7536 = vmatprep.subr.bf16.mxu0 0
    %7537 = vmatpush1.bf16.msra.mxu0 0
    %7538 = vmatprep.subr.bf16.mxu0 0
    %7539 = vmatpush1.bf16.msra.mxu0 0
    %7540 = vmatprep.subr.bf16.mxu0 0
    %7541 = vmatpush1.bf16.msra.mxu0 0
    %7542 = vmatprep.subr.bf16.mxu0 0
    %7543 = vmatpush1.bf16.msra.mxu0 0
    %7544 = vmatprep.subr.bf16.mxu0 0
    %7545 = vmatpush1.bf16.msra.mxu0 0
    %7546 = vmatprep.mubr.bf16.mxu0 0
    %7547 = vmatmul.mubr.bf16.gmra.mrb[0].mxu0 %v7144
    %v7548 = vpop.f32.mrb[0].mxu0
    %v7549 = vadd.f32 %v7508, %v7548
    %v7550 = vpop.f32.mrb[0].mxu0
    %v7551 = vadd.f32 %v7510, %v7550
    %v7552 = vpop.f32.mrb[0].mxu0
    %v7553 = vpop.f32.mrb[0].mxu0
    %7554 = vdwg.mxu0
    %7555 = vmatprep.subr.bf16.mxu0 %v4916
    %7556 = vmatpush1.bf16.msra.mxu0 %v4915
    %7557 = vmatprep.subr.bf16.mxu0 %v4928
    %7558 = vmatpush1.bf16.msra.mxu0 %v4927
    %7559 = vmatprep.subr.bf16.mxu0 %v4940
    %7560 = vmatpush1.bf16.msra.mxu0 %v4939
    %7561 = vmatprep.subr.bf16.mxu0 %v4952
    %7562 = vmatpush1.bf16.msra.mxu0 %v4951
    %7563 = vmatprep.subr.bf16.mxu0 %v4964
    %7564 = vmatpush1.bf16.msra.mxu0 %v4963
    %7565 = vmatprep.subr.bf16.mxu0 %v4976
    %7566 = vmatpush1.bf16.msra.mxu0 %v4975
    %7567 = vmatprep.subr.bf16.mxu0 %v4988
    %7568 = vmatpush1.bf16.msra.mxu0 %v4987
    %7569 = vmatprep.subr.bf16.mxu0 %v5000
    %7570 = vmatpush1.bf16.msra.mxu0 %v4999
    %7571 = vmatprep.subr.bf16.mxu0 %v5012
    %7572 = vmatpush1.bf16.msra.mxu0 %v5011
    %7573 = vmatprep.subr.bf16.mxu0 %v5024
    %7574 = vmatpush1.bf16.msra.mxu0 %v5023
    %7575 = vmatprep.subr.bf16.mxu0 %v5036
    %7576 = vmatpush1.bf16.msra.mxu0 %v5035
    %7577 = vmatprep.subr.bf16.mxu0 %v5048
    %7578 = vmatpush1.bf16.msra.mxu0 %v5047
    %7579 = vmatprep.subr.bf16.mxu0 %v5060
    %7580 = vmatpush1.bf16.msra.mxu0 %v5059
    %7581 = vmatprep.subr.bf16.mxu0 %v5072
    %7582 = vmatpush1.bf16.msra.mxu0 %v5071
    %7583 = vmatprep.subr.bf16.mxu0 %v5084
    %7584 = vmatpush1.bf16.msra.mxu0 %v5083
    %7585 = vmatprep.subr.bf16.mxu0 %v5096
    %7586 = vmatpush1.bf16.msra.mxu0 %v5095
    %7587 = vmatprep.mubr.bf16.mxu0 %v7143
    %7588 = vmatmul.mubr.bf16.gmra.mrb[0].mxu0 %v7142
    %v7589 = vpop.f32.mrb[0].mxu0
    %v7590 = vadd.f32 0.0, %v7589
    %v7591 = vpop.f32.mrb[0].mxu0
    %v7592 = vadd.f32 0.0, %v7591
    %v7593 = vpop.f32.mrb[0].mxu0
    %v7594 = vpop.f32.mrb[0].mxu0
    %7595 = vdwg.mxu0
    %7596 = vmatprep.subr.bf16.mxu0 %v5108
    %7597 = vmatpush1.bf16.msra.mxu0 %v5107
    %7598 = vmatprep.subr.bf16.mxu0 %v5120
    %7599 = vmatpush1.bf16.msra.mxu0 %v5119
    %7600 = vmatprep.subr.bf16.mxu0 %v5132
    %7601 = vmatpush1.bf16.msra.mxu0 %v5131
    %7602 = vmatprep.subr.bf16.mxu0 %v5144
    %7603 = vmatpush1.bf16.msra.mxu0 %v5143
    %7604 = vmatprep.subr.bf16.mxu0 %v5156
    %7605 = vmatpush1.bf16.msra.mxu0 %v5155
    %7606 = vmatprep.subr.bf16.mxu0 %v5168
    %7607 = vmatpush1.bf16.msra.mxu0 %v5167
    %7608 = vmatprep.subr.bf16.mxu0 %v5180
    %7609 = vmatpush1.bf16.msra.mxu0 %v5179
    %7610 = vmatprep.subr.bf16.mxu0 %v5192
    %7611 = vmatpush1.bf16.msra.mxu0 %v5191
    %7612 = vmatprep.subr.bf16.mxu0 0
    %7613 = vmatpush1.bf16.msra.mxu0 0
    %7614 = vmatprep.subr.bf16.mxu0 0
    %7615 = vmatpush1.bf16.msra.mxu0 0
    %7616 = vmatprep.subr.bf16.mxu0 0
    %7617 = vmatpush1.bf16.msra.mxu0 0
    %7618 = vmatprep.subr.bf16.mxu0 0
    %7619 = vmatpush1.bf16.msra.mxu0 0
    %7620 = vmatprep.subr.bf16.mxu0 0
    %7621 = vmatpush1.bf16.msra.mxu0 0
    %7622 = vmatprep.subr.bf16.mxu0 0
    %7623 = vmatpush1.bf16.msra.mxu0 0
    %7624 = vmatprep.subr.bf16.mxu0 0
    %7625 = vmatpush1.bf16.msra.mxu0 0
    %7626 = vmatprep.subr.bf16.mxu0 0
    %7627 = vmatpush1.bf16.msra.mxu0 0
    %7628 = vmatprep.mubr.bf16.mxu0 0
    %7629 = vmatmul.mubr.bf16.gmra.mrb[0].mxu0 %v7144
    %v7630 = vpop.f32.mrb[0].mxu0
    %v7631 = vadd.f32 %v7590, %v7630
    %v7632 = vpop.f32.mrb[0].mxu0
    %v7633 = vadd.f32 %v7592, %v7632
    %v7634 = vpop.f32.mrb[0].mxu0
    %v7635 = vpop.f32.mrb[0].mxu0
    %7636 = vdwg.mxu0
    %v7637 = vadd.f32 %v7130, %v7221
    %v7638 = vadd.f32 %v7131, %v7223
    %v7639 = vadd.f32 %v7132, %v7303
    %v7640 = vadd.f32 %v7133, %v7305
    %v7641 = vadd.f32 %v7134, %v7385
    %v7642 = vadd.f32 %v7135, %v7387
    %v7643 = vadd.f32 %v7136, %v7467
    %v7644 = vadd.f32 %v7137, %v7469
    %v7645 = vadd.f32 %v7138, %v7549
    %v7646 = vadd.f32 %v7139, %v7551
    %v7647 = vadd.f32 %v7140, %v7631
    %v7648 = vadd.f32 %v7141, %v7633
    %v7649 = vxor.u32 %v7637, 2147483648
    %v7650 = vxor.u32 %v7638, 2147483648
    %v7651 = vxor.u32 %v7639, 2147483648
    %v7652 = vmul.f32 %v7649, 1.442695
    %v7653 = vpow.pop %v7652
    %v7654 = vmul.f32 %v7650, 1.442695
    %v7655 = vpow.pop %v7654
    %v7656 = vmul.f32 %v7651, 1.442695
    %v7657 = vpow.pop %v7656
    %v7658 = vadd.f32 %v7653, 1.0
    %v7659 = vadd.f32 %v7655, 1.0
    %v7660 = vadd.f32 %v7657, 1.0
    %v7661 = vrcp.pop %v7658
    %v7662 = vmul.f32 1.0, %v7661
    %v7663 = vrcp.pop %v7659
    %v7664 = vmul.f32 1.0, %v7663
    %v7665 = vrcp.pop %v7660
    %v7666 = vmul.f32 1.0, %v7665
    %v7667 = vxor.u32 %v7640, 2147483648
    %v7668 = vxor.u32 %v7641, 2147483648
    %v7669 = vxor.u32 %v7642, 2147483648
    %v7670 = vmul.f32 %v7667, 1.442695
    %v7671 = vpow.pop %v7670
    %v7672 = vmul.f32 %v7668, 1.442695
    %v7673 = vpow.pop %v7672
    %v7674 = vmul.f32 %v7669, 1.442695
    %v7675 = vpow.pop %v7674
    %v7676 = vadd.f32 %v7671, 1.0
    %v7677 = vadd.f32 %v7673, 1.0
    %v7678 = vadd.f32 %v7675, 1.0
    %v7679 = vrcp.pop %v7676
    %v7680 = vmul.f32 1.0, %v7679
    %v7681 = vrcp.pop %v7677
    %v7682 = vmul.f32 1.0, %v7681
    %v7683 = vrcp.pop %v7678
    %v7684 = vmul.f32 1.0, %v7683
    %v7685 = vtanh.pop %v7643
    %v7686 = vtanh.pop %v7644
    %v7687 = vtanh.pop %v7645
    %v7688 = vxor.u32 %v7646, 2147483648
    %v7689 = vxor.u32 %v7647, 2147483648
    %v7690 = vxor.u32 %v7648, 2147483648
    %v7691 = vmul.f32 %v7688, 1.442695
    %v7692 = vpow.pop %v7691
    %v7693 = vmul.f32 %v7689, 1.442695
    %v7694 = vpow.pop %v7693
    %v7695 = vmul.f32 %v7690, 1.442695
    %v7696 = vpow.pop %v7695
    %v7697 = vadd.f32 %v7692, 1.0
    %v7698 = vadd.f32 %v7694, 1.0
    %v7699 = vadd.f32 %v7696, 1.0
    %v7700 = vrcp.pop %v7697
    %v7701 = vmul.f32 1.0, %v7700
    %v7702 = vrcp.pop %v7698
    %v7703 = vmul.f32 1.0, %v7702
    %v7704 = vrcp.pop %v7699
    %v7705 = vmul.f32 1.0, %v7704
    %v7706 = vmul.f32 %v7680, %v7085
    %v7707 = vmul.f32 %v7682, %v7086
    %v7708 = vmul.f32 %v7684, %v7087
    %v7709 = vmul.f32 %v7662, %v7685
    %v7710 = vmul.f32 %v7664, %v7686
    %v7711 = vmul.f32 %v7666, %v7687
    %v7712 = vadd.f32 %v7706, %v7709
    %v7713 = vadd.f32 %v7707, %v7710
    %v7714 = vadd.f32 %v7708, %v7711
    %v7715 = vtanh.pop %v7712
    %v7716 = vtanh.pop %v7713
    %v7717 = vtanh.pop %v7714
    %v7718 = vmul.f32 %v7701, %v7715
    %v7719 = vmul.f32 %v7703, %v7716
    %v7720 = vmul.f32 %v7705, %v7717
    %s7721 = smul.u32 4, 2
    %s7722 = smul.u32 %s7721, 6
    %s7723 = sshll.u32 %s7722, 4
    %7724 = dma.done %s149, %s7723
    %s7725 = smul.u32 %s4901, 1
    %s7726 = sshll.u32 %s7725, 4
    %7727 = dma.done %s178, %s7726
    %s7728 = smul.u32 4, 96
    %s7729 = smul.u32 %s7728, 1
    %s7730 = sshll.u32 %s7729, 4
    %7731 = dma.done %s190, %s7730
    %v7732 = vld [vmem:[#allocation3] sm:$0xff]
    %v7733 = vld [vmem:[#allocation3 + $0x8] sm:$0xff]
    %v7734 = vld [vmem:[#allocation3 + $0x10] sm:$0xff]
    %v7735 = vld [vmem:[#allocation3 + $0x18] sm:$0xff]
    %v7736 = vld [vmem:[#allocation3 + $0x20] sm:$0xff]
    %v7737 = vld [vmem:[#allocation3 + $0x28] sm:$0xff]
    %v7738 = vpack.c.bf16 %v7718, %v7718
    %v7739 = vpack.c.bf16 %v7719, %v7719
    %v7740 = vpack.c.bf16 %v7720, %v7720
    %v7741 = vld [vmem:[#allocation4] sm:$0xff]
    %v7742 = vld [vmem:[#allocation4 + $0x8] sm:$0xff]
    %v7743 = vld [vmem:[#allocation4 + $0x10] sm:$0xff]
    %v7744 = vld [vmem:[#allocation4 + $0x18] sm:$0xff]
    %v7745 = vld [vmem:[#allocation4 + $0x20] sm:$0xff]
    %v7746 = vld [vmem:[#allocation4 + $0x28] sm:$0xff]
    %v7747 = vld [vmem:[#allocation4 + $0x30] sm:$0xff]
    %v7748 = vld [vmem:[#allocation4 + $0x38] sm:$0xff]
    %v7749 = vld [vmem:[#allocation4 + $0x40] sm:$0xff]
    %v7750 = vld [vmem:[#allocation4 + $0x48] sm:$0xff]
    %v7751 = vld [vmem:[#allocation4 + $0x50] sm:$0xff]
    %v7752 = vld [vmem:[#allocation4 + $0x58] sm:$0xff]
    %v7753 = vld [vmem:[#allocation4 + $0x60] sm:$0xff]
    %v7754 = vld [vmem:[#allocation4 + $0x68] sm:$0xff]
    %v7755 = vld [vmem:[#allocation4 + $0x70] sm:$0xff]
    %v7756 = vld [vmem:[#allocation4 + $0x78] sm:$0xff]
    %v7757 = vld [vmem:[#allocation4 + $0x80] sm:$0xff]
    %v7758 = vld [vmem:[#allocation4 + $0x88] sm:$0xff]
    %v7759 = vld [vmem:[#allocation4 + $0x90] sm:$0xff]
    %v7760 = vld [vmem:[#allocation4 + $0x98] sm:$0xff]
    %v7761 = vld [vmem:[#allocation4 + $0xa0] sm:$0xff]
    %v7762 = vld [vmem:[#allocation4 + $0xa8] sm:$0xff]
    %v7763 = vld [vmem:[#allocation4 + $0xb0] sm:$0xff]
    %v7764 = vld [vmem:[#allocation4 + $0xb8] sm:$0xff]
    %7765 = vmatprep.subr.bf16.mxu0 0
    %7766 = vmatpush1.bf16.msra.mxu0 %v7741
    %7767 = vmatprep.subr.bf16.mxu0 0
    %7768 = vmatpush1.bf16.msra.mxu0 %v7742
    %7769 = vmatprep.subr.bf16.mxu0 0
    %7770 = vmatpush1.bf16.msra.mxu0 %v7743
    %7771 = vmatprep.subr.bf16.mxu0 0
    %7772 = vmatpush1.bf16.msra.mxu0 %v7744
    %7773 = vmatprep.subr.bf16.mxu0 0
    %7774 = vmatpush1.bf16.msra.mxu0 %v7745
    %7775 = vmatprep.subr.bf16.mxu0 0
    %7776 = vmatpush1.bf16.msra.mxu0 %v7746
    %7777 = vmatprep.subr.bf16.mxu0 0
    %7778 = vmatpush1.bf16.msra.mxu0 %v7747
    %7779 = vmatprep.subr.bf16.mxu0 0
    %7780 = vmatpush1.bf16.msra.mxu0 %v7748
    %7781 = vmatprep.subr.bf16.mxu0 0
    %7782 = vmatpush1.bf16.msra.mxu0 %v7749
    %7783 = vmatprep.subr.bf16.mxu0 0
    %7784 = vmatpush1.bf16.msra.mxu0 %v7750
    %7785 = vmatprep.subr.bf16.mxu0 0
    %7786 = vmatpush1.bf16.msra.mxu0 %v7751
    %7787 = vmatprep.subr.bf16.mxu0 0
    %7788 = vmatpush1.bf16.msra.mxu0 %v7752
    %7789 = vmatprep.subr.bf16.mxu0 0
    %7790 = vmatpush1.bf16.msra.mxu0 %v7753
    %7791 = vmatprep.subr.bf16.mxu0 0
    %7792 = vmatpush1.bf16.msra.mxu0 %v7754
    %7793 = vmatprep.subr.bf16.mxu0 0
    %7794 = vmatpush1.bf16.msra.mxu0 %v7755
    %7795 = vmatprep.subr.bf16.mxu0 0
    %7796 = vmatpush1.bf16.msra.mxu0 %v7756
    %7797 = vmatprep.mubr.bf16.mxu0 %v7739
    %7798 = vmatmul.mubr.bf16.gmra.mrb[0].mxu0 %v7738
    %v7799 = vpop.f32.mrb[0].mxu0
    %v7800 = vadd.f32 0.0, %v7799
    %v7801 = vpop.f32.mrb[0].mxu0
    %v7802 = vpop.f32.mrb[0].mxu0
    %v7803 = vpop.f32.mrb[0].mxu0
    %7804 = vdwg.mxu0
    %7805 = vmatprep.subr.bf16.mxu0 0
    %7806 = vmatpush1.bf16.msra.mxu0 %v7757
    %7807 = vmatprep.subr.bf16.mxu0 0
    %7808 = vmatpush1.bf16.msra.mxu0 %v7758
    %7809 = vmatprep.subr.bf16.mxu0 0
    %7810 = vmatpush1.bf16.msra.mxu0 %v7759
    %7811 = vmatprep.subr.bf16.mxu0 0
    %7812 = vmatpush1.bf16.msra.mxu0 %v7760
    %7813 = vmatprep.subr.bf16.mxu0 0
    %7814 = vmatpush1.bf16.msra.mxu0 %v7761
    %7815 = vmatprep.subr.bf16.mxu0 0
    %7816 = vmatpush1.bf16.msra.mxu0 %v7762
    %7817 = vmatprep.subr.bf16.mxu0 0
    %7818 = vmatpush1.bf16.msra.mxu0 %v7763
    %7819 = vmatprep.subr.bf16.mxu0 0
    %7820 = vmatpush1.bf16.msra.mxu0 %v7764
    %7821 = vmatprep.subr.bf16.mxu0 0
    %7822 = vmatpush1.bf16.msra.mxu0 0
    %7823 = vmatprep.subr.bf16.mxu0 0
    %7824 = vmatpush1.bf16.msra.mxu0 0
    %7825 = vmatprep.subr.bf16.mxu0 0
    %7826 = vmatpush1.bf16.msra.mxu0 0
    %7827 = vmatprep.subr.bf16.mxu0 0
    %7828 = vmatpush1.bf16.msra.mxu0 0
    %7829 = vmatprep.subr.bf16.mxu0 0
    %7830 = vmatpush1.bf16.msra.mxu0 0
    %7831 = vmatprep.subr.bf16.mxu0 0
    %7832 = vmatpush1.bf16.msra.mxu0 0
    %7833 = vmatprep.subr.bf16.mxu0 0
    %7834 = vmatpush1.bf16.msra.mxu0 0
    %7835 = vmatprep.subr.bf16.mxu0 0
    %7836 = vmatpush1.bf16.msra.mxu0 0
    %7837 = vmatprep.mubr.bf16.mxu0 0
    %7838 = vmatmul.mubr.bf16.gmra.mrb[0].mxu0 %v7740
    %v7839 = vpop.f32.mrb[0].mxu0
    %v7840 = vadd.f32 %v7800, %v7839
    %v7841 = vpop.f32.mrb[0].mxu0
    %v7842 = vpop.f32.mrb[0].mxu0
    %v7843 = vpop.f32.mrb[0].mxu0
    %7844 = vdwg.mxu0
    %v7845 = vld [vmem:[#allocation5] sm:$0xff]
    %v7846 = vld [vmem:[#allocation5 + $0x8] sm:$0xff]
    %v7847 = vld [vmem:[#allocation5 + $0x10] sm:$0xff]
    %v7848 = vld [vmem:[#allocation5 + $0x18] sm:$0xff]
    %v7849 = vld [vmem:[#allocation5 + $0x20] sm:$0xff]
    %v7850 = vld [vmem:[#allocation5 + $0x28] sm:$0xff]
    %v7851 = vld [vmem:[#allocation5 + $0x30] sm:$0xff]
    %v7852 = vld [vmem:[#allocation5 + $0x38] sm:$0xff]
    %v7853 = vld [vmem:[#allocation5 + $0x40] sm:$0xff]
    %v7854 = vld [vmem:[#allocation5 + $0x48] sm:$0xff]
    %v7855 = vld [vmem:[#allocation5 + $0x50] sm:$0xff]
    %v7856 = vld [vmem:[#allocation5 + $0x58] sm:$0xff]
    %v7857 = vld [vmem:[#allocation5 + $0x60] sm:$0xff]
    %v7858 = vld [vmem:[#allocation5 + $0x68] sm:$0xff]
    %v7859 = vld [vmem:[#allocation5 + $0x70] sm:$0xff]
    %v7860 = vld [vmem:[#allocation5 + $0x78] sm:$0xff]
    %v7861 = vld [vmem:[#allocation5 + $0x80] sm:$0xff]
    %v7862 = vld [vmem:[#allocation5 + $0x88] sm:$0xff]
    %v7863 = vld [vmem:[#allocation5 + $0x90] sm:$0xff]
    %v7864 = vld [vmem:[#allocation5 + $0x98] sm:$0xff]
    %v7865 = vld [vmem:[#allocation5 + $0xa0] sm:$0xff]
    %v7866 = vld [vmem:[#allocation5 + $0xa8] sm:$0xff]
    %v7867 = vld [vmem:[#allocation5 + $0xb0] sm:$0xff]
    %v7868 = vld [vmem:[#allocation5 + $0xb8] sm:$0xff]
    %v7869 = vld [vmem:[#allocation5 + $0xc0] sm:$0xff]
    %v7870 = vld [vmem:[#allocation5 + $0xc8] sm:$0xff]
    %v7871 = vld [vmem:[#allocation5 + $0xd0] sm:$0xff]
    %v7872 = vld [vmem:[#allocation5 + $0xd8] sm:$0xff]
    %v7873 = vld [vmem:[#allocation5 + $0xe0] sm:$0xff]
    %v7874 = vld [vmem:[#allocation5 + $0xe8] sm:$0xff]
    %v7875 = vld [vmem:[#allocation5 + $0xf0] sm:$0xff]
    %v7876 = vld [vmem:[#allocation5 + $0xf8] sm:$0xff]
    %v7877 = vld [vmem:[#allocation5 + $0x100] sm:$0xff]
    %v7878 = vld [vmem:[#allocation5 + $0x108] sm:$0xff]
    %v7879 = vld [vmem:[#allocation5 + $0x110] sm:$0xff]
    %v7880 = vld [vmem:[#allocation5 + $0x118] sm:$0xff]
    %v7881 = vld [vmem:[#allocation5 + $0x120] sm:$0xff]
    %v7882 = vld [vmem:[#allocation5 + $0x128] sm:$0xff]
    %v7883 = vld [vmem:[#allocation5 + $0x130] sm:$0xff]
    %v7884 = vld [vmem:[#allocation5 + $0x138] sm:$0xff]
    %v7885 = vld [vmem:[#allocation5 + $0x140] sm:$0xff]
    %v7886 = vld [vmem:[#allocation5 + $0x148] sm:$0xff]
    %v7887 = vld [vmem:[#allocation5 + $0x150] sm:$0xff]
    %v7888 = vld [vmem:[#allocation5 + $0x158] sm:$0xff]
    %v7889 = vld [vmem:[#allocation5 + $0x160] sm:$0xff]
    %v7890 = vld [vmem:[#allocation5 + $0x168] sm:$0xff]
    %v7891 = vld [vmem:[#allocation5 + $0x170] sm:$0xff]
    %v7892 = vld [vmem:[#allocation5 + $0x178] sm:$0xff]
    %7893 = vmatprep.subr.bf16.mxu0 0
    %7894 = vmatpush1.bf16.msra.mxu0 %v7845
    %7895 = vmatprep.subr.bf16.mxu0 0
    %7896 = vmatpush1.bf16.msra.mxu0 %v7846
    %7897 = vmatprep.subr.bf16.mxu0 0
    %7898 = vmatpush1.bf16.msra.mxu0 %v7847
    %7899 = vmatprep.subr.bf16.mxu0 0
    %7900 = vmatpush1.bf16.msra.mxu0 %v7848
    %7901 = vmatprep.subr.bf16.mxu0 0
    %7902 = vmatpush1.bf16.msra.mxu0 %v7849
    %7903 = vmatprep.subr.bf16.mxu0 0
    %7904 = vmatpush1.bf16.msra.mxu0 %v7850
    %7905 = vmatprep.subr.bf16.mxu0 0
    %7906 = vmatpush1.bf16.msra.mxu0 %v7851
    %7907 = vmatprep.subr.bf16.mxu0 0
    %7908 = vmatpush1.bf16.msra.mxu0 %v7852
    %7909 = vmatprep.subr.bf16.mxu0 0
    %7910 = vmatpush1.bf16.msra.mxu0 %v7853
    %7911 = vmatprep.subr.bf16.mxu0 0
    %7912 = vmatpush1.bf16.msra.mxu0 %v7854
    %7913 = vmatprep.subr.bf16.mxu0 0
    %7914 = vmatpush1.bf16.msra.mxu0 %v7855
    %7915 = vmatprep.subr.bf16.mxu0 0
    %7916 = vmatpush1.bf16.msra.mxu0 %v7856
    %7917 = vmatprep.subr.bf16.mxu0 0
    %7918 = vmatpush1.bf16.msra.mxu0 %v7857
    %7919 = vmatprep.subr.bf16.mxu0 0
    %7920 = vmatpush1.bf16.msra.mxu0 %v7858
    %7921 = vmatprep.subr.bf16.mxu0 0
    %7922 = vmatpush1.bf16.msra.mxu0 %v7859
    %7923 = vmatprep.subr.bf16.mxu0 0
    %7924 = vmatpush1.bf16.msra.mxu0 %v7860
    %7925 = vmatprep.mubr.bf16.mxu0 %v7733
    %7926 = vmatmul.mubr.bf16.gmra.mrb[0].mxu0 %v7732
    %v7927 = vpop.f32.mrb[0].mxu0
    %v7928 = vadd.f32 0.0, %v7927
    %v7929 = vpop.f32.mrb[0].mxu0
    %v7930 = vpop.f32.mrb[0].mxu0
    %v7931 = vadd.f32 0.0, %v7930
    %v7932 = vpop.f32.mrb[0].mxu0
    %7933 = vdwg.mxu0
    %7934 = vmatprep.subr.bf16.mxu0 0
    %7935 = vmatpush1.bf16.msra.mxu0 %v7861
    %7936 = vmatprep.subr.bf16.mxu0 0
    %7937 = vmatpush1.bf16.msra.mxu0 %v7862
    %7938 = vmatprep.subr.bf16.mxu0 0
    %7939 = vmatpush1.bf16.msra.mxu0 %v7863
    %7940 = vmatprep.subr.bf16.mxu0 0
    %7941 = vmatpush1.bf16.msra.mxu0 %v7864
    %7942 = vmatprep.subr.bf16.mxu0 0
    %7943 = vmatpush1.bf16.msra.mxu0 %v7865
    %7944 = vmatprep.subr.bf16.mxu0 0
    %7945 = vmatpush1.bf16.msra.mxu0 %v7866
    %7946 = vmatprep.subr.bf16.mxu0 0
    %7947 = vmatpush1.bf16.msra.mxu0 %v7867
    %7948 = vmatprep.subr.bf16.mxu0 0
    %7949 = vmatpush1.bf16.msra.mxu0 %v7868
    %7950 = vmatprep.subr.bf16.mxu0 0
    %7951 = vmatpush1.bf16.msra.mxu0 %v7869
    %7952 = vmatprep.subr.bf16.mxu0 0
    %7953 = vmatpush1.bf16.msra.mxu0 %v7870
    %7954 = vmatprep.subr.bf16.mxu0 0
    %7955 = vmatpush1.bf16.msra.mxu0 %v7871
    %7956 = vmatprep.subr.bf16.mxu0 0
    %7957 = vmatpush1.bf16.msra.mxu0 %v7872
    %7958 = vmatprep.subr.bf16.mxu0 0
    %7959 = vmatpush1.bf16.msra.mxu0 %v7873
    %7960 = vmatprep.subr.bf16.mxu0 0
    %7961 = vmatpush1.bf16.msra.mxu0 %v7874
    %7962 = vmatprep.subr.bf16.mxu0 0
    %7963 = vmatpush1.bf16.msra.mxu0 %v7875
    %7964 = vmatprep.subr.bf16.mxu0 0
    %7965 = vmatpush1.bf16.msra.mxu0 %v7876
    %7966 = vmatprep.mubr.bf16.mxu0 %v7735
    %7967 = vmatmul.mubr.bf16.gmra.mrb[0].mxu0 %v7734
    %v7968 = vpop.f32.mrb[0].mxu0
    %v7969 = vadd.f32 %v7928, %v7968
    %v7970 = vpop.f32.mrb[0].mxu0
    %v7971 = vpop.f32.mrb[0].mxu0
    %v7972 = vadd.f32 %v7931, %v7971
    %v7973 = vpop.f32.mrb[0].mxu0
    %7974 = vdwg.mxu0
    %7975 = vmatprep.subr.bf16.mxu0 0
    %7976 = vmatpush1.bf16.msra.mxu0 %v7877
    %7977 = vmatprep.subr.bf16.mxu0 0
    %7978 = vmatpush1.bf16.msra.mxu0 %v7878
    %7979 = vmatprep.subr.bf16.mxu0 0
    %7980 = vmatpush1.bf16.msra.mxu0 %v7879
    %7981 = vmatprep.subr.bf16.mxu0 0
    %7982 = vmatpush1.bf16.msra.mxu0 %v7880
    %7983 = vmatprep.subr.bf16.mxu0 0
    %7984 = vmatpush1.bf16.msra.mxu0 %v7881
    %7985 = vmatprep.subr.bf16.mxu0 0
    %7986 = vmatpush1.bf16.msra.mxu0 %v7882
    %7987 = vmatprep.subr.bf16.mxu0 0
    %7988 = vmatpush1.bf16.msra.mxu0 %v7883
    %7989 = vmatprep.subr.bf16.mxu0 0
    %7990 = vmatpush1.bf16.msra.mxu0 %v7884
    %7991 = vmatprep.subr.bf16.mxu0 0
    %7992 = vmatpush1.bf16.msra.mxu0 %v7885
    %7993 = vmatprep.subr.bf16.mxu0 0
    %7994 = vmatpush1.bf16.msra.mxu0 %v7886
    %7995 = vmatprep.subr.bf16.mxu0 0
    %7996 = vmatpush1.bf16.msra.mxu0 %v7887
    %7997 = vmatprep.subr.bf16.mxu0 0
    %7998 = vmatpush1.bf16.msra.mxu0 %v7888
    %7999 = vmatprep.subr.bf16.mxu0 0
    %8000 = vmatpush1.bf16.msra.mxu0 %v7889
    %8001 = vmatprep.subr.bf16.mxu0 0
    %8002 = vmatpush1.bf16.msra.mxu0 %v7890
    %8003 = vmatprep.subr.bf16.mxu0 0
    %8004 = vmatpush1.bf16.msra.mxu0 %v7891
    %8005 = vmatprep.subr.bf16.mxu0 0
    %8006 = vmatpush1.bf16.msra.mxu0 %v7892
    %8007 = vmatprep.mubr.bf16.mxu0 %v7737
    %8008 = vmatmul.mubr.bf16.gmra.mrb[0].mxu0 %v7736
    %v8009 = vpop.f32.mrb[0].mxu0
    %v8010 = vadd.f32 %v7969, %v8009
    %v8011 = vpop.f32.mrb[0].mxu0
    %v8012 = vpop.f32.mrb[0].mxu0
    %v8013 = vadd.f32 %v7972, %v8012
    %v8014 = vpop.f32.mrb[0].mxu0
    %8015 = vdwg.mxu0
    %v8017 = vcombine.high %v7840, %v7840
    %v8019 = vunpack.c.l.s4 1966171168
    %v8020 = vunpack.c.0.s8 %v8019
    %v8021 = vlaneseq
    %v8022 = vshrl.u32 %v8021, 7
    %v8023 = vsub.s32 %v8020, %v8022
    %v8024 = vrot.slane %v7840, %v8023
    %v8026 = vunpack.c.l.s4 1966171168
    %v8027 = vunpack.c.0.s8 %v8026
    %v8028 = vlaneseq
    %v8029 = vshrl.u32 %v8028, 7
    %v8030 = vsub.s32 %v8027, %v8029
    %v8031 = vrot.slane %v8017, %v8030
    %v8032 = vcombine.high %v8024, %v8024
    %v8033 = vcombine.high %v8031, %v8031
    %v8035 = vunpack.c.l.s4 1966171168
    %v8036 = vunpack.c.0.s8 %v8035
    %v8037 = vlaneseq
    %v8038 = vshrl.u32 %v8037, 7
    %v8039 = vsub.s32 %v8036, %v8038
    %v8040 = vrot.slane %v8024, %v8039
    %v8042 = vunpack.c.l.s4 1966171168
    %v8043 = vunpack.c.0.s8 %v8042
    %v8044 = vlaneseq
    %v8045 = vshrl.u32 %v8044, 7
    %v8046 = vsub.s32 %v8043, %v8045
    %v8047 = vrot.slane %v8031, %v8046
    %v8049 = vunpack.c.l.s4 1966171168
    %v8050 = vunpack.c.0.s8 %v8049
    %v8051 = vlaneseq
    %v8052 = vshrl.u32 %v8051, 7
    %v8053 = vsub.s32 %v8050, %v8052
    %v8054 = vrot.slane %v8032, %v8053
    %v8056 = vunpack.c.l.s4 1966171168
    %v8057 = vunpack.c.0.s8 %v8056
    %v8058 = vlaneseq
    %v8059 = vshrl.u32 %v8058, 7
    %v8060 = vsub.s32 %v8057, %v8059
    %v8061 = vrot.slane %v8033, %v8060
    %v8062 = vcombine.high %v8040, %v8040
    %v8063 = vcombine.high %v8047, %v8047
    %v8064 = vcombine.high %v8054, %v8054
    %v8065 = vcombine.high %v8061, %v8061
    %v8066 = vlaneseq
    %v8067 = vshrl.u32 %v8066, 7
    %v8068 = vsub.s32 0, %v8067
    %v8069 = vrot.slane %v8040, %v8068
    %v8070 = vlaneseq
    %v8071 = vshrl.u32 %v8070, 7
    %v8072 = vsub.s32 0, %v8071
    %v8073 = vrot.slane %v8054, %v8072
    %v8074 = vlaneseq
    %v8075 = vshrl.u32 %v8074, 7
    %v8076 = vsub.s32 0, %v8075
    %v8077 = vrot.slane %v8062, %v8076
    %v8078 = vlaneseq
    %v8079 = vshrl.u32 %v8078, 7
    %v8080 = vsub.s32 0, %v8079
    %v8081 = vrot.slane %v8064, %v8080
    %v8082 = vlaneseq
    %v8083 = vshrl.u32 %v8082, 7
    %v8084 = vsub.s32 0, %v8083
    %v8085 = vrot.slane %v8047, %v8084
    %v8086 = vlaneseq
    %v8087 = vshrl.u32 %v8086, 7
    %v8088 = vsub.s32 0, %v8087
    %v8089 = vrot.slane %v8061, %v8088
    %v8090 = vlaneseq
    %v8091 = vshrl.u32 %v8090, 7
    %v8092 = vsub.s32 0, %v8091
    %v8093 = vrot.slane %v8063, %v8092
    %v8094 = vlaneseq
    %v8095 = vshrl.u32 %v8094, 7
    %v8096 = vsub.s32 0, %v8095
    %v8097 = vrot.slane %v8065, %v8096
    %v8106 = vadd.f32 %v8069, %v8010
    %v8107 = vadd.f32 %v8069, %v8013
    %v8108 = vadd.f32 %v8073, %v8010
    %v8109 = vadd.f32 %v8073, %v8013
    %v8110 = vadd.f32 %v8077, %v8010
    %v8111 = vadd.f32 %v8077, %v8013
    %v8112 = vadd.f32 %v8081, %v8010
    %v8113 = vadd.f32 %v8081, %v8013
    %v8114 = vadd.f32 %v8085, %v8010
    %v8115 = vadd.f32 %v8085, %v8013
    %v8116 = vadd.f32 %v8089, %v8010
    %v8117 = vadd.f32 %v8089, %v8013
    %v8118 = vadd.f32 %v8093, %v8010
    %v8119 = vadd.f32 %v8093, %v8013
    %v8120 = vadd.f32 %v8097, %v8010
    %v8121 = vadd.f32 %v8097, %v8013
    %v8122 = vld [vmem:[#allocation16] sm:$0x1]
    %v8124 = vlaneseq
    %v8125 = vshrl.u32 %v8124, 7
    %v8126 = vsub.s32 0, %v8125
    %v8127 = vrot.slane %v8122, %v8126
    %v8129 = vadd.f32 %v8106, %v8127
    %v8130 = vadd.f32 %v8107, %v8127
    %v8131 = vadd.f32 %v8108, %v8127
    %v8132 = vadd.f32 %v8109, %v8127
    %v8133 = vadd.f32 %v8110, %v8127
    %v8134 = vadd.f32 %v8111, %v8127
    %v8135 = vadd.f32 %v8112, %v8127
    %v8136 = vadd.f32 %v8113, %v8127
    %v8137 = vadd.f32 %v8114, %v8127
    %v8138 = vadd.f32 %v8115, %v8127
    %v8139 = vadd.f32 %v8116, %v8127
    %v8140 = vadd.f32 %v8117, %v8127
    %v8141 = vadd.f32 %v8118, %v8127
    %v8142 = vadd.f32 %v8119, %v8127
    %v8143 = vadd.f32 %v8120, %v8127
    %v8144 = vadd.f32 %v8121, %v8127
    %v8145 = vmax.f32 %v8129, 0.0
    %v8146 = vmax.f32 %v8130, 0.0
    %v8147 = vmax.f32 %v8131, 0.0
    %v8148 = vmax.f32 %v8132, 0.0
    %v8149 = vmax.f32 %v8133, 0.0
    %v8150 = vmax.f32 %v8134, 0.0
    %v8151 = vmax.f32 %v8135, 0.0
    %v8152 = vmax.f32 %v8136, 0.0
    %v8153 = vmax.f32 %v8137, 0.0
    %v8154 = vmax.f32 %v8138, 0.0
    %v8155 = vmax.f32 %v8139, 0.0
    %v8156 = vmax.f32 %v8140, 0.0
    %v8157 = vmax.f32 %v8141, 0.0
    %v8158 = vmax.f32 %v8142, 0.0
    %v8159 = vmax.f32 %v8143, 0.0
    %v8160 = vmax.f32 %v8144, 0.0
    %v8161 = vld [vmem:[%s10] sm:$0xff]
    %v8162 = vld [vmem:[%s10 + $0x8] sm:$0xff]
    %v8163 = vld [vmem:[%s10 + $0x10] sm:$0xff]
    %v8164 = vld [vmem:[%s10 + $0x18] sm:$0xff]
    %v8165 = vld [vmem:[%s10 + $0x20] sm:$0xff]
    %v8166 = vld [vmem:[%s10 + $0x28] sm:$0xff]
    %v8167 = vld [vmem:[%s10 + $0x30] sm:$0xff]
    %v8168 = vld [vmem:[%s10 + $0x38] sm:$0xff]
    %v8169 = vld [vmem:[%s10 + $0x40] sm:$0xff]
    %v8170 = vld [vmem:[%s10 + $0x48] sm:$0xff]
    %v8171 = vld [vmem:[%s10 + $0x50] sm:$0xff]
    %v8172 = vld [vmem:[%s10 + $0x58] sm:$0xff]
    %v8173 = vld [vmem:[%s10 + $0x60] sm:$0xff]
    %v8174 = vld [vmem:[%s10 + $0x68] sm:$0xff]
    %v8175 = vld [vmem:[%s10 + $0x70] sm:$0xff]
    %v8176 = vld [vmem:[%s10 + $0x78] sm:$0xff]
    %v8177 = vld [vmem:[#allocation7] sm:$0x1]
    %v8179 = vlaneseq
    %v8180 = vshrl.u32 %v8179, 7
    %v8181 = vsub.s32 0, %v8180
    %v8182 = vrot.slane %v8177, %v8181
    %8184 = vmatprep.subr.mxu0 0.0
    %8185 = vmatpush1.msra.mxu0 %v8161
    %8186 = vmatprep.subr.mxu0 0.0
    %8187 = vmatpush1.msra.mxu0 %v8162
    %8188 = vmatprep.subr.mxu0 0.0
    %8189 = vmatpush1.msra.mxu0 %v8163
    %8190 = vmatprep.subr.mxu0 0.0
    %8191 = vmatpush1.msra.mxu0 %v8164
    %8192 = vmatprep.subr.mxu0 0.0
    %8193 = vmatpush1.msra.mxu0 %v8165
    %8194 = vmatprep.subr.mxu0 0.0
    %8195 = vmatpush1.msra.mxu0 %v8166
    %8196 = vmatprep.subr.mxu0 0.0
    %8197 = vmatpush1.msra.mxu0 %v8167
    %8198 = vmatprep.subr.mxu0 0.0
    %8199 = vmatpush1.msra.mxu0 %v8168
    %8200 = vmatprep.subr.mxu0 0.0
    %8201 = vmatpush1.msra.mxu0 %v8169
    %8202 = vmatprep.subr.mxu0 0.0
    %8203 = vmatpush1.msra.mxu0 %v8170
    %8204 = vmatprep.subr.mxu0 0.0
    %8205 = vmatpush1.msra.mxu0 %v8171
    %8206 = vmatprep.subr.mxu0 0.0
    %8207 = vmatpush1.msra.mxu0 %v8172
    %8208 = vmatprep.subr.mxu0 0.0
    %8209 = vmatpush1.msra.mxu0 %v8173
    %8210 = vmatprep.subr.mxu0 0.0
    %8211 = vmatpush1.msra.mxu0 %v8174
    %8212 = vmatprep.subr.mxu0 0.0
    %8213 = vmatpush1.msra.mxu0 %v8175
    %8214 = vmatprep.subr.mxu0 0.0
    %8215 = vmatpush1.msra.mxu0 %v8176
    %8216 = vmatprep.subr.mxu0 0.0
    %8217 = vmatpush1.msra.mxu0 0.0
    %8218 = vmatprep.subr.mxu0 0.0
    %8219 = vmatpush1.msra.mxu0 0.0
    %8220 = vmatprep.subr.mxu0 0.0
    %8221 = vmatpush1.msra.mxu0 0.0
    %8222 = vmatprep.subr.mxu0 0.0
    %8223 = vmatpush1.msra.mxu0 0.0
    %8224 = vmatprep.subr.mxu0 0.0
    %8225 = vmatpush1.msra.mxu0 0.0
    %8226 = vmatprep.subr.mxu0 0.0
    %8227 = vmatpush1.msra.mxu0 0.0
    %8228 = vmatprep.subr.mxu0 0.0
    %8229 = vmatpush1.msra.mxu0 0.0
    %8230 = vmatprep.subr.mxu0 0.0
    %8231 = vmatpush1.msra.mxu0 0.0
    %8232 = vmatprep.subr.mxu0 0.0
    %8233 = vmatpush1.msra.mxu0 0.0
    %8234 = vmatprep.subr.mxu0 0.0
    %8235 = vmatpush1.msra.mxu0 0.0
    %8236 = vmatprep.subr.mxu0 0.0
    %8237 = vmatpush1.msra.mxu0 0.0
    %8238 = vmatprep.subr.mxu0 0.0
    %8239 = vmatpush1.msra.mxu0 0.0
    %8240 = vmatprep.subr.mxu0 0.0
    %8241 = vmatpush1.msra.mxu0 0.0
    %8242 = vmatprep.subr.mxu0 0.0
    %8243 = vmatpush1.msra.mxu0 0.0
    %8244 = vmatprep.subr.mxu0 0.0
    %8245 = vmatpush1.msra.mxu0 0.0
    %8246 = vmatprep.subr.mxu0 0.0
    %8247 = vmatpush1.msra.mxu0 0.0
    %8248 = vmatprep.mubr.f32.mxu0 0.0
    %8249 = vmatmul.mubr.f32.gmra.mrb[0].mxu0 %v8145
    %v8250 = vpop.f32.mrb[0].mxu0
    %v8251 = vadd.f32 %v8182, %v8250
    %v8252 = vpop.f32.mrb[0].mxu0
    %8253 = vmatprep.mubr.f32.mxu0 0.0
    %8254 = vmatmul.mubr.f32.gmra.mrb[0].mxu0 %v8146
    %v8255 = vpop.f32.mrb[0].mxu0
    %v8256 = vadd.f32 %v8182, %v8255
    %v8257 = vpop.f32.mrb[0].mxu0
    %8258 = vmatprep.mubr.f32.mxu0 0.0
    %8259 = vmatmul.mubr.f32.gmra.mrb[0].mxu0 %v8147
    %v8260 = vpop.f32.mrb[0].mxu0
    %v8261 = vadd.f32 %v8182, %v8260
    %v8262 = vpop.f32.mrb[0].mxu0
    %8263 = vmatprep.mubr.f32.mxu0 0.0
    %8264 = vmatmul.mubr.f32.gmra.mrb[0].mxu0 %v8148
    %v8265 = vpop.f32.mrb[0].mxu0
    %v8266 = vadd.f32 %v8182, %v8265
    %v8267 = vpop.f32.mrb[0].mxu0
    %8268 = vmatprep.mubr.f32.mxu0 0.0
    %8269 = vmatmul.mubr.f32.gmra.mrb[0].mxu0 %v8149
    %v8270 = vpop.f32.mrb[0].mxu0
    %v8271 = vadd.f32 %v8182, %v8270
    %v8272 = vpop.f32.mrb[0].mxu0
    %8273 = vmatprep.mubr.f32.mxu0 0.0
    %8274 = vmatmul.mubr.f32.gmra.mrb[0].mxu0 %v8150
    %v8275 = vpop.f32.mrb[0].mxu0
    %v8276 = vadd.f32 %v8182, %v8275
    %v8277 = vpop.f32.mrb[0].mxu0
    %8278 = vmatprep.mubr.f32.mxu0 0.0
    %8279 = vmatmul.mubr.f32.gmra.mrb[0].mxu0 %v8151
    %v8280 = vpop.f32.mrb[0].mxu0
    %v8281 = vadd.f32 %v8182, %v8280
    %v8282 = vpop.f32.mrb[0].mxu0
    %8283 = vmatprep.mubr.f32.mxu0 0.0
    %8284 = vmatmul.mubr.f32.gmra.mrb[0].mxu0 %v8152
    %v8285 = vpop.f32.mrb[0].mxu0
    %v8286 = vadd.f32 %v8182, %v8285
    %v8287 = vpop.f32.mrb[0].mxu0
    %8288 = vmatprep.mubr.f32.mxu0 0.0
    %8289 = vmatmul.mubr.f32.gmra.mrb[0].mxu0 %v8153
    %v8290 = vpop.f32.mrb[0].mxu0
    %v8291 = vadd.f32 %v8182, %v8290
    %v8292 = vpop.f32.mrb[0].mxu0
    %8293 = vmatprep.mubr.f32.mxu0 0.0
    %8294 = vmatmul.mubr.f32.gmra.mrb[0].mxu0 %v8154
    %v8295 = vpop.f32.mrb[0].mxu0
    %v8296 = vadd.f32 %v8182, %v8295
    %v8297 = vpop.f32.mrb[0].mxu0
    %8298 = vmatprep.mubr.f32.mxu0 0.0
    %8299 = vmatmul.mubr.f32.gmra.mrb[0].mxu0 %v8155
    %v8300 = vpop.f32.mrb[0].mxu0
    %v8301 = vadd.f32 %v8182, %v8300
    %v8302 = vpop.f32.mrb[0].mxu0
    %8303 = vmatprep.mubr.f32.mxu0 0.0
    %8304 = vmatmul.mubr.f32.gmra.mrb[0].mxu0 %v8156
    %v8305 = vpop.f32.mrb[0].mxu0
    %v8306 = vadd.f32 %v8182, %v8305
    %v8307 = vpop.f32.mrb[0].mxu0
    %8308 = vmatprep.mubr.f32.mxu0 0.0
    %8309 = vmatmul.mubr.f32.gmra.mrb[0].mxu0 %v8157
    %v8310 = vpop.f32.mrb[0].mxu0
    %v8311 = vadd.f32 %v8182, %v8310
    %v8312 = vpop.f32.mrb[0].mxu0
    %8313 = vmatprep.mubr.f32.mxu0 0.0
    %8314 = vmatmul.mubr.f32.gmra.mrb[0].mxu0 %v8158
    %v8315 = vpop.f32.mrb[0].mxu0
    %v8316 = vadd.f32 %v8182, %v8315
    %v8317 = vpop.f32.mrb[0].mxu0
    %8318 = vmatprep.mubr.f32.mxu0 0.0
    %8319 = vmatmul.mubr.f32.gmra.mrb[0].mxu0 %v8159
    %v8320 = vpop.f32.mrb[0].mxu0
    %v8321 = vadd.f32 %v8182, %v8320
    %v8322 = vpop.f32.mrb[0].mxu0
    %8323 = vmatprep.mubr.f32.mxu0 0.0
    %8324 = vmatmul.mubr.f32.gmra.mrb[0].mxu0 %v8160
    %v8325 = vpop.f32.mrb[0].mxu0
    %v8326 = vadd.f32 %v8182, %v8325
    %v8327 = vpop.f32.mrb[0].mxu0
    %8328 = vdwg.mxu0
    %v8329 = vxor.u32 %v8251, 2147483648
    %v8330 = vxor.u32 %v8256, 2147483648
    %v8331 = vxor.u32 %v8261, 2147483648
    %v8332 = vxor.u32 %v8266, 2147483648
    %v8333 = vxor.u32 %v8271, 2147483648
    %v8334 = vxor.u32 %v8276, 2147483648
    %v8335 = vxor.u32 %v8281, 2147483648
    %v8336 = vxor.u32 %v8286, 2147483648
    %v8337 = vxor.u32 %v8291, 2147483648
    %v8338 = vxor.u32 %v8296, 2147483648
    %v8339 = vxor.u32 %v8301, 2147483648
    %v8340 = vxor.u32 %v8306, 2147483648
    %v8341 = vxor.u32 %v8311, 2147483648
    %v8342 = vxor.u32 %v8316, 2147483648
    %v8343 = vxor.u32 %v8321, 2147483648
    %v8344 = vxor.u32 %v8326, 2147483648
    %v8345 = vmul.f32 %v8329, 1.442695
    %v8346 = vpow.pop %v8345
    %v8347 = vmul.f32 %v8330, 1.442695
    %v8348 = vpow.pop %v8347
    %v8349 = vmul.f32 %v8331, 1.442695
    %v8350 = vpow.pop %v8349
    %v8351 = vmul.f32 %v8332, 1.442695
    %v8352 = vpow.pop %v8351
    %v8353 = vmul.f32 %v8333, 1.442695
    %v8354 = vpow.pop %v8353
    %v8355 = vmul.f32 %v8334, 1.442695
    %v8356 = vpow.pop %v8355
    %v8357 = vmul.f32 %v8335, 1.442695
    %v8358 = vpow.pop %v8357
    %v8359 = vmul.f32 %v8336, 1.442695
    %v8360 = vpow.pop %v8359
    %v8361 = vmul.f32 %v8337, 1.442695
    %v8362 = vpow.pop %v8361
    %v8363 = vmul.f32 %v8338, 1.442695
    %v8364 = vpow.pop %v8363
    %v8365 = vmul.f32 %v8339, 1.442695
    %v8366 = vpow.pop %v8365
    %v8367 = vmul.f32 %v8340, 1.442695
    %v8368 = vpow.pop %v8367
    %v8369 = vmul.f32 %v8341, 1.442695
    %v8370 = vpow.pop %v8369
    %v8371 = vmul.f32 %v8342, 1.442695
    %v8372 = vpow.pop %v8371
    %v8373 = vmul.f32 %v8343, 1.442695
    %v8374 = vpow.pop %v8373
    %v8375 = vmul.f32 %v8344, 1.442695
    %v8376 = vpow.pop %v8375
    %v8377 = vadd.f32 %v8346, 1.0
    %v8378 = vadd.f32 %v8348, 1.0
    %v8379 = vadd.f32 %v8350, 1.0
    %v8380 = vadd.f32 %v8352, 1.0
    %v8381 = vadd.f32 %v8354, 1.0
    %v8382 = vadd.f32 %v8356, 1.0
    %v8383 = vadd.f32 %v8358, 1.0
    %v8384 = vadd.f32 %v8360, 1.0
    %v8385 = vadd.f32 %v8362, 1.0
    %v8386 = vadd.f32 %v8364, 1.0
    %v8387 = vadd.f32 %v8366, 1.0
    %v8388 = vadd.f32 %v8368, 1.0
    %v8389 = vadd.f32 %v8370, 1.0
    %v8390 = vadd.f32 %v8372, 1.0
    %v8391 = vadd.f32 %v8374, 1.0
    %v8392 = vadd.f32 %v8376, 1.0
    %v8393 = vrcp.pop %v8377
    %v8394 = vmul.f32 1.0, %v8393
    %v8395 = vrcp.pop %v8378
    %v8396 = vmul.f32 1.0, %v8395
    %v8397 = vrcp.pop %v8379
    %v8398 = vmul.f32 1.0, %v8397
    %v8399 = vrcp.pop %v8380
    %v8400 = vmul.f32 1.0, %v8399
    %v8401 = vrcp.pop %v8381
    %v8402 = vmul.f32 1.0, %v8401
    %v8403 = vrcp.pop %v8382
    %v8404 = vmul.f32 1.0, %v8403
    %v8405 = vrcp.pop %v8383
    %v8406 = vmul.f32 1.0, %v8405
    %v8407 = vrcp.pop %v8384
    %v8408 = vmul.f32 1.0, %v8407
    %v8409 = vrcp.pop %v8385
    %v8410 = vmul.f32 1.0, %v8409
    %v8411 = vrcp.pop %v8386
    %v8412 = vmul.f32 1.0, %v8411
    %v8413 = vrcp.pop %v8387
    %v8414 = vmul.f32 1.0, %v8413
    %v8415 = vrcp.pop %v8388
    %v8416 = vmul.f32 1.0, %v8415
    %v8417 = vrcp.pop %v8389
    %v8418 = vmul.f32 1.0, %v8417
    %v8419 = vrcp.pop %v8390
    %v8420 = vmul.f32 1.0, %v8419
    %v8421 = vrcp.pop %v8391
    %v8422 = vmul.f32 1.0, %v8421
    %v8423 = vrcp.pop %v8392
    %v8424 = vmul.f32 1.0, %v8423
    %8441 = vset.pattern.permute.xlu0 0
    %8442 = vperm.xlu0 %8441, %v8394
    %v8443 = vpop.permute.xlu0 %8442
    %8444 = vset.pattern.permute.xlu0 0
    %8445 = vperm.xlu0 %8444, %v8396
    %v8446 = vpop.permute.xlu0 %8445
    %8447 = vset.pattern.permute.xlu0 0
    %8448 = vperm.xlu0 %8447, %v8398
    %v8449 = vpop.permute.xlu0 %8448
    %8450 = vset.pattern.permute.xlu0 0
    %8451 = vperm.xlu0 %8450, %v8400
    %v8452 = vpop.permute.xlu0 %8451
    %8453 = vset.pattern.permute.xlu0 0
    %8454 = vperm.xlu0 %8453, %v8402
    %v8455 = vpop.permute.xlu0 %8454
    %8456 = vset.pattern.permute.xlu0 0
    %8457 = vperm.xlu0 %8456, %v8404
    %v8458 = vpop.permute.xlu0 %8457
    %8459 = vset.pattern.permute.xlu0 0
    %8460 = vperm.xlu0 %8459, %v8406
    %v8461 = vpop.permute.xlu0 %8460
    %8462 = vset.pattern.permute.xlu0 0
    %8463 = vperm.xlu0 %8462, %v8408
    %v8464 = vpop.permute.xlu0 %8463
    %8465 = vset.pattern.permute.xlu0 0
    %8466 = vperm.xlu0 %8465, %v8410
    %v8467 = vpop.permute.xlu0 %8466
    %8468 = vset.pattern.permute.xlu0 0
    %8469 = vperm.xlu0 %8468, %v8412
    %v8470 = vpop.permute.xlu0 %8469
    %8471 = vset.pattern.permute.xlu0 0
    %8472 = vperm.xlu0 %8471, %v8414
    %v8473 = vpop.permute.xlu0 %8472
    %8474 = vset.pattern.permute.xlu0 0
    %8475 = vperm.xlu0 %8474, %v8416
    %v8476 = vpop.permute.xlu0 %8475
    %8477 = vset.pattern.permute.xlu0 0
    %8478 = vperm.xlu0 %8477, %v8418
    %v8479 = vpop.permute.xlu0 %8478
    %8480 = vset.pattern.permute.xlu0 0
    %8481 = vperm.xlu0 %8480, %v8420
    %v8482 = vpop.permute.xlu0 %8481
    %8483 = vset.pattern.permute.xlu0 0
    %8484 = vperm.xlu0 %8483, %v8422
    %v8485 = vpop.permute.xlu0 %8484
    %8486 = vset.pattern.permute.xlu0 0
    %8487 = vperm.xlu0 %8486, %v8424
    %v8488 = vpop.permute.xlu0 %8487
    %v8489 = vlaneseq
    %v8490 = vand.u32 %v8489, 127
    %v8491 = vlaneseq
    %v8492 = vshrl.u32 %v8491, 7
    %v8493 = vsub.s32 %v8490, %v8492
    %v8494 = vrot.slane %v8443, %v8493
    %v8495 = vadd.s32 %v8490, 4294967288
    %v8496 = vlaneseq
    %v8497 = vshrl.u32 %v8496, 7
    %v8498 = vsub.s32 %v8495, %v8497
    %v8499 = vrot.slane %v8446, %v8498
    %vm8500 = vcmask 130112
    %v8501 = vsel %vm8500, %v8499, %v8494
    %v8502 = vlaneseq
    %v8503 = vshrl.u32 %v8502, 7
    %v8504 = vsub.s32 %v8490, %v8503
    %v8505 = vrot.slane %v8449, %v8504
    %v8506 = vlaneseq
    %v8507 = vshrl.u32 %v8506, 7
    %v8508 = vsub.s32 %v8495, %v8507
    %v8509 = vrot.slane %v8452, %v8508
    %v8510 = vsel %vm8500, %v8509, %v8505
    %v8511 = vlaneseq
    %v8512 = vshrl.u32 %v8511, 7
    %v8513 = vsub.s32 %v8490, %v8512
    %v8514 = vrot.slane %v8455, %v8513
    %v8515 = vlaneseq
    %v8516 = vshrl.u32 %v8515, 7
    %v8517 = vsub.s32 %v8495, %v8516
    %v8518 = vrot.slane %v8458, %v8517
    %v8519 = vsel %vm8500, %v8518, %v8514
    %v8520 = vlaneseq
    %v8521 = vshrl.u32 %v8520, 7
    %v8522 = vsub.s32 %v8490, %v8521
    %v8523 = vrot.slane %v8461, %v8522
    %v8524 = vlaneseq
    %v8525 = vshrl.u32 %v8524, 7
    %v8526 = vsub.s32 %v8495, %v8525
    %v8527 = vrot.slane %v8464, %v8526
    %v8528 = vsel %vm8500, %v8527, %v8523
    %v8529 = vlaneseq
    %v8530 = vshrl.u32 %v8529, 7
    %v8531 = vsub.s32 %v8490, %v8530
    %v8532 = vrot.slane %v8467, %v8531
    %v8533 = vlaneseq
    %v8534 = vshrl.u32 %v8533, 7
    %v8535 = vsub.s32 %v8495, %v8534
    %v8536 = vrot.slane %v8470, %v8535
    %v8537 = vsel %vm8500, %v8536, %v8532
    %v8538 = vlaneseq
    %v8539 = vshrl.u32 %v8538, 7
    %v8540 = vsub.s32 %v8490, %v8539
    %v8541 = vrot.slane %v8473, %v8540
    %v8542 = vlaneseq
    %v8543 = vshrl.u32 %v8542, 7
    %v8544 = vsub.s32 %v8495, %v8543
    %v8545 = vrot.slane %v8476, %v8544
    %v8546 = vsel %vm8500, %v8545, %v8541
    %v8547 = vlaneseq
    %v8548 = vshrl.u32 %v8547, 7
    %v8549 = vsub.s32 %v8490, %v8548
    %v8550 = vrot.slane %v8479, %v8549
    %v8551 = vlaneseq
    %v8552 = vshrl.u32 %v8551, 7
    %v8553 = vsub.s32 %v8495, %v8552
    %v8554 = vrot.slane %v8482, %v8553
    %v8555 = vsel %vm8500, %v8554, %v8550
    %v8556 = vlaneseq
    %v8557 = vshrl.u32 %v8556, 7
    %v8558 = vsub.s32 %v8490, %v8557
    %v8559 = vrot.slane %v8485, %v8558
    %v8560 = vlaneseq
    %v8561 = vshrl.u32 %v8560, 7
    %v8562 = vsub.s32 %v8495, %v8561
    %v8563 = vrot.slane %v8488, %v8562
    %v8564 = vsel %vm8500, %v8563, %v8559
    %vm8565 = vcmask 1041409
    %v8566 = vsel %vm8565, %v8510, %v8501
    %vm8567 = vcmask 1042434
    %v8568 = vsel %vm8567, %v8519, %v8566
    %vm8569 = vcmask 1043459
    %v8570 = vsel %vm8569, %v8528, %v8568
    %vm8571 = vcmask 1044484
    %v8572 = vsel %vm8571, %v8537, %v8570
    %vm8573 = vcmask 1045509
    %v8574 = vsel %vm8573, %v8546, %v8572
    %vm8575 = vcmask 1046534
    %v8576 = vsel %vm8575, %v8555, %v8574
    %vm8577 = vcmask 1047559
    %v8578 = vsel %vm8577, %v8564, %v8576
    %vm8580 = vcmask 130048
    %v8581 = vsel %vm8580, %v8578, 0.0
    %8582 = vadd.xlane.f32.xlu0 %v8581
    %v8583 = vpop.xlane.xlu0 %8582
    %v8584 = vrcp.pop 16.0
    %v8585 = vmul.f32 %v8583, %v8584
    %v8588 = vunpack.c.l.s4 839922192
    %v8589 = vunpack.c.0.s8 %v8588
    %v8590 = vlaneseq
    %v8591 = vshrl.u32 %v8590, 7
    %v8592 = vsub.s32 %v8589, %v8591
    %v8593 = vrot.slane %v8585, %v8592
    %v8595 = vunpack.c.l.s4 1985246804
    %v8596 = vunpack.c.0.s8 %v8595
    %v8597 = vlaneseq
    %v8598 = vshrl.u32 %v8597, 7
    %v8599 = vsub.s32 %v8596, %v8598
    %v8600 = vrot.slane %v8585, %v8599
    %vm8603 = vcmask 3072
    %8604 = vst.msk [vmem:[%s12] sm:$0xf] %vm8603, %v8593
    %8605 = vst.msk [vmem:[%s12 + $0x4] sm:$0xf] %vm8603, %v8600
    // Predicated region
    $region66: #{tpu_custom_call.1} parent=1 // pred_check
      _
    $region67: #{tpu_custom_call.1} parent=1 // pred_check_branch
      %8607 = sbr.rel (0) target = $region69
    $region68: #{tpu_custom_call.1} parent=1 // pred_region
      _
    $region69: #{tpu_custom_call.1} parent=1 // pred_fallthru
      _
    // Predicated region
    $region70: #{tpu_custom_call.1} parent=1 // pred_check
      _
    $region71: #{tpu_custom_call.1} parent=1 // pred_check_branch
      %8609 = sbr.rel (0) target = $region73
    $region72: #{tpu_custom_call.1} parent=1 // pred_region
      _
    $region73: #{tpu_custom_call.1} parent=1 // pred_fallthru
      _
    %8610 = vsyncpa [#allocation9], 1
    %8611 = vsyncpa [#allocation11], 1
    %8612 = vsyncpa [#allocation14], 1
    %8613 = vsyncpa [#allocation17], 1
  %8614 = vsyncmov [#allocation6]
  %s8615 = vpop.sfrf %8614
  %p8616 = scmp.eq.s32.totalorder %s8615, 0
  %p8617 = pneg %p8616
  %8619 = shalt.err (%p8617)
  %s8620 = scalar_lea.sflag [#allocation6], 1
  %8621 = vsyncmov %s8620
  %s8622 = vpop.sfrf %8621
  %p8623 = scmp.eq.s32.totalorder %s8622, 0
  %p8624 = pneg %p8623
  %8626 = shalt.err (%p8624)
  %s8627 = scalar_lea.sflag [#allocation6], 2
  %8628 = vsyncmov %s8627
  %s8629 = vpop.sfrf %8628
  %p8630 = scmp.eq.s32.totalorder %s8629, 0
  %p8631 = pneg %p8630
  %8633 = shalt.err (%p8631)
  %s8634 = scalar_lea.sflag [#allocation6], 3
  %8635 = vsyncmov %s8634
  %s8636 = vpop.sfrf %8635
  %p8637 = scmp.eq.s32.totalorder %s8636, 0
  %p8638 = pneg %p8637
  %8640 = shalt.err (%p8638)

</llo_original>
